<compile_context>
chip_gen: v5e
topology: v5e:2x2
jax: 0.10.0
libtpu: 0.0.40
codegen_flags: <defaults>
</compile_context>

<pallas_src>
import functools
import math

import jax
import jax.numpy as jnp
from jax import lax
from jax.experimental import pallas as pl
from jax.experimental.pallas import tpu as pltpu

LN_EPS = 1e-5


# ---------------------------------------------------------------------------
# kernel bodies
# ---------------------------------------------------------------------------
def _compute(clip, xr, xcol, w_ref, a_ref, h_ref, g_ref, be_ref,
             wm_ref, bm_ref, wf_ref, bf_ref, y_ref, m_ref, ho_ref):
    """Shared math. xr: (TB, F) row view, xcol: (TB, F, 1) column view."""
    # y_pre = x @ (W + alpha*hebb), decomposed into one shared full-height MXU
    # matmul plus a VPU multiply + sublane reduction over F (the plastic weight
    # is never materialized).
    base = jnp.dot(xr, w_ref[...], preferred_element_type=jnp.float32)      # (TB, O)
    plastic = jnp.sum(h_ref[...] * a_ref[...] * xcol, axis=1)               # (TB, O)
    y_pre = base + plastic

    # LayerNorm over features (biased variance, eps inside rsqrt) + tanh.
    mean = jnp.mean(y_pre, axis=-1, keepdims=True)
    cent = y_pre - mean
    var = jnp.mean(cent * cent, axis=-1, keepdims=True)
    y = jnp.tanh(cent * lax.rsqrt(var + LN_EPS) * g_ref[...] + be_ref[...])  # (TB, O)

    # modulator: m = tanh(Linear(O -> 1)(y)); scalar bias lives in SMEM.
    m = jnp.tanh(jnp.sum(y * wm_ref[...], axis=-1, keepdims=True)
                 + bm_ref[0, 0])                                             # (TB, 1)

    # modfanout: eta = Linear(1 -> O)(m).
    eta = m * wf_ref[...] + bf_ref[...]                                      # (TB, O)

    # Hebbian update: hebb <- clamp(hebb + eta * outer(x, y), [-clip, clip]).
    # h_ref is re-read here (second streaming pass over the VMEM tile) instead
    # of keeping a full-tile value live across the LN/modulator phase.
    gy = (eta * y)[:, None, :]                                               # (TB, 1, O)
    ho_ref[...] = jnp.clip(h_ref[...] + gy * xcol, -clip, clip).astype(ho_ref.dtype)

    y_ref[...] = y.astype(y_ref.dtype)
    m_ref[...] = m.astype(m_ref.dtype)


def _kernel_fused(clip, col_mode,
                  xr_ref, w_ref, a_ref, h_ref, g_ref, be_ref,
                  wm_ref, bm_ref, wf_ref, bf_ref,
                  y_ref, m_ref, ho_ref):
    """x comes in only as the (TB, F) row view; the column view is rebuilt
    in-kernel (cheap) instead of DMA'ing a lane-padded (B, F, 1) HBM array."""
    xr = xr_ref[...]
    if col_mode == "bcast":
        xcol = xr[:, :, None]                        # (TB, F, 1)
    else:  # "swap": middle-dim insert (proven pattern) + minor-dims transpose
        xcol = jnp.swapaxes(xr[:, None, :], 1, 2)    # (TB, 1, F) -> (TB, F, 1)
    _compute(clip, xr, xcol, w_ref, a_ref, h_ref, g_ref, be_ref,
             wm_ref, bm_ref, wf_ref, bf_ref, y_ref, m_ref, ho_ref)


def _kernel_col_input(clip,
                      xr_ref, xc_ref, w_ref, a_ref, h_ref, g_ref, be_ref,
                      wm_ref, bm_ref, wf_ref, bf_ref,
                      y_ref, m_ref, ho_ref):
    """Compatibility fallback: column view of x is DMA'd in (extra HBM traffic,
    but a known-good lowering path)."""
    _compute(clip, xr_ref[...], xc_ref[...], w_ref, a_ref, h_ref, g_ref, be_ref,
             wm_ref, bm_ref, wf_ref, bf_ref, y_ref, m_ref, ho_ref)


# ---------------------------------------------------------------------------
# sizing helpers
# ---------------------------------------------------------------------------
def _vmem_limit_bytes():
    """Generation-aware VMEM budget (~56 MiB on v7x, ~112 MiB on v5e/v6e)."""
    try:
        cap = int(pltpu.get_tpu_info().vmem_capacity_bytes)
    except Exception:
        cap = 64 << 20  # conservative: v7x physical VMEM per TensorCore
    lim = min(cap - (8 << 20), cap * 7 // 8)
    return int(max(32 << 20, min(lim, 112 << 20)))


def _pick_block_batch(B, F, O, itemsize, vmem_limit, col_mode, requested=None):
    """Rows of hebb processed per grid step."""
    if requested is not None:
        tb = max(1, min(int(requested), B))
        if tb != B and tb % 8 != 0:
            tb = max(8, (tb // 8) * 8) if B >= 8 else B
        return min(tb, B)

    # Per-row VMEM across double-buffered tiles: hebb in + out (aliased in HBM,
    # still two VMEM buffer sets) + the x row tile; the fallback mode also
    # carries a lane-padded (tb, F, 1) column tile (F * 128 words per row).
    row_bytes = 4 * F * O * itemsize + 2 * F * 4
    if col_mode == "input":
        row_bytes += 2 * F * 128 * 4
    overhead = 2 * F * O * 4 + 2 * (O + 1) * 4 * 4 + (4 << 20)
    budget = max(vmem_limit - overhead, vmem_limit // 2)
    cap = (budget // row_bytes) // 8 * 8
    cap = int(max(8, min(cap, 4096)))

    if B < 8:
        return B  # block == full array dims, always legal
    # Prefer multiple-of-8 divisors of B (no ragged tail, true in-place hebb);
    # among those prefer >= 2 grid steps so "parallel" can use both v7x cores.
    divisors = [d for d in range(8, min(cap, B) + 1, 8) if B % d == 0]
    if divisors:
        multi = [d for d in divisors if B // d >= 2]
        return max(multi) if multi else max(divisors)
    if B <= cap:
        return B
    return cap  # ragged last block: Pallas masks the out-of-range rows


# ---------------------------------------------------------------------------
# pallas_call builder
# ---------------------------------------------------------------------------
def _make_call(col_mode, B, F, O, tb, clip, vmem_limit, hebb_dtype):
    n_steps = -(-B // tb)

    x_spec = pl.BlockSpec((tb, F), lambda i: (i, 0))
    const_fo = pl.BlockSpec((F, O), lambda i: (0, 0))
    hebb_spec = pl.BlockSpec((tb, F, O), lambda i: (i, 0, 0))
    row_o = pl.BlockSpec((1, O), lambda i: (0, 0))
    smem_scalar = pl.BlockSpec(memory_space=pltpu.MemorySpace.SMEM)

    tail_specs = [const_fo, const_fo, hebb_spec,        # weight, alpha, hebb
                  row_o, row_o,                         # ln gamma, ln beta
                  row_o, smem_scalar,                   # mod_w, mod_b (scalar)
                  row_o, row_o]                         # fan_w, fan_b

    if col_mode == "input":
        xc_spec = pl.BlockSpec((tb, F, 1), lambda i: (i, 0, 0))
        in_specs = [x_spec, xc_spec] + tail_specs
        kernel = functools.partial(_kernel_col_input, float(clip))
        hebb_arg_idx = 4
    else:
        in_specs = [x_spec] + tail_specs
        kernel = functools.partial(_kernel_fused, float(clip), col_mode)
        hebb_arg_idx = 3

    out_shape = (
        jax.ShapeDtypeStruct((B, O), jnp.float32),
        jax.ShapeDtypeStruct((B, 1), jnp.float32),
        jax.ShapeDtypeStruct((B, F, O), hebb_dtype),
    )
    out_specs = (
        pl.BlockSpec((tb, O), lambda i: (i, 0)),
        pl.BlockSpec((tb, 1), lambda i: (i, 0)),
        pl.BlockSpec((tb, F, O), lambda i: (i, 0, 0)),
    )

    pc = pl.pallas_call(
        kernel,
        out_shape=out_shape,
        grid=(n_steps,),
        in_specs=in_specs,
        out_specs=out_specs,
        input_output_aliases={hebb_arg_idx: 2},   # hebb updated in place
        compiler_params=pltpu.CompilerParams(
            dimension_semantics=("parallel",),
            vmem_limit_bytes=vmem_limit),
    )

    if col_mode == "input":
        def call_fn(x_row, x_col, w, a, hebb, g, be, wm, bm, wf, bf):
            return pc(x_row, x_col, w, a, hebb, g, be, wm, bm, wf, bf)
    else:
        def call_fn(x_row, w, a, hebb, g, be, wm, bm, wf, bf):
            return pc(x_row, w, a, hebb, g, be, wm, bm, wf, bf)

    # jit + donation so the hebb alias is honored end to end (no defensive copy).
    return jax.jit(call_fn, donate_argnums=(hebb_arg_idx,))


def modulated_plastic_dense(x, hebb, params, clip=2.0, block_batch=None):
    """Pallas implementation of ModulatedPlasticDense.forward.

    x:    (B, in_features)                  float32
    hebb: (B, in_features+1, out_features)  float32 (donated / updated in place:
          do not reuse the caller's hebb array after this call)
    returns (y: (B, O), m: (B, 1), hebb_new: (B, F, O))
    """
    B, in_f = x.shape
    F, O = params["weight"].shape
    assert F == in_f + 1
    assert hebb.shape == (B, F, O)

    vmem_limit = _vmem_limit_bytes()
    itemsize = jnp.dtype(hebb.dtype).itemsize

    # bias column appended on the host (tiny (B, F) array)
    x_pad = jnp.concatenate([x, jnp.ones((B, 1), x.dtype)], axis=-1)

    base_args = (params["weight"], params["alpha"], hebb,
                 params["ln_gamma"], params["ln_beta"],
                 params["mod_w"], params["mod_b"],
                 params["fan_w"], params["fan_b"])

    last_err = None
    for col_mode in ("bcast", "swap", "input"):
        try:
            tb = _pick_block_batch(B, F, O, itemsize, vmem_limit, col_mode,
                                   block_batch)
            fn = _make_call(col_mode, B, F, O, tb, clip, vmem_limit, hebb.dtype)
            if col_mode == "input":
                args = (x_pad, x_pad[:, :, None]) + base_args
            else:
                args = (x_pad,) + base_args
            out = fn(*args)
            jax.block_until_ready(out)
            return out
        except Exception as err:  # Mosaic lowering NotImplemented etc. -> next mode
            last_err = err
    raise last_err


# ---------------------------------------------------------------------------
# parameters / reference
# ---------------------------------------------------------------------------
def init_params(key, in_features, out_features):
    """Deterministic synthetic init mirroring the module's parameter shapes."""
    F, O = in_features + 1, out_features
    k = jax.random.split(key, 6)
    bound_mod = 1.0 / math.sqrt(out_features)   # nn.Linear(O, 1) default bound
    bound_fan = 1.0                             # nn.Linear(1, O) default bound
    return dict(
        weight=0.001 * jax.random.normal(k[0], (F, O), jnp.float32),
        alpha=0.001 * jax.random.normal(k[1], (F, O), jnp.float32),
        ln_gamma=jnp.ones((1, O), jnp.float32),
        ln_beta=jnp.zeros((1, O), jnp.float32),
        mod_w=jax.random.uniform(k[2], (1, O), jnp.float32, -bound_mod, bound_mod),
        mod_b=jax.random.uniform(k[3], (1, 1), jnp.float32, -bound_mod, bound_mod),
        fan_w=jax.random.uniform(k[4], (1, O), jnp.float32, -bound_fan, bound_fan),
        fan_b=jax.random.uniform(k[5], (1, O), jnp.float32, -bound_fan, bound_fan),
    )


def reference(x, hebb, params, clip=2.0):
    """Pure-JAX reference reproducing the PyTorch forward semantics."""
    B = x.shape[0]
    xp = jnp.concatenate([x, jnp.ones((B, 1), x.dtype)], axis=-1)           # (B, F)
    weff = params["weight"][None] + params["alpha"][None] * hebb            # (B, F, O)
    y_pre = jnp.einsum("bf,bfo->bo", xp, weff)                              # (B, O)
    mean = y_pre.mean(-1, keepdims=True)
    var = ((y_pre - mean) ** 2).mean(-1, keepdims=True)
    y = jnp.tanh((y_pre - mean) / jnp.sqrt(var + LN_EPS)
                 * params["ln_gamma"] + params["ln_beta"])
    m = jnp.tanh(jnp.sum(y * params["mod_w"], -1, keepdims=True) + params["mod_b"])
    eta = m * params["fan_w"] + params["fan_b"]                             # (B, O)
    delta = eta[:, None, :] * (xp[:, :, None] * y[:, None, :])              # (B, F, O)
    hebb_new = jnp.clip(hebb + delta, -clip, clip)
    return y, m, hebb_new


if __name__ == "__main__":
    B, IN_FEATURES, OUT_FEATURES = 32, 31, 128   # padded in-dim F = 32

    key = jax.random.PRNGKey(0)
    kx, kh, kp = jax.random.split(key, 3)
    x = jax.random.normal(kx, (B, IN_FEATURES), jnp.float32)
    hebb = 0.01 * jax.random.normal(kh, (B, IN_FEATURES + 1, OUT_FEATURES),
                                    jnp.float32)
    params = init_params(kp, IN_FEATURES, OUT_FEATURES)

    # Reference FIRST: the kernel donates/aliases the hebb buffer.
    y_r, m_r, h_r = jax.block_until_ready(reference(x, hebb, params))

    y, m, hebb_new = jax.block_until_ready(
        modulated_plastic_dense(x, hebb, params))   # auto tb=16 -> grid=(2,)

    assert y.shape == (B, OUT_FEATURES) and m.shape == (B, 1)
    assert hebb_new.shape == (B, IN_FEATURES + 1, OUT_FEATURES)
    assert jnp.allclose(y, y_r, atol=1e-4, rtol=1e-4)
    assert jnp.allclose(m, m_r, atol=1e-4, rtol=1e-4)
    assert jnp.allclose(hebb_new, h_r, atol=1e-4, rtol=1e-4)

    print("KERNEL_OK")
</pallas_src>

<mosaic_0001>
module attributes {stable_mosaic.version = 11 : i64} {
  func.func @_kernel_fused(%arg0: i32, %arg1: memref<16x32xf32, #tpu.memory_space<vmem>>, %arg2: memref<32x128xf32, #tpu.memory_space<vmem>>, %arg3: memref<32x128xf32, #tpu.memory_space<vmem>>, %arg4: memref<16x32x128xf32, #tpu.memory_space<vmem>>, %arg5: memref<1x128xf32, #tpu.memory_space<vmem>>, %arg6: memref<1x128xf32, #tpu.memory_space<vmem>>, %arg7: memref<1x128xf32, #tpu.memory_space<vmem>>, %arg8: memref<1x1xf32, #tpu.memory_space<smem>>, %arg9: memref<1x128xf32, #tpu.memory_space<vmem>>, %arg10: memref<1x128xf32, #tpu.memory_space<vmem>>, %arg11: memref<16x128xf32, #tpu.memory_space<vmem>>, %arg12: memref<16x1xf32, #tpu.memory_space<vmem>>, %arg13: memref<16x32x128xf32, #tpu.memory_space<vmem>>) attributes {dimension_semantics = [#tpu.dimension_semantics<parallel>], iteration_bounds = array<i64: 2>, scalar_prefetch = 0 : i64, scratch_operands = 0 : i64, tpu.core_type = #tpu.core_type<tc>, window_params = [{transform_indices = @transform_0, window_bounds = array<i64: 16, 32>}, {pipeline_mode = #tpu.pipeline_mode<synchronous>, transform_indices = @transform_1, window_bounds = array<i64: 32, 128>}, {pipeline_mode = #tpu.pipeline_mode<synchronous>, transform_indices = @transform_2, window_bounds = array<i64: 32, 128>}, {transform_indices = @transform_3, window_bounds = array<i64: 16, 32, 128>}, {pipeline_mode = #tpu.pipeline_mode<synchronous>, transform_indices = @transform_4, window_bounds = array<i64: 1, 128>}, {pipeline_mode = #tpu.pipeline_mode<synchronous>, transform_indices = @transform_5, window_bounds = array<i64: 1, 128>}, {pipeline_mode = #tpu.pipeline_mode<synchronous>, transform_indices = @transform_6, window_bounds = array<i64: 1, 128>}, {transform_indices = @transform_7, window_bounds = array<i64: 1, 1>}, {pipeline_mode = #tpu.pipeline_mode<synchronous>, transform_indices = @transform_8, window_bounds = array<i64: 1, 128>}, {pipeline_mode = #tpu.pipeline_mode<synchronous>, transform_indices = @transform_9, window_bounds = array<i64: 1, 128>}, {transform_indices = @transform_10, window_bounds = array<i64: 16, 128>}, {transform_indices = @transform_11, window_bounds = array<i64: 16, 1>}, {transform_indices = @transform_12, window_bounds = array<i64: 16, 32, 128>}]} {
    %c0 = arith.constant 0 : index
    %c0_0 = arith.constant 0 : index
    %0 = vector.load %arg1[%c0, %c0_0] : memref<16x32xf32, #tpu.memory_space<vmem>>, vector<16x32xf32>
    %1 = vector.shape_cast %0 : vector<16x32xf32> to vector<16x32x1xf32>
    %c0_1 = arith.constant 0 : index
    %c0_2 = arith.constant 0 : index
    %2 = vector.load %arg2[%c0_1, %c0_2] : memref<32x128xf32, #tpu.memory_space<vmem>>, vector<32x128xf32>
    %cst = arith.constant dense<0.000000e+00> : vector<16x128xf32>
    %3 = tpu.matmul %0, %2, %cst {dimension_numbers = #tpu.dot_dimension_numbers<[1], [0], [0], [1], [0, 0, 1, 1], [], []>} : vector<16x32xf32>, vector<32x128xf32>, vector<16x128xf32> -> vector<16x128xf32>
    %c0_3 = arith.constant 0 : index
    %c0_4 = arith.constant 0 : index
    %c0_5 = arith.constant 0 : index
    %4 = vector.load %arg4[%c0_3, %c0_4, %c0_5] : memref<16x32x128xf32, #tpu.memory_space<vmem>>, vector<16x32x128xf32>
    %c0_6 = arith.constant 0 : index
    %c0_7 = arith.constant 0 : index
    %5 = vector.load %arg3[%c0_6, %c0_7] : memref<32x128xf32, #tpu.memory_space<vmem>>, vector<32x128xf32>
    %6 = vector.shape_cast %5 : vector<32x128xf32> to vector<1x32x128xf32>
    %7 = vector.broadcast %6 : vector<1x32x128xf32> to vector<16x32x128xf32>
    %8 = arith.mulf %4, %7 : vector<16x32x128xf32>
    %9 = vector.broadcast %1 : vector<16x32x1xf32> to vector<16x32x128xf32>
    %10 = arith.mulf %8, %9 : vector<16x32x128xf32>
    %cst_8 = arith.constant dense<0.000000e+00> : vector<16x128xf32>
    %11 = vector.multi_reduction <add>, %10, %cst_8 [1] : vector<16x32x128xf32> to vector<16x128xf32>
    %12 = arith.addf %3, %11 : vector<16x128xf32>
    %cst_9 = arith.constant dense<0.000000e+00> : vector<16xf32>
    %13 = vector.multi_reduction <add>, %12, %cst_9 [1] : vector<16x128xf32> to vector<16xf32>
    %14 = vector.shape_cast %13 : vector<16xf32> to vector<16x1xf32>
    %cst_10 = arith.constant 1.280000e+02 : f32
    %15 = vector.broadcast %cst_10 : f32 to vector<16x1xf32>
    %16 = arith.divf %14, %15 : vector<16x1xf32>
    %17 = vector.broadcast %16 : vector<16x1xf32> to vector<16x128xf32>
    %18 = arith.subf %12, %17 : vector<16x128xf32>
    %19 = arith.mulf %18, %18 : vector<16x128xf32>
    %cst_11 = arith.constant dense<0.000000e+00> : vector<16xf32>
    %20 = vector.multi_reduction <add>, %19, %cst_11 [1] : vector<16x128xf32> to vector<16xf32>
    %21 = vector.shape_cast %20 : vector<16xf32> to vector<16x1xf32>
    %cst_12 = arith.constant 1.280000e+02 : f32
    %22 = vector.broadcast %cst_12 : f32 to vector<16x1xf32>
    %23 = arith.divf %21, %22 : vector<16x1xf32>
    %cst_13 = arith.constant 9.99999974E-6 : f32
    %24 = vector.broadcast %cst_13 : f32 to vector<16x1xf32>
    %25 = arith.addf %23, %24 : vector<16x1xf32>
    %26 = math.rsqrt %25 : vector<16x1xf32>
    %27 = vector.broadcast %26 : vector<16x1xf32> to vector<16x128xf32>
    %28 = arith.mulf %18, %27 : vector<16x128xf32>
    %c0_14 = arith.constant 0 : index
    %c0_15 = arith.constant 0 : index
    %29 = vector.load %arg5[%c0_14, %c0_15] : memref<1x128xf32, #tpu.memory_space<vmem>>, vector<1x128xf32>
    %30 = vector.broadcast %29 : vector<1x128xf32> to vector<16x128xf32>
    %31 = arith.mulf %28, %30 : vector<16x128xf32>
    %c0_16 = arith.constant 0 : index
    %c0_17 = arith.constant 0 : index
    %32 = vector.load %arg6[%c0_16, %c0_17] : memref<1x128xf32, #tpu.memory_space<vmem>>, vector<1x128xf32>
    %33 = vector.broadcast %32 : vector<1x128xf32> to vector<16x128xf32>
    %34 = arith.addf %31, %33 : vector<16x128xf32>
    %35 = math.tanh %34 : vector<16x128xf32>
    %c0_18 = arith.constant 0 : index
    %c0_19 = arith.constant 0 : index
    %36 = vector.load %arg7[%c0_18, %c0_19] : memref<1x128xf32, #tpu.memory_space<vmem>>, vector<1x128xf32>
    %37 = vector.broadcast %36 : vector<1x128xf32> to vector<16x128xf32>
    %38 = arith.mulf %35, %37 : vector<16x128xf32>
    %cst_20 = arith.constant dense<0.000000e+00> : vector<16xf32>
    %39 = vector.multi_reduction <add>, %38, %cst_20 [1] : vector<16x128xf32> to vector<16xf32>
    %40 = vector.shape_cast %39 : vector<16xf32> to vector<16x1xf32>
    %c0_21 = arith.constant 0 : index
    %c0_22 = arith.constant 0 : index
    %41 = memref.load %arg8[%c0_21, %c0_22] : memref<1x1xf32, #tpu.memory_space<smem>>
    %42 = vector.broadcast %41 : f32 to vector<16x1xf32>
    %43 = arith.addf %40, %42 : vector<16x1xf32>
    %44 = math.tanh %43 : vector<16x1xf32>
    %c0_23 = arith.constant 0 : index
    %c0_24 = arith.constant 0 : index
    %45 = vector.load %arg9[%c0_23, %c0_24] : memref<1x128xf32, #tpu.memory_space<vmem>>, vector<1x128xf32>
    %46 = vector.broadcast %44 : vector<16x1xf32> to vector<16x128xf32>
    %47 = vector.broadcast %45 : vector<1x128xf32> to vector<16x128xf32>
    %48 = arith.mulf %46, %47 : vector<16x128xf32>
    %c0_25 = arith.constant 0 : index
    %c0_26 = arith.constant 0 : index
    %49 = vector.load %arg10[%c0_25, %c0_26] : memref<1x128xf32, #tpu.memory_space<vmem>>, vector<1x128xf32>
    %50 = vector.broadcast %49 : vector<1x128xf32> to vector<16x128xf32>
    %51 = arith.addf %48, %50 : vector<16x128xf32>
    %52 = arith.mulf %51, %35 : vector<16x128xf32>
    %53 = vector.shape_cast %52 : vector<16x128xf32> to vector<16x1x128xf32>
    %c0_27 = arith.constant 0 : index
    %c0_28 = arith.constant 0 : index
    %c0_29 = arith.constant 0 : index
    %54 = vector.load %arg4[%c0_27, %c0_28, %c0_29] : memref<16x32x128xf32, #tpu.memory_space<vmem>>, vector<16x32x128xf32>
    %55 = vector.broadcast %53 : vector<16x1x128xf32> to vector<16x32x128xf32>
    %56 = vector.broadcast %1 : vector<16x32x1xf32> to vector<16x32x128xf32>
    %57 = arith.mulf %55, %56 : vector<16x32x128xf32>
    %58 = arith.addf %54, %57 : vector<16x32x128xf32>
    %cst_30 = arith.constant -2.000000e+00 : f32
    %cst_31 = arith.constant 2.000000e+00 : f32
    %59 = vector.broadcast %cst_30 : f32 to vector<16x32x128xf32>
    %60 = arith.maximumf %59, %58 : vector<16x32x128xf32>
    %61 = vector.broadcast %cst_31 : f32 to vector<16x32x128xf32>
    %62 = arith.minimumf %61, %60 : vector<16x32x128xf32>
    %c0_32 = arith.constant 0 : index
    %c0_33 = arith.constant 0 : index
    %c0_34 = arith.constant 0 : index
    %63 = vector.load %arg13[%c0_32, %c0_33, %c0_34] : memref<16x32x128xf32, #tpu.memory_space<vmem>>, vector<16x32x128xf32>
    tpu.vector_store %arg13[%c0_32, %c0_33, %c0_34], %62 {strides = array<i32>} : memref<16x32x128xf32, #tpu.memory_space<vmem>>, vector<16x32x128xf32>,
    %c0_35 = arith.constant 0 : index
    %c0_36 = arith.constant 0 : index
    %64 = vector.load %arg11[%c0_35, %c0_36] : memref<16x128xf32, #tpu.memory_space<vmem>>, vector<16x128xf32>
    tpu.vector_store %arg11[%c0_35, %c0_36], %35 {strides = array<i32>} : memref<16x128xf32, #tpu.memory_space<vmem>>, vector<16x128xf32>,
    %c0_37 = arith.constant 0 : index
    %c0_38 = arith.constant 0 : index
    %65 = vector.load %arg12[%c0_37, %c0_38] : memref<16x1xf32, #tpu.memory_space<vmem>>, vector<16x1xf32>
    tpu.vector_store %arg12[%c0_37, %c0_38], %44 {strides = array<i32>} : memref<16x1xf32, #tpu.memory_space<vmem>>, vector<16x1xf32>,
    return
  }
  func.func @transform_0(%arg0: i32) -> (i32, i32) {
    %c0_i32 = arith.constant 0 : i32
    %c0_i32_0 = arith.constant 0 : i32
    return %arg0, %c0_i32 : i32, i32
  }
  func.func @transform_1(%arg0: i32) -> (i32, i32) {
    %c0_i32 = arith.constant 0 : i32
    %c0_i32_0 = arith.constant 0 : i32
    %c0_i32_1 = arith.constant 0 : i32
    return %c0_i32, %c0_i32_0 : i32, i32
  }
  func.func @transform_2(%arg0: i32) -> (i32, i32) {
    %c0_i32 = arith.constant 0 : i32
    %c0_i32_0 = arith.constant 0 : i32
    %c0_i32_1 = arith.constant 0 : i32
    return %c0_i32, %c0_i32_0 : i32, i32
  }
  func.func @transform_3(%arg0: i32) -> (i32, i32, i32) {
    %c0_i32 = arith.constant 0 : i32
    %c0_i32_0 = arith.constant 0 : i32
    %c0_i32_1 = arith.constant 0 : i32
    return %arg0, %c0_i32, %c0_i32_0 : i32, i32, i32
  }
  func.func @transform_4(%arg0: i32) -> (i32, i32) {
    %c0_i32 = arith.constant 0 : i32
    %c0_i32_0 = arith.constant 0 : i32
    %c0_i32_1 = arith.constant 0 : i32
    return %c0_i32, %c0_i32_0 : i32, i32
  }
  func.func @transform_5(%arg0: i32) -> (i32, i32) {
    %c0_i32 = arith.constant 0 : i32
    %c0_i32_0 = arith.constant 0 : i32
    %c0_i32_1 = arith.constant 0 : i32
    return %c0_i32, %c0_i32_0 : i32, i32
  }
  func.func @transform_6(%arg0: i32) -> (i32, i32) {
    %c0_i32 = arith.constant 0 : i32
    %c0_i32_0 = arith.constant 0 : i32
    %c0_i32_1 = arith.constant 0 : i32
    return %c0_i32, %c0_i32_0 : i32, i32
  }
  func.func @transform_7(%arg0: i32) -> (i32, i32) {
    %c0_i32 = arith.constant 0 : i32
    %c0_i32_0 = arith.constant 0 : i32
    %c0_i32_1 = arith.constant 0 : i32
    return %c0_i32, %c0_i32_0 : i32, i32
  }
  func.func @transform_8(%arg0: i32) -> (i32, i32) {
    %c0_i32 = arith.constant 0 : i32
    %c0_i32_0 = arith.constant 0 : i32
    %c0_i32_1 = arith.constant 0 : i32
    return %c0_i32, %c0_i32_0 : i32, i32
  }
  func.func @transform_9(%arg0: i32) -> (i32, i32) {
    %c0_i32 = arith.constant 0 : i32
    %c0_i32_0 = arith.constant 0 : i32
    %c0_i32_1 = arith.constant 0 : i32
    return %c0_i32, %c0_i32_0 : i32, i32
  }
  func.func @transform_10(%arg0: i32) -> (i32, i32) {
    %c0_i32 = arith.constant 0 : i32
    %c0_i32_0 = arith.constant 0 : i32
    return %arg0, %c0_i32 : i32, i32
  }
  func.func @transform_11(%arg0: i32) -> (i32, i32) {
    %c0_i32 = arith.constant 0 : i32
    %c0_i32_0 = arith.constant 0 : i32
    return %arg0, %c0_i32 : i32, i32
  }
  func.func @transform_12(%arg0: i32) -> (i32, i32, i32) {
    %c0_i32 = arith.constant 0 : i32
    %c0_i32_0 = arith.constant 0 : i32
    %c0_i32_1 = arith.constant 0 : i32
    return %arg0, %c0_i32, %c0_i32_0 : i32, i32, i32
  }
}

module attributes {stable_mosaic.version = 11 : i64} {
  func.func @_kernel_fused(%arg0: i32, %arg1: memref<16x32xf32, #tpu.memory_space<vmem>>, %arg2: memref<32x128xf32, #tpu.memory_space<vmem>>, %arg3: memref<32x128xf32, #tpu.memory_space<vmem>>, %arg4: memref<16x32x128xf32, #tpu.memory_space<vmem>>, %arg5: memref<1x128xf32, #tpu.memory_space<vmem>>, %arg6: memref<1x128xf32, #tpu.memory_space<vmem>>, %arg7: memref<1x128xf32, #tpu.memory_space<vmem>>, %arg8: memref<1x1xf32, #tpu.memory_space<smem>>, %arg9: memref<1x128xf32, #tpu.memory_space<vmem>>, %arg10: memref<1x128xf32, #tpu.memory_space<vmem>>, %arg11: memref<16x128xf32, #tpu.memory_space<vmem>>, %arg12: memref<16x1xf32, #tpu.memory_space<vmem>>, %arg13: memref<16x32x128xf32, #tpu.memory_space<vmem>>) attributes {dimension_semantics = [#tpu.dimension_semantics<parallel>], iteration_bounds = array<i64: 2>, scalar_prefetch = 0 : i64, scratch_operands = 0 : i64, tpu.core_type = #tpu.core_type<tc>, window_params = [{transform_indices = @transform_0, window_bounds = array<i64: 16, 32>}, {pipeline_mode = #tpu.pipeline_mode<synchronous>, transform_indices = @transform_1, window_bounds = array<i64: 32, 128>}, {pipeline_mode = #tpu.pipeline_mode<synchronous>, transform_indices = @transform_2, window_bounds = array<i64: 32, 128>}, {transform_indices = @transform_3, window_bounds = array<i64: 16, 32, 128>}, {pipeline_mode = #tpu.pipeline_mode<synchronous>, transform_indices = @transform_4, window_bounds = array<i64: 1, 128>}, {pipeline_mode = #tpu.pipeline_mode<synchronous>, transform_indices = @transform_5, window_bounds = array<i64: 1, 128>}, {pipeline_mode = #tpu.pipeline_mode<synchronous>, transform_indices = @transform_6, window_bounds = array<i64: 1, 128>}, {transform_indices = @transform_7, window_bounds = array<i64: 1, 1>}, {pipeline_mode = #tpu.pipeline_mode<synchronous>, transform_indices = @transform_8, window_bounds = array<i64: 1, 128>}, {pipeline_mode = #tpu.pipeline_mode<synchronous>, transform_indices = @transform_9, window_bounds = array<i64: 1, 128>}, {transform_indices = @transform_10, window_bounds = array<i64: 16, 128>}, {transform_indices = @transform_11, window_bounds = array<i64: 16, 1>}, {transform_indices = @transform_12, window_bounds = array<i64: 16, 32, 128>}]} {
    %c0 = arith.constant 0 : index
    %c0_0 = arith.constant 0 : index
    %0 = vector.load %arg1[%c0, %c0_0] : memref<16x32xf32, #tpu.memory_space<vmem>>, vector<16x32xf32>
    %1 = vector.shape_cast %0 : vector<16x32xf32> to vector<16x1x32xf32>
    %2 = tpu.transpose %1, [0, 2, 1] : vector<16x1x32xf32> -> vector<16x32x1xf32>
    %c0_1 = arith.constant 0 : index
    %c0_2 = arith.constant 0 : index
    %3 = vector.load %arg2[%c0_1, %c0_2] : memref<32x128xf32, #tpu.memory_space<vmem>>, vector<32x128xf32>
    %cst = arith.constant dense<0.000000e+00> : vector<16x128xf32>
    %4 = tpu.matmul %0, %3, %cst {dimension_numbers = #tpu.dot_dimension_numbers<[1], [0], [0], [1], [0, 0, 1, 1], [], []>} : vector<16x32xf32>, vector<32x128xf32>, vector<16x128xf32> -> vector<16x128xf32>
    %c0_3 = arith.constant 0 : index
    %c0_4 = arith.constant 0 : index
    %c0_5 = arith.constant 0 : index
    %5 = vector.load %arg4[%c0_3, %c0_4, %c0_5] : memref<16x32x128xf32, #tpu.memory_space<vmem>>, vector<16x32x128xf32>
    %c0_6 = arith.constant 0 : index
    %c0_7 = arith.constant 0 : index
    %6 = vector.load %arg3[%c0_6, %c0_7] : memref<32x128xf32, #tpu.memory_space<vmem>>, vector<32x128xf32>
    %7 = vector.shape_cast %6 : vector<32x128xf32> to vector<1x32x128xf32>
    %8 = vector.broadcast %7 : vector<1x32x128xf32> to vector<16x32x128xf32>
    %9 = arith.mulf %5, %8 : vector<16x32x128xf32>
    %10 = vector.broadcast %2 : vector<16x32x1xf32> to vector<16x32x128xf32>
    %11 = arith.mulf %9, %10 : vector<16x32x128xf32>
    %cst_8 = arith.constant dense<0.000000e+00> : vector<16x128xf32>
    %12 = vector.multi_reduction <add>, %11, %cst_8 [1] : vector<16x32x128xf32> to vector<16x128xf32>
    %13 = arith.addf %4, %12 : vector<16x128xf32>
    %cst_9 = arith.constant dense<0.000000e+00> : vector<16xf32>
    %14 = vector.multi_reduction <add>, %13, %cst_9 [1] : vector<16x128xf32> to vector<16xf32>
    %15 = vector.shape_cast %14 : vector<16xf32> to vector<16x1xf32>
    %cst_10 = arith.constant 1.280000e+02 : f32
    %16 = vector.broadcast %cst_10 : f32 to vector<16x1xf32>
    %17 = arith.divf %15, %16 : vector<16x1xf32>
    %18 = vector.broadcast %17 : vector<16x1xf32> to vector<16x128xf32>
    %19 = arith.subf %13, %18 : vector<16x128xf32>
    %20 = arith.mulf %19, %19 : vector<16x128xf32>
    %cst_11 = arith.constant dense<0.000000e+00> : vector<16xf32>
    %21 = vector.multi_reduction <add>, %20, %cst_11 [1] : vector<16x128xf32> to vector<16xf32>
    %22 = vector.shape_cast %21 : vector<16xf32> to vector<16x1xf32>
    %cst_12 = arith.constant 1.280000e+02 : f32
    %23 = vector.broadcast %cst_12 : f32 to vector<16x1xf32>
    %24 = arith.divf %22, %23 : vector<16x1xf32>
    %cst_13 = arith.constant 9.99999974E-6 : f32
    %25 = vector.broadcast %cst_13 : f32 to vector<16x1xf32>
    %26 = arith.addf %24, %25 : vector<16x1xf32>
    %27 = math.rsqrt %26 : vector<16x1xf32>
    %28 = vector.broadcast %27 : vector<16x1xf32> to vector<16x128xf32>
    %29 = arith.mulf %19, %28 : vector<16x128xf32>
    %c0_14 = arith.constant 0 : index
    %c0_15 = arith.constant 0 : index
    %30 = vector.load %arg5[%c0_14, %c0_15] : memref<1x128xf32, #tpu.memory_space<vmem>>, vector<1x128xf32>
    %31 = vector.broadcast %30 : vector<1x128xf32> to vector<16x128xf32>
    %32 = arith.mulf %29, %31 : vector<16x128xf32>
    %c0_16 = arith.constant 0 : index
    %c0_17 = arith.constant 0 : index
    %33 = vector.load %arg6[%c0_16, %c0_17] : memref<1x128xf32, #tpu.memory_space<vmem>>, vector<1x128xf32>
    %34 = vector.broadcast %33 : vector<1x128xf32> to vector<16x128xf32>
    %35 = arith.addf %32, %34 : vector<16x128xf32>
    %36 = math.tanh %35 : vector<16x128xf32>
    %c0_18 = arith.constant 0 : index
    %c0_19 = arith.constant 0 : index
    %37 = vector.load %arg7[%c0_18, %c0_19] : memref<1x128xf32, #tpu.memory_space<vmem>>, vector<1x128xf32>
    %38 = vector.broadcast %37 : vector<1x128xf32> to vector<16x128xf32>
    %39 = arith.mulf %36, %38 : vector<16x128xf32>
    %cst_20 = arith.constant dense<0.000000e+00> : vector<16xf32>
    %40 = vector.multi_reduction <add>, %39, %cst_20 [1] : vector<16x128xf32> to vector<16xf32>
    %41 = vector.shape_cast %40 : vector<16xf32> to vector<16x1xf32>
    %c0_21 = arith.constant 0 : index
    %c0_22 = arith.constant 0 : index
    %42 = memref.load %arg8[%c0_21, %c0_22] : memref<1x1xf32, #tpu.memory_space<smem>>
    %43 = vector.broadcast %42 : f32 to vector<16x1xf32>
    %44 = arith.addf %41, %43 : vector<16x1xf32>
    %45 = math.tanh %44 : vector<16x1xf32>
    %c0_23 = arith.constant 0 : index
    %c0_24 = arith.constant 0 : index
    %46 = vector.load %arg9[%c0_23, %c0_24] : memref<1x128xf32, #tpu.memory_space<vmem>>, vector<1x128xf32>
    %47 = vector.broadcast %45 : vector<16x1xf32> to vector<16x128xf32>
    %48 = vector.broadcast %46 : vector<1x128xf32> to vector<16x128xf32>
    %49 = arith.mulf %47, %48 : vector<16x128xf32>
    %c0_25 = arith.constant 0 : index
    %c0_26 = arith.constant 0 : index
    %50 = vector.load %arg10[%c0_25, %c0_26] : memref<1x128xf32, #tpu.memory_space<vmem>>, vector<1x128xf32>
    %51 = vector.broadcast %50 : vector<1x128xf32> to vector<16x128xf32>
    %52 = arith.addf %49, %51 : vector<16x128xf32>
    %53 = arith.mulf %52, %36 : vector<16x128xf32>
    %54 = vector.shape_cast %53 : vector<16x128xf32> to vector<16x1x128xf32>
    %c0_27 = arith.constant 0 : index
    %c0_28 = arith.constant 0 : index
    %c0_29 = arith.constant 0 : index
    %55 = vector.load %arg4[%c0_27, %c0_28, %c0_29] : memref<16x32x128xf32, #tpu.memory_space<vmem>>, vector<16x32x128xf32>
    %56 = vector.broadcast %54 : vector<16x1x128xf32> to vector<16x32x128xf32>
    %57 = vector.broadcast %2 : vector<16x32x1xf32> to vector<16x32x128xf32>
    %58 = arith.mulf %56, %57 : vector<16x32x128xf32>
    %59 = arith.addf %55, %58 : vector<16x32x128xf32>
    %cst_30 = arith.constant -2.000000e+00 : f32
    %cst_31 = arith.constant 2.000000e+00 : f32
    %60 = vector.broadcast %cst_30 : f32 to vector<16x32x128xf32>
    %61 = arith.maximumf %60, %59 : vector<16x32x128xf32>
    %62 = vector.broadcast %cst_31 : f32 to vector<16x32x128xf32>
    %63 = arith.minimumf %62, %61 : vector<16x32x128xf32>
    %c0_32 = arith.constant 0 : index
    %c0_33 = arith.constant 0 : index
    %c0_34 = arith.constant 0 : index
    %64 = vector.load %arg13[%c0_32, %c0_33, %c0_34] : memref<16x32x128xf32, #tpu.memory_space<vmem>>, vector<16x32x128xf32>
    tpu.vector_store %arg13[%c0_32, %c0_33, %c0_34], %63 {strides = array<i32>} : memref<16x32x128xf32, #tpu.memory_space<vmem>>, vector<16x32x128xf32>,
    %c0_35 = arith.constant 0 : index
    %c0_36 = arith.constant 0 : index
    %65 = vector.load %arg11[%c0_35, %c0_36] : memref<16x128xf32, #tpu.memory_space<vmem>>, vector<16x128xf32>
    tpu.vector_store %arg11[%c0_35, %c0_36], %36 {strides = array<i32>} : memref<16x128xf32, #tpu.memory_space<vmem>>, vector<16x128xf32>,
    %c0_37 = arith.constant 0 : index
    %c0_38 = arith.constant 0 : index
    %66 = vector.load %arg12[%c0_37, %c0_38] : memref<16x1xf32, #tpu.memory_space<vmem>>, vector<16x1xf32>
    tpu.vector_store %arg12[%c0_37, %c0_38], %45 {strides = array<i32>} : memref<16x1xf32, #tpu.memory_space<vmem>>, vector<16x1xf32>,
    return
  }
  func.func @transform_0(%arg0: i32) -> (i32, i32) {
    %c0_i32 = arith.constant 0 : i32
    %c0_i32_0 = arith.constant 0 : i32
    return %arg0, %c0_i32 : i32, i32
  }
  func.func @transform_1(%arg0: i32) -> (i32, i32) {
    %c0_i32 = arith.constant 0 : i32
    %c0_i32_0 = arith.constant 0 : i32
    %c0_i32_1 = arith.constant 0 : i32
    return %c0_i32, %c0_i32_0 : i32, i32
  }
  func.func @transform_2(%arg0: i32) -> (i32, i32) {
    %c0_i32 = arith.constant 0 : i32
    %c0_i32_0 = arith.constant 0 : i32
    %c0_i32_1 = arith.constant 0 : i32
    return %c0_i32, %c0_i32_0 : i32, i32
  }
  func.func @transform_3(%arg0: i32) -> (i32, i32, i32) {
    %c0_i32 = arith.constant 0 : i32
    %c0_i32_0 = arith.constant 0 : i32
    %c0_i32_1 = arith.constant 0 : i32
    return %arg0, %c0_i32, %c0_i32_0 : i32, i32, i32
  }
  func.func @transform_4(%arg0: i32) -> (i32, i32) {
    %c0_i32 = arith.constant 0 : i32
    %c0_i32_0 = arith.constant 0 : i32
    %c0_i32_1 = arith.constant 0 : i32
    return %c0_i32, %c0_i32_0 : i32, i32
  }
  func.func @transform_5(%arg0: i32) -> (i32, i32) {
    %c0_i32 = arith.constant 0 : i32
    %c0_i32_0 = arith.constant 0 : i32
    %c0_i32_1 = arith.constant 0 : i32
    return %c0_i32, %c0_i32_0 : i32, i32
  }
  func.func @transform_6(%arg0: i32) -> (i32, i32) {
    %c0_i32 = arith.constant 0 : i32
    %c0_i32_0 = arith.constant 0 : i32
    %c0_i32_1 = arith.constant 0 : i32
    return %c0_i32, %c0_i32_0 : i32, i32
  }
  func.func @transform_7(%arg0: i32) -> (i32, i32) {
    %c0_i32 = arith.constant 0 : i32
    %c0_i32_0 = arith.constant 0 : i32
    %c0_i32_1 = arith.constant 0 : i32
    return %c0_i32, %c0_i32_0 : i32, i32
  }
  func.func @transform_8(%arg0: i32) -> (i32, i32) {
    %c0_i32 = arith.constant 0 : i32
    %c0_i32_0 = arith.constant 0 : i32
    %c0_i32_1 = arith.constant 0 : i32
    return %c0_i32, %c0_i32_0 : i32, i32
  }
  func.func @transform_9(%arg0: i32) -> (i32, i32) {
    %c0_i32 = arith.constant 0 : i32
    %c0_i32_0 = arith.constant 0 : i32
    %c0_i32_1 = arith.constant 0 : i32
    return %c0_i32, %c0_i32_0 : i32, i32
  }
  func.func @transform_10(%arg0: i32) -> (i32, i32) {
    %c0_i32 = arith.constant 0 : i32
    %c0_i32_0 = arith.constant 0 : i32
    return %arg0, %c0_i32 : i32, i32
  }
  func.func @transform_11(%arg0: i32) -> (i32, i32) {
    %c0_i32 = arith.constant 0 : i32
    %c0_i32_0 = arith.constant 0 : i32
    return %arg0, %c0_i32 : i32, i32
  }
  func.func @transform_12(%arg0: i32) -> (i32, i32, i32) {
    %c0_i32 = arith.constant 0 : i32
    %c0_i32_0 = arith.constant 0 : i32
    %c0_i32_1 = arith.constant 0 : i32
    return %arg0, %c0_i32, %c0_i32_0 : i32, i32, i32
  }
}

module attributes {stable_mosaic.version = 11 : i64} {
  func.func @_kernel_col_input(%arg0: i32, %arg1: memref<16x32xf32, #tpu.memory_space<vmem>>, %arg2: memref<16x32x1xf32, #tpu.memory_space<vmem>>, %arg3: memref<32x128xf32, #tpu.memory_space<vmem>>, %arg4: memref<32x128xf32, #tpu.memory_space<vmem>>, %arg5: memref<16x32x128xf32, #tpu.memory_space<vmem>>, %arg6: memref<1x128xf32, #tpu.memory_space<vmem>>, %arg7: memref<1x128xf32, #tpu.memory_space<vmem>>, %arg8: memref<1x128xf32, #tpu.memory_space<vmem>>, %arg9: memref<1x1xf32, #tpu.memory_space<smem>>, %arg10: memref<1x128xf32, #tpu.memory_space<vmem>>, %arg11: memref<1x128xf32, #tpu.memory_space<vmem>>, %arg12: memref<16x128xf32, #tpu.memory_space<vmem>>, %arg13: memref<16x1xf32, #tpu.memory_space<vmem>>, %arg14: memref<16x32x128xf32, #tpu.memory_space<vmem>>) attributes {dimension_semantics = [#tpu.dimension_semantics<parallel>], iteration_bounds = array<i64: 2>, scalar_prefetch = 0 : i64, scratch_operands = 0 : i64, tpu.core_type = #tpu.core_type<tc>, window_params = [{transform_indices = @transform_0, window_bounds = array<i64: 16, 32>}, {transform_indices = @transform_1, window_bounds = array<i64: 16, 32, 1>}, {pipeline_mode = #tpu.pipeline_mode<synchronous>, transform_indices = @transform_2, window_bounds = array<i64: 32, 128>}, {pipeline_mode = #tpu.pipeline_mode<synchronous>, transform_indices = @transform_3, window_bounds = array<i64: 32, 128>}, {transform_indices = @transform_4, window_bounds = array<i64: 16, 32, 128>}, {pipeline_mode = #tpu.pipeline_mode<synchronous>, transform_indices = @transform_5, window_bounds = array<i64: 1, 128>}, {pipeline_mode = #tpu.pipeline_mode<synchronous>, transform_indices = @transform_6, window_bounds = array<i64: 1, 128>}, {pipeline_mode = #tpu.pipeline_mode<synchronous>, transform_indices = @transform_7, window_bounds = array<i64: 1, 128>}, {transform_indices = @transform_8, window_bounds = array<i64: 1, 1>}, {pipeline_mode = #tpu.pipeline_mode<synchronous>, transform_indices = @transform_9, window_bounds = array<i64: 1, 128>}, {pipeline_mode = #tpu.pipeline_mode<synchronous>, transform_indices = @transform_10, window_bounds = array<i64: 1, 128>}, {transform_indices = @transform_11, window_bounds = array<i64: 16, 128>}, {transform_indices = @transform_12, window_bounds = array<i64: 16, 1>}, {transform_indices = @transform_13, window_bounds = array<i64: 16, 32, 128>}]} {
    %c0 = arith.constant 0 : index
    %c0_0 = arith.constant 0 : index
    %0 = vector.load %arg1[%c0, %c0_0] : memref<16x32xf32, #tpu.memory_space<vmem>>, vector<16x32xf32>
    %c0_1 = arith.constant 0 : index
    %c0_2 = arith.constant 0 : index
    %c0_3 = arith.constant 0 : index
    %1 = vector.load %arg2[%c0_1, %c0_2, %c0_3] : memref<16x32x1xf32, #tpu.memory_space<vmem>>, vector<16x32x1xf32>
    %c0_4 = arith.constant 0 : index
    %c0_5 = arith.constant 0 : index
    %2 = vector.load %arg3[%c0_4, %c0_5] : memref<32x128xf32, #tpu.memory_space<vmem>>, vector<32x128xf32>
    %cst = arith.constant dense<0.000000e+00> : vector<16x128xf32>
    %3 = tpu.matmul %0, %2, %cst {dimension_numbers = #tpu.dot_dimension_numbers<[1], [0], [0], [1], [0, 0, 1, 1], [], []>} : vector<16x32xf32>, vector<32x128xf32>, vector<16x128xf32> -> vector<16x128xf32>
    %c0_6 = arith.constant 0 : index
    %c0_7 = arith.constant 0 : index
    %c0_8 = arith.constant 0 : index
    %4 = vector.load %arg5[%c0_6, %c0_7, %c0_8] : memref<16x32x128xf32, #tpu.memory_space<vmem>>, vector<16x32x128xf32>
    %c0_9 = arith.constant 0 : index
    %c0_10 = arith.constant 0 : index
    %5 = vector.load %arg4[%c0_9, %c0_10] : memref<32x128xf32, #tpu.memory_space<vmem>>, vector<32x128xf32>
    %6 = vector.shape_cast %5 : vector<32x128xf32> to vector<1x32x128xf32>
    %7 = vector.broadcast %6 : vector<1x32x128xf32> to vector<16x32x128xf32>
    %8 = arith.mulf %4, %7 : vector<16x32x128xf32>
    %9 = vector.broadcast %1 : vector<16x32x1xf32> to vector<16x32x128xf32>
    %10 = arith.mulf %8, %9 : vector<16x32x128xf32>
    %cst_11 = arith.constant dense<0.000000e+00> : vector<16x128xf32>
    %11 = vector.multi_reduction <add>, %10, %cst_11 [1] : vector<16x32x128xf32> to vector<16x128xf32>
    %12 = arith.addf %3, %11 : vector<16x128xf32>
    %cst_12 = arith.constant dense<0.000000e+00> : vector<16xf32>
    %13 = vector.multi_reduction <add>, %12, %cst_12 [1] : vector<16x128xf32> to vector<16xf32>
    %14 = vector.shape_cast %13 : vector<16xf32> to vector<16x1xf32>
    %cst_13 = arith.constant 1.280000e+02 : f32
    %15 = vector.broadcast %cst_13 : f32 to vector<16x1xf32>
    %16 = arith.divf %14, %15 : vector<16x1xf32>
    %17 = vector.broadcast %16 : vector<16x1xf32> to vector<16x128xf32>
    %18 = arith.subf %12, %17 : vector<16x128xf32>
    %19 = arith.mulf %18, %18 : vector<16x128xf32>
    %cst_14 = arith.constant dense<0.000000e+00> : vector<16xf32>
    %20 = vector.multi_reduction <add>, %19, %cst_14 [1] : vector<16x128xf32> to vector<16xf32>
    %21 = vector.shape_cast %20 : vector<16xf32> to vector<16x1xf32>
    %cst_15 = arith.constant 1.280000e+02 : f32
    %22 = vector.broadcast %cst_15 : f32 to vector<16x1xf32>
    %23 = arith.divf %21, %22 : vector<16x1xf32>
    %cst_16 = arith.constant 9.99999974E-6 : f32
    %24 = vector.broadcast %cst_16 : f32 to vector<16x1xf32>
    %25 = arith.addf %23, %24 : vector<16x1xf32>
    %26 = math.rsqrt %25 : vector<16x1xf32>
    %27 = vector.broadcast %26 : vector<16x1xf32> to vector<16x128xf32>
    %28 = arith.mulf %18, %27 : vector<16x128xf32>
    %c0_17 = arith.constant 0 : index
    %c0_18 = arith.constant 0 : index
    %29 = vector.load %arg6[%c0_17, %c0_18] : memref<1x128xf32, #tpu.memory_space<vmem>>, vector<1x128xf32>
    %30 = vector.broadcast %29 : vector<1x128xf32> to vector<16x128xf32>
    %31 = arith.mulf %28, %30 : vector<16x128xf32>
    %c0_19 = arith.constant 0 : index
    %c0_20 = arith.constant 0 : index
    %32 = vector.load %arg7[%c0_19, %c0_20] : memref<1x128xf32, #tpu.memory_space<vmem>>, vector<1x128xf32>
    %33 = vector.broadcast %32 : vector<1x128xf32> to vector<16x128xf32>
    %34 = arith.addf %31, %33 : vector<16x128xf32>
    %35 = math.tanh %34 : vector<16x128xf32>
    %c0_21 = arith.constant 0 : index
    %c0_22 = arith.constant 0 : index
    %36 = vector.load %arg8[%c0_21, %c0_22] : memref<1x128xf32, #tpu.memory_space<vmem>>, vector<1x128xf32>
    %37 = vector.broadcast %36 : vector<1x128xf32> to vector<16x128xf32>
    %38 = arith.mulf %35, %37 : vector<16x128xf32>
    %cst_23 = arith.constant dense<0.000000e+00> : vector<16xf32>
    %39 = vector.multi_reduction <add>, %38, %cst_23 [1] : vector<16x128xf32> to vector<16xf32>
    %40 = vector.shape_cast %39 : vector<16xf32> to vector<16x1xf32>
    %c0_24 = arith.constant 0 : index
    %c0_25 = arith.constant 0 : index
    %41 = memref.load %arg9[%c0_24, %c0_25] : memref<1x1xf32, #tpu.memory_space<smem>>
    %42 = vector.broadcast %41 : f32 to vector<16x1xf32>
    %43 = arith.addf %40, %42 : vector<16x1xf32>
    %44 = math.tanh %43 : vector<16x1xf32>
    %c0_26 = arith.constant 0 : index
    %c0_27 = arith.constant 0 : index
    %45 = vector.load %arg10[%c0_26, %c0_27] : memref<1x128xf32, #tpu.memory_space<vmem>>, vector<1x128xf32>
    %46 = vector.broadcast %44 : vector<16x1xf32> to vector<16x128xf32>
    %47 = vector.broadcast %45 : vector<1x128xf32> to vector<16x128xf32>
    %48 = arith.mulf %46, %47 : vector<16x128xf32>
    %c0_28 = arith.constant 0 : index
    %c0_29 = arith.constant 0 : index
    %49 = vector.load %arg11[%c0_28, %c0_29] : memref<1x128xf32, #tpu.memory_space<vmem>>, vector<1x128xf32>
    %50 = vector.broadcast %49 : vector<1x128xf32> to vector<16x128xf32>
    %51 = arith.addf %48, %50 : vector<16x128xf32>
    %52 = arith.mulf %51, %35 : vector<16x128xf32>
    %53 = vector.shape_cast %52 : vector<16x128xf32> to vector<16x1x128xf32>
    %c0_30 = arith.constant 0 : index
    %c0_31 = arith.constant 0 : index
    %c0_32 = arith.constant 0 : index
    %54 = vector.load %arg5[%c0_30, %c0_31, %c0_32] : memref<16x32x128xf32, #tpu.memory_space<vmem>>, vector<16x32x128xf32>
    %55 = vector.broadcast %53 : vector<16x1x128xf32> to vector<16x32x128xf32>
    %56 = vector.broadcast %1 : vector<16x32x1xf32> to vector<16x32x128xf32>
    %57 = arith.mulf %55, %56 : vector<16x32x128xf32>
    %58 = arith.addf %54, %57 : vector<16x32x128xf32>
    %cst_33 = arith.constant -2.000000e+00 : f32
    %cst_34 = arith.constant 2.000000e+00 : f32
    %59 = vector.broadcast %cst_33 : f32 to vector<16x32x128xf32>
    %60 = arith.maximumf %59, %58 : vector<16x32x128xf32>
    %61 = vector.broadcast %cst_34 : f32 to vector<16x32x128xf32>
    %62 = arith.minimumf %61, %60 : vector<16x32x128xf32>
    %c0_35 = arith.constant 0 : index
    %c0_36 = arith.constant 0 : index
    %c0_37 = arith.constant 0 : index
    %63 = vector.load %arg14[%c0_35, %c0_36, %c0_37] : memref<16x32x128xf32, #tpu.memory_space<vmem>>, vector<16x32x128xf32>
    tpu.vector_store %arg14[%c0_35, %c0_36, %c0_37], %62 {strides = array<i32>} : memref<16x32x128xf32, #tpu.memory_space<vmem>>, vector<16x32x128xf32>,
    %c0_38 = arith.constant 0 : index
    %c0_39 = arith.constant 0 : index
    %64 = vector.load %arg12[%c0_38, %c0_39] : memref<16x128xf32, #tpu.memory_space<vmem>>, vector<16x128xf32>
    tpu.vector_store %arg12[%c0_38, %c0_39], %35 {strides = array<i32>} : memref<16x128xf32, #tpu.memory_space<vmem>>, vector<16x128xf32>,
    %c0_40 = arith.constant 0 : index
    %c0_41 = arith.constant 0 : index
    %65 = vector.load %arg13[%c0_40, %c0_41] : memref<16x1xf32, #tpu.memory_space<vmem>>, vector<16x1xf32>
    tpu.vector_store %arg13[%c0_40, %c0_41], %44 {strides = array<i32>} : memref<16x1xf32, #tpu.memory_space<vmem>>, vector<16x1xf32>,
    return
  }
  func.func @transform_0(%arg0: i32) -> (i32, i32) {
    %c0_i32 = arith.constant 0 : i32
    %c0_i32_0 = arith.constant 0 : i32
    return %arg0, %c0_i32 : i32, i32
  }
  func.func @transform_1(%arg0: i32) -> (i32, i32, i32) {
    %c0_i32 = arith.constant 0 : i32
    %c0_i32_0 = arith.constant 0 : i32
    %c0_i32_1 = arith.constant 0 : i32
    return %arg0, %c0_i32, %c0_i32_0 : i32, i32, i32
  }
  func.func @transform_2(%arg0: i32) -> (i32, i32) {
    %c0_i32 = arith.constant 0 : i32
    %c0_i32_0 = arith.constant 0 : i32
    %c0_i32_1 = arith.constant 0 : i32
    return %c0_i32, %c0_i32_0 : i32, i32
  }
  func.func @transform_3(%arg0: i32) -> (i32, i32) {
    %c0_i32 = arith.constant 0 : i32
    %c0_i32_0 = arith.constant 0 : i32
    %c0_i32_1 = arith.constant 0 : i32
    return %c0_i32, %c0_i32_0 : i32, i32
  }
  func.func @transform_4(%arg0: i32) -> (i32, i32, i32) {
    %c0_i32 = arith.constant 0 : i32
    %c0_i32_0 = arith.constant 0 : i32
    %c0_i32_1 = arith.constant 0 : i32
    return %arg0, %c0_i32, %c0_i32_0 : i32, i32, i32
  }
  func.func @transform_5(%arg0: i32) -> (i32, i32) {
    %c0_i32 = arith.constant 0 : i32
    %c0_i32_0 = arith.constant 0 : i32
    %c0_i32_1 = arith.constant 0 : i32
    return %c0_i32, %c0_i32_0 : i32, i32
  }
  func.func @transform_6(%arg0: i32) -> (i32, i32) {
    %c0_i32 = arith.constant 0 : i32
    %c0_i32_0 = arith.constant 0 : i32
    %c0_i32_1 = arith.constant 0 : i32
    return %c0_i32, %c0_i32_0 : i32, i32
  }
  func.func @transform_7(%arg0: i32) -> (i32, i32) {
    %c0_i32 = arith.constant 0 : i32
    %c0_i32_0 = arith.constant 0 : i32
    %c0_i32_1 = arith.constant 0 : i32
    return %c0_i32, %c0_i32_0 : i32, i32
  }
  func.func @transform_8(%arg0: i32) -> (i32, i32) {
    %c0_i32 = arith.constant 0 : i32
    %c0_i32_0 = arith.constant 0 : i32
    %c0_i32_1 = arith.constant 0 : i32
    return %c0_i32, %c0_i32_0 : i32, i32
  }
  func.func @transform_9(%arg0: i32) -> (i32, i32) {
    %c0_i32 = arith.constant 0 : i32
    %c0_i32_0 = arith.constant 0 : i32
    %c0_i32_1 = arith.constant 0 : i32
    return %c0_i32, %c0_i32_0 : i32, i32
  }
  func.func @transform_10(%arg0: i32) -> (i32, i32) {
    %c0_i32 = arith.constant 0 : i32
    %c0_i32_0 = arith.constant 0 : i32
    %c0_i32_1 = arith.constant 0 : i32
    return %c0_i32, %c0_i32_0 : i32, i32
  }
  func.func @transform_11(%arg0: i32) -> (i32, i32) {
    %c0_i32 = arith.constant 0 : i32
    %c0_i32_0 = arith.constant 0 : i32
    return %arg0, %c0_i32 : i32, i32
  }
  func.func @transform_12(%arg0: i32) -> (i32, i32) {
    %c0_i32 = arith.constant 0 : i32
    %c0_i32_0 = arith.constant 0 : i32
    return %arg0, %c0_i32 : i32, i32
  }
  func.func @transform_13(%arg0: i32) -> (i32, i32, i32) {
    %c0_i32 = arith.constant 0 : i32
    %c0_i32_0 = arith.constant 0 : i32
    %c0_i32_1 = arith.constant 0 : i32
    return %arg0, %c0_i32, %c0_i32_0 : i32, i32, i32
  }
}

</mosaic_0001>

<llo_original>
// kernel: call_fn.1
$region0: #{call_fn.1}
  #allocation0 [shape = 'u32[]', space=smem, size = 0x4, offset = 0x4, fixed_abs, tag = 'smem constant byte address 0x4 - core index']
  #allocation1 [shape = 'u32[72,128]{1,0:T(1,128)}', space=vmem, size = 0x9000, scoped, tag = 'internal scratch']
  #allocation2 [shape = 'f32[1,1]{1,0:T(1,128)S(6)}', space=smem, size = 0x200, scoped, tag = 'scoped memory for call_fn.1']
  %s0 = inlined_call_operand.hbm [shape: f32[32,32], index: 0, kind: input, shape index: {}]
  %s1 = inlined_call_operand.hbm [shape: f32[32,128], index: 1, kind: input, shape index: {}]
  %s2 = inlined_call_operand.hbm [shape: f32[32,128], index: 2, kind: input, shape index: {}]
  %s3 = inlined_call_operand.hbm [shape: f32[32,32,128], index: 3, kind: input, shape index: {}, may-alias: {3,12}]
  %s4 = inlined_call_operand.vmem [shape: f32[1,128], index: 4, kind: input, shape index: {}]
  %s5 = inlined_call_operand.vmem [shape: f32[1,128], index: 5, kind: input, shape index: {}]
  %s6 = inlined_call_operand.vmem [shape: f32[1,128], index: 6, kind: input, shape index: {}]
  %s7 = inlined_call_operand.<no memory space> [shape: f32[1,1], index: 7, kind: input, shape index: {}]
  %s8 = inlined_call_operand.vmem [shape: f32[1,128], index: 8, kind: input, shape index: {}]
  %s9 = inlined_call_operand.vmem [shape: f32[1,128], index: 9, kind: input, shape index: {}]
  %s10 = inlined_call_operand.hbm [shape: f32[32,128], index: 10, kind: output, shape index: {0}]
  %s11 = inlined_call_operand.vmem [shape: f32[32,1], index: 11, kind: output, shape index: {1}]
  %s12 = inlined_call_operand.hbm [shape: f32[32,32,128], index: 12, kind: output, shape index: {2}, may-alias: {3,12}]
  %13 = xla_tuple %s10, %s11, %s12
  %s14 = sld [smem:[#allocation0]]
  $region105: #{call_fn.1} parent=0
    _
  %s16 = ssub.s32 1, %s14
  %s17 = scalar_select 0, %s16, %s14
  %18 = sst [smem:[#allocation2]] %s7
  $region1: #{call_fn.1} parent=0
    #allocation3 [shape = 'u8[16384]{0}', space=vmem, size = 0x4000, scoped, tag = 'input window, operand 0']
    #allocation4 [shape = 's32[2]{0}', space=sflag, size = 0x8, scoped, tag = 'scoped memory for call_fn.1']
    #allocation5 [shape = 's32[2]{0}', space=sflag, size = 0x8, scoped, tag = 'scoped memory for call_fn.1']
    #allocation6 [shape = 'u8[16384]{0}', space=vmem, size = 0x4000, scoped, tag = 'input window, operand 1, single buffered']
    #allocation7 [shape = 's32[1]{0}', space=sflag, size = 0x4, scoped, tag = 'scoped memory for call_fn.1']
    #allocation8 [shape = 'u8[16384]{0}', space=vmem, size = 0x4000, scoped, tag = 'input window, operand 2, single buffered']
    #allocation9 [shape = 'u8[524288]{0}', space=vmem, size = 0x80000, scoped, tag = 'input window, operand 3']
    #allocation10 [shape = 's32[2]{0}', space=sflag, size = 0x8, scoped, tag = 'scoped memory for call_fn.1']
    #allocation11 [shape = 'u8[16384]{0}', space=vmem, size = 0x4000, scoped, tag = 'output window, operand 0']
    #allocation12 [shape = 'u8[524288]{0}', space=vmem, size = 0x80000, scoped, tag = 'output window, operand 2']
    #allocation13 [shape = 's32[2]{0}', space=sflag, size = 0x8, scoped, tag = 'scoped memory for call_fn.1']
    %19 = vsyncpa [#allocation4], 0
    %s20 = scalar_lea.sflag [#allocation4], 1
    %21 = vsyncpa %s20, 0
    %22 = vsyncpa [#allocation7], 0
    %23 = vsyncpa [#allocation10], 0
    %s24 = scalar_lea.sflag [#allocation10], 1
    %25 = vsyncpa %s24, 0
    %26 = vsyncpa [#allocation5], 0
    %s27 = scalar_lea.sflag [#allocation5], 1
    %28 = vsyncpa %s27, 0
    %29 = vsyncpa [#allocation13], 0
    %s30 = scalar_lea.sflag [#allocation13], 1
    %31 = vsyncpa %s30, 0
    loop: start=0, step=1, limit=4
    $region2: #{call_fn.1} parent=1 // loop_pre_header
      _
    $region3: #{call_fn.1} parent=1 // loop_header
      %s33 = sphi 0, %s37
      %p34 = scmp.ge.s32.totalorder %s33, 4
      %s43 = sphi 0, %s45
      %s46 = sphi 0, %s43
      %s47 = sphi 0, %s46
      %s63 = sphi 0, %s47
      %s67 = sphi 0, %s67
      %s69 = sphi 0, %s67
      %s70 = sphi 0, %s69
      %s84 = sphi 0, %s70
      %s88 = sphi 0, %s88
      %s90 = sphi 0, %s88
      %s91 = sphi 0, %s90
      %s105 = sphi 0, %s91
      %s111 = sphi 0, %s113
      %s114 = sphi 0, %s111
      %s115 = sphi 0, %s114
      %s131 = sphi 0, %s115
      %s135 = sphi 0, %s135
      %s137 = sphi 0, %s135
      %s138 = sphi 0, %s137
      %s152 = sphi 0, %s138
      %s156 = sphi 0, %s156
      %s158 = sphi 0, %s156
      %s159 = sphi 0, %s158
      %s173 = sphi 0, %s159
      %s177 = sphi 0, %s177
      %s179 = sphi 0, %s177
      %s180 = sphi 0, %s179
      %s194 = sphi 0, %s180
      %s198 = sphi 0, %s198
      %s200 = sphi 0, %s198
      %s201 = sphi 0, %s200
      %s215 = sphi 0, %s201
      %s219 = sphi 0, %s219
      %s221 = sphi 0, %s219
      %s222 = sphi 0, %s221
      %s236 = sphi 0, %s222
      %s240 = sphi 0, %s240
      %s242 = sphi 0, %s240
      %s243 = sphi 0, %s242
      %s257 = sphi 0, %s243
      %s263 = sphi 0, %s265
      %s266 = sphi 0, %s263
      %s267 = sphi 0, %s266
      %s283 = sphi 0, %s267
      %s289 = sphi 0, %s291
      %s292 = sphi 0, %s289
      %s293 = sphi 0, %s292
      %s309 = sphi 0, %s293
      %s315 = sphi 0, %s317
      %s318 = sphi 0, %s315
      %s319 = sphi 0, %s318
      %s335 = sphi 0, %s319
    $region4: #{call_fn.1} parent=1 // loop_header_branch
      %36 = sbr.rel (%p34) target = $region8
    $region5: #{call_fn.1} parent=1 // loop_body
      %s38 = ssub.s32 %s33, 1
      %s39 = ssub.s32 %s33, 2
      %s40 = sadd.s32 %s33, 1
      %s41 = ssub.s32 %s33, %s40
      %p42 = scmp.eq.s32.totalorder %s41, 0
      %s44 = sadd.s32 %s43, 1
      %s45 = scalar_select %p42, %s43, %s44
      %p48 = pneg %p42
      %p49 = scmp.eq.s32.totalorder %s33, 1
      %p50 = por %p48, %p49
      %p51 = scmp.ne.s32.totalorder %s43, %s46
      %p52 = scmp.eq.s32.totalorder %s33, 0
      %p53 = por %p51, %p52
      %p54 = scmp.ne.s32.totalorder %s43, %s46
      %p55 = scmp.eq.s32.totalorder %s38, 1
      %p56 = por %p54, %p55
      %p57 = scmp.ne.s32.totalorder %s46, %s47
      %p58 = scmp.eq.s32.totalorder %s38, 0
      %p59 = por %p57, %p58
      %p60 = scmp.ne.s32.totalorder %s46, %s47
      %p61 = scmp.eq.s32.totalorder %s39, 1
      %p62 = por %p60, %p61
      %p64 = scmp.ne.s32.totalorder %s47, %s63
      %p65 = scmp.eq.s32.totalorder %s39, 0
      %p66 = por %p64, %p65
      %s68 = sadd.s32 %s67, 1
      %p71 = scmp.eq.s32.totalorder %s33, 1
      %p72 = scmp.ne.s32.totalorder %s67, %s69
      %p73 = scmp.eq.s32.totalorder %s33, 0
      %p74 = por %p72, %p73
      %p75 = scmp.ne.s32.totalorder %s67, %s69
      %p76 = scmp.eq.s32.totalorder %s38, 1
      %p77 = por %p75, %p76
      %p78 = scmp.ne.s32.totalorder %s69, %s70
      %p79 = scmp.eq.s32.totalorder %s38, 0
      %p80 = por %p78, %p79
      %p81 = scmp.ne.s32.totalorder %s69, %s70
      %p82 = scmp.eq.s32.totalorder %s39, 1
      %p83 = por %p81, %p82
      %p85 = scmp.ne.s32.totalorder %s70, %s84
      %p86 = scmp.eq.s32.totalorder %s39, 0
      %p87 = por %p85, %p86
      %s89 = sadd.s32 %s88, 1
      %p92 = scmp.eq.s32.totalorder %s33, 1
      %p93 = scmp.ne.s32.totalorder %s88, %s90
      %p94 = scmp.eq.s32.totalorder %s33, 0
      %p95 = por %p93, %p94
      %p96 = scmp.ne.s32.totalorder %s88, %s90
      %p97 = scmp.eq.s32.totalorder %s38, 1
      %p98 = por %p96, %p97
      %p99 = scmp.ne.s32.totalorder %s90, %s91
      %p100 = scmp.eq.s32.totalorder %s38, 0
      %p101 = por %p99, %p100
      %p102 = scmp.ne.s32.totalorder %s90, %s91
      %p103 = scmp.eq.s32.totalorder %s39, 1
      %p104 = por %p102, %p103
      %p106 = scmp.ne.s32.totalorder %s91, %s105
      %p107 = scmp.eq.s32.totalorder %s39, 0
      %p108 = por %p106, %p107
      %s109 = ssub.s32 %s33, %s40
      %p110 = scmp.eq.s32.totalorder %s109, 0
      %s112 = sadd.s32 %s111, 1
      %s113 = scalar_select %p110, %s111, %s112
      %p116 = pneg %p110
      %p117 = scmp.eq.s32.totalorder %s33, 1
      %p118 = por %p116, %p117
      %p119 = scmp.ne.s32.totalorder %s111, %s114
      %p120 = scmp.eq.s32.totalorder %s33, 0
      %p121 = por %p119, %p120
      %p122 = scmp.ne.s32.totalorder %s111, %s114
      %p123 = scmp.eq.s32.totalorder %s38, 1
      %p124 = por %p122, %p123
      %p125 = scmp.ne.s32.totalorder %s114, %s115
      %p126 = scmp.eq.s32.totalorder %s38, 0
      %p127 = por %p125, %p126
      %p128 = scmp.ne.s32.totalorder %s114, %s115
      %p129 = scmp.eq.s32.totalorder %s39, 1
      %p130 = por %p128, %p129
      %p132 = scmp.ne.s32.totalorder %s115, %s131
      %p133 = scmp.eq.s32.totalorder %s39, 0
      %p134 = por %p132, %p133
      %s136 = sadd.s32 %s135, 1
      %p139 = scmp.eq.s32.totalorder %s33, 1
      %p140 = scmp.ne.s32.totalorder %s135, %s137
      %p141 = scmp.eq.s32.totalorder %s33, 0
      %p142 = por %p140, %p141
      %p143 = scmp.ne.s32.totalorder %s135, %s137
      %p144 = scmp.eq.s32.totalorder %s38, 1
      %p145 = por %p143, %p144
      %p146 = scmp.ne.s32.totalorder %s137, %s138
      %p147 = scmp.eq.s32.totalorder %s38, 0
      %p148 = por %p146, %p147
      %p149 = scmp.ne.s32.totalorder %s137, %s138
      %p150 = scmp.eq.s32.totalorder %s39, 1
      %p151 = por %p149, %p150
      %p153 = scmp.ne.s32.totalorder %s138, %s152
      %p154 = scmp.eq.s32.totalorder %s39, 0
      %p155 = por %p153, %p154
      %s157 = sadd.s32 %s156, 1
      %p160 = scmp.eq.s32.totalorder %s33, 1
      %p161 = scmp.ne.s32.totalorder %s156, %s158
      %p162 = scmp.eq.s32.totalorder %s33, 0
      %p163 = por %p161, %p162
      %p164 = scmp.ne.s32.totalorder %s156, %s158
      %p165 = scmp.eq.s32.totalorder %s38, 1
      %p166 = por %p164, %p165
      %p167 = scmp.ne.s32.totalorder %s158, %s159
      %p168 = scmp.eq.s32.totalorder %s38, 0
      %p169 = por %p167, %p168
      %p170 = scmp.ne.s32.totalorder %s158, %s159
      %p171 = scmp.eq.s32.totalorder %s39, 1
      %p172 = por %p170, %p171
      %p174 = scmp.ne.s32.totalorder %s159, %s173
      %p175 = scmp.eq.s32.totalorder %s39, 0
      %p176 = por %p174, %p175
      %s178 = sadd.s32 %s177, 1
      %p181 = scmp.eq.s32.totalorder %s33, 1
      %p182 = scmp.ne.s32.totalorder %s177, %s179
      %p183 = scmp.eq.s32.totalorder %s33, 0
      %p184 = por %p182, %p183
      %p185 = scmp.ne.s32.totalorder %s177, %s179
      %p186 = scmp.eq.s32.totalorder %s38, 1
      %p187 = por %p185, %p186
      %p188 = scmp.ne.s32.totalorder %s179, %s180
      %p189 = scmp.eq.s32.totalorder %s38, 0
      %p190 = por %p188, %p189
      %p191 = scmp.ne.s32.totalorder %s179, %s180
      %p192 = scmp.eq.s32.totalorder %s39, 1
      %p193 = por %p191, %p192
      %p195 = scmp.ne.s32.totalorder %s180, %s194
      %p196 = scmp.eq.s32.totalorder %s39, 0
      %p197 = por %p195, %p196
      %s199 = sadd.s32 %s198, 1
      %p202 = scmp.eq.s32.totalorder %s33, 1
      %p203 = scmp.ne.s32.totalorder %s198, %s200
      %p204 = scmp.eq.s32.totalorder %s33, 0
      %p205 = por %p203, %p204
      %p206 = scmp.ne.s32.totalorder %s198, %s200
      %p207 = scmp.eq.s32.totalorder %s38, 1
      %p208 = por %p206, %p207
      %p209 = scmp.ne.s32.totalorder %s200, %s201
      %p210 = scmp.eq.s32.totalorder %s38, 0
      %p211 = por %p209, %p210
      %p212 = scmp.ne.s32.totalorder %s200, %s201
      %p213 = scmp.eq.s32.totalorder %s39, 1
      %p214 = por %p212, %p213
      %p216 = scmp.ne.s32.totalorder %s201, %s215
      %p217 = scmp.eq.s32.totalorder %s39, 0
      %p218 = por %p216, %p217
      %s220 = sadd.s32 %s219, 1
      %p223 = scmp.eq.s32.totalorder %s33, 1
      %p224 = scmp.ne.s32.totalorder %s219, %s221
      %p225 = scmp.eq.s32.totalorder %s33, 0
      %p226 = por %p224, %p225
      %p227 = scmp.ne.s32.totalorder %s219, %s221
      %p228 = scmp.eq.s32.totalorder %s38, 1
      %p229 = por %p227, %p228
      %p230 = scmp.ne.s32.totalorder %s221, %s222
      %p231 = scmp.eq.s32.totalorder %s38, 0
      %p232 = por %p230, %p231
      %p233 = scmp.ne.s32.totalorder %s221, %s222
      %p234 = scmp.eq.s32.totalorder %s39, 1
      %p235 = por %p233, %p234
      %p237 = scmp.ne.s32.totalorder %s222, %s236
      %p238 = scmp.eq.s32.totalorder %s39, 0
      %p239 = por %p237, %p238
      %s241 = sadd.s32 %s240, 1
      %p244 = scmp.eq.s32.totalorder %s33, 1
      %p245 = scmp.ne.s32.totalorder %s240, %s242
      %p246 = scmp.eq.s32.totalorder %s33, 0
      %p247 = por %p245, %p246
      %p248 = scmp.ne.s32.totalorder %s240, %s242
      %p249 = scmp.eq.s32.totalorder %s38, 1
      %p250 = por %p248, %p249
      %p251 = scmp.ne.s32.totalorder %s242, %s243
      %p252 = scmp.eq.s32.totalorder %s38, 0
      %p253 = por %p251, %p252
      %p254 = scmp.ne.s32.totalorder %s242, %s243
      %p255 = scmp.eq.s32.totalorder %s39, 1
      %p256 = por %p254, %p255
      %p258 = scmp.ne.s32.totalorder %s243, %s257
      %p259 = scmp.eq.s32.totalorder %s39, 0
      %p260 = por %p258, %p259
      %s261 = ssub.s32 %s33, %s40
      %p262 = scmp.eq.s32.totalorder %s261, 0
      %s264 = sadd.s32 %s263, 1
      %s265 = scalar_select %p262, %s263, %s264
      %p268 = pneg %p262
      %p269 = scmp.eq.s32.totalorder %s33, 1
      %p270 = por %p268, %p269
      %p271 = scmp.ne.s32.totalorder %s263, %s266
      %p272 = scmp.eq.s32.totalorder %s33, 0
      %p273 = por %p271, %p272
      %p274 = scmp.ne.s32.totalorder %s263, %s266
      %p275 = scmp.eq.s32.totalorder %s38, 1
      %p276 = por %p274, %p275
      %p277 = scmp.ne.s32.totalorder %s266, %s267
      %p278 = scmp.eq.s32.totalorder %s38, 0
      %p279 = por %p277, %p278
      %p280 = scmp.ne.s32.totalorder %s266, %s267
      %p281 = scmp.eq.s32.totalorder %s39, 1
      %p282 = por %p280, %p281
      %p284 = scmp.ne.s32.totalorder %s267, %s283
      %p285 = scmp.eq.s32.totalorder %s39, 0
      %p286 = por %p284, %p285
      %s287 = ssub.s32 %s33, %s40
      %p288 = scmp.eq.s32.totalorder %s287, 0
      %s290 = sadd.s32 %s289, 1
      %s291 = scalar_select %p288, %s289, %s290
      %p294 = pneg %p288
      %p295 = scmp.eq.s32.totalorder %s33, 1
      %p296 = por %p294, %p295
      %p297 = scmp.ne.s32.totalorder %s289, %s292
      %p298 = scmp.eq.s32.totalorder %s33, 0
      %p299 = por %p297, %p298
      %p300 = scmp.ne.s32.totalorder %s289, %s292
      %p301 = scmp.eq.s32.totalorder %s38, 1
      %p302 = por %p300, %p301
      %p303 = scmp.ne.s32.totalorder %s292, %s293
      %p304 = scmp.eq.s32.totalorder %s38, 0
      %p305 = por %p303, %p304
      %p306 = scmp.ne.s32.totalorder %s292, %s293
      %p307 = scmp.eq.s32.totalorder %s39, 1
      %p308 = por %p306, %p307
      %p310 = scmp.ne.s32.totalorder %s293, %s309
      %p311 = scmp.eq.s32.totalorder %s39, 0
      %p312 = por %p310, %p311
      %s313 = ssub.s32 %s33, %s40
      %p314 = scmp.eq.s32.totalorder %s313, 0
      %s316 = sadd.s32 %s315, 1
      %s317 = scalar_select %p314, %s315, %s316
      %p320 = pneg %p314
      %p321 = scmp.eq.s32.totalorder %s33, 1
      %p322 = por %p320, %p321
      %p323 = scmp.ne.s32.totalorder %s315, %s318
      %p324 = scmp.eq.s32.totalorder %s33, 0
      %p325 = por %p323, %p324
      %p326 = scmp.ne.s32.totalorder %s315, %s318
      %p327 = scmp.eq.s32.totalorder %s38, 1
      %p328 = por %p326, %p327
      %p329 = scmp.ne.s32.totalorder %s318, %s319
      %p330 = scmp.eq.s32.totalorder %s38, 0
      %p331 = por %p329, %p330
      %p332 = scmp.ne.s32.totalorder %s318, %s319
      %p333 = scmp.eq.s32.totalorder %s39, 1
      %p334 = por %p332, %p333
      %p336 = scmp.ne.s32.totalorder %s319, %s335
      %p337 = scmp.eq.s32.totalorder %s39, 0
      %p338 = por %p336, %p337
      %p339 = scmp.le.s32.totalorder 1, %s33
      %p340 = scmp.lt.s32.totalorder %s33, 3
      %p341 = pnand %p339, %p340
      %p342 = pneg %p341
      // Predicated region
      $region9: #{call_fn.1} parent=5 // pred_check
        _
      $region10: #{call_fn.1} parent=5 // pred_check_branch
        %344 = sbr.rel (%p341) target = $region12
      $region11: #{call_fn.1} parent=5 // pred_region
        %s345 = ssub.s32 %s33, 1
        // Predicated region
        $region13: #{call_fn.1} parent=11 // pred_check
          %p346 = pneg %p80
        $region14: #{call_fn.1} parent=11 // pred_check_branch
          %348 = sbr.rel (%p346) target = $region16
        $region15: #{call_fn.1} parent=11 // pred_region
          %350 = vsyncadd [#allocation7], 0
          %s351 = sshll.u32 %s1, 4
          %s352 = int_to_ptr.hbm [resolvable:$true] %s351
          %s353 = sshll.u32 [#allocation6], 4
          %s354 = int_to_ptr.vmem [resolvable:$true] %s353
          %359 = dma.hbm_to_vmem [thread:$0]  %s352, 512, %s354, [#allocation7], 128, 128, 8
        $region16: #{call_fn.1} parent=11 // pred_fallthru
          _
        // Predicated region
        $region17: #{call_fn.1} parent=11 // pred_check
          %p360 = pneg %p101
        $region18: #{call_fn.1} parent=11 // pred_check_branch
          %362 = sbr.rel (%p360) target = $region20
        $region19: #{call_fn.1} parent=11 // pred_region
          %364 = vsyncadd [#allocation7], 0
          %s365 = sshll.u32 %s2, 4
          %s366 = int_to_ptr.hbm [resolvable:$true] %s365
          %s367 = sshll.u32 [#allocation8], 4
          %s368 = int_to_ptr.vmem [resolvable:$true] %s367
          %373 = dma.hbm_to_vmem [thread:$0]  %s366, 512, %s368, [#allocation7], 128, 128, 8
        $region20: #{call_fn.1} parent=11 // pred_fallthru
          _
        // Predicated region
        $region21: #{call_fn.1} parent=11 // pred_check
          %p374 = pneg %p148
        $region22: #{call_fn.1} parent=11 // pred_check_branch
          %376 = sbr.rel (%p374) target = $region24
        $region23: #{call_fn.1} parent=11 // pred_region
          _
        $region24: #{call_fn.1} parent=11 // pred_fallthru
          _
        // Predicated region
        $region25: #{call_fn.1} parent=11 // pred_check
          %p377 = pneg %p169
        $region26: #{call_fn.1} parent=11 // pred_check_branch
          %379 = sbr.rel (%p377) target = $region28
        $region27: #{call_fn.1} parent=11 // pred_region
          _
        $region28: #{call_fn.1} parent=11 // pred_fallthru
          _
        // Predicated region
        $region29: #{call_fn.1} parent=11 // pred_check
          %p380 = pneg %p190
        $region30: #{call_fn.1} parent=11 // pred_check_branch
          %382 = sbr.rel (%p380) target = $region32
        $region31: #{call_fn.1} parent=11 // pred_region
          _
        $region32: #{call_fn.1} parent=11 // pred_fallthru
          _
        // Predicated region
        $region33: #{call_fn.1} parent=11 // pred_check
          %p383 = pneg %p211
        $region34: #{call_fn.1} parent=11 // pred_check_branch
          %385 = sbr.rel (%p383) target = $region36
        $region35: #{call_fn.1} parent=11 // pred_region
          _
        $region36: #{call_fn.1} parent=11 // pred_fallthru
          _
        // Predicated region
        $region37: #{call_fn.1} parent=11 // pred_check
          %p386 = pneg %p232
        $region38: #{call_fn.1} parent=11 // pred_check_branch
          %388 = sbr.rel (%p386) target = $region40
        $region39: #{call_fn.1} parent=11 // pred_region
          _
        $region40: #{call_fn.1} parent=11 // pred_fallthru
          _
        // Predicated region
        $region41: #{call_fn.1} parent=11 // pred_check
          %p389 = pneg %p253
        $region42: #{call_fn.1} parent=11 // pred_check_branch
          %391 = sbr.rel (%p389) target = $region44
        $region43: #{call_fn.1} parent=11 // pred_region
          _
        $region44: #{call_fn.1} parent=11 // pred_fallthru
          _
      $region12: #{call_fn.1} parent=5 // pred_fallthru
        _
      %p392 = scmp.lt.s32.totalorder %s33, 2
      // Predicated region
      $region45: #{call_fn.1} parent=5 // pred_check
        %p393 = pneg %p392
      $region46: #{call_fn.1} parent=5 // pred_check_branch
        %395 = sbr.rel (%p393) target = $region48
      $region47: #{call_fn.1} parent=5 // pred_region
        // Predicated region
        $region49: #{call_fn.1} parent=47 // pred_check
          %p396 = pneg %p53
        $region50: #{call_fn.1} parent=47 // pred_check_branch
          %398 = sbr.rel (%p396) target = $region52
        $region51: #{call_fn.1} parent=47 // pred_region
          %s399 = sand.u32 %s43, 1
          %s400 = scalar_lea.sflag [#allocation4], %s399
          %s401 = sand.u32 %s43, 1
          %s402 = smul.addr %s401, 16
          %s403 = scalar_lea.vmem [#allocation3], %s402
          %s404 = smul.u32 2, %s33
          %406 = vsyncadd %s400, 0
          %s407 = smul.addr %s404, 8
          %s408 = scalar_lea.hbm %s0, %s407
          %s409 = sshll.u32 %s408, 4
          %s410 = int_to_ptr.hbm [resolvable:$true] %s409
          %s411 = sshll.u32 %s403, 4
          %s412 = int_to_ptr.vmem [resolvable:$true] %s411
          %417 = dma.hbm_to_vmem [thread:$0]  %s410, 256, %s412, %s400, 128, 128, 8
        $region52: #{call_fn.1} parent=47 // pred_fallthru
          _
        // Predicated region
        $region53: #{call_fn.1} parent=47 // pred_check
          %p418 = pneg %p121
        $region54: #{call_fn.1} parent=47 // pred_check_branch
          %420 = sbr.rel (%p418) target = $region56
        $region55: #{call_fn.1} parent=47 // pred_region
          %s421 = sand.u32 %s111, 1
          %s422 = scalar_lea.sflag [#allocation10], %s421
          %s423 = sand.u32 %s111, 1
          %s424 = smul.addr %s423, 512
          %s425 = scalar_lea.vmem [#allocation9], %s424
          %s426 = smul.u32 16, %s33
          %428 = vsyncadd %s422, 0
          %s429 = smul.addr %s426, 4
          %s430 = smul.addr %s429, 8
          %s431 = scalar_lea.hbm %s3, %s430
          %s432 = sshll.u32 %s431, 4
          %s433 = int_to_ptr.hbm [resolvable:$true] %s432
          %s434 = sshll.u32 %s425, 4
          %s435 = int_to_ptr.vmem [resolvable:$true] %s434
          %440 = dma.hbm_to_vmem [thread:$0]  %s433, 8192, %s435, %s422, 128, 128, 8
        $region56: #{call_fn.1} parent=47 // pred_fallthru
          _
      $region48: #{call_fn.1} parent=5 // pred_fallthru
        _
      %p441 = scmp.le.s32.totalorder 1, %s33
      %p442 = scmp.lt.s32.totalorder %s33, 3
      %p443 = pnand %p441, %p442
      %p444 = pneg %p443
      // Predicated region
      $region57: #{call_fn.1} parent=5 // pred_check
        _
      $region58: #{call_fn.1} parent=5 // pred_check_branch
        %446 = sbr.rel (%p443) target = $region60
      $region59: #{call_fn.1} parent=5 // pred_region
        %s447 = ssub.s32 %s33, 1
        %s448 = sand.u32 %s46, 1
        %s449 = scalar_lea.sflag [#allocation4], %s448
        %s450 = sand.u32 %s46, 1
        %s451 = smul.addr %s450, 16
        %s452 = scalar_lea.vmem [#allocation3], %s451
        // Predicated region
        $region61: #{call_fn.1} parent=59 // pred_check
          %p453 = pneg %p59
        $region62: #{call_fn.1} parent=59 // pred_check_branch
          %455 = sbr.rel (%p453) target = $region64
        $region63: #{call_fn.1} parent=59 // pred_region
          %457 = dma.done %s449, 256
        $region64: #{call_fn.1} parent=59 // pred_fallthru
          _
        // Predicated region
        $region65: #{call_fn.1} parent=59 // pred_check
          %p458 = pneg %p80
        $region66: #{call_fn.1} parent=59 // pred_check_branch
          %460 = sbr.rel (%p458) target = $region68
        $region67: #{call_fn.1} parent=59 // pred_region
          %462 = dma.done [#allocation7], 512
        $region68: #{call_fn.1} parent=59 // pred_fallthru
          _
        // Predicated region
        $region69: #{call_fn.1} parent=59 // pred_check
          %p463 = pneg %p101
        $region70: #{call_fn.1} parent=59 // pred_check_branch
          %465 = sbr.rel (%p463) target = $region72
        $region71: #{call_fn.1} parent=59 // pred_region
          %467 = dma.done [#allocation7], 512
        $region72: #{call_fn.1} parent=59 // pred_fallthru
          _
        %s468 = sand.u32 %s114, 1
        %s469 = scalar_lea.sflag [#allocation10], %s468
        %s470 = sand.u32 %s114, 1
        %s471 = smul.addr %s470, 512
        %s472 = scalar_lea.vmem [#allocation9], %s471
        // Predicated region
        $region73: #{call_fn.1} parent=59 // pred_check
          %p473 = pneg %p127
        $region74: #{call_fn.1} parent=59 // pred_check_branch
          %475 = sbr.rel (%p473) target = $region76
        $region75: #{call_fn.1} parent=59 // pred_region
          %477 = dma.done %s469, 8192
        $region76: #{call_fn.1} parent=59 // pred_fallthru
          _
        %s478 = sand.u32 %s46, 1
        %s479 = scalar_lea.sflag [#allocation4], %s478
        %s480 = sand.u32 %s46, 1
        %s481 = smul.addr %s480, 16
        %s482 = scalar_lea.vmem [#allocation3], %s481
        %p483 = pneg %p59
        %p484 = pneg %p56
        %p485 = pneg %p80
        %p486 = pneg %p77
        %p487 = pneg %p101
        %p488 = pneg %p98
        %s489 = sand.u32 %s114, 1
        %s490 = scalar_lea.sflag [#allocation10], %s489
        %s491 = sand.u32 %s114, 1
        %s492 = smul.addr %s491, 512
        %s493 = scalar_lea.vmem [#allocation9], %s492
        %p494 = pneg %p127
        %p495 = pneg %p124
        %p496 = pneg %p148
        %p497 = pneg %p145
        %p498 = pneg %p169
        %p499 = pneg %p166
        %p500 = pneg %p190
        %p501 = pneg %p187
        %p502 = pneg %p211
        %p503 = pneg %p208
        %p504 = pneg %p232
        %p505 = pneg %p229
        %p506 = pneg %p253
        %p507 = pneg %p250
        %p508 = pneg %p279
        %p509 = pneg %p276
        %s510 = sand.u32 %s266, 1
        %s511 = scalar_lea.sflag [#allocation5], %s510
        %s512 = sand.u32 %s266, 1
        %s513 = smul.addr %s512, 16
        %s514 = scalar_lea.vmem [#allocation11], %s513
        %p515 = pneg %p305
        %p516 = pneg %p302
        %s517 = smul.u32 2, %s38
        %p518 = scmp.lt.s32.totalorder %s517, 3
        %s519 = scalar_select %p518, %s517, 3
        %s520 = smul.addr %s519, 8
        %s521 = scalar_lea.vmem %s11, %s520
        %p522 = pneg %p331
        %p523 = pneg %p328
        %s524 = sand.u32 %s318, 1
        %s525 = scalar_lea.sflag [#allocation13], %s524
        %s526 = sand.u32 %s318, 1
        %s527 = smul.addr %s526, 512
        %s528 = scalar_lea.vmem [#allocation12], %s527
        %s529 = smul.u32 2, %s38
        %s530 = smul.u32 16, %s38
        %s531 = smul.u32 2, %s38
        %s532 = smul.u32 2, %s38
        %p533 = scmp.lt.s32.totalorder %s532, 3
        %s534 = scalar_select %p533, %s532, 3
        %s535 = smul.addr %s534, 8
        %s536 = scalar_lea.vmem %s11, %s535
        %s537 = smul.u32 2, %s38
        %s538 = smul.u32 16, %s38
        %v539 = vld [vmem:[%s452] sm:$0xff]
        %v540 = vld [vmem:[%s452 + $0x8] sm:$0xff]
        %v541 = vperm.slane %v539, 0
        %v542 = vlaneseq
        %v543 = vshrl.u32 %v542, 7
        %545 = vset.pattern.permute.xlu0 %v543
        %546 = vperm.xlu0 %545, %v541
        %v547 = vpop.permute.xlu0 %546
        %v548 = vlaneseq
        %v549 = vshrl.u32 %v548, 7
        %v550 = vadd.s32 %v549, 8
        %551 = vset.pattern.permute.xlu0 %v550
        %552 = vperm.xlu0 %551, %v541
        %v553 = vpop.permute.xlu0 %552
        %v554 = vlaneseq
        %v555 = vshrl.u32 %v554, 7
        %v556 = vadd.s32 %v555, 16
        %557 = vset.pattern.permute.xlu0 %v556
        %558 = vperm.xlu0 %557, %v541
        %v559 = vpop.permute.xlu0 %558
        %v560 = vlaneseq
        %v561 = vshrl.u32 %v560, 7
        %v562 = vadd.s32 %v561, 24
        %563 = vset.pattern.permute.xlu0 %v562
        %564 = vperm.xlu0 %563, %v541
        %v565 = vpop.permute.xlu0 %564
        %v566 = vperm.slane %v539, 1
        %v567 = vlaneseq
        %v568 = vshrl.u32 %v567, 7
        %570 = vset.pattern.permute.xlu0 %v568
        %571 = vperm.xlu0 %570, %v566
        %v572 = vpop.permute.xlu0 %571
        %v573 = vlaneseq
        %v574 = vshrl.u32 %v573, 7
        %v575 = vadd.s32 %v574, 8
        %576 = vset.pattern.permute.xlu0 %v575
        %577 = vperm.xlu0 %576, %v566
        %v578 = vpop.permute.xlu0 %577
        %v579 = vlaneseq
        %v580 = vshrl.u32 %v579, 7
        %v581 = vadd.s32 %v580, 16
        %582 = vset.pattern.permute.xlu0 %v581
        %583 = vperm.xlu0 %582, %v566
        %v584 = vpop.permute.xlu0 %583
        %v585 = vlaneseq
        %v586 = vshrl.u32 %v585, 7
        %v587 = vadd.s32 %v586, 24
        %588 = vset.pattern.permute.xlu0 %v587
        %589 = vperm.xlu0 %588, %v566
        %v590 = vpop.permute.xlu0 %589
        %v591 = vperm.slane %v539, 2
        %v592 = vlaneseq
        %v593 = vshrl.u32 %v592, 7
        %595 = vset.pattern.permute.xlu0 %v593
        %596 = vperm.xlu0 %595, %v591
        %v597 = vpop.permute.xlu0 %596
        %v598 = vlaneseq
        %v599 = vshrl.u32 %v598, 7
        %v600 = vadd.s32 %v599, 8
        %601 = vset.pattern.permute.xlu0 %v600
        %602 = vperm.xlu0 %601, %v591
        %v603 = vpop.permute.xlu0 %602
        %v604 = vlaneseq
        %v605 = vshrl.u32 %v604, 7
        %v606 = vadd.s32 %v605, 16
        %607 = vset.pattern.permute.xlu0 %v606
        %608 = vperm.xlu0 %607, %v591
        %v609 = vpop.permute.xlu0 %608
        %v610 = vlaneseq
        %v611 = vshrl.u32 %v610, 7
        %v612 = vadd.s32 %v611, 24
        %613 = vset.pattern.permute.xlu0 %v612
        %614 = vperm.xlu0 %613, %v591
        %v615 = vpop.permute.xlu0 %614
        %v616 = vperm.slane %v539, 3
        %v617 = vlaneseq
        %v618 = vshrl.u32 %v617, 7
        %620 = vset.pattern.permute.xlu0 %v618
        %621 = vperm.xlu0 %620, %v616
        %v622 = vpop.permute.xlu0 %621
        %v623 = vlaneseq
        %v624 = vshrl.u32 %v623, 7
        %v625 = vadd.s32 %v624, 8
        %626 = vset.pattern.permute.xlu0 %v625
        %627 = vperm.xlu0 %626, %v616
        %v628 = vpop.permute.xlu0 %627
        %v629 = vlaneseq
        %v630 = vshrl.u32 %v629, 7
        %v631 = vadd.s32 %v630, 16
        %632 = vset.pattern.permute.xlu0 %v631
        %633 = vperm.xlu0 %632, %v616
        %v634 = vpop.permute.xlu0 %633
        %v635 = vlaneseq
        %v636 = vshrl.u32 %v635, 7
        %v637 = vadd.s32 %v636, 24
        %638 = vset.pattern.permute.xlu0 %v637
        %639 = vperm.xlu0 %638, %v616
        %v640 = vpop.permute.xlu0 %639
        %v641 = vperm.slane %v539, 4
        %v642 = vlaneseq
        %v643 = vshrl.u32 %v642, 7
        %645 = vset.pattern.permute.xlu0 %v643
        %646 = vperm.xlu0 %645, %v641
        %v647 = vpop.permute.xlu0 %646
        %v648 = vlaneseq
        %v649 = vshrl.u32 %v648, 7
        %v650 = vadd.s32 %v649, 8
        %651 = vset.pattern.permute.xlu0 %v650
        %652 = vperm.xlu0 %651, %v641
        %v653 = vpop.permute.xlu0 %652
        %v654 = vlaneseq
        %v655 = vshrl.u32 %v654, 7
        %v656 = vadd.s32 %v655, 16
        %657 = vset.pattern.permute.xlu0 %v656
        %658 = vperm.xlu0 %657, %v641
        %v659 = vpop.permute.xlu0 %658
        %v660 = vlaneseq
        %v661 = vshrl.u32 %v660, 7
        %v662 = vadd.s32 %v661, 24
        %663 = vset.pattern.permute.xlu0 %v662
        %664 = vperm.xlu0 %663, %v641
        %v665 = vpop.permute.xlu0 %664
        %v666 = vperm.slane %v539, 5
        %v667 = vlaneseq
        %v668 = vshrl.u32 %v667, 7
        %670 = vset.pattern.permute.xlu0 %v668
        %671 = vperm.xlu0 %670, %v666
        %v672 = vpop.permute.xlu0 %671
        %v673 = vlaneseq
        %v674 = vshrl.u32 %v673, 7
        %v675 = vadd.s32 %v674, 8
        %676 = vset.pattern.permute.xlu0 %v675
        %677 = vperm.xlu0 %676, %v666
        %v678 = vpop.permute.xlu0 %677
        %v679 = vlaneseq
        %v680 = vshrl.u32 %v679, 7
        %v681 = vadd.s32 %v680, 16
        %682 = vset.pattern.permute.xlu0 %v681
        %683 = vperm.xlu0 %682, %v666
        %v684 = vpop.permute.xlu0 %683
        %v685 = vlaneseq
        %v686 = vshrl.u32 %v685, 7
        %v687 = vadd.s32 %v686, 24
        %688 = vset.pattern.permute.xlu0 %v687
        %689 = vperm.xlu0 %688, %v666
        %v690 = vpop.permute.xlu0 %689
        %v691 = vperm.slane %v539, 6
        %v692 = vlaneseq
        %v693 = vshrl.u32 %v692, 7
        %695 = vset.pattern.permute.xlu0 %v693
        %696 = vperm.xlu0 %695, %v691
        %v697 = vpop.permute.xlu0 %696
        %v698 = vlaneseq
        %v699 = vshrl.u32 %v698, 7
        %v700 = vadd.s32 %v699, 8
        %701 = vset.pattern.permute.xlu0 %v700
        %702 = vperm.xlu0 %701, %v691
        %v703 = vpop.permute.xlu0 %702
        %v704 = vlaneseq
        %v705 = vshrl.u32 %v704, 7
        %v706 = vadd.s32 %v705, 16
        %707 = vset.pattern.permute.xlu0 %v706
        %708 = vperm.xlu0 %707, %v691
        %v709 = vpop.permute.xlu0 %708
        %v710 = vlaneseq
        %v711 = vshrl.u32 %v710, 7
        %v712 = vadd.s32 %v711, 24
        %713 = vset.pattern.permute.xlu0 %v712
        %714 = vperm.xlu0 %713, %v691
        %v715 = vpop.permute.xlu0 %714
        %v716 = vperm.slane %v539, 7
        %v717 = vlaneseq
        %v718 = vshrl.u32 %v717, 7
        %720 = vset.pattern.permute.xlu0 %v718
        %721 = vperm.xlu0 %720, %v716
        %v722 = vpop.permute.xlu0 %721
        %v723 = vlaneseq
        %v724 = vshrl.u32 %v723, 7
        %v725 = vadd.s32 %v724, 8
        %726 = vset.pattern.permute.xlu0 %v725
        %727 = vperm.xlu0 %726, %v716
        %v728 = vpop.permute.xlu0 %727
        %v729 = vlaneseq
        %v730 = vshrl.u32 %v729, 7
        %v731 = vadd.s32 %v730, 16
        %732 = vset.pattern.permute.xlu0 %v731
        %733 = vperm.xlu0 %732, %v716
        %v734 = vpop.permute.xlu0 %733
        %v735 = vlaneseq
        %v736 = vshrl.u32 %v735, 7
        %v737 = vadd.s32 %v736, 24
        %738 = vset.pattern.permute.xlu0 %v737
        %739 = vperm.xlu0 %738, %v716
        %v740 = vpop.permute.xlu0 %739
        %v741 = vperm.slane %v540, 0
        %v742 = vlaneseq
        %v743 = vshrl.u32 %v742, 7
        %745 = vset.pattern.permute.xlu0 %v743
        %746 = vperm.xlu0 %745, %v741
        %v747 = vpop.permute.xlu0 %746
        %v748 = vlaneseq
        %v749 = vshrl.u32 %v748, 7
        %v750 = vadd.s32 %v749, 8
        %751 = vset.pattern.permute.xlu0 %v750
        %752 = vperm.xlu0 %751, %v741
        %v753 = vpop.permute.xlu0 %752
        %v754 = vlaneseq
        %v755 = vshrl.u32 %v754, 7
        %v756 = vadd.s32 %v755, 16
        %757 = vset.pattern.permute.xlu0 %v756
        %758 = vperm.xlu0 %757, %v741
        %v759 = vpop.permute.xlu0 %758
        %v760 = vlaneseq
        %v761 = vshrl.u32 %v760, 7
        %v762 = vadd.s32 %v761, 24
        %763 = vset.pattern.permute.xlu0 %v762
        %764 = vperm.xlu0 %763, %v741
        %v765 = vpop.permute.xlu0 %764
        %v766 = vperm.slane %v540, 1
        %v767 = vlaneseq
        %v768 = vshrl.u32 %v767, 7
        %770 = vset.pattern.permute.xlu0 %v768
        %771 = vperm.xlu0 %770, %v766
        %v772 = vpop.permute.xlu0 %771
        %v773 = vlaneseq
        %v774 = vshrl.u32 %v773, 7
        %v775 = vadd.s32 %v774, 8
        %776 = vset.pattern.permute.xlu0 %v775
        %777 = vperm.xlu0 %776, %v766
        %v778 = vpop.permute.xlu0 %777
        %v779 = vlaneseq
        %v780 = vshrl.u32 %v779, 7
        %v781 = vadd.s32 %v780, 16
        %782 = vset.pattern.permute.xlu0 %v781
        %783 = vperm.xlu0 %782, %v766
        %v784 = vpop.permute.xlu0 %783
        %v785 = vlaneseq
        %v786 = vshrl.u32 %v785, 7
        %v787 = vadd.s32 %v786, 24
        %788 = vset.pattern.permute.xlu0 %v787
        %789 = vperm.xlu0 %788, %v766
        %v790 = vpop.permute.xlu0 %789
        %v791 = vperm.slane %v540, 2
        %v792 = vlaneseq
        %v793 = vshrl.u32 %v792, 7
        %795 = vset.pattern.permute.xlu0 %v793
        %796 = vperm.xlu0 %795, %v791
        %v797 = vpop.permute.xlu0 %796
        %v798 = vlaneseq
        %v799 = vshrl.u32 %v798, 7
        %v800 = vadd.s32 %v799, 8
        %801 = vset.pattern.permute.xlu0 %v800
        %802 = vperm.xlu0 %801, %v791
        %v803 = vpop.permute.xlu0 %802
        %v804 = vlaneseq
        %v805 = vshrl.u32 %v804, 7
        %v806 = vadd.s32 %v805, 16
        %807 = vset.pattern.permute.xlu0 %v806
        %808 = vperm.xlu0 %807, %v791
        %v809 = vpop.permute.xlu0 %808
        %v810 = vlaneseq
        %v811 = vshrl.u32 %v810, 7
        %v812 = vadd.s32 %v811, 24
        %813 = vset.pattern.permute.xlu0 %v812
        %814 = vperm.xlu0 %813, %v791
        %v815 = vpop.permute.xlu0 %814
        %v816 = vperm.slane %v540, 3
        %v817 = vlaneseq
        %v818 = vshrl.u32 %v817, 7
        %820 = vset.pattern.permute.xlu0 %v818
        %821 = vperm.xlu0 %820, %v816
        %v822 = vpop.permute.xlu0 %821
        %v823 = vlaneseq
        %v824 = vshrl.u32 %v823, 7
        %v825 = vadd.s32 %v824, 8
        %826 = vset.pattern.permute.xlu0 %v825
        %827 = vperm.xlu0 %826, %v816
        %v828 = vpop.permute.xlu0 %827
        %v829 = vlaneseq
        %v830 = vshrl.u32 %v829, 7
        %v831 = vadd.s32 %v830, 16
        %832 = vset.pattern.permute.xlu0 %v831
        %833 = vperm.xlu0 %832, %v816
        %v834 = vpop.permute.xlu0 %833
        %v835 = vlaneseq
        %v836 = vshrl.u32 %v835, 7
        %v837 = vadd.s32 %v836, 24
        %838 = vset.pattern.permute.xlu0 %v837
        %839 = vperm.xlu0 %838, %v816
        %v840 = vpop.permute.xlu0 %839
        %v841 = vperm.slane %v540, 4
        %v842 = vlaneseq
        %v843 = vshrl.u32 %v842, 7
        %845 = vset.pattern.permute.xlu0 %v843
        %846 = vperm.xlu0 %845, %v841
        %v847 = vpop.permute.xlu0 %846
        %v848 = vlaneseq
        %v849 = vshrl.u32 %v848, 7
        %v850 = vadd.s32 %v849, 8
        %851 = vset.pattern.permute.xlu0 %v850
        %852 = vperm.xlu0 %851, %v841
        %v853 = vpop.permute.xlu0 %852
        %v854 = vlaneseq
        %v855 = vshrl.u32 %v854, 7
        %v856 = vadd.s32 %v855, 16
        %857 = vset.pattern.permute.xlu0 %v856
        %858 = vperm.xlu0 %857, %v841
        %v859 = vpop.permute.xlu0 %858
        %v860 = vlaneseq
        %v861 = vshrl.u32 %v860, 7
        %v862 = vadd.s32 %v861, 24
        %863 = vset.pattern.permute.xlu0 %v862
        %864 = vperm.xlu0 %863, %v841
        %v865 = vpop.permute.xlu0 %864
        %v866 = vperm.slane %v540, 5
        %v867 = vlaneseq
        %v868 = vshrl.u32 %v867, 7
        %870 = vset.pattern.permute.xlu0 %v868
        %871 = vperm.xlu0 %870, %v866
        %v872 = vpop.permute.xlu0 %871
        %v873 = vlaneseq
        %v874 = vshrl.u32 %v873, 7
        %v875 = vadd.s32 %v874, 8
        %876 = vset.pattern.permute.xlu0 %v875
        %877 = vperm.xlu0 %876, %v866
        %v878 = vpop.permute.xlu0 %877
        %v879 = vlaneseq
        %v880 = vshrl.u32 %v879, 7
        %v881 = vadd.s32 %v880, 16
        %882 = vset.pattern.permute.xlu0 %v881
        %883 = vperm.xlu0 %882, %v866
        %v884 = vpop.permute.xlu0 %883
        %v885 = vlaneseq
        %v886 = vshrl.u32 %v885, 7
        %v887 = vadd.s32 %v886, 24
        %888 = vset.pattern.permute.xlu0 %v887
        %889 = vperm.xlu0 %888, %v866
        %v890 = vpop.permute.xlu0 %889
        %v891 = vperm.slane %v540, 6
        %v892 = vlaneseq
        %v893 = vshrl.u32 %v892, 7
        %895 = vset.pattern.permute.xlu0 %v893
        %896 = vperm.xlu0 %895, %v891
        %v897 = vpop.permute.xlu0 %896
        %v898 = vlaneseq
        %v899 = vshrl.u32 %v898, 7
        %v900 = vadd.s32 %v899, 8
        %901 = vset.pattern.permute.xlu0 %v900
        %902 = vperm.xlu0 %901, %v891
        %v903 = vpop.permute.xlu0 %902
        %v904 = vlaneseq
        %v905 = vshrl.u32 %v904, 7
        %v906 = vadd.s32 %v905, 16
        %907 = vset.pattern.permute.xlu0 %v906
        %908 = vperm.xlu0 %907, %v891
        %v909 = vpop.permute.xlu0 %908
        %v910 = vlaneseq
        %v911 = vshrl.u32 %v910, 7
        %v912 = vadd.s32 %v911, 24
        %913 = vset.pattern.permute.xlu0 %v912
        %914 = vperm.xlu0 %913, %v891
        %v915 = vpop.permute.xlu0 %914
        %v916 = vperm.slane %v540, 7
        %v917 = vlaneseq
        %v918 = vshrl.u32 %v917, 7
        %920 = vset.pattern.permute.xlu0 %v918
        %921 = vperm.xlu0 %920, %v916
        %v922 = vpop.permute.xlu0 %921
        %v923 = vlaneseq
        %v924 = vshrl.u32 %v923, 7
        %v925 = vadd.s32 %v924, 8
        %926 = vset.pattern.permute.xlu0 %v925
        %927 = vperm.xlu0 %926, %v916
        %v928 = vpop.permute.xlu0 %927
        %v929 = vlaneseq
        %v930 = vshrl.u32 %v929, 7
        %v931 = vadd.s32 %v930, 16
        %932 = vset.pattern.permute.xlu0 %v931
        %933 = vperm.xlu0 %932, %v916
        %v934 = vpop.permute.xlu0 %933
        %v935 = vlaneseq
        %v936 = vshrl.u32 %v935, 7
        %v937 = vadd.s32 %v936, 24
        %938 = vset.pattern.permute.xlu0 %v937
        %939 = vperm.xlu0 %938, %v916
        %v940 = vpop.permute.xlu0 %939
        %v941 = vld [vmem:[#allocation6] sm:$0xff]
        %v942 = vld [vmem:[#allocation6 + $0x8] sm:$0xff]
        %v943 = vld [vmem:[#allocation6 + $0x10] sm:$0xff]
        %v944 = vld [vmem:[#allocation6 + $0x18] sm:$0xff]
        %v945 = vld [vmem:[%s472] sm:$0xff]
        %v946 = vld [vmem:[%s472 + $0x8] sm:$0xff]
        %v947 = vld [vmem:[%s472 + $0x10] sm:$0xff]
        %v948 = vld [vmem:[%s472 + $0x18] sm:$0xff]
        %v949 = vld [vmem:[%s472 + $0x20] sm:$0xff]
        %v950 = vld [vmem:[%s472 + $0x28] sm:$0xff]
        %v951 = vld [vmem:[%s472 + $0x30] sm:$0xff]
        %v952 = vld [vmem:[%s472 + $0x38] sm:$0xff]
        %v953 = vld [vmem:[%s472 + $0x40] sm:$0xff]
        %v954 = vld [vmem:[%s472 + $0x48] sm:$0xff]
        %v955 = vld [vmem:[%s472 + $0x50] sm:$0xff]
        %v956 = vld [vmem:[%s472 + $0x58] sm:$0xff]
        %v957 = vld [vmem:[%s472 + $0x60] sm:$0xff]
        %v958 = vld [vmem:[%s472 + $0x68] sm:$0xff]
        %v959 = vld [vmem:[%s472 + $0x70] sm:$0xff]
        %v960 = vld [vmem:[%s472 + $0x78] sm:$0xff]
        %v961 = vld [vmem:[%s472 + $0x80] sm:$0xff]
        %v962 = vld [vmem:[%s472 + $0x88] sm:$0xff]
        %v963 = vld [vmem:[%s472 + $0x90] sm:$0xff]
        %v964 = vld [vmem:[%s472 + $0x98] sm:$0xff]
        %v965 = vld [vmem:[%s472 + $0xa0] sm:$0xff]
        %v966 = vld [vmem:[%s472 + $0xa8] sm:$0xff]
        %v967 = vld [vmem:[%s472 + $0xb0] sm:$0xff]
        %v968 = vld [vmem:[%s472 + $0xb8] sm:$0xff]
        %v969 = vld [vmem:[%s472 + $0xc0] sm:$0xff]
        %v970 = vld [vmem:[%s472 + $0xc8] sm:$0xff]
        %v971 = vld [vmem:[%s472 + $0xd0] sm:$0xff]
        %v972 = vld [vmem:[%s472 + $0xd8] sm:$0xff]
        %v973 = vld [vmem:[%s472 + $0xe0] sm:$0xff]
        %v974 = vld [vmem:[%s472 + $0xe8] sm:$0xff]
        %v975 = vld [vmem:[%s472 + $0xf0] sm:$0xff]
        %v976 = vld [vmem:[%s472 + $0xf8] sm:$0xff]
        %v977 = vld [vmem:[%s472 + $0x100] sm:$0xff]
        %v978 = vld [vmem:[%s472 + $0x108] sm:$0xff]
        %v979 = vld [vmem:[%s472 + $0x110] sm:$0xff]
        %v980 = vld [vmem:[%s472 + $0x118] sm:$0xff]
        %v981 = vld [vmem:[%s472 + $0x120] sm:$0xff]
        %v982 = vld [vmem:[%s472 + $0x128] sm:$0xff]
        %v983 = vld [vmem:[%s472 + $0x130] sm:$0xff]
        %v984 = vld [vmem:[%s472 + $0x138] sm:$0xff]
        %v985 = vld [vmem:[%s472 + $0x140] sm:$0xff]
        %v986 = vld [vmem:[%s472 + $0x148] sm:$0xff]
        %v987 = vld [vmem:[%s472 + $0x150] sm:$0xff]
        %v988 = vld [vmem:[%s472 + $0x158] sm:$0xff]
        %v989 = vld [vmem:[%s472 + $0x160] sm:$0xff]
        %v990 = vld [vmem:[%s472 + $0x168] sm:$0xff]
        %v991 = vld [vmem:[%s472 + $0x170] sm:$0xff]
        %v992 = vld [vmem:[%s472 + $0x178] sm:$0xff]
        %v993 = vld [vmem:[%s472 + $0x180] sm:$0xff]
        %v994 = vld [vmem:[%s472 + $0x188] sm:$0xff]
        %v995 = vld [vmem:[%s472 + $0x190] sm:$0xff]
        %v996 = vld [vmem:[%s472 + $0x198] sm:$0xff]
        %v997 = vld [vmem:[%s472 + $0x1a0] sm:$0xff]
        %v998 = vld [vmem:[%s472 + $0x1a8] sm:$0xff]
        %v999 = vld [vmem:[%s472 + $0x1b0] sm:$0xff]
        %v1000 = vld [vmem:[%s472 + $0x1b8] sm:$0xff]
        %v1001 = vld [vmem:[%s472 + $0x1c0] sm:$0xff]
        %v1002 = vld [vmem:[%s472 + $0x1c8] sm:$0xff]
        %v1003 = vld [vmem:[%s472 + $0x1d0] sm:$0xff]
        %v1004 = vld [vmem:[%s472 + $0x1d8] sm:$0xff]
        %v1005 = vld [vmem:[%s472 + $0x1e0] sm:$0xff]
        %v1006 = vld [vmem:[%s472 + $0x1e8] sm:$0xff]
        %v1007 = vld [vmem:[%s472 + $0x1f0] sm:$0xff]
        %v1008 = vld [vmem:[%s472 + $0x1f8] sm:$0xff]
        %v1009 = vld [vmem:[#allocation8] sm:$0xff]
        %v1010 = vld [vmem:[#allocation8 + $0x8] sm:$0xff]
        %v1011 = vld [vmem:[#allocation8 + $0x10] sm:$0xff]
        %v1012 = vld [vmem:[#allocation8 + $0x18] sm:$0xff]
        %v1013 = vmul.f32 %v945, %v1009
        %v1014 = vmul.f32 %v946, %v1010
        %v1015 = vmul.f32 %v947, %v1011
        %v1016 = vmul.f32 %v948, %v1012
        %v1017 = vmul.f32 %v949, %v1009
        %v1018 = vmul.f32 %v950, %v1010
        %v1019 = vmul.f32 %v951, %v1011
        %v1020 = vmul.f32 %v952, %v1012
        %v1021 = vmul.f32 %v953, %v1009
        %v1022 = vmul.f32 %v954, %v1010
        %v1023 = vmul.f32 %v955, %v1011
        %v1024 = vmul.f32 %v956, %v1012
        %v1025 = vmul.f32 %v957, %v1009
        %v1026 = vmul.f32 %v958, %v1010
        %v1027 = vmul.f32 %v959, %v1011
        %v1028 = vmul.f32 %v960, %v1012
        %v1029 = vmul.f32 %v961, %v1009
        %v1030 = vmul.f32 %v962, %v1010
        %v1031 = vmul.f32 %v963, %v1011
        %v1032 = vmul.f32 %v964, %v1012
        %v1033 = vmul.f32 %v965, %v1009
        %v1034 = vmul.f32 %v966, %v1010
        %v1035 = vmul.f32 %v967, %v1011
        %v1036 = vmul.f32 %v968, %v1012
        %v1037 = vmul.f32 %v969, %v1009
        %v1038 = vmul.f32 %v970, %v1010
        %v1039 = vmul.f32 %v971, %v1011
        %v1040 = vmul.f32 %v972, %v1012
        %v1041 = vmul.f32 %v973, %v1009
        %v1042 = vmul.f32 %v974, %v1010
        %v1043 = vmul.f32 %v975, %v1011
        %v1044 = vmul.f32 %v976, %v1012
        %v1045 = vmul.f32 %v977, %v1009
        %v1046 = vmul.f32 %v978, %v1010
        %v1047 = vmul.f32 %v979, %v1011
        %v1048 = vmul.f32 %v980, %v1012
        %v1049 = vmul.f32 %v981, %v1009
        %v1050 = vmul.f32 %v982, %v1010
        %v1051 = vmul.f32 %v983, %v1011
        %v1052 = vmul.f32 %v984, %v1012
        %v1053 = vmul.f32 %v985, %v1009
        %v1054 = vmul.f32 %v986, %v1010
        %v1055 = vmul.f32 %v987, %v1011
        %v1056 = vmul.f32 %v988, %v1012
        %v1057 = vmul.f32 %v989, %v1009
        %v1058 = vmul.f32 %v990, %v1010
        %v1059 = vmul.f32 %v991, %v1011
        %v1060 = vmul.f32 %v992, %v1012
        %v1061 = vmul.f32 %v993, %v1009
        %v1062 = vmul.f32 %v994, %v1010
        %v1063 = vmul.f32 %v995, %v1011
        %v1064 = vmul.f32 %v996, %v1012
        %v1065 = vmul.f32 %v997, %v1009
        %v1066 = vmul.f32 %v998, %v1010
        %v1067 = vmul.f32 %v999, %v1011
        %v1068 = vmul.f32 %v1000, %v1012
        %v1069 = vmul.f32 %v1001, %v1009
        %v1070 = vmul.f32 %v1002, %v1010
        %v1071 = vmul.f32 %v1003, %v1011
        %v1072 = vmul.f32 %v1004, %v1012
        %v1073 = vmul.f32 %v1005, %v1009
        %v1074 = vmul.f32 %v1006, %v1010
        %v1075 = vmul.f32 %v1007, %v1011
        %v1076 = vmul.f32 %v1008, %v1012
        %v1077 = vmul.f32 %v1013, %v547
        %v1078 = vmul.f32 %v1014, %v553
        %v1079 = vmul.f32 %v1015, %v559
        %v1080 = vmul.f32 %v1016, %v565
        %v1081 = vmul.f32 %v1017, %v572
        %v1082 = vmul.f32 %v1018, %v578
        %v1083 = vmul.f32 %v1019, %v584
        %v1084 = vmul.f32 %v1020, %v590
        %v1085 = vmul.f32 %v1021, %v597
        %v1086 = vmul.f32 %v1022, %v603
        %v1087 = vmul.f32 %v1023, %v609
        %v1088 = vmul.f32 %v1024, %v615
        %v1089 = vmul.f32 %v1025, %v622
        %v1090 = vmul.f32 %v1026, %v628
        %v1091 = vmul.f32 %v1027, %v634
        %v1092 = vmul.f32 %v1028, %v640
        %v1093 = vmul.f32 %v1029, %v647
        %v1094 = vmul.f32 %v1030, %v653
        %v1095 = vmul.f32 %v1031, %v659
        %v1096 = vmul.f32 %v1032, %v665
        %v1097 = vmul.f32 %v1033, %v672
        %v1098 = vmul.f32 %v1034, %v678
        %v1099 = vmul.f32 %v1035, %v684
        %v1100 = vmul.f32 %v1036, %v690
        %v1101 = vmul.f32 %v1037, %v697
        %v1102 = vmul.f32 %v1038, %v703
        %v1103 = vmul.f32 %v1039, %v709
        %v1104 = vmul.f32 %v1040, %v715
        %v1105 = vmul.f32 %v1041, %v722
        %v1106 = vmul.f32 %v1042, %v728
        %v1107 = vmul.f32 %v1043, %v734
        %v1108 = vmul.f32 %v1044, %v740
        %v1109 = vmul.f32 %v1045, %v747
        %v1110 = vmul.f32 %v1046, %v753
        %v1111 = vmul.f32 %v1047, %v759
        %v1112 = vmul.f32 %v1048, %v765
        %v1113 = vmul.f32 %v1049, %v772
        %v1114 = vmul.f32 %v1050, %v778
        %v1115 = vmul.f32 %v1051, %v784
        %v1116 = vmul.f32 %v1052, %v790
        %v1117 = vmul.f32 %v1053, %v797
        %v1118 = vmul.f32 %v1054, %v803
        %v1119 = vmul.f32 %v1055, %v809
        %v1120 = vmul.f32 %v1056, %v815
        %v1121 = vmul.f32 %v1057, %v822
        %v1122 = vmul.f32 %v1058, %v828
        %v1123 = vmul.f32 %v1059, %v834
        %v1124 = vmul.f32 %v1060, %v840
        %v1125 = vmul.f32 %v1061, %v847
        %v1126 = vmul.f32 %v1062, %v853
        %v1127 = vmul.f32 %v1063, %v859
        %v1128 = vmul.f32 %v1064, %v865
        %v1129 = vmul.f32 %v1065, %v872
        %v1130 = vmul.f32 %v1066, %v878
        %v1131 = vmul.f32 %v1067, %v884
        %v1132 = vmul.f32 %v1068, %v890
        %v1133 = vmul.f32 %v1069, %v897
        %v1134 = vmul.f32 %v1070, %v903
        %v1135 = vmul.f32 %v1071, %v909
        %v1136 = vmul.f32 %v1072, %v915
        %v1137 = vmul.f32 %v1073, %v922
        %v1138 = vmul.f32 %v1074, %v928
        %v1139 = vmul.f32 %v1075, %v934
        %v1140 = vmul.f32 %v1076, %v940
        %v1141 = vadd.f32 %v1077, %v1078
        %v1142 = vadd.f32 %v1141, %v1079
        %v1143 = vadd.f32 %v1142, %v1080
        %v1144 = vrot.slane %v1143, 4
        %v1145 = vadd.f32 %v1143, %v1144
        %v1146 = vrot.slane %v1145, 2
        %v1147 = vadd.f32 %v1145, %v1146
        %v1148 = vrot.slane %v1147, 1
        %v1149 = vadd.f32 %v1147, %v1148
        %v1150 = vadd.f32 %v1081, %v1082
        %v1151 = vadd.f32 %v1150, %v1083
        %v1152 = vadd.f32 %v1151, %v1084
        %v1153 = vrot.slane %v1152, 4
        %v1154 = vadd.f32 %v1152, %v1153
        %v1155 = vrot.slane %v1154, 2
        %v1156 = vadd.f32 %v1154, %v1155
        %v1157 = vrot.slane %v1156, 1
        %v1158 = vadd.f32 %v1156, %v1157
        %v1159 = vadd.f32 %v1085, %v1086
        %v1160 = vadd.f32 %v1159, %v1087
        %v1161 = vadd.f32 %v1160, %v1088
        %v1162 = vrot.slane %v1161, 4
        %v1163 = vadd.f32 %v1161, %v1162
        %v1164 = vrot.slane %v1163, 2
        %v1165 = vadd.f32 %v1163, %v1164
        %v1166 = vrot.slane %v1165, 1
        %v1167 = vadd.f32 %v1165, %v1166
        %v1168 = vadd.f32 %v1089, %v1090
        %v1169 = vadd.f32 %v1168, %v1091
        %v1170 = vadd.f32 %v1169, %v1092
        %v1171 = vrot.slane %v1170, 4
        %v1172 = vadd.f32 %v1170, %v1171
        %v1173 = vrot.slane %v1172, 2
        %v1174 = vadd.f32 %v1172, %v1173
        %v1175 = vrot.slane %v1174, 1
        %v1176 = vadd.f32 %v1174, %v1175
        %v1177 = vadd.f32 %v1093, %v1094
        %v1178 = vadd.f32 %v1177, %v1095
        %v1179 = vadd.f32 %v1178, %v1096
        %v1180 = vrot.slane %v1179, 4
        %v1181 = vadd.f32 %v1179, %v1180
        %v1182 = vrot.slane %v1181, 2
        %v1183 = vadd.f32 %v1181, %v1182
        %v1184 = vrot.slane %v1183, 1
        %v1185 = vadd.f32 %v1183, %v1184
        %v1186 = vadd.f32 %v1097, %v1098
        %v1187 = vadd.f32 %v1186, %v1099
        %v1188 = vadd.f32 %v1187, %v1100
        %v1189 = vrot.slane %v1188, 4
        %v1190 = vadd.f32 %v1188, %v1189
        %v1191 = vrot.slane %v1190, 2
        %v1192 = vadd.f32 %v1190, %v1191
        %v1193 = vrot.slane %v1192, 1
        %v1194 = vadd.f32 %v1192, %v1193
        %v1195 = vadd.f32 %v1101, %v1102
        %v1196 = vadd.f32 %v1195, %v1103
        %v1197 = vadd.f32 %v1196, %v1104
        %v1198 = vrot.slane %v1197, 4
        %v1199 = vadd.f32 %v1197, %v1198
        %v1200 = vrot.slane %v1199, 2
        %v1201 = vadd.f32 %v1199, %v1200
        %v1202 = vrot.slane %v1201, 1
        %v1203 = vadd.f32 %v1201, %v1202
        %v1204 = vadd.f32 %v1105, %v1106
        %v1205 = vadd.f32 %v1204, %v1107
        %v1206 = vadd.f32 %v1205, %v1108
        %v1207 = vrot.slane %v1206, 4
        %v1208 = vadd.f32 %v1206, %v1207
        %v1209 = vrot.slane %v1208, 2
        %v1210 = vadd.f32 %v1208, %v1209
        %v1211 = vrot.slane %v1210, 1
        %v1212 = vadd.f32 %v1210, %v1211
        %v1213 = vadd.f32 %v1109, %v1110
        %v1214 = vadd.f32 %v1213, %v1111
        %v1215 = vadd.f32 %v1214, %v1112
        %v1216 = vrot.slane %v1215, 4
        %v1217 = vadd.f32 %v1215, %v1216
        %v1218 = vrot.slane %v1217, 2
        %v1219 = vadd.f32 %v1217, %v1218
        %v1220 = vrot.slane %v1219, 1
        %v1221 = vadd.f32 %v1219, %v1220
        %v1222 = vadd.f32 %v1113, %v1114
        %v1223 = vadd.f32 %v1222, %v1115
        %v1224 = vadd.f32 %v1223, %v1116
        %v1225 = vrot.slane %v1224, 4
        %v1226 = vadd.f32 %v1224, %v1225
        %v1227 = vrot.slane %v1226, 2
        %v1228 = vadd.f32 %v1226, %v1227
        %v1229 = vrot.slane %v1228, 1
        %v1230 = vadd.f32 %v1228, %v1229
        %v1231 = vadd.f32 %v1117, %v1118
        %v1232 = vadd.f32 %v1231, %v1119
        %v1233 = vadd.f32 %v1232, %v1120
        %v1234 = vrot.slane %v1233, 4
        %v1235 = vadd.f32 %v1233, %v1234
        %v1236 = vrot.slane %v1235, 2
        %v1237 = vadd.f32 %v1235, %v1236
        %v1238 = vrot.slane %v1237, 1
        %v1239 = vadd.f32 %v1237, %v1238
        %v1240 = vadd.f32 %v1121, %v1122
        %v1241 = vadd.f32 %v1240, %v1123
        %v1242 = vadd.f32 %v1241, %v1124
        %v1243 = vrot.slane %v1242, 4
        %v1244 = vadd.f32 %v1242, %v1243
        %v1245 = vrot.slane %v1244, 2
        %v1246 = vadd.f32 %v1244, %v1245
        %v1247 = vrot.slane %v1246, 1
        %v1248 = vadd.f32 %v1246, %v1247
        %v1249 = vadd.f32 %v1125, %v1126
        %v1250 = vadd.f32 %v1249, %v1127
        %v1251 = vadd.f32 %v1250, %v1128
        %v1252 = vrot.slane %v1251, 4
        %v1253 = vadd.f32 %v1251, %v1252
        %v1254 = vrot.slane %v1253, 2
        %v1255 = vadd.f32 %v1253, %v1254
        %v1256 = vrot.slane %v1255, 1
        %v1257 = vadd.f32 %v1255, %v1256
        %v1258 = vadd.f32 %v1129, %v1130
        %v1259 = vadd.f32 %v1258, %v1131
        %v1260 = vadd.f32 %v1259, %v1132
        %v1261 = vrot.slane %v1260, 4
        %v1262 = vadd.f32 %v1260, %v1261
        %v1263 = vrot.slane %v1262, 2
        %v1264 = vadd.f32 %v1262, %v1263
        %v1265 = vrot.slane %v1264, 1
        %v1266 = vadd.f32 %v1264, %v1265
        %v1267 = vadd.f32 %v1133, %v1134
        %v1268 = vadd.f32 %v1267, %v1135
        %v1269 = vadd.f32 %v1268, %v1136
        %v1270 = vrot.slane %v1269, 4
        %v1271 = vadd.f32 %v1269, %v1270
        %v1272 = vrot.slane %v1271, 2
        %v1273 = vadd.f32 %v1271, %v1272
        %v1274 = vrot.slane %v1273, 1
        %v1275 = vadd.f32 %v1273, %v1274
        %v1276 = vadd.f32 %v1137, %v1138
        %v1277 = vadd.f32 %v1276, %v1139
        %v1278 = vadd.f32 %v1277, %v1140
        %v1279 = vrot.slane %v1278, 4
        %v1280 = vadd.f32 %v1278, %v1279
        %v1281 = vrot.slane %v1280, 2
        %v1282 = vadd.f32 %v1280, %v1281
        %v1283 = vrot.slane %v1282, 1
        %v1284 = vadd.f32 %v1282, %v1283
        %vm1301 = vcmask 1041409
        %v1302 = vsel %vm1301, %v1158, %v1149
        %vm1303 = vcmask 1042434
        %v1304 = vsel %vm1303, %v1167, %v1302
        %vm1305 = vcmask 1043459
        %v1306 = vsel %vm1305, %v1176, %v1304
        %vm1307 = vcmask 1044484
        %v1308 = vsel %vm1307, %v1185, %v1306
        %vm1309 = vcmask 1045509
        %v1310 = vsel %vm1309, %v1194, %v1308
        %vm1311 = vcmask 1046534
        %v1312 = vsel %vm1311, %v1203, %v1310
        %vm1313 = vcmask 1047559
        %v1314 = vsel %vm1313, %v1212, %v1312
        %v1315 = vsel %vm1301, %v1230, %v1221
        %v1316 = vsel %vm1303, %v1239, %v1315
        %v1317 = vsel %vm1305, %v1248, %v1316
        %v1318 = vsel %vm1307, %v1257, %v1317
        %v1319 = vsel %vm1309, %v1266, %v1318
        %v1320 = vsel %vm1311, %v1275, %v1319
        %v1321 = vsel %vm1313, %v1284, %v1320
        %vm1324 = vcmask 261120
        %v1326 = vsel %vm1324, %v539, 0
        %v1329 = vsel %vm1324, %v540, 0
        %1331 = vmatpush.msra.mxu0 0.0
        %1332 = vmatpush.msra.mxu0 0.0
        %1333 = vmatpush.msra.mxu0 0.0
        %1334 = vmatpush.msra.mxu0 0.0
        %1335 = vmatpush.msra.mxu0 0.0
        %1336 = vmatpush.msra.mxu0 0.0
        %1337 = vmatpush.msra.mxu0 0.0
        %1338 = vmatpush.msra.mxu0 0.0
        %1339 = vmatpush.msra.mxu0 0.0
        %1340 = vmatpush.msra.mxu0 0.0
        %1341 = vmatpush.msra.mxu0 0.0
        %1342 = vmatpush.msra.mxu0 0.0
        %1343 = vmatpush.msra.mxu0 %v944
        %1344 = vmatpush.msra.mxu0 %v943
        %1345 = vmatpush.msra.mxu0 %v942
        %1346 = vmatpush.msra.mxu0 %v941
        %1347 = vmatmul.f32.gmra.mxu0 %v1326
        %v1348 = vpop.f32.mrf.mxu0
        %v1349 = vadd.f32 %v1314, %v1348
        %1350 = vmatmul.f32.gmra.mxu0 %v1329
        %v1351 = vpop.f32.mrf.mxu0
        %v1352 = vadd.f32 %v1321, %v1351
        %1353 = vdwg.mxu0
        %1354 = vadd.xlane.f32.xlu0 %v1349
        %v1355 = vpop.xlane.xlu0 %1354
        %1356 = vadd.xlane.f32.xlu0 %v1352
        %v1357 = vpop.xlane.xlu0 %1356
        %v1358 = vrcp.pop 128.0
        %v1359 = vmul.f32 128.0, %v1358
        %v1360 = vsub.f32 1.0, %v1359
        %v1361 = vmul.f32 %v1358, %v1360
        %v1362 = vadd.f32 %v1358, %v1361
        %vm1363 = vweird.f32 %v1358
        %v1364 = vsel %vm1363, %v1358, %v1362
        %v1365 = vmul.f32 %v1355, %v1364
        %v1366 = vmul.f32 %v1357, %v1364
        %v1367 = vsub.f32 %v1349, %v1365
        %v1368 = vsub.f32 %v1352, %v1366
        %v1369 = vmul.f32 %v1367, %v1367
        %v1370 = vmul.f32 %v1368, %v1368
        %1371 = vadd.xlane.f32.xlu0 %v1369
        %v1372 = vpop.xlane.xlu0 %1371
        %1373 = vadd.xlane.f32.xlu0 %v1370
        %v1374 = vpop.xlane.xlu0 %1373
        %v1375 = vmul.f32 %v1372, %v1364
        %v1376 = vmul.f32 %v1374, %v1364
        %v1377 = vadd.f32 %v1375, 1e-05
        %v1378 = vadd.f32 %v1376, 1e-05
        %v1379 = vrsqrt.pop %v1377
        %v1380 = vmul.f32 %v1379, %v1377
        %v1381 = vmul.f32 %v1380, %v1379
        %v1382 = vmul.f32 0.5, %v1381
        %v1383 = vsub.f32 1.5, %v1382
        %v1384 = vmul.f32 %v1379, %v1383
        %vm1385 = vweird.f32 %v1377
        %vm1386 = vweird.f32 %v1379
        %vm1387 = vmor %vm1385, %vm1386
        %v1388 = vsel %vm1387, %v1379, %v1384
        %v1389 = vrsqrt.pop %v1378
        %v1390 = vmul.f32 %v1389, %v1378
        %v1391 = vmul.f32 %v1390, %v1389
        %v1392 = vmul.f32 0.5, %v1391
        %v1393 = vsub.f32 1.5, %v1392
        %v1394 = vmul.f32 %v1389, %v1393
        %vm1395 = vweird.f32 %v1378
        %vm1396 = vweird.f32 %v1389
        %vm1397 = vmor %vm1395, %vm1396
        %v1398 = vsel %vm1397, %v1389, %v1394
        %v1399 = vmul.f32 %v1367, %v1388
        %v1400 = vmul.f32 %v1368, %v1398
        %v1401 = vld [vmem:[%s4] sm:$0x1]
        %v1403 = vperm.slane %v1401, 0
        %v1405 = vmul.f32 %v1399, %v1403
        %v1406 = vmul.f32 %v1400, %v1403
        %v1407 = vld [vmem:[%s5] sm:$0x1]
        %v1409 = vperm.slane %v1407, 0
        %v1411 = vadd.f32 %v1405, %v1409
        %v1412 = vadd.f32 %v1406, %v1409
        %v1413 = vtanh.pop %v1411
        %v1414 = vtanh.pop %v1412
        %v1415 = vld [vmem:[%s6] sm:$0x1]
        %v1417 = vperm.slane %v1415, 0
        %v1419 = vmul.f32 %v1413, %v1417
        %v1420 = vmul.f32 %v1414, %v1417
        %1421 = vadd.xlane.f32.xlu0 %v1419
        %v1422 = vpop.xlane.xlu0 %1421
        %1423 = vadd.xlane.f32.xlu0 %v1420
        %v1424 = vpop.xlane.xlu0 %1423
        %s1425 = sld [smem:[#allocation2]]
        %v1426 = vstv %s1425
        %v1427 = vadd.f32 %v1422, %v1426
        %v1428 = vadd.f32 %v1424, %v1426
        %v1429 = vtanh.pop %v1427
        %v1430 = vtanh.pop %v1428
        %v1431 = vld [vmem:[%s8] sm:$0x1]
        %v1433 = vperm.slane %v1431, 0
        %v1435 = vmul.f32 %v1429, %v1433
        %v1436 = vmul.f32 %v1430, %v1433
        %v1437 = vld [vmem:[%s9] sm:$0x1]
        %v1439 = vperm.slane %v1437, 0
        %v1441 = vadd.f32 %v1435, %v1439
        %v1442 = vadd.f32 %v1436, %v1439
        %v1443 = vmul.f32 %v1441, %v1413
        %v1444 = vmul.f32 %v1442, %v1414
        %v1447 = vrot.slane %v1443, 1
        %v1448 = vrot.slane %v1443, 2
        %v1449 = vrot.slane %v1443, 3
        %v1450 = vrot.slane %v1443, 4
        %v1451 = vrot.slane %v1443, 5
        %v1452 = vrot.slane %v1443, 6
        %v1453 = vrot.slane %v1443, 7
        %v1454 = vrot.slane %v1444, 1
        %v1455 = vrot.slane %v1444, 2
        %v1456 = vrot.slane %v1444, 3
        %v1457 = vrot.slane %v1444, 4
        %v1458 = vrot.slane %v1444, 5
        %v1459 = vrot.slane %v1444, 6
        %v1460 = vrot.slane %v1444, 7
        %v1461 = vperm.slane %v1443, 0
        %v1462 = vperm.slane %v1447, 0
        %v1463 = vperm.slane %v1448, 0
        %v1464 = vperm.slane %v1449, 0
        %v1465 = vperm.slane %v1450, 0
        %v1466 = vperm.slane %v1451, 0
        %v1467 = vperm.slane %v1452, 0
        %v1468 = vperm.slane %v1453, 0
        %v1469 = vperm.slane %v1444, 0
        %v1470 = vperm.slane %v1454, 0
        %v1471 = vperm.slane %v1455, 0
        %v1472 = vperm.slane %v1456, 0
        %v1473 = vperm.slane %v1457, 0
        %v1474 = vperm.slane %v1458, 0
        %v1475 = vperm.slane %v1459, 0
        %v1476 = vperm.slane %v1460, 0
        %v1493 = vmul.f32 %v1461, %v547
        %v1494 = vmul.f32 %v1461, %v553
        %v1495 = vmul.f32 %v1461, %v559
        %v1496 = vmul.f32 %v1461, %v565
        %v1497 = vmul.f32 %v1462, %v572
        %v1498 = vmul.f32 %v1462, %v578
        %v1499 = vmul.f32 %v1462, %v584
        %v1500 = vmul.f32 %v1462, %v590
        %v1501 = vmul.f32 %v1463, %v597
        %v1502 = vmul.f32 %v1463, %v603
        %v1503 = vmul.f32 %v1463, %v609
        %v1504 = vmul.f32 %v1463, %v615
        %v1505 = vmul.f32 %v1464, %v622
        %v1506 = vmul.f32 %v1464, %v628
        %v1507 = vmul.f32 %v1464, %v634
        %v1508 = vmul.f32 %v1464, %v640
        %v1509 = vmul.f32 %v1465, %v647
        %v1510 = vmul.f32 %v1465, %v653
        %v1511 = vmul.f32 %v1465, %v659
        %v1512 = vmul.f32 %v1465, %v665
        %v1513 = vmul.f32 %v1466, %v672
        %v1514 = vmul.f32 %v1466, %v678
        %v1515 = vmul.f32 %v1466, %v684
        %v1516 = vmul.f32 %v1466, %v690
        %v1517 = vmul.f32 %v1467, %v697
        %v1518 = vmul.f32 %v1467, %v703
        %v1519 = vmul.f32 %v1467, %v709
        %v1520 = vmul.f32 %v1467, %v715
        %v1521 = vmul.f32 %v1468, %v722
        %v1522 = vmul.f32 %v1468, %v728
        %v1523 = vmul.f32 %v1468, %v734
        %v1524 = vmul.f32 %v1468, %v740
        %v1525 = vmul.f32 %v1469, %v747
        %v1526 = vmul.f32 %v1469, %v753
        %v1527 = vmul.f32 %v1469, %v759
        %v1528 = vmul.f32 %v1469, %v765
        %v1529 = vmul.f32 %v1470, %v772
        %v1530 = vmul.f32 %v1470, %v778
        %v1531 = vmul.f32 %v1470, %v784
        %v1532 = vmul.f32 %v1470, %v790
        %v1533 = vmul.f32 %v1471, %v797
        %v1534 = vmul.f32 %v1471, %v803
        %v1535 = vmul.f32 %v1471, %v809
        %v1536 = vmul.f32 %v1471, %v815
        %v1537 = vmul.f32 %v1472, %v822
        %v1538 = vmul.f32 %v1472, %v828
        %v1539 = vmul.f32 %v1472, %v834
        %v1540 = vmul.f32 %v1472, %v840
        %v1541 = vmul.f32 %v1473, %v847
        %v1542 = vmul.f32 %v1473, %v853
        %v1543 = vmul.f32 %v1473, %v859
        %v1544 = vmul.f32 %v1473, %v865
        %v1545 = vmul.f32 %v1474, %v872
        %v1546 = vmul.f32 %v1474, %v878
        %v1547 = vmul.f32 %v1474, %v884
        %v1548 = vmul.f32 %v1474, %v890
        %v1549 = vmul.f32 %v1475, %v897
        %v1550 = vmul.f32 %v1475, %v903
        %v1551 = vmul.f32 %v1475, %v909
        %v1552 = vmul.f32 %v1475, %v915
        %v1553 = vmul.f32 %v1476, %v922
        %v1554 = vmul.f32 %v1476, %v928
        %v1555 = vmul.f32 %v1476, %v934
        %v1556 = vmul.f32 %v1476, %v940
        %v1557 = vadd.f32 %v945, %v1493
        %v1558 = vadd.f32 %v946, %v1494
        %v1559 = vadd.f32 %v947, %v1495
        %v1560 = vadd.f32 %v948, %v1496
        %v1561 = vadd.f32 %v949, %v1497
        %v1562 = vadd.f32 %v950, %v1498
        %v1563 = vadd.f32 %v951, %v1499
        %v1564 = vadd.f32 %v952, %v1500
        %v1565 = vadd.f32 %v953, %v1501
        %v1566 = vadd.f32 %v954, %v1502
        %v1567 = vadd.f32 %v955, %v1503
        %v1568 = vadd.f32 %v956, %v1504
        %v1569 = vadd.f32 %v957, %v1505
        %v1570 = vadd.f32 %v958, %v1506
        %v1571 = vadd.f32 %v959, %v1507
        %v1572 = vadd.f32 %v960, %v1508
        %v1573 = vadd.f32 %v961, %v1509
        %v1574 = vadd.f32 %v962, %v1510
        %v1575 = vadd.f32 %v963, %v1511
        %v1576 = vadd.f32 %v964, %v1512
        %v1577 = vadd.f32 %v965, %v1513
        %v1578 = vadd.f32 %v966, %v1514
        %v1579 = vadd.f32 %v967, %v1515
        %v1580 = vadd.f32 %v968, %v1516
        %v1581 = vadd.f32 %v969, %v1517
        %v1582 = vadd.f32 %v970, %v1518
        %v1583 = vadd.f32 %v971, %v1519
        %v1584 = vadd.f32 %v972, %v1520
        %v1585 = vadd.f32 %v973, %v1521
        %v1586 = vadd.f32 %v974, %v1522
        %v1587 = vadd.f32 %v975, %v1523
        %v1588 = vadd.f32 %v976, %v1524
        %v1589 = vadd.f32 %v977, %v1525
        %v1590 = vadd.f32 %v978, %v1526
        %v1591 = vadd.f32 %v979, %v1527
        %v1592 = vadd.f32 %v980, %v1528
        %v1593 = vadd.f32 %v981, %v1529
        %v1594 = vadd.f32 %v982, %v1530
        %v1595 = vadd.f32 %v983, %v1531
        %v1596 = vadd.f32 %v984, %v1532
        %v1597 = vadd.f32 %v985, %v1533
        %v1598 = vadd.f32 %v986, %v1534
        %v1599 = vadd.f32 %v987, %v1535
        %v1600 = vadd.f32 %v988, %v1536
        %v1601 = vadd.f32 %v989, %v1537
        %v1602 = vadd.f32 %v990, %v1538
        %v1603 = vadd.f32 %v991, %v1539
        %v1604 = vadd.f32 %v992, %v1540
        %v1605 = vadd.f32 %v993, %v1541
        %v1606 = vadd.f32 %v994, %v1542
        %v1607 = vadd.f32 %v995, %v1543
        %v1608 = vadd.f32 %v996, %v1544
        %v1609 = vadd.f32 %v997, %v1545
        %v1610 = vadd.f32 %v998, %v1546
        %v1611 = vadd.f32 %v999, %v1547
        %v1612 = vadd.f32 %v1000, %v1548
        %v1613 = vadd.f32 %v1001, %v1549
        %v1614 = vadd.f32 %v1002, %v1550
        %v1615 = vadd.f32 %v1003, %v1551
        %v1616 = vadd.f32 %v1004, %v1552
        %v1617 = vadd.f32 %v1005, %v1553
        %v1618 = vadd.f32 %v1006, %v1554
        %v1619 = vadd.f32 %v1007, %v1555
        %v1620 = vadd.f32 %v1008, %v1556
        %v1621 = vmax.f32 %v1557, -2.0
        %v1622 = vmax.f32 %v1558, -2.0
        %v1623 = vmax.f32 %v1559, -2.0
        %v1624 = vmax.f32 %v1560, -2.0
        %v1625 = vmax.f32 %v1561, -2.0
        %v1626 = vmax.f32 %v1562, -2.0
        %v1627 = vmax.f32 %v1563, -2.0
        %v1628 = vmax.f32 %v1564, -2.0
        %v1629 = vmax.f32 %v1565, -2.0
        %v1630 = vmax.f32 %v1566, -2.0
        %v1631 = vmax.f32 %v1567, -2.0
        %v1632 = vmax.f32 %v1568, -2.0
        %v1633 = vmax.f32 %v1569, -2.0
        %v1634 = vmax.f32 %v1570, -2.0
        %v1635 = vmax.f32 %v1571, -2.0
        %v1636 = vmax.f32 %v1572, -2.0
        %v1637 = vmax.f32 %v1573, -2.0
        %v1638 = vmax.f32 %v1574, -2.0
        %v1639 = vmax.f32 %v1575, -2.0
        %v1640 = vmax.f32 %v1576, -2.0
        %v1641 = vmax.f32 %v1577, -2.0
        %v1642 = vmax.f32 %v1578, -2.0
        %v1643 = vmax.f32 %v1579, -2.0
        %v1644 = vmax.f32 %v1580, -2.0
        %v1645 = vmax.f32 %v1581, -2.0
        %v1646 = vmax.f32 %v1582, -2.0
        %v1647 = vmax.f32 %v1583, -2.0
        %v1648 = vmax.f32 %v1584, -2.0
        %v1649 = vmax.f32 %v1585, -2.0
        %v1650 = vmax.f32 %v1586, -2.0
        %v1651 = vmax.f32 %v1587, -2.0
        %v1652 = vmax.f32 %v1588, -2.0
        %v1653 = vmax.f32 %v1589, -2.0
        %v1654 = vmax.f32 %v1590, -2.0
        %v1655 = vmax.f32 %v1591, -2.0
        %v1656 = vmax.f32 %v1592, -2.0
        %v1657 = vmax.f32 %v1593, -2.0
        %v1658 = vmax.f32 %v1594, -2.0
        %v1659 = vmax.f32 %v1595, -2.0
        %v1660 = vmax.f32 %v1596, -2.0
        %v1661 = vmax.f32 %v1597, -2.0
        %v1662 = vmax.f32 %v1598, -2.0
        %v1663 = vmax.f32 %v1599, -2.0
        %v1664 = vmax.f32 %v1600, -2.0
        %v1665 = vmax.f32 %v1601, -2.0
        %v1666 = vmax.f32 %v1602, -2.0
        %v1667 = vmax.f32 %v1603, -2.0
        %v1668 = vmax.f32 %v1604, -2.0
        %v1669 = vmax.f32 %v1605, -2.0
        %v1670 = vmax.f32 %v1606, -2.0
        %v1671 = vmax.f32 %v1607, -2.0
        %v1672 = vmax.f32 %v1608, -2.0
        %v1673 = vmax.f32 %v1609, -2.0
        %v1674 = vmax.f32 %v1610, -2.0
        %v1675 = vmax.f32 %v1611, -2.0
        %v1676 = vmax.f32 %v1612, -2.0
        %v1677 = vmax.f32 %v1613, -2.0
        %v1678 = vmax.f32 %v1614, -2.0
        %v1679 = vmax.f32 %v1615, -2.0
        %v1680 = vmax.f32 %v1616, -2.0
        %v1681 = vmax.f32 %v1617, -2.0
        %v1682 = vmax.f32 %v1618, -2.0
        %v1683 = vmax.f32 %v1619, -2.0
        %v1684 = vmax.f32 %v1620, -2.0
        %v1685 = vmin.f32 %v1621, 2.0
        %v1686 = vmin.f32 %v1622, 2.0
        %v1687 = vmin.f32 %v1623, 2.0
        %v1688 = vmin.f32 %v1624, 2.0
        %v1689 = vmin.f32 %v1625, 2.0
        %v1690 = vmin.f32 %v1626, 2.0
        %v1691 = vmin.f32 %v1627, 2.0
        %v1692 = vmin.f32 %v1628, 2.0
        %v1693 = vmin.f32 %v1629, 2.0
        %v1694 = vmin.f32 %v1630, 2.0
        %v1695 = vmin.f32 %v1631, 2.0
        %v1696 = vmin.f32 %v1632, 2.0
        %v1697 = vmin.f32 %v1633, 2.0
        %v1698 = vmin.f32 %v1634, 2.0
        %v1699 = vmin.f32 %v1635, 2.0
        %v1700 = vmin.f32 %v1636, 2.0
        %v1701 = vmin.f32 %v1637, 2.0
        %v1702 = vmin.f32 %v1638, 2.0
        %v1703 = vmin.f32 %v1639, 2.0
        %v1704 = vmin.f32 %v1640, 2.0
        %v1705 = vmin.f32 %v1641, 2.0
        %v1706 = vmin.f32 %v1642, 2.0
        %v1707 = vmin.f32 %v1643, 2.0
        %v1708 = vmin.f32 %v1644, 2.0
        %v1709 = vmin.f32 %v1645, 2.0
        %v1710 = vmin.f32 %v1646, 2.0
        %v1711 = vmin.f32 %v1647, 2.0
        %v1712 = vmin.f32 %v1648, 2.0
        %v1713 = vmin.f32 %v1649, 2.0
        %v1714 = vmin.f32 %v1650, 2.0
        %v1715 = vmin.f32 %v1651, 2.0
        %v1716 = vmin.f32 %v1652, 2.0
        %v1717 = vmin.f32 %v1653, 2.0
        %v1718 = vmin.f32 %v1654, 2.0
        %v1719 = vmin.f32 %v1655, 2.0
        %v1720 = vmin.f32 %v1656, 2.0
        %v1721 = vmin.f32 %v1657, 2.0
        %v1722 = vmin.f32 %v1658, 2.0
        %v1723 = vmin.f32 %v1659, 2.0
        %v1724 = vmin.f32 %v1660, 2.0
        %v1725 = vmin.f32 %v1661, 2.0
        %v1726 = vmin.f32 %v1662, 2.0
        %v1727 = vmin.f32 %v1663, 2.0
        %v1728 = vmin.f32 %v1664, 2.0
        %v1729 = vmin.f32 %v1665, 2.0
        %v1730 = vmin.f32 %v1666, 2.0
        %v1731 = vmin.f32 %v1667, 2.0
        %v1732 = vmin.f32 %v1668, 2.0
        %v1733 = vmin.f32 %v1669, 2.0
        %v1734 = vmin.f32 %v1670, 2.0
        %v1735 = vmin.f32 %v1671, 2.0
        %v1736 = vmin.f32 %v1672, 2.0
        %v1737 = vmin.f32 %v1673, 2.0
        %v1738 = vmin.f32 %v1674, 2.0
        %v1739 = vmin.f32 %v1675, 2.0
        %v1740 = vmin.f32 %v1676, 2.0
        %v1741 = vmin.f32 %v1677, 2.0
        %v1742 = vmin.f32 %v1678, 2.0
        %v1743 = vmin.f32 %v1679, 2.0
        %v1744 = vmin.f32 %v1680, 2.0
        %v1745 = vmin.f32 %v1681, 2.0
        %v1746 = vmin.f32 %v1682, 2.0
        %v1747 = vmin.f32 %v1683, 2.0
        %v1748 = vmin.f32 %v1684, 2.0
        %1749 = vst [vmem:[%s528] sm:$0xff] %v1685
        %1750 = vst [vmem:[%s528 + $0x8] sm:$0xff] %v1686
        %1751 = vst [vmem:[%s528 + $0x10] sm:$0xff] %v1687
        %1752 = vst [vmem:[%s528 + $0x18] sm:$0xff] %v1688
        %1753 = vst [vmem:[%s528 + $0x20] sm:$0xff] %v1689
        %1754 = vst [vmem:[%s528 + $0x28] sm:$0xff] %v1690
        %1755 = vst [vmem:[%s528 + $0x30] sm:$0xff] %v1691
        %1756 = vst [vmem:[%s528 + $0x38] sm:$0xff] %v1692
        %1757 = vst [vmem:[%s528 + $0x40] sm:$0xff] %v1693
        %1758 = vst [vmem:[%s528 + $0x48] sm:$0xff] %v1694
        %1759 = vst [vmem:[%s528 + $0x50] sm:$0xff] %v1695
        %1760 = vst [vmem:[%s528 + $0x58] sm:$0xff] %v1696
        %1761 = vst [vmem:[%s528 + $0x60] sm:$0xff] %v1697
        %1762 = vst [vmem:[%s528 + $0x68] sm:$0xff] %v1698
        %1763 = vst [vmem:[%s528 + $0x70] sm:$0xff] %v1699
        %1764 = vst [vmem:[%s528 + $0x78] sm:$0xff] %v1700
        %1765 = vst [vmem:[%s528 + $0x80] sm:$0xff] %v1701
        %1766 = vst [vmem:[%s528 + $0x88] sm:$0xff] %v1702
        %1767 = vst [vmem:[%s528 + $0x90] sm:$0xff] %v1703
        %1768 = vst [vmem:[%s528 + $0x98] sm:$0xff] %v1704
        %1769 = vst [vmem:[%s528 + $0xa0] sm:$0xff] %v1705
        %1770 = vst [vmem:[%s528 + $0xa8] sm:$0xff] %v1706
        %1771 = vst [vmem:[%s528 + $0xb0] sm:$0xff] %v1707
        %1772 = vst [vmem:[%s528 + $0xb8] sm:$0xff] %v1708
        %1773 = vst [vmem:[%s528 + $0xc0] sm:$0xff] %v1709
        %1774 = vst [vmem:[%s528 + $0xc8] sm:$0xff] %v1710
        %1775 = vst [vmem:[%s528 + $0xd0] sm:$0xff] %v1711
        %1776 = vst [vmem:[%s528 + $0xd8] sm:$0xff] %v1712
        %1777 = vst [vmem:[%s528 + $0xe0] sm:$0xff] %v1713
        %1778 = vst [vmem:[%s528 + $0xe8] sm:$0xff] %v1714
        %1779 = vst [vmem:[%s528 + $0xf0] sm:$0xff] %v1715
        %1780 = vst [vmem:[%s528 + $0xf8] sm:$0xff] %v1716
        %1781 = vst [vmem:[%s528 + $0x100] sm:$0xff] %v1717
        %1782 = vst [vmem:[%s528 + $0x108] sm:$0xff] %v1718
        %1783 = vst [vmem:[%s528 + $0x110] sm:$0xff] %v1719
        %1784 = vst [vmem:[%s528 + $0x118] sm:$0xff] %v1720
        %1785 = vst [vmem:[%s528 + $0x120] sm:$0xff] %v1721
        %1786 = vst [vmem:[%s528 + $0x128] sm:$0xff] %v1722
        %1787 = vst [vmem:[%s528 + $0x130] sm:$0xff] %v1723
        %1788 = vst [vmem:[%s528 + $0x138] sm:$0xff] %v1724
        %1789 = vst [vmem:[%s528 + $0x140] sm:$0xff] %v1725
        %1790 = vst [vmem:[%s528 + $0x148] sm:$0xff] %v1726
        %1791 = vst [vmem:[%s528 + $0x150] sm:$0xff] %v1727
        %1792 = vst [vmem:[%s528 + $0x158] sm:$0xff] %v1728
        %1793 = vst [vmem:[%s528 + $0x160] sm:$0xff] %v1729
        %1794 = vst [vmem:[%s528 + $0x168] sm:$0xff] %v1730
        %1795 = vst [vmem:[%s528 + $0x170] sm:$0xff] %v1731
        %1796 = vst [vmem:[%s528 + $0x178] sm:$0xff] %v1732
        %1797 = vst [vmem:[%s528 + $0x180] sm:$0xff] %v1733
        %1798 = vst [vmem:[%s528 + $0x188] sm:$0xff] %v1734
        %1799 = vst [vmem:[%s528 + $0x190] sm:$0xff] %v1735
        %1800 = vst [vmem:[%s528 + $0x198] sm:$0xff] %v1736
        %1801 = vst [vmem:[%s528 + $0x1a0] sm:$0xff] %v1737
        %1802 = vst [vmem:[%s528 + $0x1a8] sm:$0xff] %v1738
        %1803 = vst [vmem:[%s528 + $0x1b0] sm:$0xff] %v1739
        %1804 = vst [vmem:[%s528 + $0x1b8] sm:$0xff] %v1740
        %1805 = vst [vmem:[%s528 + $0x1c0] sm:$0xff] %v1741
        %1806 = vst [vmem:[%s528 + $0x1c8] sm:$0xff] %v1742
        %1807 = vst [vmem:[%s528 + $0x1d0] sm:$0xff] %v1743
        %1808 = vst [vmem:[%s528 + $0x1d8] sm:$0xff] %v1744
        %1809 = vst [vmem:[%s528 + $0x1e0] sm:$0xff] %v1745
        %1810 = vst [vmem:[%s528 + $0x1e8] sm:$0xff] %v1746
        %1811 = vst [vmem:[%s528 + $0x1f0] sm:$0xff] %v1747
        %1812 = vst [vmem:[%s528 + $0x1f8] sm:$0xff] %v1748
        %1813 = vst [vmem:[%s514] sm:$0xff] %v1413
        %1814 = vst [vmem:[%s514 + $0x8] sm:$0xff] %v1414
        %vm1815 = vcmask 7168
        %1816 = vst.msk [vmem:[%s536] sm:$0xff] %vm1815, %v1429
        %1817 = vst.msk [vmem:[%s536 + $0x8] sm:$0xff] %vm1815, %v1430
        %s1818 = sand.u32 %s266, 1
        %s1819 = scalar_lea.sflag [#allocation5], %s1818
        %s1820 = sand.u32 %s266, 1
        %s1821 = smul.addr %s1820, 16
        %s1822 = scalar_lea.vmem [#allocation11], %s1821
        %s1823 = smul.u32 2, %s38
        %p1824 = scmp.lt.s32.totalorder %s1823, 3
        %s1825 = scalar_select %p1824, %s1823, 3
        %s1826 = smul.addr %s1825, 8
        %s1827 = scalar_lea.vmem %s11, %s1826
        %s1828 = sand.u32 %s318, 1
        %s1829 = scalar_lea.sflag [#allocation13], %s1828
        %s1830 = sand.u32 %s318, 1
        %s1831 = smul.addr %s1830, 512
        %s1832 = scalar_lea.vmem [#allocation12], %s1831
        // Predicated region
        $region77: #{call_fn.1} parent=59 // pred_check
          %p1833 = pneg %p276
        $region78: #{call_fn.1} parent=59 // pred_check_branch
          %1835 = sbr.rel (%p1833) target = $region80
        $region79: #{call_fn.1} parent=59 // pred_region
          %s1836 = smul.u32 2, %s38
          %1838 = vsyncadd %s1819, 0
          %s1839 = smul.addr %s1836, 8
          %s1840 = scalar_lea.hbm %s10, %s1839
          %s1841 = sshll.u32 %s1822, 4
          %s1842 = int_to_ptr.vmem [resolvable:$true] %s1841
          %s1843 = sshll.u32 %s1840, 4
          %s1844 = int_to_ptr.hbm [resolvable:$true] %s1843
          %1849 = dma.vmem_to_hbm [thread:$0]  %s1842, 256, %s1844, %s1819, 128, 128, 8
        $region80: #{call_fn.1} parent=59 // pred_fallthru
          _
        // Predicated region
        $region81: #{call_fn.1} parent=59 // pred_check
          %p1850 = pneg %p302
        $region82: #{call_fn.1} parent=59 // pred_check_branch
          %1852 = sbr.rel (%p1850) target = $region84
        $region83: #{call_fn.1} parent=59 // pred_region
          %s1853 = smul.u32 2, %s38
        $region84: #{call_fn.1} parent=59 // pred_fallthru
          _
        // Predicated region
        $region85: #{call_fn.1} parent=59 // pred_check
          %p1854 = pneg %p328
        $region86: #{call_fn.1} parent=59 // pred_check_branch
          %1856 = sbr.rel (%p1854) target = $region88
        $region87: #{call_fn.1} parent=59 // pred_region
          %s1857 = smul.u32 16, %s38
          %1859 = vsyncadd %s1829, 0
          %s1860 = smul.addr %s1857, 4
          %s1861 = smul.addr %s1860, 8
          %s1862 = scalar_lea.hbm %s12, %s1861
          %s1863 = sshll.u32 %s1832, 4
          %s1864 = int_to_ptr.vmem [resolvable:$true] %s1863
          %s1865 = sshll.u32 %s1862, 4
          %s1866 = int_to_ptr.hbm [resolvable:$true] %s1865
          %1871 = dma.vmem_to_hbm [thread:$0]  %s1864, 8192, %s1866, %s1829, 128, 128, 8
        $region88: #{call_fn.1} parent=59 // pred_fallthru
          _
      $region60: #{call_fn.1} parent=5 // pred_fallthru
        _
      %p1872 = scmp.le.s32.totalorder 2, %s33
      // Predicated region
      $region89: #{call_fn.1} parent=5 // pred_check
        %p1873 = pneg %p1872
      $region90: #{call_fn.1} parent=5 // pred_check_branch
        %1875 = sbr.rel (%p1873) target = $region92
      $region91: #{call_fn.1} parent=5 // pred_region
        %s1876 = ssub.s32 %s33, 2
        // Predicated region
        $region93: #{call_fn.1} parent=91 // pred_check
          %p1877 = pneg %p282
        $region94: #{call_fn.1} parent=91 // pred_check_branch
          %1879 = sbr.rel (%p1877) target = $region96
        $region95: #{call_fn.1} parent=91 // pred_region
          %s1880 = sand.u32 %s267, 1
          %s1881 = scalar_lea.sflag [#allocation5], %s1880
          %s1882 = sand.u32 %s267, 1
          %s1883 = smul.addr %s1882, 16
          %s1884 = scalar_lea.vmem [#allocation11], %s1883
          %1886 = dma.done %s1881, 256
        $region96: #{call_fn.1} parent=91 // pred_fallthru
          _
        // Predicated region
        $region97: #{call_fn.1} parent=91 // pred_check
          %p1887 = pneg %p308
        $region98: #{call_fn.1} parent=91 // pred_check_branch
          %1889 = sbr.rel (%p1887) target = $region100
        $region99: #{call_fn.1} parent=91 // pred_region
          %s1890 = smul.u32 2, %s39
          %p1891 = scmp.lt.s32.totalorder %s1890, 3
          %s1892 = scalar_select %p1891, %s1890, 3
          %s1893 = smul.addr %s1892, 8
          %s1894 = scalar_lea.vmem %s11, %s1893
        $region100: #{call_fn.1} parent=91 // pred_fallthru
          _
        // Predicated region
        $region101: #{call_fn.1} parent=91 // pred_check
          %p1895 = pneg %p334
        $region102: #{call_fn.1} parent=91 // pred_check_branch
          %1897 = sbr.rel (%p1895) target = $region104
        $region103: #{call_fn.1} parent=91 // pred_region
          %s1898 = sand.u32 %s319, 1
          %s1899 = scalar_lea.sflag [#allocation13], %s1898
          %s1900 = sand.u32 %s319, 1
          %s1901 = smul.addr %s1900, 512
          %s1902 = scalar_lea.vmem [#allocation12], %s1901
          %1904 = dma.done %s1899, 8192
        $region104: #{call_fn.1} parent=91 // pred_fallthru
          _
      $region92: #{call_fn.1} parent=5 // pred_fallthru
        _
    $region6: #{call_fn.1} parent=1 // loop_footer
      %s37 = sadd.s32 1, %s33
    $region7: #{call_fn.1} parent=1 // loop_footer_branch
      %32 = sbr.rel target = $region3
    $region8: #{call_fn.1} parent=1 // loop_exit
      _
    %1905 = vsyncpa [#allocation4], 1
    %s1906 = scalar_lea.sflag [#allocation4], 1
    %1907 = vsyncpa %s1906, 1
    %1908 = vsyncpa [#allocation7], 1
    %1909 = vsyncpa [#allocation10], 1
    %s1910 = scalar_lea.sflag [#allocation10], 1
    %1911 = vsyncpa %s1910, 1
    %1912 = vsyncpa [#allocation5], 1
    %s1913 = scalar_lea.sflag [#allocation5], 1
    %1914 = vsyncpa %s1913, 1
    %1915 = vsyncpa [#allocation13], 1
    %s1916 = scalar_lea.sflag [#allocation13], 1
    %1917 = vsyncpa %s1916, 1

// kernel: call_fn.1
$region0: #{call_fn.1}
  #allocation0 [shape = 'u32[]', space=smem, size = 0x4, offset = 0x4, fixed_abs, tag = 'smem constant byte address 0x4 - core index']
  #allocation1 [shape = 'u32[72,128]{1,0:T(1,128)}', space=vmem, size = 0x9000, scoped, tag = 'internal scratch']
  #allocation2 [shape = 'f32[1,1]{1,0:T(1,128)S(6)}', space=smem, size = 0x200, scoped, tag = 'scoped memory for call_fn.1']
  %s0 = inlined_call_operand.hbm [shape: f32[32,32], index: 0, kind: input, shape index: {}]
  %s1 = inlined_call_operand.hbm [shape: f32[32,128], index: 1, kind: input, shape index: {}]
  %s2 = inlined_call_operand.hbm [shape: f32[32,128], index: 2, kind: input, shape index: {}]
  %s3 = inlined_call_operand.hbm [shape: f32[32,32,128], index: 3, kind: input, shape index: {}, may-alias: {3,12}]
  %s4 = inlined_call_operand.vmem [shape: f32[1,128], index: 4, kind: input, shape index: {}]
  %s5 = inlined_call_operand.vmem [shape: f32[1,128], index: 5, kind: input, shape index: {}]
  %s6 = inlined_call_operand.vmem [shape: f32[1,128], index: 6, kind: input, shape index: {}]
  %s7 = inlined_call_operand.<no memory space> [shape: f32[1,1], index: 7, kind: input, shape index: {}]
  %s8 = inlined_call_operand.vmem [shape: f32[1,128], index: 8, kind: input, shape index: {}]
  %s9 = inlined_call_operand.vmem [shape: f32[1,128], index: 9, kind: input, shape index: {}]
  %s10 = inlined_call_operand.hbm [shape: f32[32,128], index: 10, kind: output, shape index: {0}]
  %s11 = inlined_call_operand.vmem [shape: f32[32,1], index: 11, kind: output, shape index: {1}]
  %s12 = inlined_call_operand.hbm [shape: f32[32,32,128], index: 12, kind: output, shape index: {2}, may-alias: {3,12}]
  %13 = xla_tuple %s10, %s11, %s12
  %s14 = sld [smem:[#allocation0]]
  $region105: #{call_fn.1} parent=0
    _
  %s16 = ssub.s32 1, %s14
  %s17 = scalar_select 0, %s16, %s14
  %18 = sst [smem:[#allocation2]] %s7
  $region1: #{call_fn.1} parent=0
    #allocation3 [shape = 'u8[16384]{0}', space=vmem, size = 0x4000, scoped, tag = 'input window, operand 0']
    #allocation4 [shape = 's32[2]{0}', space=sflag, size = 0x8, scoped, tag = 'scoped memory for call_fn.1']
    #allocation5 [shape = 's32[2]{0}', space=sflag, size = 0x8, scoped, tag = 'scoped memory for call_fn.1']
    #allocation6 [shape = 'u8[16384]{0}', space=vmem, size = 0x4000, scoped, tag = 'input window, operand 1, single buffered']
    #allocation7 [shape = 's32[1]{0}', space=sflag, size = 0x4, scoped, tag = 'scoped memory for call_fn.1']
    #allocation8 [shape = 'u8[16384]{0}', space=vmem, size = 0x4000, scoped, tag = 'input window, operand 2, single buffered']
    #allocation9 [shape = 'u8[524288]{0}', space=vmem, size = 0x80000, scoped, tag = 'input window, operand 3']
    #allocation10 [shape = 's32[2]{0}', space=sflag, size = 0x8, scoped, tag = 'scoped memory for call_fn.1']
    #allocation11 [shape = 'u8[16384]{0}', space=vmem, size = 0x4000, scoped, tag = 'output window, operand 0']
    #allocation12 [shape = 'u8[524288]{0}', space=vmem, size = 0x80000, scoped, tag = 'output window, operand 2']
    #allocation13 [shape = 's32[2]{0}', space=sflag, size = 0x8, scoped, tag = 'scoped memory for call_fn.1']
    %19 = vsyncpa [#allocation4], 0
    %s20 = scalar_lea.sflag [#allocation4], 1
    %21 = vsyncpa %s20, 0
    %22 = vsyncpa [#allocation7], 0
    %23 = vsyncpa [#allocation10], 0
    %s24 = scalar_lea.sflag [#allocation10], 1
    %25 = vsyncpa %s24, 0
    %26 = vsyncpa [#allocation5], 0
    %s27 = scalar_lea.sflag [#allocation5], 1
    %28 = vsyncpa %s27, 0
    %29 = vsyncpa [#allocation13], 0
    %s30 = scalar_lea.sflag [#allocation13], 1
    %31 = vsyncpa %s30, 0
    loop: start=0, step=1, limit=4
    $region2: #{call_fn.1} parent=1 // loop_pre_header
      _
    $region3: #{call_fn.1} parent=1 // loop_header
      %s33 = sphi 0, %s37
      %p34 = scmp.ge.s32.totalorder %s33, 4
      %s43 = sphi 0, %s45
      %s46 = sphi 0, %s43
      %s47 = sphi 0, %s46
      %s63 = sphi 0, %s47
      %s67 = sphi 0, %s67
      %s69 = sphi 0, %s67
      %s70 = sphi 0, %s69
      %s84 = sphi 0, %s70
      %s88 = sphi 0, %s88
      %s90 = sphi 0, %s88
      %s91 = sphi 0, %s90
      %s105 = sphi 0, %s91
      %s111 = sphi 0, %s113
      %s114 = sphi 0, %s111
      %s115 = sphi 0, %s114
      %s131 = sphi 0, %s115
      %s135 = sphi 0, %s135
      %s137 = sphi 0, %s135
      %s138 = sphi 0, %s137
      %s152 = sphi 0, %s138
      %s156 = sphi 0, %s156
      %s158 = sphi 0, %s156
      %s159 = sphi 0, %s158
      %s173 = sphi 0, %s159
      %s177 = sphi 0, %s177
      %s179 = sphi 0, %s177
      %s180 = sphi 0, %s179
      %s194 = sphi 0, %s180
      %s198 = sphi 0, %s198
      %s200 = sphi 0, %s198
      %s201 = sphi 0, %s200
      %s215 = sphi 0, %s201
      %s219 = sphi 0, %s219
      %s221 = sphi 0, %s219
      %s222 = sphi 0, %s221
      %s236 = sphi 0, %s222
      %s240 = sphi 0, %s240
      %s242 = sphi 0, %s240
      %s243 = sphi 0, %s242
      %s257 = sphi 0, %s243
      %s263 = sphi 0, %s265
      %s266 = sphi 0, %s263
      %s267 = sphi 0, %s266
      %s283 = sphi 0, %s267
      %s289 = sphi 0, %s291
      %s292 = sphi 0, %s289
      %s293 = sphi 0, %s292
      %s309 = sphi 0, %s293
      %s315 = sphi 0, %s317
      %s318 = sphi 0, %s315
      %s319 = sphi 0, %s318
      %s335 = sphi 0, %s319
    $region4: #{call_fn.1} parent=1 // loop_header_branch
      %36 = sbr.rel (%p34) target = $region8
    $region5: #{call_fn.1} parent=1 // loop_body
      %s38 = ssub.s32 %s33, 1
      %s39 = ssub.s32 %s33, 2
      %s40 = sadd.s32 %s33, 1
      %s41 = ssub.s32 %s33, %s40
      %p42 = scmp.eq.s32.totalorder %s41, 0
      %s44 = sadd.s32 %s43, 1
      %s45 = scalar_select %p42, %s43, %s44
      %p48 = pneg %p42
      %p49 = scmp.eq.s32.totalorder %s33, 1
      %p50 = por %p48, %p49
      %p51 = scmp.ne.s32.totalorder %s43, %s46
      %p52 = scmp.eq.s32.totalorder %s33, 0
      %p53 = por %p51, %p52
      %p54 = scmp.ne.s32.totalorder %s43, %s46
      %p55 = scmp.eq.s32.totalorder %s38, 1
      %p56 = por %p54, %p55
      %p57 = scmp.ne.s32.totalorder %s46, %s47
      %p58 = scmp.eq.s32.totalorder %s38, 0
      %p59 = por %p57, %p58
      %p60 = scmp.ne.s32.totalorder %s46, %s47
      %p61 = scmp.eq.s32.totalorder %s39, 1
      %p62 = por %p60, %p61
      %p64 = scmp.ne.s32.totalorder %s47, %s63
      %p65 = scmp.eq.s32.totalorder %s39, 0
      %p66 = por %p64, %p65
      %s68 = sadd.s32 %s67, 1
      %p71 = scmp.eq.s32.totalorder %s33, 1
      %p72 = scmp.ne.s32.totalorder %s67, %s69
      %p73 = scmp.eq.s32.totalorder %s33, 0
      %p74 = por %p72, %p73
      %p75 = scmp.ne.s32.totalorder %s67, %s69
      %p76 = scmp.eq.s32.totalorder %s38, 1
      %p77 = por %p75, %p76
      %p78 = scmp.ne.s32.totalorder %s69, %s70
      %p79 = scmp.eq.s32.totalorder %s38, 0
      %p80 = por %p78, %p79
      %p81 = scmp.ne.s32.totalorder %s69, %s70
      %p82 = scmp.eq.s32.totalorder %s39, 1
      %p83 = por %p81, %p82
      %p85 = scmp.ne.s32.totalorder %s70, %s84
      %p86 = scmp.eq.s32.totalorder %s39, 0
      %p87 = por %p85, %p86
      %s89 = sadd.s32 %s88, 1
      %p92 = scmp.eq.s32.totalorder %s33, 1
      %p93 = scmp.ne.s32.totalorder %s88, %s90
      %p94 = scmp.eq.s32.totalorder %s33, 0
      %p95 = por %p93, %p94
      %p96 = scmp.ne.s32.totalorder %s88, %s90
      %p97 = scmp.eq.s32.totalorder %s38, 1
      %p98 = por %p96, %p97
      %p99 = scmp.ne.s32.totalorder %s90, %s91
      %p100 = scmp.eq.s32.totalorder %s38, 0
      %p101 = por %p99, %p100
      %p102 = scmp.ne.s32.totalorder %s90, %s91
      %p103 = scmp.eq.s32.totalorder %s39, 1
      %p104 = por %p102, %p103
      %p106 = scmp.ne.s32.totalorder %s91, %s105
      %p107 = scmp.eq.s32.totalorder %s39, 0
      %p108 = por %p106, %p107
      %s109 = ssub.s32 %s33, %s40
      %p110 = scmp.eq.s32.totalorder %s109, 0
      %s112 = sadd.s32 %s111, 1
      %s113 = scalar_select %p110, %s111, %s112
      %p116 = pneg %p110
      %p117 = scmp.eq.s32.totalorder %s33, 1
      %p118 = por %p116, %p117
      %p119 = scmp.ne.s32.totalorder %s111, %s114
      %p120 = scmp.eq.s32.totalorder %s33, 0
      %p121 = por %p119, %p120
      %p122 = scmp.ne.s32.totalorder %s111, %s114
      %p123 = scmp.eq.s32.totalorder %s38, 1
      %p124 = por %p122, %p123
      %p125 = scmp.ne.s32.totalorder %s114, %s115
      %p126 = scmp.eq.s32.totalorder %s38, 0
      %p127 = por %p125, %p126
      %p128 = scmp.ne.s32.totalorder %s114, %s115
      %p129 = scmp.eq.s32.totalorder %s39, 1
      %p130 = por %p128, %p129
      %p132 = scmp.ne.s32.totalorder %s115, %s131
      %p133 = scmp.eq.s32.totalorder %s39, 0
      %p134 = por %p132, %p133
      %s136 = sadd.s32 %s135, 1
      %p139 = scmp.eq.s32.totalorder %s33, 1
      %p140 = scmp.ne.s32.totalorder %s135, %s137
      %p141 = scmp.eq.s32.totalorder %s33, 0
      %p142 = por %p140, %p141
      %p143 = scmp.ne.s32.totalorder %s135, %s137
      %p144 = scmp.eq.s32.totalorder %s38, 1
      %p145 = por %p143, %p144
      %p146 = scmp.ne.s32.totalorder %s137, %s138
      %p147 = scmp.eq.s32.totalorder %s38, 0
      %p148 = por %p146, %p147
      %p149 = scmp.ne.s32.totalorder %s137, %s138
      %p150 = scmp.eq.s32.totalorder %s39, 1
      %p151 = por %p149, %p150
      %p153 = scmp.ne.s32.totalorder %s138, %s152
      %p154 = scmp.eq.s32.totalorder %s39, 0
      %p155 = por %p153, %p154
      %s157 = sadd.s32 %s156, 1
      %p160 = scmp.eq.s32.totalorder %s33, 1
      %p161 = scmp.ne.s32.totalorder %s156, %s158
      %p162 = scmp.eq.s32.totalorder %s33, 0
      %p163 = por %p161, %p162
      %p164 = scmp.ne.s32.totalorder %s156, %s158
      %p165 = scmp.eq.s32.totalorder %s38, 1
      %p166 = por %p164, %p165
      %p167 = scmp.ne.s32.totalorder %s158, %s159
      %p168 = scmp.eq.s32.totalorder %s38, 0
      %p169 = por %p167, %p168
      %p170 = scmp.ne.s32.totalorder %s158, %s159
      %p171 = scmp.eq.s32.totalorder %s39, 1
      %p172 = por %p170, %p171
      %p174 = scmp.ne.s32.totalorder %s159, %s173
      %p175 = scmp.eq.s32.totalorder %s39, 0
      %p176 = por %p174, %p175
      %s178 = sadd.s32 %s177, 1
      %p181 = scmp.eq.s32.totalorder %s33, 1
      %p182 = scmp.ne.s32.totalorder %s177, %s179
      %p183 = scmp.eq.s32.totalorder %s33, 0
      %p184 = por %p182, %p183
      %p185 = scmp.ne.s32.totalorder %s177, %s179
      %p186 = scmp.eq.s32.totalorder %s38, 1
      %p187 = por %p185, %p186
      %p188 = scmp.ne.s32.totalorder %s179, %s180
      %p189 = scmp.eq.s32.totalorder %s38, 0
      %p190 = por %p188, %p189
      %p191 = scmp.ne.s32.totalorder %s179, %s180
      %p192 = scmp.eq.s32.totalorder %s39, 1
      %p193 = por %p191, %p192
      %p195 = scmp.ne.s32.totalorder %s180, %s194
      %p196 = scmp.eq.s32.totalorder %s39, 0
      %p197 = por %p195, %p196
      %s199 = sadd.s32 %s198, 1
      %p202 = scmp.eq.s32.totalorder %s33, 1
      %p203 = scmp.ne.s32.totalorder %s198, %s200
      %p204 = scmp.eq.s32.totalorder %s33, 0
      %p205 = por %p203, %p204
      %p206 = scmp.ne.s32.totalorder %s198, %s200
      %p207 = scmp.eq.s32.totalorder %s38, 1
      %p208 = por %p206, %p207
      %p209 = scmp.ne.s32.totalorder %s200, %s201
      %p210 = scmp.eq.s32.totalorder %s38, 0
      %p211 = por %p209, %p210
      %p212 = scmp.ne.s32.totalorder %s200, %s201
      %p213 = scmp.eq.s32.totalorder %s39, 1
      %p214 = por %p212, %p213
      %p216 = scmp.ne.s32.totalorder %s201, %s215
      %p217 = scmp.eq.s32.totalorder %s39, 0
      %p218 = por %p216, %p217
      %s220 = sadd.s32 %s219, 1
      %p223 = scmp.eq.s32.totalorder %s33, 1
      %p224 = scmp.ne.s32.totalorder %s219, %s221
      %p225 = scmp.eq.s32.totalorder %s33, 0
      %p226 = por %p224, %p225
      %p227 = scmp.ne.s32.totalorder %s219, %s221
      %p228 = scmp.eq.s32.totalorder %s38, 1
      %p229 = por %p227, %p228
      %p230 = scmp.ne.s32.totalorder %s221, %s222
      %p231 = scmp.eq.s32.totalorder %s38, 0
      %p232 = por %p230, %p231
      %p233 = scmp.ne.s32.totalorder %s221, %s222
      %p234 = scmp.eq.s32.totalorder %s39, 1
      %p235 = por %p233, %p234
      %p237 = scmp.ne.s32.totalorder %s222, %s236
      %p238 = scmp.eq.s32.totalorder %s39, 0
      %p239 = por %p237, %p238
      %s241 = sadd.s32 %s240, 1
      %p244 = scmp.eq.s32.totalorder %s33, 1
      %p245 = scmp.ne.s32.totalorder %s240, %s242
      %p246 = scmp.eq.s32.totalorder %s33, 0
      %p247 = por %p245, %p246
      %p248 = scmp.ne.s32.totalorder %s240, %s242
      %p249 = scmp.eq.s32.totalorder %s38, 1
      %p250 = por %p248, %p249
      %p251 = scmp.ne.s32.totalorder %s242, %s243
      %p252 = scmp.eq.s32.totalorder %s38, 0
      %p253 = por %p251, %p252
      %p254 = scmp.ne.s32.totalorder %s242, %s243
      %p255 = scmp.eq.s32.totalorder %s39, 1
      %p256 = por %p254, %p255
      %p258 = scmp.ne.s32.totalorder %s243, %s257
      %p259 = scmp.eq.s32.totalorder %s39, 0
      %p260 = por %p258, %p259
      %s261 = ssub.s32 %s33, %s40
      %p262 = scmp.eq.s32.totalorder %s261, 0
      %s264 = sadd.s32 %s263, 1
      %s265 = scalar_select %p262, %s263, %s264
      %p268 = pneg %p262
      %p269 = scmp.eq.s32.totalorder %s33, 1
      %p270 = por %p268, %p269
      %p271 = scmp.ne.s32.totalorder %s263, %s266
      %p272 = scmp.eq.s32.totalorder %s33, 0
      %p273 = por %p271, %p272
      %p274 = scmp.ne.s32.totalorder %s263, %s266
      %p275 = scmp.eq.s32.totalorder %s38, 1
      %p276 = por %p274, %p275
      %p277 = scmp.ne.s32.totalorder %s266, %s267
      %p278 = scmp.eq.s32.totalorder %s38, 0
      %p279 = por %p277, %p278
      %p280 = scmp.ne.s32.totalorder %s266, %s267
      %p281 = scmp.eq.s32.totalorder %s39, 1
      %p282 = por %p280, %p281
      %p284 = scmp.ne.s32.totalorder %s267, %s283
      %p285 = scmp.eq.s32.totalorder %s39, 0
      %p286 = por %p284, %p285
      %s287 = ssub.s32 %s33, %s40
      %p288 = scmp.eq.s32.totalorder %s287, 0
      %s290 = sadd.s32 %s289, 1
      %s291 = scalar_select %p288, %s289, %s290
      %p294 = pneg %p288
      %p295 = scmp.eq.s32.totalorder %s33, 1
      %p296 = por %p294, %p295
      %p297 = scmp.ne.s32.totalorder %s289, %s292
      %p298 = scmp.eq.s32.totalorder %s33, 0
      %p299 = por %p297, %p298
      %p300 = scmp.ne.s32.totalorder %s289, %s292
      %p301 = scmp.eq.s32.totalorder %s38, 1
      %p302 = por %p300, %p301
      %p303 = scmp.ne.s32.totalorder %s292, %s293
      %p304 = scmp.eq.s32.totalorder %s38, 0
      %p305 = por %p303, %p304
      %p306 = scmp.ne.s32.totalorder %s292, %s293
      %p307 = scmp.eq.s32.totalorder %s39, 1
      %p308 = por %p306, %p307
      %p310 = scmp.ne.s32.totalorder %s293, %s309
      %p311 = scmp.eq.s32.totalorder %s39, 0
      %p312 = por %p310, %p311
      %s313 = ssub.s32 %s33, %s40
      %p314 = scmp.eq.s32.totalorder %s313, 0
      %s316 = sadd.s32 %s315, 1
      %s317 = scalar_select %p314, %s315, %s316
      %p320 = pneg %p314
      %p321 = scmp.eq.s32.totalorder %s33, 1
      %p322 = por %p320, %p321
      %p323 = scmp.ne.s32.totalorder %s315, %s318
      %p324 = scmp.eq.s32.totalorder %s33, 0
      %p325 = por %p323, %p324
      %p326 = scmp.ne.s32.totalorder %s315, %s318
      %p327 = scmp.eq.s32.totalorder %s38, 1
      %p328 = por %p326, %p327
      %p329 = scmp.ne.s32.totalorder %s318, %s319
      %p330 = scmp.eq.s32.totalorder %s38, 0
      %p331 = por %p329, %p330
      %p332 = scmp.ne.s32.totalorder %s318, %s319
      %p333 = scmp.eq.s32.totalorder %s39, 1
      %p334 = por %p332, %p333
      %p336 = scmp.ne.s32.totalorder %s319, %s335
      %p337 = scmp.eq.s32.totalorder %s39, 0
      %p338 = por %p336, %p337
      %p339 = scmp.le.s32.totalorder 1, %s33
      %p340 = scmp.lt.s32.totalorder %s33, 3
      %p341 = pnand %p339, %p340
      %p342 = pneg %p341
      // Predicated region
      $region9: #{call_fn.1} parent=5 // pred_check
        _
      $region10: #{call_fn.1} parent=5 // pred_check_branch
        %344 = sbr.rel (%p341) target = $region12
      $region11: #{call_fn.1} parent=5 // pred_region
        %s345 = ssub.s32 %s33, 1
        // Predicated region
        $region13: #{call_fn.1} parent=11 // pred_check
          %p346 = pneg %p80
        $region14: #{call_fn.1} parent=11 // pred_check_branch
          %348 = sbr.rel (%p346) target = $region16
        $region15: #{call_fn.1} parent=11 // pred_region
          %350 = vsyncadd [#allocation7], 0
          %s351 = sshll.u32 %s1, 4
          %s352 = int_to_ptr.hbm [resolvable:$true] %s351
          %s353 = sshll.u32 [#allocation6], 4
          %s354 = int_to_ptr.vmem [resolvable:$true] %s353
          %359 = dma.hbm_to_vmem [thread:$0]  %s352, 512, %s354, [#allocation7], 128, 128, 8
        $region16: #{call_fn.1} parent=11 // pred_fallthru
          _
        // Predicated region
        $region17: #{call_fn.1} parent=11 // pred_check
          %p360 = pneg %p101
        $region18: #{call_fn.1} parent=11 // pred_check_branch
          %362 = sbr.rel (%p360) target = $region20
        $region19: #{call_fn.1} parent=11 // pred_region
          %364 = vsyncadd [#allocation7], 0
          %s365 = sshll.u32 %s2, 4
          %s366 = int_to_ptr.hbm [resolvable:$true] %s365
          %s367 = sshll.u32 [#allocation8], 4
          %s368 = int_to_ptr.vmem [resolvable:$true] %s367
          %373 = dma.hbm_to_vmem [thread:$0]  %s366, 512, %s368, [#allocation7], 128, 128, 8
        $region20: #{call_fn.1} parent=11 // pred_fallthru
          _
        // Predicated region
        $region21: #{call_fn.1} parent=11 // pred_check
          %p374 = pneg %p148
        $region22: #{call_fn.1} parent=11 // pred_check_branch
          %376 = sbr.rel (%p374) target = $region24
        $region23: #{call_fn.1} parent=11 // pred_region
          _
        $region24: #{call_fn.1} parent=11 // pred_fallthru
          _
        // Predicated region
        $region25: #{call_fn.1} parent=11 // pred_check
          %p377 = pneg %p169
        $region26: #{call_fn.1} parent=11 // pred_check_branch
          %379 = sbr.rel (%p377) target = $region28
        $region27: #{call_fn.1} parent=11 // pred_region
          _
        $region28: #{call_fn.1} parent=11 // pred_fallthru
          _
        // Predicated region
        $region29: #{call_fn.1} parent=11 // pred_check
          %p380 = pneg %p190
        $region30: #{call_fn.1} parent=11 // pred_check_branch
          %382 = sbr.rel (%p380) target = $region32
        $region31: #{call_fn.1} parent=11 // pred_region
          _
        $region32: #{call_fn.1} parent=11 // pred_fallthru
          _
        // Predicated region
        $region33: #{call_fn.1} parent=11 // pred_check
          %p383 = pneg %p211
        $region34: #{call_fn.1} parent=11 // pred_check_branch
          %385 = sbr.rel (%p383) target = $region36
        $region35: #{call_fn.1} parent=11 // pred_region
          _
        $region36: #{call_fn.1} parent=11 // pred_fallthru
          _
        // Predicated region
        $region37: #{call_fn.1} parent=11 // pred_check
          %p386 = pneg %p232
        $region38: #{call_fn.1} parent=11 // pred_check_branch
          %388 = sbr.rel (%p386) target = $region40
        $region39: #{call_fn.1} parent=11 // pred_region
          _
        $region40: #{call_fn.1} parent=11 // pred_fallthru
          _
        // Predicated region
        $region41: #{call_fn.1} parent=11 // pred_check
          %p389 = pneg %p253
        $region42: #{call_fn.1} parent=11 // pred_check_branch
          %391 = sbr.rel (%p389) target = $region44
        $region43: #{call_fn.1} parent=11 // pred_region
          _
        $region44: #{call_fn.1} parent=11 // pred_fallthru
          _
      $region12: #{call_fn.1} parent=5 // pred_fallthru
        _
      %p392 = scmp.lt.s32.totalorder %s33, 2
      // Predicated region
      $region45: #{call_fn.1} parent=5 // pred_check
        %p393 = pneg %p392
      $region46: #{call_fn.1} parent=5 // pred_check_branch
        %395 = sbr.rel (%p393) target = $region48
      $region47: #{call_fn.1} parent=5 // pred_region
        // Predicated region
        $region49: #{call_fn.1} parent=47 // pred_check
          %p396 = pneg %p53
        $region50: #{call_fn.1} parent=47 // pred_check_branch
          %398 = sbr.rel (%p396) target = $region52
        $region51: #{call_fn.1} parent=47 // pred_region
          %s399 = sand.u32 %s43, 1
          %s400 = scalar_lea.sflag [#allocation4], %s399
          %s401 = sand.u32 %s43, 1
          %s402 = smul.addr %s401, 16
          %s403 = scalar_lea.vmem [#allocation3], %s402
          %s404 = smul.u32 2, %s33
          %406 = vsyncadd %s400, 0
          %s407 = smul.addr %s404, 8
          %s408 = scalar_lea.hbm %s0, %s407
          %s409 = sshll.u32 %s408, 4
          %s410 = int_to_ptr.hbm [resolvable:$true] %s409
          %s411 = sshll.u32 %s403, 4
          %s412 = int_to_ptr.vmem [resolvable:$true] %s411
          %417 = dma.hbm_to_vmem [thread:$0]  %s410, 256, %s412, %s400, 128, 128, 8
        $region52: #{call_fn.1} parent=47 // pred_fallthru
          _
        // Predicated region
        $region53: #{call_fn.1} parent=47 // pred_check
          %p418 = pneg %p121
        $region54: #{call_fn.1} parent=47 // pred_check_branch
          %420 = sbr.rel (%p418) target = $region56
        $region55: #{call_fn.1} parent=47 // pred_region
          %s421 = sand.u32 %s111, 1
          %s422 = scalar_lea.sflag [#allocation10], %s421
          %s423 = sand.u32 %s111, 1
          %s424 = smul.addr %s423, 512
          %s425 = scalar_lea.vmem [#allocation9], %s424
          %s426 = smul.u32 16, %s33
          %428 = vsyncadd %s422, 0
          %s429 = smul.addr %s426, 4
          %s430 = smul.addr %s429, 8
          %s431 = scalar_lea.hbm %s3, %s430
          %s432 = sshll.u32 %s431, 4
          %s433 = int_to_ptr.hbm [resolvable:$true] %s432
          %s434 = sshll.u32 %s425, 4
          %s435 = int_to_ptr.vmem [resolvable:$true] %s434
          %440 = dma.hbm_to_vmem [thread:$0]  %s433, 8192, %s435, %s422, 128, 128, 8
        $region56: #{call_fn.1} parent=47 // pred_fallthru
          _
      $region48: #{call_fn.1} parent=5 // pred_fallthru
        _
      %p441 = scmp.le.s32.totalorder 1, %s33
      %p442 = scmp.lt.s32.totalorder %s33, 3
      %p443 = pnand %p441, %p442
      %p444 = pneg %p443
      // Predicated region
      $region57: #{call_fn.1} parent=5 // pred_check
        _
      $region58: #{call_fn.1} parent=5 // pred_check_branch
        %446 = sbr.rel (%p443) target = $region60
      $region59: #{call_fn.1} parent=5 // pred_region
        %s447 = ssub.s32 %s33, 1
        %s448 = sand.u32 %s46, 1
        %s449 = scalar_lea.sflag [#allocation4], %s448
        %s450 = sand.u32 %s46, 1
        %s451 = smul.addr %s450, 16
        %s452 = scalar_lea.vmem [#allocation3], %s451
        // Predicated region
        $region61: #{call_fn.1} parent=59 // pred_check
          %p453 = pneg %p59
        $region62: #{call_fn.1} parent=59 // pred_check_branch
          %455 = sbr.rel (%p453) target = $region64
        $region63: #{call_fn.1} parent=59 // pred_region
          %457 = dma.done %s449, 256
        $region64: #{call_fn.1} parent=59 // pred_fallthru
          _
        // Predicated region
        $region65: #{call_fn.1} parent=59 // pred_check
          %p458 = pneg %p80
        $region66: #{call_fn.1} parent=59 // pred_check_branch
          %460 = sbr.rel (%p458) target = $region68
        $region67: #{call_fn.1} parent=59 // pred_region
          %462 = dma.done [#allocation7], 512
        $region68: #{call_fn.1} parent=59 // pred_fallthru
          _
        // Predicated region
        $region69: #{call_fn.1} parent=59 // pred_check
          %p463 = pneg %p101
        $region70: #{call_fn.1} parent=59 // pred_check_branch
          %465 = sbr.rel (%p463) target = $region72
        $region71: #{call_fn.1} parent=59 // pred_region
          %467 = dma.done [#allocation7], 512
        $region72: #{call_fn.1} parent=59 // pred_fallthru
          _
        %s468 = sand.u32 %s114, 1
        %s469 = scalar_lea.sflag [#allocation10], %s468
        %s470 = sand.u32 %s114, 1
        %s471 = smul.addr %s470, 512
        %s472 = scalar_lea.vmem [#allocation9], %s471
        // Predicated region
        $region73: #{call_fn.1} parent=59 // pred_check
          %p473 = pneg %p127
        $region74: #{call_fn.1} parent=59 // pred_check_branch
          %475 = sbr.rel (%p473) target = $region76
        $region75: #{call_fn.1} parent=59 // pred_region
          %477 = dma.done %s469, 8192
        $region76: #{call_fn.1} parent=59 // pred_fallthru
          _
        %s478 = sand.u32 %s46, 1
        %s479 = scalar_lea.sflag [#allocation4], %s478
        %s480 = sand.u32 %s46, 1
        %s481 = smul.addr %s480, 16
        %s482 = scalar_lea.vmem [#allocation3], %s481
        %p483 = pneg %p59
        %p484 = pneg %p56
        %p485 = pneg %p80
        %p486 = pneg %p77
        %p487 = pneg %p101
        %p488 = pneg %p98
        %s489 = sand.u32 %s114, 1
        %s490 = scalar_lea.sflag [#allocation10], %s489
        %s491 = sand.u32 %s114, 1
        %s492 = smul.addr %s491, 512
        %s493 = scalar_lea.vmem [#allocation9], %s492
        %p494 = pneg %p127
        %p495 = pneg %p124
        %p496 = pneg %p148
        %p497 = pneg %p145
        %p498 = pneg %p169
        %p499 = pneg %p166
        %p500 = pneg %p190
        %p501 = pneg %p187
        %p502 = pneg %p211
        %p503 = pneg %p208
        %p504 = pneg %p232
        %p505 = pneg %p229
        %p506 = pneg %p253
        %p507 = pneg %p250
        %p508 = pneg %p279
        %p509 = pneg %p276
        %s510 = sand.u32 %s266, 1
        %s511 = scalar_lea.sflag [#allocation5], %s510
        %s512 = sand.u32 %s266, 1
        %s513 = smul.addr %s512, 16
        %s514 = scalar_lea.vmem [#allocation11], %s513
        %p515 = pneg %p305
        %p516 = pneg %p302
        %s517 = smul.u32 2, %s38
        %p518 = scmp.lt.s32.totalorder %s517, 3
        %s519 = scalar_select %p518, %s517, 3
        %s520 = smul.addr %s519, 8
        %s521 = scalar_lea.vmem %s11, %s520
        %p522 = pneg %p331
        %p523 = pneg %p328
        %s524 = sand.u32 %s318, 1
        %s525 = scalar_lea.sflag [#allocation13], %s524
        %s526 = sand.u32 %s318, 1
        %s527 = smul.addr %s526, 512
        %s528 = scalar_lea.vmem [#allocation12], %s527
        %s529 = smul.u32 2, %s38
        %s530 = smul.u32 16, %s38
        %s531 = smul.u32 2, %s38
        %s532 = smul.u32 2, %s38
        %p533 = scmp.lt.s32.totalorder %s532, 3
        %s534 = scalar_select %p533, %s532, 3
        %s535 = smul.addr %s534, 8
        %s536 = scalar_lea.vmem %s11, %s535
        %s537 = smul.u32 2, %s38
        %s538 = smul.u32 16, %s38
        %v539 = vld [vmem:[%s452] sm:$0xff]
        %v540 = vld [vmem:[%s452 + $0x8] sm:$0xff]
        %v543 = vrot.slane %v539, 1
        %v544 = vrot.slane %v539, 2
        %v545 = vrot.slane %v539, 3
        %v546 = vrot.slane %v539, 4
        %v547 = vrot.slane %v539, 5
        %v548 = vrot.slane %v539, 6
        %v549 = vrot.slane %v539, 7
        %v550 = vrot.slane %v540, 1
        %v551 = vrot.slane %v540, 2
        %v552 = vrot.slane %v540, 3
        %v553 = vrot.slane %v540, 4
        %v554 = vrot.slane %v540, 5
        %v555 = vrot.slane %v540, 6
        %v556 = vrot.slane %v540, 7
        %571 = vxpose.xlu0.b32.start [1/16] %v539, 128
        %572 = vxpose.xlu0.b32.cont [2/16] 0.0, 128
        %573 = vxpose.xlu0.b32.cont [3/16] 0.0, 128
        %574 = vxpose.xlu0.b32.cont [4/16] 0.0, 128
        %575 = vxpose.xlu0.b32.cont [5/16] 0.0, 128
        %576 = vxpose.xlu0.b32.cont [6/16] 0.0, 128
        %577 = vxpose.xlu0.b32.cont [7/16] 0.0, 128
        %578 = vxpose.xlu0.b32.cont [8/16] 0.0, 128
        %579 = vxpose.xlu0.b32.cont [9/16] 0.0, 128
        %580 = vxpose.xlu0.b32.cont [10/16] 0.0, 128
        %581 = vxpose.xlu0.b32.cont [11/16] 0.0, 128
        %582 = vxpose.xlu0.b32.cont [12/16] 0.0, 128
        %583 = vxpose.xlu0.b32.cont [13/16] 0.0, 128
        %584 = vxpose.xlu0.b32.cont [14/16] 0.0, 128
        %585 = vxpose.xlu0.b32.cont [15/16] 0.0, 128
        %586 = vxpose.xlu0.b32.end [16/16] 0.0, 128
        %v587 = vpop.trf.xlu0
        %v588 = vpop.trf.xlu0
        %v589 = vpop.trf.xlu0
        %v590 = vpop.trf.xlu0
        %v591 = vpop.trf.xlu0
        %v592 = vpop.trf.xlu0
        %v593 = vpop.trf.xlu0
        %v594 = vpop.trf.xlu0
        %v595 = vpop.trf.xlu0
        %v596 = vpop.trf.xlu0
        %v597 = vpop.trf.xlu0
        %v598 = vpop.trf.xlu0
        %v599 = vpop.trf.xlu0
        %v600 = vpop.trf.xlu0
        %v601 = vpop.trf.xlu0
        %v602 = vpop.trf.xlu0
        %603 = vxpose.xlu0.b32.start [1/16] %v543, 128
        %604 = vxpose.xlu0.b32.cont [2/16] 0.0, 128
        %605 = vxpose.xlu0.b32.cont [3/16] 0.0, 128
        %606 = vxpose.xlu0.b32.cont [4/16] 0.0, 128
        %607 = vxpose.xlu0.b32.cont [5/16] 0.0, 128
        %608 = vxpose.xlu0.b32.cont [6/16] 0.0, 128
        %609 = vxpose.xlu0.b32.cont [7/16] 0.0, 128
        %610 = vxpose.xlu0.b32.cont [8/16] 0.0, 128
        %611 = vxpose.xlu0.b32.cont [9/16] 0.0, 128
        %612 = vxpose.xlu0.b32.cont [10/16] 0.0, 128
        %613 = vxpose.xlu0.b32.cont [11/16] 0.0, 128
        %614 = vxpose.xlu0.b32.cont [12/16] 0.0, 128
        %615 = vxpose.xlu0.b32.cont [13/16] 0.0, 128
        %616 = vxpose.xlu0.b32.cont [14/16] 0.0, 128
        %617 = vxpose.xlu0.b32.cont [15/16] 0.0, 128
        %618 = vxpose.xlu0.b32.end [16/16] 0.0, 128
        %v619 = vpop.trf.xlu0
        %v620 = vpop.trf.xlu0
        %v621 = vpop.trf.xlu0
        %v622 = vpop.trf.xlu0
        %v623 = vpop.trf.xlu0
        %v624 = vpop.trf.xlu0
        %v625 = vpop.trf.xlu0
        %v626 = vpop.trf.xlu0
        %v627 = vpop.trf.xlu0
        %v628 = vpop.trf.xlu0
        %v629 = vpop.trf.xlu0
        %v630 = vpop.trf.xlu0
        %v631 = vpop.trf.xlu0
        %v632 = vpop.trf.xlu0
        %v633 = vpop.trf.xlu0
        %v634 = vpop.trf.xlu0
        %635 = vxpose.xlu0.b32.start [1/16] %v544, 128
        %636 = vxpose.xlu0.b32.cont [2/16] 0.0, 128
        %637 = vxpose.xlu0.b32.cont [3/16] 0.0, 128
        %638 = vxpose.xlu0.b32.cont [4/16] 0.0, 128
        %639 = vxpose.xlu0.b32.cont [5/16] 0.0, 128
        %640 = vxpose.xlu0.b32.cont [6/16] 0.0, 128
        %641 = vxpose.xlu0.b32.cont [7/16] 0.0, 128
        %642 = vxpose.xlu0.b32.cont [8/16] 0.0, 128
        %643 = vxpose.xlu0.b32.cont [9/16] 0.0, 128
        %644 = vxpose.xlu0.b32.cont [10/16] 0.0, 128
        %645 = vxpose.xlu0.b32.cont [11/16] 0.0, 128
        %646 = vxpose.xlu0.b32.cont [12/16] 0.0, 128
        %647 = vxpose.xlu0.b32.cont [13/16] 0.0, 128
        %648 = vxpose.xlu0.b32.cont [14/16] 0.0, 128
        %649 = vxpose.xlu0.b32.cont [15/16] 0.0, 128
        %650 = vxpose.xlu0.b32.end [16/16] 0.0, 128
        %v651 = vpop.trf.xlu0
        %v652 = vpop.trf.xlu0
        %v653 = vpop.trf.xlu0
        %v654 = vpop.trf.xlu0
        %v655 = vpop.trf.xlu0
        %v656 = vpop.trf.xlu0
        %v657 = vpop.trf.xlu0
        %v658 = vpop.trf.xlu0
        %v659 = vpop.trf.xlu0
        %v660 = vpop.trf.xlu0
        %v661 = vpop.trf.xlu0
        %v662 = vpop.trf.xlu0
        %v663 = vpop.trf.xlu0
        %v664 = vpop.trf.xlu0
        %v665 = vpop.trf.xlu0
        %v666 = vpop.trf.xlu0
        %667 = vxpose.xlu0.b32.start [1/16] %v545, 128
        %668 = vxpose.xlu0.b32.cont [2/16] 0.0, 128
        %669 = vxpose.xlu0.b32.cont [3/16] 0.0, 128
        %670 = vxpose.xlu0.b32.cont [4/16] 0.0, 128
        %671 = vxpose.xlu0.b32.cont [5/16] 0.0, 128
        %672 = vxpose.xlu0.b32.cont [6/16] 0.0, 128
        %673 = vxpose.xlu0.b32.cont [7/16] 0.0, 128
        %674 = vxpose.xlu0.b32.cont [8/16] 0.0, 128
        %675 = vxpose.xlu0.b32.cont [9/16] 0.0, 128
        %676 = vxpose.xlu0.b32.cont [10/16] 0.0, 128
        %677 = vxpose.xlu0.b32.cont [11/16] 0.0, 128
        %678 = vxpose.xlu0.b32.cont [12/16] 0.0, 128
        %679 = vxpose.xlu0.b32.cont [13/16] 0.0, 128
        %680 = vxpose.xlu0.b32.cont [14/16] 0.0, 128
        %681 = vxpose.xlu0.b32.cont [15/16] 0.0, 128
        %682 = vxpose.xlu0.b32.end [16/16] 0.0, 128
        %v683 = vpop.trf.xlu0
        %v684 = vpop.trf.xlu0
        %v685 = vpop.trf.xlu0
        %v686 = vpop.trf.xlu0
        %v687 = vpop.trf.xlu0
        %v688 = vpop.trf.xlu0
        %v689 = vpop.trf.xlu0
        %v690 = vpop.trf.xlu0
        %v691 = vpop.trf.xlu0
        %v692 = vpop.trf.xlu0
        %v693 = vpop.trf.xlu0
        %v694 = vpop.trf.xlu0
        %v695 = vpop.trf.xlu0
        %v696 = vpop.trf.xlu0
        %v697 = vpop.trf.xlu0
        %v698 = vpop.trf.xlu0
        %699 = vxpose.xlu0.b32.start [1/16] %v546, 128
        %700 = vxpose.xlu0.b32.cont [2/16] 0.0, 128
        %701 = vxpose.xlu0.b32.cont [3/16] 0.0, 128
        %702 = vxpose.xlu0.b32.cont [4/16] 0.0, 128
        %703 = vxpose.xlu0.b32.cont [5/16] 0.0, 128
        %704 = vxpose.xlu0.b32.cont [6/16] 0.0, 128
        %705 = vxpose.xlu0.b32.cont [7/16] 0.0, 128
        %706 = vxpose.xlu0.b32.cont [8/16] 0.0, 128
        %707 = vxpose.xlu0.b32.cont [9/16] 0.0, 128
        %708 = vxpose.xlu0.b32.cont [10/16] 0.0, 128
        %709 = vxpose.xlu0.b32.cont [11/16] 0.0, 128
        %710 = vxpose.xlu0.b32.cont [12/16] 0.0, 128
        %711 = vxpose.xlu0.b32.cont [13/16] 0.0, 128
        %712 = vxpose.xlu0.b32.cont [14/16] 0.0, 128
        %713 = vxpose.xlu0.b32.cont [15/16] 0.0, 128
        %714 = vxpose.xlu0.b32.end [16/16] 0.0, 128
        %v715 = vpop.trf.xlu0
        %v716 = vpop.trf.xlu0
        %v717 = vpop.trf.xlu0
        %v718 = vpop.trf.xlu0
        %v719 = vpop.trf.xlu0
        %v720 = vpop.trf.xlu0
        %v721 = vpop.trf.xlu0
        %v722 = vpop.trf.xlu0
        %v723 = vpop.trf.xlu0
        %v724 = vpop.trf.xlu0
        %v725 = vpop.trf.xlu0
        %v726 = vpop.trf.xlu0
        %v727 = vpop.trf.xlu0
        %v728 = vpop.trf.xlu0
        %v729 = vpop.trf.xlu0
        %v730 = vpop.trf.xlu0
        %731 = vxpose.xlu0.b32.start [1/16] %v547, 128
        %732 = vxpose.xlu0.b32.cont [2/16] 0.0, 128
        %733 = vxpose.xlu0.b32.cont [3/16] 0.0, 128
        %734 = vxpose.xlu0.b32.cont [4/16] 0.0, 128
        %735 = vxpose.xlu0.b32.cont [5/16] 0.0, 128
        %736 = vxpose.xlu0.b32.cont [6/16] 0.0, 128
        %737 = vxpose.xlu0.b32.cont [7/16] 0.0, 128
        %738 = vxpose.xlu0.b32.cont [8/16] 0.0, 128
        %739 = vxpose.xlu0.b32.cont [9/16] 0.0, 128
        %740 = vxpose.xlu0.b32.cont [10/16] 0.0, 128
        %741 = vxpose.xlu0.b32.cont [11/16] 0.0, 128
        %742 = vxpose.xlu0.b32.cont [12/16] 0.0, 128
        %743 = vxpose.xlu0.b32.cont [13/16] 0.0, 128
        %744 = vxpose.xlu0.b32.cont [14/16] 0.0, 128
        %745 = vxpose.xlu0.b32.cont [15/16] 0.0, 128
        %746 = vxpose.xlu0.b32.end [16/16] 0.0, 128
        %v747 = vpop.trf.xlu0
        %v748 = vpop.trf.xlu0
        %v749 = vpop.trf.xlu0
        %v750 = vpop.trf.xlu0
        %v751 = vpop.trf.xlu0
        %v752 = vpop.trf.xlu0
        %v753 = vpop.trf.xlu0
        %v754 = vpop.trf.xlu0
        %v755 = vpop.trf.xlu0
        %v756 = vpop.trf.xlu0
        %v757 = vpop.trf.xlu0
        %v758 = vpop.trf.xlu0
        %v759 = vpop.trf.xlu0
        %v760 = vpop.trf.xlu0
        %v761 = vpop.trf.xlu0
        %v762 = vpop.trf.xlu0
        %763 = vxpose.xlu0.b32.start [1/16] %v548, 128
        %764 = vxpose.xlu0.b32.cont [2/16] 0.0, 128
        %765 = vxpose.xlu0.b32.cont [3/16] 0.0, 128
        %766 = vxpose.xlu0.b32.cont [4/16] 0.0, 128
        %767 = vxpose.xlu0.b32.cont [5/16] 0.0, 128
        %768 = vxpose.xlu0.b32.cont [6/16] 0.0, 128
        %769 = vxpose.xlu0.b32.cont [7/16] 0.0, 128
        %770 = vxpose.xlu0.b32.cont [8/16] 0.0, 128
        %771 = vxpose.xlu0.b32.cont [9/16] 0.0, 128
        %772 = vxpose.xlu0.b32.cont [10/16] 0.0, 128
        %773 = vxpose.xlu0.b32.cont [11/16] 0.0, 128
        %774 = vxpose.xlu0.b32.cont [12/16] 0.0, 128
        %775 = vxpose.xlu0.b32.cont [13/16] 0.0, 128
        %776 = vxpose.xlu0.b32.cont [14/16] 0.0, 128
        %777 = vxpose.xlu0.b32.cont [15/16] 0.0, 128
        %778 = vxpose.xlu0.b32.end [16/16] 0.0, 128
        %v779 = vpop.trf.xlu0
        %v780 = vpop.trf.xlu0
        %v781 = vpop.trf.xlu0
        %v782 = vpop.trf.xlu0
        %v783 = vpop.trf.xlu0
        %v784 = vpop.trf.xlu0
        %v785 = vpop.trf.xlu0
        %v786 = vpop.trf.xlu0
        %v787 = vpop.trf.xlu0
        %v788 = vpop.trf.xlu0
        %v789 = vpop.trf.xlu0
        %v790 = vpop.trf.xlu0
        %v791 = vpop.trf.xlu0
        %v792 = vpop.trf.xlu0
        %v793 = vpop.trf.xlu0
        %v794 = vpop.trf.xlu0
        %795 = vxpose.xlu0.b32.start [1/16] %v549, 128
        %796 = vxpose.xlu0.b32.cont [2/16] 0.0, 128
        %797 = vxpose.xlu0.b32.cont [3/16] 0.0, 128
        %798 = vxpose.xlu0.b32.cont [4/16] 0.0, 128
        %799 = vxpose.xlu0.b32.cont [5/16] 0.0, 128
        %800 = vxpose.xlu0.b32.cont [6/16] 0.0, 128
        %801 = vxpose.xlu0.b32.cont [7/16] 0.0, 128
        %802 = vxpose.xlu0.b32.cont [8/16] 0.0, 128
        %803 = vxpose.xlu0.b32.cont [9/16] 0.0, 128
        %804 = vxpose.xlu0.b32.cont [10/16] 0.0, 128
        %805 = vxpose.xlu0.b32.cont [11/16] 0.0, 128
        %806 = vxpose.xlu0.b32.cont [12/16] 0.0, 128
        %807 = vxpose.xlu0.b32.cont [13/16] 0.0, 128
        %808 = vxpose.xlu0.b32.cont [14/16] 0.0, 128
        %809 = vxpose.xlu0.b32.cont [15/16] 0.0, 128
        %810 = vxpose.xlu0.b32.end [16/16] 0.0, 128
        %v811 = vpop.trf.xlu0
        %v812 = vpop.trf.xlu0
        %v813 = vpop.trf.xlu0
        %v814 = vpop.trf.xlu0
        %v815 = vpop.trf.xlu0
        %v816 = vpop.trf.xlu0
        %v817 = vpop.trf.xlu0
        %v818 = vpop.trf.xlu0
        %v819 = vpop.trf.xlu0
        %v820 = vpop.trf.xlu0
        %v821 = vpop.trf.xlu0
        %v822 = vpop.trf.xlu0
        %v823 = vpop.trf.xlu0
        %v824 = vpop.trf.xlu0
        %v825 = vpop.trf.xlu0
        %v826 = vpop.trf.xlu0
        %827 = vxpose.xlu0.b32.start [1/16] %v540, 128
        %828 = vxpose.xlu0.b32.cont [2/16] 0.0, 128
        %829 = vxpose.xlu0.b32.cont [3/16] 0.0, 128
        %830 = vxpose.xlu0.b32.cont [4/16] 0.0, 128
        %831 = vxpose.xlu0.b32.cont [5/16] 0.0, 128
        %832 = vxpose.xlu0.b32.cont [6/16] 0.0, 128
        %833 = vxpose.xlu0.b32.cont [7/16] 0.0, 128
        %834 = vxpose.xlu0.b32.cont [8/16] 0.0, 128
        %835 = vxpose.xlu0.b32.cont [9/16] 0.0, 128
        %836 = vxpose.xlu0.b32.cont [10/16] 0.0, 128
        %837 = vxpose.xlu0.b32.cont [11/16] 0.0, 128
        %838 = vxpose.xlu0.b32.cont [12/16] 0.0, 128
        %839 = vxpose.xlu0.b32.cont [13/16] 0.0, 128
        %840 = vxpose.xlu0.b32.cont [14/16] 0.0, 128
        %841 = vxpose.xlu0.b32.cont [15/16] 0.0, 128
        %842 = vxpose.xlu0.b32.end [16/16] 0.0, 128
        %v843 = vpop.trf.xlu0
        %v844 = vpop.trf.xlu0
        %v845 = vpop.trf.xlu0
        %v846 = vpop.trf.xlu0
        %v847 = vpop.trf.xlu0
        %v848 = vpop.trf.xlu0
        %v849 = vpop.trf.xlu0
        %v850 = vpop.trf.xlu0
        %v851 = vpop.trf.xlu0
        %v852 = vpop.trf.xlu0
        %v853 = vpop.trf.xlu0
        %v854 = vpop.trf.xlu0
        %v855 = vpop.trf.xlu0
        %v856 = vpop.trf.xlu0
        %v857 = vpop.trf.xlu0
        %v858 = vpop.trf.xlu0
        %859 = vxpose.xlu0.b32.start [1/16] %v550, 128
        %860 = vxpose.xlu0.b32.cont [2/16] 0.0, 128
        %861 = vxpose.xlu0.b32.cont [3/16] 0.0, 128
        %862 = vxpose.xlu0.b32.cont [4/16] 0.0, 128
        %863 = vxpose.xlu0.b32.cont [5/16] 0.0, 128
        %864 = vxpose.xlu0.b32.cont [6/16] 0.0, 128
        %865 = vxpose.xlu0.b32.cont [7/16] 0.0, 128
        %866 = vxpose.xlu0.b32.cont [8/16] 0.0, 128
        %867 = vxpose.xlu0.b32.cont [9/16] 0.0, 128
        %868 = vxpose.xlu0.b32.cont [10/16] 0.0, 128
        %869 = vxpose.xlu0.b32.cont [11/16] 0.0, 128
        %870 = vxpose.xlu0.b32.cont [12/16] 0.0, 128
        %871 = vxpose.xlu0.b32.cont [13/16] 0.0, 128
        %872 = vxpose.xlu0.b32.cont [14/16] 0.0, 128
        %873 = vxpose.xlu0.b32.cont [15/16] 0.0, 128
        %874 = vxpose.xlu0.b32.end [16/16] 0.0, 128
        %v875 = vpop.trf.xlu0
        %v876 = vpop.trf.xlu0
        %v877 = vpop.trf.xlu0
        %v878 = vpop.trf.xlu0
        %v879 = vpop.trf.xlu0
        %v880 = vpop.trf.xlu0
        %v881 = vpop.trf.xlu0
        %v882 = vpop.trf.xlu0
        %v883 = vpop.trf.xlu0
        %v884 = vpop.trf.xlu0
        %v885 = vpop.trf.xlu0
        %v886 = vpop.trf.xlu0
        %v887 = vpop.trf.xlu0
        %v888 = vpop.trf.xlu0
        %v889 = vpop.trf.xlu0
        %v890 = vpop.trf.xlu0
        %891 = vxpose.xlu0.b32.start [1/16] %v551, 128
        %892 = vxpose.xlu0.b32.cont [2/16] 0.0, 128
        %893 = vxpose.xlu0.b32.cont [3/16] 0.0, 128
        %894 = vxpose.xlu0.b32.cont [4/16] 0.0, 128
        %895 = vxpose.xlu0.b32.cont [5/16] 0.0, 128
        %896 = vxpose.xlu0.b32.cont [6/16] 0.0, 128
        %897 = vxpose.xlu0.b32.cont [7/16] 0.0, 128
        %898 = vxpose.xlu0.b32.cont [8/16] 0.0, 128
        %899 = vxpose.xlu0.b32.cont [9/16] 0.0, 128
        %900 = vxpose.xlu0.b32.cont [10/16] 0.0, 128
        %901 = vxpose.xlu0.b32.cont [11/16] 0.0, 128
        %902 = vxpose.xlu0.b32.cont [12/16] 0.0, 128
        %903 = vxpose.xlu0.b32.cont [13/16] 0.0, 128
        %904 = vxpose.xlu0.b32.cont [14/16] 0.0, 128
        %905 = vxpose.xlu0.b32.cont [15/16] 0.0, 128
        %906 = vxpose.xlu0.b32.end [16/16] 0.0, 128
        %v907 = vpop.trf.xlu0
        %v908 = vpop.trf.xlu0
        %v909 = vpop.trf.xlu0
        %v910 = vpop.trf.xlu0
        %v911 = vpop.trf.xlu0
        %v912 = vpop.trf.xlu0
        %v913 = vpop.trf.xlu0
        %v914 = vpop.trf.xlu0
        %v915 = vpop.trf.xlu0
        %v916 = vpop.trf.xlu0
        %v917 = vpop.trf.xlu0
        %v918 = vpop.trf.xlu0
        %v919 = vpop.trf.xlu0
        %v920 = vpop.trf.xlu0
        %v921 = vpop.trf.xlu0
        %v922 = vpop.trf.xlu0
        %923 = vxpose.xlu0.b32.start [1/16] %v552, 128
        %924 = vxpose.xlu0.b32.cont [2/16] 0.0, 128
        %925 = vxpose.xlu0.b32.cont [3/16] 0.0, 128
        %926 = vxpose.xlu0.b32.cont [4/16] 0.0, 128
        %927 = vxpose.xlu0.b32.cont [5/16] 0.0, 128
        %928 = vxpose.xlu0.b32.cont [6/16] 0.0, 128
        %929 = vxpose.xlu0.b32.cont [7/16] 0.0, 128
        %930 = vxpose.xlu0.b32.cont [8/16] 0.0, 128
        %931 = vxpose.xlu0.b32.cont [9/16] 0.0, 128
        %932 = vxpose.xlu0.b32.cont [10/16] 0.0, 128
        %933 = vxpose.xlu0.b32.cont [11/16] 0.0, 128
        %934 = vxpose.xlu0.b32.cont [12/16] 0.0, 128
        %935 = vxpose.xlu0.b32.cont [13/16] 0.0, 128
        %936 = vxpose.xlu0.b32.cont [14/16] 0.0, 128
        %937 = vxpose.xlu0.b32.cont [15/16] 0.0, 128
        %938 = vxpose.xlu0.b32.end [16/16] 0.0, 128
        %v939 = vpop.trf.xlu0
        %v940 = vpop.trf.xlu0
        %v941 = vpop.trf.xlu0
        %v942 = vpop.trf.xlu0
        %v943 = vpop.trf.xlu0
        %v944 = vpop.trf.xlu0
        %v945 = vpop.trf.xlu0
        %v946 = vpop.trf.xlu0
        %v947 = vpop.trf.xlu0
        %v948 = vpop.trf.xlu0
        %v949 = vpop.trf.xlu0
        %v950 = vpop.trf.xlu0
        %v951 = vpop.trf.xlu0
        %v952 = vpop.trf.xlu0
        %v953 = vpop.trf.xlu0
        %v954 = vpop.trf.xlu0
        %955 = vxpose.xlu0.b32.start [1/16] %v553, 128
        %956 = vxpose.xlu0.b32.cont [2/16] 0.0, 128
        %957 = vxpose.xlu0.b32.cont [3/16] 0.0, 128
        %958 = vxpose.xlu0.b32.cont [4/16] 0.0, 128
        %959 = vxpose.xlu0.b32.cont [5/16] 0.0, 128
        %960 = vxpose.xlu0.b32.cont [6/16] 0.0, 128
        %961 = vxpose.xlu0.b32.cont [7/16] 0.0, 128
        %962 = vxpose.xlu0.b32.cont [8/16] 0.0, 128
        %963 = vxpose.xlu0.b32.cont [9/16] 0.0, 128
        %964 = vxpose.xlu0.b32.cont [10/16] 0.0, 128
        %965 = vxpose.xlu0.b32.cont [11/16] 0.0, 128
        %966 = vxpose.xlu0.b32.cont [12/16] 0.0, 128
        %967 = vxpose.xlu0.b32.cont [13/16] 0.0, 128
        %968 = vxpose.xlu0.b32.cont [14/16] 0.0, 128
        %969 = vxpose.xlu0.b32.cont [15/16] 0.0, 128
        %970 = vxpose.xlu0.b32.end [16/16] 0.0, 128
        %v971 = vpop.trf.xlu0
        %v972 = vpop.trf.xlu0
        %v973 = vpop.trf.xlu0
        %v974 = vpop.trf.xlu0
        %v975 = vpop.trf.xlu0
        %v976 = vpop.trf.xlu0
        %v977 = vpop.trf.xlu0
        %v978 = vpop.trf.xlu0
        %v979 = vpop.trf.xlu0
        %v980 = vpop.trf.xlu0
        %v981 = vpop.trf.xlu0
        %v982 = vpop.trf.xlu0
        %v983 = vpop.trf.xlu0
        %v984 = vpop.trf.xlu0
        %v985 = vpop.trf.xlu0
        %v986 = vpop.trf.xlu0
        %987 = vxpose.xlu0.b32.start [1/16] %v554, 128
        %988 = vxpose.xlu0.b32.cont [2/16] 0.0, 128
        %989 = vxpose.xlu0.b32.cont [3/16] 0.0, 128
        %990 = vxpose.xlu0.b32.cont [4/16] 0.0, 128
        %991 = vxpose.xlu0.b32.cont [5/16] 0.0, 128
        %992 = vxpose.xlu0.b32.cont [6/16] 0.0, 128
        %993 = vxpose.xlu0.b32.cont [7/16] 0.0, 128
        %994 = vxpose.xlu0.b32.cont [8/16] 0.0, 128
        %995 = vxpose.xlu0.b32.cont [9/16] 0.0, 128
        %996 = vxpose.xlu0.b32.cont [10/16] 0.0, 128
        %997 = vxpose.xlu0.b32.cont [11/16] 0.0, 128
        %998 = vxpose.xlu0.b32.cont [12/16] 0.0, 128
        %999 = vxpose.xlu0.b32.cont [13/16] 0.0, 128
        %1000 = vxpose.xlu0.b32.cont [14/16] 0.0, 128
        %1001 = vxpose.xlu0.b32.cont [15/16] 0.0, 128
        %1002 = vxpose.xlu0.b32.end [16/16] 0.0, 128
        %v1003 = vpop.trf.xlu0
        %v1004 = vpop.trf.xlu0
        %v1005 = vpop.trf.xlu0
        %v1006 = vpop.trf.xlu0
        %v1007 = vpop.trf.xlu0
        %v1008 = vpop.trf.xlu0
        %v1009 = vpop.trf.xlu0
        %v1010 = vpop.trf.xlu0
        %v1011 = vpop.trf.xlu0
        %v1012 = vpop.trf.xlu0
        %v1013 = vpop.trf.xlu0
        %v1014 = vpop.trf.xlu0
        %v1015 = vpop.trf.xlu0
        %v1016 = vpop.trf.xlu0
        %v1017 = vpop.trf.xlu0
        %v1018 = vpop.trf.xlu0
        %1019 = vxpose.xlu0.b32.start [1/16] %v555, 128
        %1020 = vxpose.xlu0.b32.cont [2/16] 0.0, 128
        %1021 = vxpose.xlu0.b32.cont [3/16] 0.0, 128
        %1022 = vxpose.xlu0.b32.cont [4/16] 0.0, 128
        %1023 = vxpose.xlu0.b32.cont [5/16] 0.0, 128
        %1024 = vxpose.xlu0.b32.cont [6/16] 0.0, 128
        %1025 = vxpose.xlu0.b32.cont [7/16] 0.0, 128
        %1026 = vxpose.xlu0.b32.cont [8/16] 0.0, 128
        %1027 = vxpose.xlu0.b32.cont [9/16] 0.0, 128
        %1028 = vxpose.xlu0.b32.cont [10/16] 0.0, 128
        %1029 = vxpose.xlu0.b32.cont [11/16] 0.0, 128
        %1030 = vxpose.xlu0.b32.cont [12/16] 0.0, 128
        %1031 = vxpose.xlu0.b32.cont [13/16] 0.0, 128
        %1032 = vxpose.xlu0.b32.cont [14/16] 0.0, 128
        %1033 = vxpose.xlu0.b32.cont [15/16] 0.0, 128
        %1034 = vxpose.xlu0.b32.end [16/16] 0.0, 128
        %v1035 = vpop.trf.xlu0
        %v1036 = vpop.trf.xlu0
        %v1037 = vpop.trf.xlu0
        %v1038 = vpop.trf.xlu0
        %v1039 = vpop.trf.xlu0
        %v1040 = vpop.trf.xlu0
        %v1041 = vpop.trf.xlu0
        %v1042 = vpop.trf.xlu0
        %v1043 = vpop.trf.xlu0
        %v1044 = vpop.trf.xlu0
        %v1045 = vpop.trf.xlu0
        %v1046 = vpop.trf.xlu0
        %v1047 = vpop.trf.xlu0
        %v1048 = vpop.trf.xlu0
        %v1049 = vpop.trf.xlu0
        %v1050 = vpop.trf.xlu0
        %1051 = vxpose.xlu0.b32.start [1/16] %v556, 128
        %1052 = vxpose.xlu0.b32.cont [2/16] 0.0, 128
        %1053 = vxpose.xlu0.b32.cont [3/16] 0.0, 128
        %1054 = vxpose.xlu0.b32.cont [4/16] 0.0, 128
        %1055 = vxpose.xlu0.b32.cont [5/16] 0.0, 128
        %1056 = vxpose.xlu0.b32.cont [6/16] 0.0, 128
        %1057 = vxpose.xlu0.b32.cont [7/16] 0.0, 128
        %1058 = vxpose.xlu0.b32.cont [8/16] 0.0, 128
        %1059 = vxpose.xlu0.b32.cont [9/16] 0.0, 128
        %1060 = vxpose.xlu0.b32.cont [10/16] 0.0, 128
        %1061 = vxpose.xlu0.b32.cont [11/16] 0.0, 128
        %1062 = vxpose.xlu0.b32.cont [12/16] 0.0, 128
        %1063 = vxpose.xlu0.b32.cont [13/16] 0.0, 128
        %1064 = vxpose.xlu0.b32.cont [14/16] 0.0, 128
        %1065 = vxpose.xlu0.b32.cont [15/16] 0.0, 128
        %1066 = vxpose.xlu0.b32.end [16/16] 0.0, 128
        %v1067 = vpop.trf.xlu0
        %v1068 = vpop.trf.xlu0
        %v1069 = vpop.trf.xlu0
        %v1070 = vpop.trf.xlu0
        %v1071 = vpop.trf.xlu0
        %v1072 = vpop.trf.xlu0
        %v1073 = vpop.trf.xlu0
        %v1074 = vpop.trf.xlu0
        %v1075 = vpop.trf.xlu0
        %v1076 = vpop.trf.xlu0
        %v1077 = vpop.trf.xlu0
        %v1078 = vpop.trf.xlu0
        %v1079 = vpop.trf.xlu0
        %v1080 = vpop.trf.xlu0
        %v1081 = vpop.trf.xlu0
        %v1082 = vpop.trf.xlu0
        %v1083 = vld [vmem:[#allocation6] sm:$0xff]
        %v1084 = vld [vmem:[#allocation6 + $0x8] sm:$0xff]
        %v1085 = vld [vmem:[#allocation6 + $0x10] sm:$0xff]
        %v1086 = vld [vmem:[#allocation6 + $0x18] sm:$0xff]
        %v1087 = vld [vmem:[%s472] sm:$0xff]
        %v1088 = vld [vmem:[%s472 + $0x8] sm:$0xff]
        %v1089 = vld [vmem:[%s472 + $0x10] sm:$0xff]
        %v1090 = vld [vmem:[%s472 + $0x18] sm:$0xff]
        %v1091 = vld [vmem:[%s472 + $0x20] sm:$0xff]
        %v1092 = vld [vmem:[%s472 + $0x28] sm:$0xff]
        %v1093 = vld [vmem:[%s472 + $0x30] sm:$0xff]
        %v1094 = vld [vmem:[%s472 + $0x38] sm:$0xff]
        %v1095 = vld [vmem:[%s472 + $0x40] sm:$0xff]
        %v1096 = vld [vmem:[%s472 + $0x48] sm:$0xff]
        %v1097 = vld [vmem:[%s472 + $0x50] sm:$0xff]
        %v1098 = vld [vmem:[%s472 + $0x58] sm:$0xff]
        %v1099 = vld [vmem:[%s472 + $0x60] sm:$0xff]
        %v1100 = vld [vmem:[%s472 + $0x68] sm:$0xff]
        %v1101 = vld [vmem:[%s472 + $0x70] sm:$0xff]
        %v1102 = vld [vmem:[%s472 + $0x78] sm:$0xff]
        %v1103 = vld [vmem:[%s472 + $0x80] sm:$0xff]
        %v1104 = vld [vmem:[%s472 + $0x88] sm:$0xff]
        %v1105 = vld [vmem:[%s472 + $0x90] sm:$0xff]
        %v1106 = vld [vmem:[%s472 + $0x98] sm:$0xff]
        %v1107 = vld [vmem:[%s472 + $0xa0] sm:$0xff]
        %v1108 = vld [vmem:[%s472 + $0xa8] sm:$0xff]
        %v1109 = vld [vmem:[%s472 + $0xb0] sm:$0xff]
        %v1110 = vld [vmem:[%s472 + $0xb8] sm:$0xff]
        %v1111 = vld [vmem:[%s472 + $0xc0] sm:$0xff]
        %v1112 = vld [vmem:[%s472 + $0xc8] sm:$0xff]
        %v1113 = vld [vmem:[%s472 + $0xd0] sm:$0xff]
        %v1114 = vld [vmem:[%s472 + $0xd8] sm:$0xff]
        %v1115 = vld [vmem:[%s472 + $0xe0] sm:$0xff]
        %v1116 = vld [vmem:[%s472 + $0xe8] sm:$0xff]
        %v1117 = vld [vmem:[%s472 + $0xf0] sm:$0xff]
        %v1118 = vld [vmem:[%s472 + $0xf8] sm:$0xff]
        %v1119 = vld [vmem:[%s472 + $0x100] sm:$0xff]
        %v1120 = vld [vmem:[%s472 + $0x108] sm:$0xff]
        %v1121 = vld [vmem:[%s472 + $0x110] sm:$0xff]
        %v1122 = vld [vmem:[%s472 + $0x118] sm:$0xff]
        %v1123 = vld [vmem:[%s472 + $0x120] sm:$0xff]
        %v1124 = vld [vmem:[%s472 + $0x128] sm:$0xff]
        %v1125 = vld [vmem:[%s472 + $0x130] sm:$0xff]
        %v1126 = vld [vmem:[%s472 + $0x138] sm:$0xff]
        %v1127 = vld [vmem:[%s472 + $0x140] sm:$0xff]
        %v1128 = vld [vmem:[%s472 + $0x148] sm:$0xff]
        %v1129 = vld [vmem:[%s472 + $0x150] sm:$0xff]
        %v1130 = vld [vmem:[%s472 + $0x158] sm:$0xff]
        %v1131 = vld [vmem:[%s472 + $0x160] sm:$0xff]
        %v1132 = vld [vmem:[%s472 + $0x168] sm:$0xff]
        %v1133 = vld [vmem:[%s472 + $0x170] sm:$0xff]
        %v1134 = vld [vmem:[%s472 + $0x178] sm:$0xff]
        %v1135 = vld [vmem:[%s472 + $0x180] sm:$0xff]
        %v1136 = vld [vmem:[%s472 + $0x188] sm:$0xff]
        %v1137 = vld [vmem:[%s472 + $0x190] sm:$0xff]
        %v1138 = vld [vmem:[%s472 + $0x198] sm:$0xff]
        %v1139 = vld [vmem:[%s472 + $0x1a0] sm:$0xff]
        %v1140 = vld [vmem:[%s472 + $0x1a8] sm:$0xff]
        %v1141 = vld [vmem:[%s472 + $0x1b0] sm:$0xff]
        %v1142 = vld [vmem:[%s472 + $0x1b8] sm:$0xff]
        %v1143 = vld [vmem:[%s472 + $0x1c0] sm:$0xff]
        %v1144 = vld [vmem:[%s472 + $0x1c8] sm:$0xff]
        %v1145 = vld [vmem:[%s472 + $0x1d0] sm:$0xff]
        %v1146 = vld [vmem:[%s472 + $0x1d8] sm:$0xff]
        %v1147 = vld [vmem:[%s472 + $0x1e0] sm:$0xff]
        %v1148 = vld [vmem:[%s472 + $0x1e8] sm:$0xff]
        %v1149 = vld [vmem:[%s472 + $0x1f0] sm:$0xff]
        %v1150 = vld [vmem:[%s472 + $0x1f8] sm:$0xff]
        %v1151 = vld [vmem:[#allocation8] sm:$0xff]
        %v1152 = vld [vmem:[#allocation8 + $0x8] sm:$0xff]
        %v1153 = vld [vmem:[#allocation8 + $0x10] sm:$0xff]
        %v1154 = vld [vmem:[#allocation8 + $0x18] sm:$0xff]
        %v1155 = vmul.f32 %v1087, %v1151
        %v1156 = vmul.f32 %v1088, %v1152
        %v1157 = vmul.f32 %v1089, %v1153
        %v1158 = vmul.f32 %v1090, %v1154
        %v1159 = vmul.f32 %v1091, %v1151
        %v1160 = vmul.f32 %v1092, %v1152
        %v1161 = vmul.f32 %v1093, %v1153
        %v1162 = vmul.f32 %v1094, %v1154
        %v1163 = vmul.f32 %v1095, %v1151
        %v1164 = vmul.f32 %v1096, %v1152
        %v1165 = vmul.f32 %v1097, %v1153
        %v1166 = vmul.f32 %v1098, %v1154
        %v1167 = vmul.f32 %v1099, %v1151
        %v1168 = vmul.f32 %v1100, %v1152
        %v1169 = vmul.f32 %v1101, %v1153
        %v1170 = vmul.f32 %v1102, %v1154
        %v1171 = vmul.f32 %v1103, %v1151
        %v1172 = vmul.f32 %v1104, %v1152
        %v1173 = vmul.f32 %v1105, %v1153
        %v1174 = vmul.f32 %v1106, %v1154
        %v1175 = vmul.f32 %v1107, %v1151
        %v1176 = vmul.f32 %v1108, %v1152
        %v1177 = vmul.f32 %v1109, %v1153
        %v1178 = vmul.f32 %v1110, %v1154
        %v1179 = vmul.f32 %v1111, %v1151
        %v1180 = vmul.f32 %v1112, %v1152
        %v1181 = vmul.f32 %v1113, %v1153
        %v1182 = vmul.f32 %v1114, %v1154
        %v1183 = vmul.f32 %v1115, %v1151
        %v1184 = vmul.f32 %v1116, %v1152
        %v1185 = vmul.f32 %v1117, %v1153
        %v1186 = vmul.f32 %v1118, %v1154
        %v1187 = vmul.f32 %v1119, %v1151
        %v1188 = vmul.f32 %v1120, %v1152
        %v1189 = vmul.f32 %v1121, %v1153
        %v1190 = vmul.f32 %v1122, %v1154
        %v1191 = vmul.f32 %v1123, %v1151
        %v1192 = vmul.f32 %v1124, %v1152
        %v1193 = vmul.f32 %v1125, %v1153
        %v1194 = vmul.f32 %v1126, %v1154
        %v1195 = vmul.f32 %v1127, %v1151
        %v1196 = vmul.f32 %v1128, %v1152
        %v1197 = vmul.f32 %v1129, %v1153
        %v1198 = vmul.f32 %v1130, %v1154
        %v1199 = vmul.f32 %v1131, %v1151
        %v1200 = vmul.f32 %v1132, %v1152
        %v1201 = vmul.f32 %v1133, %v1153
        %v1202 = vmul.f32 %v1134, %v1154
        %v1203 = vmul.f32 %v1135, %v1151
        %v1204 = vmul.f32 %v1136, %v1152
        %v1205 = vmul.f32 %v1137, %v1153
        %v1206 = vmul.f32 %v1138, %v1154
        %v1207 = vmul.f32 %v1139, %v1151
        %v1208 = vmul.f32 %v1140, %v1152
        %v1209 = vmul.f32 %v1141, %v1153
        %v1210 = vmul.f32 %v1142, %v1154
        %v1211 = vmul.f32 %v1143, %v1151
        %v1212 = vmul.f32 %v1144, %v1152
        %v1213 = vmul.f32 %v1145, %v1153
        %v1214 = vmul.f32 %v1146, %v1154
        %v1215 = vmul.f32 %v1147, %v1151
        %v1216 = vmul.f32 %v1148, %v1152
        %v1217 = vmul.f32 %v1149, %v1153
        %v1218 = vmul.f32 %v1150, %v1154
        %1220 = vset.pattern.permute.xlu0 0
        %1221 = vperm.xlu0 %1220, %v587
        %v1222 = vpop.permute.xlu0 %1221
        %1225 = vset.pattern.permute.xlu0 0
        %1226 = vperm.xlu0 %1225, %v588
        %v1227 = vpop.permute.xlu0 %1226
        %1230 = vset.pattern.permute.xlu0 0
        %1231 = vperm.xlu0 %1230, %v589
        %v1232 = vpop.permute.xlu0 %1231
        %1235 = vset.pattern.permute.xlu0 0
        %1236 = vperm.xlu0 %1235, %v590
        %v1237 = vpop.permute.xlu0 %1236
        %1240 = vset.pattern.permute.xlu0 0
        %1241 = vperm.xlu0 %1240, %v619
        %v1242 = vpop.permute.xlu0 %1241
        %1245 = vset.pattern.permute.xlu0 0
        %1246 = vperm.xlu0 %1245, %v620
        %v1247 = vpop.permute.xlu0 %1246
        %1250 = vset.pattern.permute.xlu0 0
        %1251 = vperm.xlu0 %1250, %v621
        %v1252 = vpop.permute.xlu0 %1251
        %1255 = vset.pattern.permute.xlu0 0
        %1256 = vperm.xlu0 %1255, %v622
        %v1257 = vpop.permute.xlu0 %1256
        %1260 = vset.pattern.permute.xlu0 0
        %1261 = vperm.xlu0 %1260, %v651
        %v1262 = vpop.permute.xlu0 %1261
        %1265 = vset.pattern.permute.xlu0 0
        %1266 = vperm.xlu0 %1265, %v652
        %v1267 = vpop.permute.xlu0 %1266
        %1270 = vset.pattern.permute.xlu0 0
        %1271 = vperm.xlu0 %1270, %v653
        %v1272 = vpop.permute.xlu0 %1271
        %1275 = vset.pattern.permute.xlu0 0
        %1276 = vperm.xlu0 %1275, %v654
        %v1277 = vpop.permute.xlu0 %1276
        %1280 = vset.pattern.permute.xlu0 0
        %1281 = vperm.xlu0 %1280, %v683
        %v1282 = vpop.permute.xlu0 %1281
        %1285 = vset.pattern.permute.xlu0 0
        %1286 = vperm.xlu0 %1285, %v684
        %v1287 = vpop.permute.xlu0 %1286
        %1290 = vset.pattern.permute.xlu0 0
        %1291 = vperm.xlu0 %1290, %v685
        %v1292 = vpop.permute.xlu0 %1291
        %1295 = vset.pattern.permute.xlu0 0
        %1296 = vperm.xlu0 %1295, %v686
        %v1297 = vpop.permute.xlu0 %1296
        %1300 = vset.pattern.permute.xlu0 0
        %1301 = vperm.xlu0 %1300, %v715
        %v1302 = vpop.permute.xlu0 %1301
        %1305 = vset.pattern.permute.xlu0 0
        %1306 = vperm.xlu0 %1305, %v716
        %v1307 = vpop.permute.xlu0 %1306
        %1310 = vset.pattern.permute.xlu0 0
        %1311 = vperm.xlu0 %1310, %v717
        %v1312 = vpop.permute.xlu0 %1311
        %1315 = vset.pattern.permute.xlu0 0
        %1316 = vperm.xlu0 %1315, %v718
        %v1317 = vpop.permute.xlu0 %1316
        %1320 = vset.pattern.permute.xlu0 0
        %1321 = vperm.xlu0 %1320, %v747
        %v1322 = vpop.permute.xlu0 %1321
        %1325 = vset.pattern.permute.xlu0 0
        %1326 = vperm.xlu0 %1325, %v748
        %v1327 = vpop.permute.xlu0 %1326
        %1330 = vset.pattern.permute.xlu0 0
        %1331 = vperm.xlu0 %1330, %v749
        %v1332 = vpop.permute.xlu0 %1331
        %1335 = vset.pattern.permute.xlu0 0
        %1336 = vperm.xlu0 %1335, %v750
        %v1337 = vpop.permute.xlu0 %1336
        %1340 = vset.pattern.permute.xlu0 0
        %1341 = vperm.xlu0 %1340, %v779
        %v1342 = vpop.permute.xlu0 %1341
        %1345 = vset.pattern.permute.xlu0 0
        %1346 = vperm.xlu0 %1345, %v780
        %v1347 = vpop.permute.xlu0 %1346
        %1350 = vset.pattern.permute.xlu0 0
        %1351 = vperm.xlu0 %1350, %v781
        %v1352 = vpop.permute.xlu0 %1351
        %1355 = vset.pattern.permute.xlu0 0
        %1356 = vperm.xlu0 %1355, %v782
        %v1357 = vpop.permute.xlu0 %1356
        %1360 = vset.pattern.permute.xlu0 0
        %1361 = vperm.xlu0 %1360, %v811
        %v1362 = vpop.permute.xlu0 %1361
        %1365 = vset.pattern.permute.xlu0 0
        %1366 = vperm.xlu0 %1365, %v812
        %v1367 = vpop.permute.xlu0 %1366
        %1370 = vset.pattern.permute.xlu0 0
        %1371 = vperm.xlu0 %1370, %v813
        %v1372 = vpop.permute.xlu0 %1371
        %1375 = vset.pattern.permute.xlu0 0
        %1376 = vperm.xlu0 %1375, %v814
        %v1377 = vpop.permute.xlu0 %1376
        %1380 = vset.pattern.permute.xlu0 0
        %1381 = vperm.xlu0 %1380, %v843
        %v1382 = vpop.permute.xlu0 %1381
        %1385 = vset.pattern.permute.xlu0 0
        %1386 = vperm.xlu0 %1385, %v844
        %v1387 = vpop.permute.xlu0 %1386
        %1390 = vset.pattern.permute.xlu0 0
        %1391 = vperm.xlu0 %1390, %v845
        %v1392 = vpop.permute.xlu0 %1391
        %1395 = vset.pattern.permute.xlu0 0
        %1396 = vperm.xlu0 %1395, %v846
        %v1397 = vpop.permute.xlu0 %1396
        %1400 = vset.pattern.permute.xlu0 0
        %1401 = vperm.xlu0 %1400, %v875
        %v1402 = vpop.permute.xlu0 %1401
        %1405 = vset.pattern.permute.xlu0 0
        %1406 = vperm.xlu0 %1405, %v876
        %v1407 = vpop.permute.xlu0 %1406
        %1410 = vset.pattern.permute.xlu0 0
        %1411 = vperm.xlu0 %1410, %v877
        %v1412 = vpop.permute.xlu0 %1411
        %1415 = vset.pattern.permute.xlu0 0
        %1416 = vperm.xlu0 %1415, %v878
        %v1417 = vpop.permute.xlu0 %1416
        %1420 = vset.pattern.permute.xlu0 0
        %1421 = vperm.xlu0 %1420, %v907
        %v1422 = vpop.permute.xlu0 %1421
        %1425 = vset.pattern.permute.xlu0 0
        %1426 = vperm.xlu0 %1425, %v908
        %v1427 = vpop.permute.xlu0 %1426
        %1430 = vset.pattern.permute.xlu0 0
        %1431 = vperm.xlu0 %1430, %v909
        %v1432 = vpop.permute.xlu0 %1431
        %1435 = vset.pattern.permute.xlu0 0
        %1436 = vperm.xlu0 %1435, %v910
        %v1437 = vpop.permute.xlu0 %1436
        %1440 = vset.pattern.permute.xlu0 0
        %1441 = vperm.xlu0 %1440, %v939
        %v1442 = vpop.permute.xlu0 %1441
        %1445 = vset.pattern.permute.xlu0 0
        %1446 = vperm.xlu0 %1445, %v940
        %v1447 = vpop.permute.xlu0 %1446
        %1450 = vset.pattern.permute.xlu0 0
        %1451 = vperm.xlu0 %1450, %v941
        %v1452 = vpop.permute.xlu0 %1451
        %1455 = vset.pattern.permute.xlu0 0
        %1456 = vperm.xlu0 %1455, %v942
        %v1457 = vpop.permute.xlu0 %1456
        %1460 = vset.pattern.permute.xlu0 0
        %1461 = vperm.xlu0 %1460, %v971
        %v1462 = vpop.permute.xlu0 %1461
        %1465 = vset.pattern.permute.xlu0 0
        %1466 = vperm.xlu0 %1465, %v972
        %v1467 = vpop.permute.xlu0 %1466
        %1470 = vset.pattern.permute.xlu0 0
        %1471 = vperm.xlu0 %1470, %v973
        %v1472 = vpop.permute.xlu0 %1471
        %1475 = vset.pattern.permute.xlu0 0
        %1476 = vperm.xlu0 %1475, %v974
        %v1477 = vpop.permute.xlu0 %1476
        %1480 = vset.pattern.permute.xlu0 0
        %1481 = vperm.xlu0 %1480, %v1003
        %v1482 = vpop.permute.xlu0 %1481
        %1485 = vset.pattern.permute.xlu0 0
        %1486 = vperm.xlu0 %1485, %v1004
        %v1487 = vpop.permute.xlu0 %1486
        %1490 = vset.pattern.permute.xlu0 0
        %1491 = vperm.xlu0 %1490, %v1005
        %v1492 = vpop.permute.xlu0 %1491
        %1495 = vset.pattern.permute.xlu0 0
        %1496 = vperm.xlu0 %1495, %v1006
        %v1497 = vpop.permute.xlu0 %1496
        %1500 = vset.pattern.permute.xlu0 0
        %1501 = vperm.xlu0 %1500, %v1035
        %v1502 = vpop.permute.xlu0 %1501
        %1505 = vset.pattern.permute.xlu0 0
        %1506 = vperm.xlu0 %1505, %v1036
        %v1507 = vpop.permute.xlu0 %1506
        %1510 = vset.pattern.permute.xlu0 0
        %1511 = vperm.xlu0 %1510, %v1037
        %v1512 = vpop.permute.xlu0 %1511
        %1515 = vset.pattern.permute.xlu0 0
        %1516 = vperm.xlu0 %1515, %v1038
        %v1517 = vpop.permute.xlu0 %1516
        %1520 = vset.pattern.permute.xlu0 0
        %1521 = vperm.xlu0 %1520, %v1067
        %v1522 = vpop.permute.xlu0 %1521
        %1525 = vset.pattern.permute.xlu0 0
        %1526 = vperm.xlu0 %1525, %v1068
        %v1527 = vpop.permute.xlu0 %1526
        %1530 = vset.pattern.permute.xlu0 0
        %1531 = vperm.xlu0 %1530, %v1069
        %v1532 = vpop.permute.xlu0 %1531
        %1535 = vset.pattern.permute.xlu0 0
        %1536 = vperm.xlu0 %1535, %v1070
        %v1537 = vpop.permute.xlu0 %1536
        %v1539 = vmul.f32 %v1155, %v1222
        %v1540 = vmul.f32 %v1156, %v1227
        %v1541 = vmul.f32 %v1157, %v1232
        %v1542 = vmul.f32 %v1158, %v1237
        %v1543 = vmul.f32 %v1159, %v1242
        %v1544 = vmul.f32 %v1160, %v1247
        %v1545 = vmul.f32 %v1161, %v1252
        %v1546 = vmul.f32 %v1162, %v1257
        %v1547 = vmul.f32 %v1163, %v1262
        %v1548 = vmul.f32 %v1164, %v1267
        %v1549 = vmul.f32 %v1165, %v1272
        %v1550 = vmul.f32 %v1166, %v1277
        %v1551 = vmul.f32 %v1167, %v1282
        %v1552 = vmul.f32 %v1168, %v1287
        %v1553 = vmul.f32 %v1169, %v1292
        %v1554 = vmul.f32 %v1170, %v1297
        %v1555 = vmul.f32 %v1171, %v1302
        %v1556 = vmul.f32 %v1172, %v1307
        %v1557 = vmul.f32 %v1173, %v1312
        %v1558 = vmul.f32 %v1174, %v1317
        %v1559 = vmul.f32 %v1175, %v1322
        %v1560 = vmul.f32 %v1176, %v1327
        %v1561 = vmul.f32 %v1177, %v1332
        %v1562 = vmul.f32 %v1178, %v1337
        %v1563 = vmul.f32 %v1179, %v1342
        %v1564 = vmul.f32 %v1180, %v1347
        %v1565 = vmul.f32 %v1181, %v1352
        %v1566 = vmul.f32 %v1182, %v1357
        %v1567 = vmul.f32 %v1183, %v1362
        %v1568 = vmul.f32 %v1184, %v1367
        %v1569 = vmul.f32 %v1185, %v1372
        %v1570 = vmul.f32 %v1186, %v1377
        %v1571 = vmul.f32 %v1187, %v1382
        %v1572 = vmul.f32 %v1188, %v1387
        %v1573 = vmul.f32 %v1189, %v1392
        %v1574 = vmul.f32 %v1190, %v1397
        %v1575 = vmul.f32 %v1191, %v1402
        %v1576 = vmul.f32 %v1192, %v1407
        %v1577 = vmul.f32 %v1193, %v1412
        %v1578 = vmul.f32 %v1194, %v1417
        %v1579 = vmul.f32 %v1195, %v1422
        %v1580 = vmul.f32 %v1196, %v1427
        %v1581 = vmul.f32 %v1197, %v1432
        %v1582 = vmul.f32 %v1198, %v1437
        %v1583 = vmul.f32 %v1199, %v1442
        %v1584 = vmul.f32 %v1200, %v1447
        %v1585 = vmul.f32 %v1201, %v1452
        %v1586 = vmul.f32 %v1202, %v1457
        %v1587 = vmul.f32 %v1203, %v1462
        %v1588 = vmul.f32 %v1204, %v1467
        %v1589 = vmul.f32 %v1205, %v1472
        %v1590 = vmul.f32 %v1206, %v1477
        %v1591 = vmul.f32 %v1207, %v1482
        %v1592 = vmul.f32 %v1208, %v1487
        %v1593 = vmul.f32 %v1209, %v1492
        %v1594 = vmul.f32 %v1210, %v1497
        %v1595 = vmul.f32 %v1211, %v1502
        %v1596 = vmul.f32 %v1212, %v1507
        %v1597 = vmul.f32 %v1213, %v1512
        %v1598 = vmul.f32 %v1214, %v1517
        %v1599 = vmul.f32 %v1215, %v1522
        %v1600 = vmul.f32 %v1216, %v1527
        %v1601 = vmul.f32 %v1217, %v1532
        %v1602 = vmul.f32 %v1218, %v1537
        %v1603 = vadd.f32 %v1539, %v1540
        %v1604 = vadd.f32 %v1603, %v1541
        %v1605 = vadd.f32 %v1604, %v1542
        %v1606 = vrot.slane %v1605, 4
        %v1607 = vadd.f32 %v1605, %v1606
        %v1608 = vrot.slane %v1607, 2
        %v1609 = vadd.f32 %v1607, %v1608
        %v1610 = vrot.slane %v1609, 1
        %v1611 = vadd.f32 %v1609, %v1610
        %v1612 = vadd.f32 %v1543, %v1544
        %v1613 = vadd.f32 %v1612, %v1545
        %v1614 = vadd.f32 %v1613, %v1546
        %v1615 = vrot.slane %v1614, 4
        %v1616 = vadd.f32 %v1614, %v1615
        %v1617 = vrot.slane %v1616, 2
        %v1618 = vadd.f32 %v1616, %v1617
        %v1619 = vrot.slane %v1618, 1
        %v1620 = vadd.f32 %v1618, %v1619
        %v1621 = vadd.f32 %v1547, %v1548
        %v1622 = vadd.f32 %v1621, %v1549
        %v1623 = vadd.f32 %v1622, %v1550
        %v1624 = vrot.slane %v1623, 4
        %v1625 = vadd.f32 %v1623, %v1624
        %v1626 = vrot.slane %v1625, 2
        %v1627 = vadd.f32 %v1625, %v1626
        %v1628 = vrot.slane %v1627, 1
        %v1629 = vadd.f32 %v1627, %v1628
        %v1630 = vadd.f32 %v1551, %v1552
        %v1631 = vadd.f32 %v1630, %v1553
        %v1632 = vadd.f32 %v1631, %v1554
        %v1633 = vrot.slane %v1632, 4
        %v1634 = vadd.f32 %v1632, %v1633
        %v1635 = vrot.slane %v1634, 2
        %v1636 = vadd.f32 %v1634, %v1635
        %v1637 = vrot.slane %v1636, 1
        %v1638 = vadd.f32 %v1636, %v1637
        %v1639 = vadd.f32 %v1555, %v1556
        %v1640 = vadd.f32 %v1639, %v1557
        %v1641 = vadd.f32 %v1640, %v1558
        %v1642 = vrot.slane %v1641, 4
        %v1643 = vadd.f32 %v1641, %v1642
        %v1644 = vrot.slane %v1643, 2
        %v1645 = vadd.f32 %v1643, %v1644
        %v1646 = vrot.slane %v1645, 1
        %v1647 = vadd.f32 %v1645, %v1646
        %v1648 = vadd.f32 %v1559, %v1560
        %v1649 = vadd.f32 %v1648, %v1561
        %v1650 = vadd.f32 %v1649, %v1562
        %v1651 = vrot.slane %v1650, 4
        %v1652 = vadd.f32 %v1650, %v1651
        %v1653 = vrot.slane %v1652, 2
        %v1654 = vadd.f32 %v1652, %v1653
        %v1655 = vrot.slane %v1654, 1
        %v1656 = vadd.f32 %v1654, %v1655
        %v1657 = vadd.f32 %v1563, %v1564
        %v1658 = vadd.f32 %v1657, %v1565
        %v1659 = vadd.f32 %v1658, %v1566
        %v1660 = vrot.slane %v1659, 4
        %v1661 = vadd.f32 %v1659, %v1660
        %v1662 = vrot.slane %v1661, 2
        %v1663 = vadd.f32 %v1661, %v1662
        %v1664 = vrot.slane %v1663, 1
        %v1665 = vadd.f32 %v1663, %v1664
        %v1666 = vadd.f32 %v1567, %v1568
        %v1667 = vadd.f32 %v1666, %v1569
        %v1668 = vadd.f32 %v1667, %v1570
        %v1669 = vrot.slane %v1668, 4
        %v1670 = vadd.f32 %v1668, %v1669
        %v1671 = vrot.slane %v1670, 2
        %v1672 = vadd.f32 %v1670, %v1671
        %v1673 = vrot.slane %v1672, 1
        %v1674 = vadd.f32 %v1672, %v1673
        %v1675 = vadd.f32 %v1571, %v1572
        %v1676 = vadd.f32 %v1675, %v1573
        %v1677 = vadd.f32 %v1676, %v1574
        %v1678 = vrot.slane %v1677, 4
        %v1679 = vadd.f32 %v1677, %v1678
        %v1680 = vrot.slane %v1679, 2
        %v1681 = vadd.f32 %v1679, %v1680
        %v1682 = vrot.slane %v1681, 1
        %v1683 = vadd.f32 %v1681, %v1682
        %v1684 = vadd.f32 %v1575, %v1576
        %v1685 = vadd.f32 %v1684, %v1577
        %v1686 = vadd.f32 %v1685, %v1578
        %v1687 = vrot.slane %v1686, 4
        %v1688 = vadd.f32 %v1686, %v1687
        %v1689 = vrot.slane %v1688, 2
        %v1690 = vadd.f32 %v1688, %v1689
        %v1691 = vrot.slane %v1690, 1
        %v1692 = vadd.f32 %v1690, %v1691
        %v1693 = vadd.f32 %v1579, %v1580
        %v1694 = vadd.f32 %v1693, %v1581
        %v1695 = vadd.f32 %v1694, %v1582
        %v1696 = vrot.slane %v1695, 4
        %v1697 = vadd.f32 %v1695, %v1696
        %v1698 = vrot.slane %v1697, 2
        %v1699 = vadd.f32 %v1697, %v1698
        %v1700 = vrot.slane %v1699, 1
        %v1701 = vadd.f32 %v1699, %v1700
        %v1702 = vadd.f32 %v1583, %v1584
        %v1703 = vadd.f32 %v1702, %v1585
        %v1704 = vadd.f32 %v1703, %v1586
        %v1705 = vrot.slane %v1704, 4
        %v1706 = vadd.f32 %v1704, %v1705
        %v1707 = vrot.slane %v1706, 2
        %v1708 = vadd.f32 %v1706, %v1707
        %v1709 = vrot.slane %v1708, 1
        %v1710 = vadd.f32 %v1708, %v1709
        %v1711 = vadd.f32 %v1587, %v1588
        %v1712 = vadd.f32 %v1711, %v1589
        %v1713 = vadd.f32 %v1712, %v1590
        %v1714 = vrot.slane %v1713, 4
        %v1715 = vadd.f32 %v1713, %v1714
        %v1716 = vrot.slane %v1715, 2
        %v1717 = vadd.f32 %v1715, %v1716
        %v1718 = vrot.slane %v1717, 1
        %v1719 = vadd.f32 %v1717, %v1718
        %v1720 = vadd.f32 %v1591, %v1592
        %v1721 = vadd.f32 %v1720, %v1593
        %v1722 = vadd.f32 %v1721, %v1594
        %v1723 = vrot.slane %v1722, 4
        %v1724 = vadd.f32 %v1722, %v1723
        %v1725 = vrot.slane %v1724, 2
        %v1726 = vadd.f32 %v1724, %v1725
        %v1727 = vrot.slane %v1726, 1
        %v1728 = vadd.f32 %v1726, %v1727
        %v1729 = vadd.f32 %v1595, %v1596
        %v1730 = vadd.f32 %v1729, %v1597
        %v1731 = vadd.f32 %v1730, %v1598
        %v1732 = vrot.slane %v1731, 4
        %v1733 = vadd.f32 %v1731, %v1732
        %v1734 = vrot.slane %v1733, 2
        %v1735 = vadd.f32 %v1733, %v1734
        %v1736 = vrot.slane %v1735, 1
        %v1737 = vadd.f32 %v1735, %v1736
        %v1738 = vadd.f32 %v1599, %v1600
        %v1739 = vadd.f32 %v1738, %v1601
        %v1740 = vadd.f32 %v1739, %v1602
        %v1741 = vrot.slane %v1740, 4
        %v1742 = vadd.f32 %v1740, %v1741
        %v1743 = vrot.slane %v1742, 2
        %v1744 = vadd.f32 %v1742, %v1743
        %v1745 = vrot.slane %v1744, 1
        %v1746 = vadd.f32 %v1744, %v1745
        %vm1763 = vcmask 1041409
        %v1764 = vsel %vm1763, %v1620, %v1611
        %vm1765 = vcmask 1042434
        %v1766 = vsel %vm1765, %v1629, %v1764
        %vm1767 = vcmask 1043459
        %v1768 = vsel %vm1767, %v1638, %v1766
        %vm1769 = vcmask 1044484
        %v1770 = vsel %vm1769, %v1647, %v1768
        %vm1771 = vcmask 1045509
        %v1772 = vsel %vm1771, %v1656, %v1770
        %vm1773 = vcmask 1046534
        %v1774 = vsel %vm1773, %v1665, %v1772
        %vm1775 = vcmask 1047559
        %v1776 = vsel %vm1775, %v1674, %v1774
        %v1777 = vsel %vm1763, %v1692, %v1683
        %v1778 = vsel %vm1765, %v1701, %v1777
        %v1779 = vsel %vm1767, %v1710, %v1778
        %v1780 = vsel %vm1769, %v1719, %v1779
        %v1781 = vsel %vm1771, %v1728, %v1780
        %v1782 = vsel %vm1773, %v1737, %v1781
        %v1783 = vsel %vm1775, %v1746, %v1782
        %vm1786 = vcmask 261120
        %v1787 = vsel %vm1786, %v539, 0
        %v1789 = vsel %vm1786, %v540, 0
        %1791 = vmatpush.msra.mxu0 0.0
        %1792 = vmatpush.msra.mxu0 0.0
        %1793 = vmatpush.msra.mxu0 0.0
        %1794 = vmatpush.msra.mxu0 0.0
        %1795 = vmatpush.msra.mxu0 0.0
        %1796 = vmatpush.msra.mxu0 0.0
        %1797 = vmatpush.msra.mxu0 0.0
        %1798 = vmatpush.msra.mxu0 0.0
        %1799 = vmatpush.msra.mxu0 0.0
        %1800 = vmatpush.msra.mxu0 0.0
        %1801 = vmatpush.msra.mxu0 0.0
        %1802 = vmatpush.msra.mxu0 0.0
        %1803 = vmatpush.msra.mxu0 %v1086
        %1804 = vmatpush.msra.mxu0 %v1085
        %1805 = vmatpush.msra.mxu0 %v1084
        %1806 = vmatpush.msra.mxu0 %v1083
        %1807 = vmatmul.f32.gmra.mxu0 %v1787
        %v1808 = vpop.f32.mrf.mxu0
        %v1809 = vadd.f32 %v1776, %v1808
        %1810 = vmatmul.f32.gmra.mxu0 %v1789
        %v1811 = vpop.f32.mrf.mxu0
        %v1812 = vadd.f32 %v1783, %v1811
        %1813 = vdwg.mxu0
        %1814 = vadd.xlane.f32.xlu0 %v1809
        %v1815 = vpop.xlane.xlu0 %1814
        %1816 = vadd.xlane.f32.xlu0 %v1812
        %v1817 = vpop.xlane.xlu0 %1816
        %v1818 = vrcp.pop 128.0
        %v1819 = vmul.f32 128.0, %v1818
        %v1820 = vsub.f32 1.0, %v1819
        %v1821 = vmul.f32 %v1818, %v1820
        %v1822 = vadd.f32 %v1818, %v1821
        %vm1823 = vweird.f32 %v1818
        %v1824 = vsel %vm1823, %v1818, %v1822
        %v1825 = vmul.f32 %v1815, %v1824
        %v1826 = vmul.f32 %v1817, %v1824
        %v1827 = vsub.f32 %v1809, %v1825
        %v1828 = vsub.f32 %v1812, %v1826
        %v1829 = vmul.f32 %v1827, %v1827
        %v1830 = vmul.f32 %v1828, %v1828
        %1831 = vadd.xlane.f32.xlu0 %v1829
        %v1832 = vpop.xlane.xlu0 %1831
        %1833 = vadd.xlane.f32.xlu0 %v1830
        %v1834 = vpop.xlane.xlu0 %1833
        %v1835 = vmul.f32 %v1832, %v1824
        %v1836 = vmul.f32 %v1834, %v1824
        %v1837 = vadd.f32 %v1835, 1e-05
        %v1838 = vadd.f32 %v1836, 1e-05
        %v1839 = vrsqrt.pop %v1837
        %v1840 = vmul.f32 %v1839, %v1837
        %v1841 = vmul.f32 %v1840, %v1839
        %v1842 = vmul.f32 0.5, %v1841
        %v1843 = vsub.f32 1.5, %v1842
        %v1844 = vmul.f32 %v1839, %v1843
        %vm1845 = vweird.f32 %v1837
        %vm1846 = vweird.f32 %v1839
        %vm1847 = vmor %vm1845, %vm1846
        %v1848 = vsel %vm1847, %v1839, %v1844
        %v1849 = vrsqrt.pop %v1838
        %v1850 = vmul.f32 %v1849, %v1838
        %v1851 = vmul.f32 %v1850, %v1849
        %v1852 = vmul.f32 0.5, %v1851
        %v1853 = vsub.f32 1.5, %v1852
        %v1854 = vmul.f32 %v1849, %v1853
        %vm1855 = vweird.f32 %v1838
        %vm1856 = vweird.f32 %v1849
        %vm1857 = vmor %vm1855, %vm1856
        %v1858 = vsel %vm1857, %v1849, %v1854
        %v1859 = vmul.f32 %v1827, %v1848
        %v1860 = vmul.f32 %v1828, %v1858
        %v1861 = vld [vmem:[%s4] sm:$0x1]
        %v1863 = vperm.slane %v1861, 0
        %v1865 = vmul.f32 %v1859, %v1863
        %v1866 = vmul.f32 %v1860, %v1863
        %v1867 = vld [vmem:[%s5] sm:$0x1]
        %v1869 = vperm.slane %v1867, 0
        %v1871 = vadd.f32 %v1865, %v1869
        %v1872 = vadd.f32 %v1866, %v1869
        %v1873 = vtanh.pop %v1871
        %v1874 = vtanh.pop %v1872
        %v1875 = vld [vmem:[%s6] sm:$0x1]
        %v1877 = vperm.slane %v1875, 0
        %v1879 = vmul.f32 %v1873, %v1877
        %v1880 = vmul.f32 %v1874, %v1877
        %1881 = vadd.xlane.f32.xlu0 %v1879
        %v1882 = vpop.xlane.xlu0 %1881
        %1883 = vadd.xlane.f32.xlu0 %v1880
        %v1884 = vpop.xlane.xlu0 %1883
        %s1885 = sld [smem:[#allocation2]]
        %v1886 = vstv %s1885
        %v1887 = vadd.f32 %v1882, %v1886
        %v1888 = vadd.f32 %v1884, %v1886
        %v1889 = vtanh.pop %v1887
        %v1890 = vtanh.pop %v1888
        %v1891 = vld [vmem:[%s8] sm:$0x1]
        %v1893 = vperm.slane %v1891, 0
        %v1895 = vmul.f32 %v1889, %v1893
        %v1896 = vmul.f32 %v1890, %v1893
        %v1897 = vld [vmem:[%s9] sm:$0x1]
        %v1899 = vperm.slane %v1897, 0
        %v1901 = vadd.f32 %v1895, %v1899
        %v1902 = vadd.f32 %v1896, %v1899
        %v1903 = vmul.f32 %v1901, %v1873
        %v1904 = vmul.f32 %v1902, %v1874
        %v1907 = vrot.slane %v1903, 1
        %v1908 = vrot.slane %v1903, 2
        %v1909 = vrot.slane %v1903, 3
        %v1910 = vrot.slane %v1903, 4
        %v1911 = vrot.slane %v1903, 5
        %v1912 = vrot.slane %v1903, 6
        %v1913 = vrot.slane %v1903, 7
        %v1914 = vrot.slane %v1904, 1
        %v1915 = vrot.slane %v1904, 2
        %v1916 = vrot.slane %v1904, 3
        %v1917 = vrot.slane %v1904, 4
        %v1918 = vrot.slane %v1904, 5
        %v1919 = vrot.slane %v1904, 6
        %v1920 = vrot.slane %v1904, 7
        %v1921 = vperm.slane %v1903, 0
        %v1922 = vperm.slane %v1907, 0
        %v1923 = vperm.slane %v1908, 0
        %v1924 = vperm.slane %v1909, 0
        %v1925 = vperm.slane %v1910, 0
        %v1926 = vperm.slane %v1911, 0
        %v1927 = vperm.slane %v1912, 0
        %v1928 = vperm.slane %v1913, 0
        %v1929 = vperm.slane %v1904, 0
        %v1930 = vperm.slane %v1914, 0
        %v1931 = vperm.slane %v1915, 0
        %v1932 = vperm.slane %v1916, 0
        %v1933 = vperm.slane %v1917, 0
        %v1934 = vperm.slane %v1918, 0
        %v1935 = vperm.slane %v1919, 0
        %v1936 = vperm.slane %v1920, 0
        %v1953 = vmul.f32 %v1921, %v1222
        %v1954 = vmul.f32 %v1921, %v1227
        %v1955 = vmul.f32 %v1921, %v1232
        %v1956 = vmul.f32 %v1921, %v1237
        %v1957 = vmul.f32 %v1922, %v1242
        %v1958 = vmul.f32 %v1922, %v1247
        %v1959 = vmul.f32 %v1922, %v1252
        %v1960 = vmul.f32 %v1922, %v1257
        %v1961 = vmul.f32 %v1923, %v1262
        %v1962 = vmul.f32 %v1923, %v1267
        %v1963 = vmul.f32 %v1923, %v1272
        %v1964 = vmul.f32 %v1923, %v1277
        %v1965 = vmul.f32 %v1924, %v1282
        %v1966 = vmul.f32 %v1924, %v1287
        %v1967 = vmul.f32 %v1924, %v1292
        %v1968 = vmul.f32 %v1924, %v1297
        %v1969 = vmul.f32 %v1925, %v1302
        %v1970 = vmul.f32 %v1925, %v1307
        %v1971 = vmul.f32 %v1925, %v1312
        %v1972 = vmul.f32 %v1925, %v1317
        %v1973 = vmul.f32 %v1926, %v1322
        %v1974 = vmul.f32 %v1926, %v1327
        %v1975 = vmul.f32 %v1926, %v1332
        %v1976 = vmul.f32 %v1926, %v1337
        %v1977 = vmul.f32 %v1927, %v1342
        %v1978 = vmul.f32 %v1927, %v1347
        %v1979 = vmul.f32 %v1927, %v1352
        %v1980 = vmul.f32 %v1927, %v1357
        %v1981 = vmul.f32 %v1928, %v1362
        %v1982 = vmul.f32 %v1928, %v1367
        %v1983 = vmul.f32 %v1928, %v1372
        %v1984 = vmul.f32 %v1928, %v1377
        %v1985 = vmul.f32 %v1929, %v1382
        %v1986 = vmul.f32 %v1929, %v1387
        %v1987 = vmul.f32 %v1929, %v1392
        %v1988 = vmul.f32 %v1929, %v1397
        %v1989 = vmul.f32 %v1930, %v1402
        %v1990 = vmul.f32 %v1930, %v1407
        %v1991 = vmul.f32 %v1930, %v1412
        %v1992 = vmul.f32 %v1930, %v1417
        %v1993 = vmul.f32 %v1931, %v1422
        %v1994 = vmul.f32 %v1931, %v1427
        %v1995 = vmul.f32 %v1931, %v1432
        %v1996 = vmul.f32 %v1931, %v1437
        %v1997 = vmul.f32 %v1932, %v1442
        %v1998 = vmul.f32 %v1932, %v1447
        %v1999 = vmul.f32 %v1932, %v1452
        %v2000 = vmul.f32 %v1932, %v1457
        %v2001 = vmul.f32 %v1933, %v1462
        %v2002 = vmul.f32 %v1933, %v1467
        %v2003 = vmul.f32 %v1933, %v1472
        %v2004 = vmul.f32 %v1933, %v1477
        %v2005 = vmul.f32 %v1934, %v1482
        %v2006 = vmul.f32 %v1934, %v1487
        %v2007 = vmul.f32 %v1934, %v1492
        %v2008 = vmul.f32 %v1934, %v1497
        %v2009 = vmul.f32 %v1935, %v1502
        %v2010 = vmul.f32 %v1935, %v1507
        %v2011 = vmul.f32 %v1935, %v1512
        %v2012 = vmul.f32 %v1935, %v1517
        %v2013 = vmul.f32 %v1936, %v1522
        %v2014 = vmul.f32 %v1936, %v1527
        %v2015 = vmul.f32 %v1936, %v1532
        %v2016 = vmul.f32 %v1936, %v1537
        %v2017 = vadd.f32 %v1087, %v1953
        %v2018 = vadd.f32 %v1088, %v1954
        %v2019 = vadd.f32 %v1089, %v1955
        %v2020 = vadd.f32 %v1090, %v1956
        %v2021 = vadd.f32 %v1091, %v1957
        %v2022 = vadd.f32 %v1092, %v1958
        %v2023 = vadd.f32 %v1093, %v1959
        %v2024 = vadd.f32 %v1094, %v1960
        %v2025 = vadd.f32 %v1095, %v1961
        %v2026 = vadd.f32 %v1096, %v1962
        %v2027 = vadd.f32 %v1097, %v1963
        %v2028 = vadd.f32 %v1098, %v1964
        %v2029 = vadd.f32 %v1099, %v1965
        %v2030 = vadd.f32 %v1100, %v1966
        %v2031 = vadd.f32 %v1101, %v1967
        %v2032 = vadd.f32 %v1102, %v1968
        %v2033 = vadd.f32 %v1103, %v1969
        %v2034 = vadd.f32 %v1104, %v1970
        %v2035 = vadd.f32 %v1105, %v1971
        %v2036 = vadd.f32 %v1106, %v1972
        %v2037 = vadd.f32 %v1107, %v1973
        %v2038 = vadd.f32 %v1108, %v1974
        %v2039 = vadd.f32 %v1109, %v1975
        %v2040 = vadd.f32 %v1110, %v1976
        %v2041 = vadd.f32 %v1111, %v1977
        %v2042 = vadd.f32 %v1112, %v1978
        %v2043 = vadd.f32 %v1113, %v1979
        %v2044 = vadd.f32 %v1114, %v1980
        %v2045 = vadd.f32 %v1115, %v1981
        %v2046 = vadd.f32 %v1116, %v1982
        %v2047 = vadd.f32 %v1117, %v1983
        %v2048 = vadd.f32 %v1118, %v1984
        %v2049 = vadd.f32 %v1119, %v1985
        %v2050 = vadd.f32 %v1120, %v1986
        %v2051 = vadd.f32 %v1121, %v1987
        %v2052 = vadd.f32 %v1122, %v1988
        %v2053 = vadd.f32 %v1123, %v1989
        %v2054 = vadd.f32 %v1124, %v1990
        %v2055 = vadd.f32 %v1125, %v1991
        %v2056 = vadd.f32 %v1126, %v1992
        %v2057 = vadd.f32 %v1127, %v1993
        %v2058 = vadd.f32 %v1128, %v1994
        %v2059 = vadd.f32 %v1129, %v1995
        %v2060 = vadd.f32 %v1130, %v1996
        %v2061 = vadd.f32 %v1131, %v1997
        %v2062 = vadd.f32 %v1132, %v1998
        %v2063 = vadd.f32 %v1133, %v1999
        %v2064 = vadd.f32 %v1134, %v2000
        %v2065 = vadd.f32 %v1135, %v2001
        %v2066 = vadd.f32 %v1136, %v2002
        %v2067 = vadd.f32 %v1137, %v2003
        %v2068 = vadd.f32 %v1138, %v2004
        %v2069 = vadd.f32 %v1139, %v2005
        %v2070 = vadd.f32 %v1140, %v2006
        %v2071 = vadd.f32 %v1141, %v2007
        %v2072 = vadd.f32 %v1142, %v2008
        %v2073 = vadd.f32 %v1143, %v2009
        %v2074 = vadd.f32 %v1144, %v2010
        %v2075 = vadd.f32 %v1145, %v2011
        %v2076 = vadd.f32 %v1146, %v2012
        %v2077 = vadd.f32 %v1147, %v2013
        %v2078 = vadd.f32 %v1148, %v2014
        %v2079 = vadd.f32 %v1149, %v2015
        %v2080 = vadd.f32 %v1150, %v2016
        %v2081 = vmax.f32 %v2017, -2.0
        %v2082 = vmax.f32 %v2018, -2.0
        %v2083 = vmax.f32 %v2019, -2.0
        %v2084 = vmax.f32 %v2020, -2.0
        %v2085 = vmax.f32 %v2021, -2.0
        %v2086 = vmax.f32 %v2022, -2.0
        %v2087 = vmax.f32 %v2023, -2.0
        %v2088 = vmax.f32 %v2024, -2.0
        %v2089 = vmax.f32 %v2025, -2.0
        %v2090 = vmax.f32 %v2026, -2.0
        %v2091 = vmax.f32 %v2027, -2.0
        %v2092 = vmax.f32 %v2028, -2.0
        %v2093 = vmax.f32 %v2029, -2.0
        %v2094 = vmax.f32 %v2030, -2.0
        %v2095 = vmax.f32 %v2031, -2.0
        %v2096 = vmax.f32 %v2032, -2.0
        %v2097 = vmax.f32 %v2033, -2.0
        %v2098 = vmax.f32 %v2034, -2.0
        %v2099 = vmax.f32 %v2035, -2.0
        %v2100 = vmax.f32 %v2036, -2.0
        %v2101 = vmax.f32 %v2037, -2.0
        %v2102 = vmax.f32 %v2038, -2.0
        %v2103 = vmax.f32 %v2039, -2.0
        %v2104 = vmax.f32 %v2040, -2.0
        %v2105 = vmax.f32 %v2041, -2.0
        %v2106 = vmax.f32 %v2042, -2.0
        %v2107 = vmax.f32 %v2043, -2.0
        %v2108 = vmax.f32 %v2044, -2.0
        %v2109 = vmax.f32 %v2045, -2.0
        %v2110 = vmax.f32 %v2046, -2.0
        %v2111 = vmax.f32 %v2047, -2.0
        %v2112 = vmax.f32 %v2048, -2.0
        %v2113 = vmax.f32 %v2049, -2.0
        %v2114 = vmax.f32 %v2050, -2.0
        %v2115 = vmax.f32 %v2051, -2.0
        %v2116 = vmax.f32 %v2052, -2.0
        %v2117 = vmax.f32 %v2053, -2.0
        %v2118 = vmax.f32 %v2054, -2.0
        %v2119 = vmax.f32 %v2055, -2.0
        %v2120 = vmax.f32 %v2056, -2.0
        %v2121 = vmax.f32 %v2057, -2.0
        %v2122 = vmax.f32 %v2058, -2.0
        %v2123 = vmax.f32 %v2059, -2.0
        %v2124 = vmax.f32 %v2060, -2.0
        %v2125 = vmax.f32 %v2061, -2.0
        %v2126 = vmax.f32 %v2062, -2.0
        %v2127 = vmax.f32 %v2063, -2.0
        %v2128 = vmax.f32 %v2064, -2.0
        %v2129 = vmax.f32 %v2065, -2.0
        %v2130 = vmax.f32 %v2066, -2.0
        %v2131 = vmax.f32 %v2067, -2.0
        %v2132 = vmax.f32 %v2068, -2.0
        %v2133 = vmax.f32 %v2069, -2.0
        %v2134 = vmax.f32 %v2070, -2.0
        %v2135 = vmax.f32 %v2071, -2.0
        %v2136 = vmax.f32 %v2072, -2.0
        %v2137 = vmax.f32 %v2073, -2.0
        %v2138 = vmax.f32 %v2074, -2.0
        %v2139 = vmax.f32 %v2075, -2.0
        %v2140 = vmax.f32 %v2076, -2.0
        %v2141 = vmax.f32 %v2077, -2.0
        %v2142 = vmax.f32 %v2078, -2.0
        %v2143 = vmax.f32 %v2079, -2.0
        %v2144 = vmax.f32 %v2080, -2.0
        %v2145 = vmin.f32 %v2081, 2.0
        %v2146 = vmin.f32 %v2082, 2.0
        %v2147 = vmin.f32 %v2083, 2.0
        %v2148 = vmin.f32 %v2084, 2.0
        %v2149 = vmin.f32 %v2085, 2.0
        %v2150 = vmin.f32 %v2086, 2.0
        %v2151 = vmin.f32 %v2087, 2.0
        %v2152 = vmin.f32 %v2088, 2.0
        %v2153 = vmin.f32 %v2089, 2.0
        %v2154 = vmin.f32 %v2090, 2.0
        %v2155 = vmin.f32 %v2091, 2.0
        %v2156 = vmin.f32 %v2092, 2.0
        %v2157 = vmin.f32 %v2093, 2.0
        %v2158 = vmin.f32 %v2094, 2.0
        %v2159 = vmin.f32 %v2095, 2.0
        %v2160 = vmin.f32 %v2096, 2.0
        %v2161 = vmin.f32 %v2097, 2.0
        %v2162 = vmin.f32 %v2098, 2.0
        %v2163 = vmin.f32 %v2099, 2.0
        %v2164 = vmin.f32 %v2100, 2.0
        %v2165 = vmin.f32 %v2101, 2.0
        %v2166 = vmin.f32 %v2102, 2.0
        %v2167 = vmin.f32 %v2103, 2.0
        %v2168 = vmin.f32 %v2104, 2.0
        %v2169 = vmin.f32 %v2105, 2.0
        %v2170 = vmin.f32 %v2106, 2.0
        %v2171 = vmin.f32 %v2107, 2.0
        %v2172 = vmin.f32 %v2108, 2.0
        %v2173 = vmin.f32 %v2109, 2.0
        %v2174 = vmin.f32 %v2110, 2.0
        %v2175 = vmin.f32 %v2111, 2.0
        %v2176 = vmin.f32 %v2112, 2.0
        %v2177 = vmin.f32 %v2113, 2.0
        %v2178 = vmin.f32 %v2114, 2.0
        %v2179 = vmin.f32 %v2115, 2.0
        %v2180 = vmin.f32 %v2116, 2.0
        %v2181 = vmin.f32 %v2117, 2.0
        %v2182 = vmin.f32 %v2118, 2.0
        %v2183 = vmin.f32 %v2119, 2.0
        %v2184 = vmin.f32 %v2120, 2.0
        %v2185 = vmin.f32 %v2121, 2.0
        %v2186 = vmin.f32 %v2122, 2.0
        %v2187 = vmin.f32 %v2123, 2.0
        %v2188 = vmin.f32 %v2124, 2.0
        %v2189 = vmin.f32 %v2125, 2.0
        %v2190 = vmin.f32 %v2126, 2.0
        %v2191 = vmin.f32 %v2127, 2.0
        %v2192 = vmin.f32 %v2128, 2.0
        %v2193 = vmin.f32 %v2129, 2.0
        %v2194 = vmin.f32 %v2130, 2.0
        %v2195 = vmin.f32 %v2131, 2.0
        %v2196 = vmin.f32 %v2132, 2.0
        %v2197 = vmin.f32 %v2133, 2.0
        %v2198 = vmin.f32 %v2134, 2.0
        %v2199 = vmin.f32 %v2135, 2.0
        %v2200 = vmin.f32 %v2136, 2.0
        %v2201 = vmin.f32 %v2137, 2.0
        %v2202 = vmin.f32 %v2138, 2.0
        %v2203 = vmin.f32 %v2139, 2.0
        %v2204 = vmin.f32 %v2140, 2.0
        %v2205 = vmin.f32 %v2141, 2.0
        %v2206 = vmin.f32 %v2142, 2.0
        %v2207 = vmin.f32 %v2143, 2.0
        %v2208 = vmin.f32 %v2144, 2.0
        %2209 = vst [vmem:[%s528] sm:$0xff] %v2145
        %2210 = vst [vmem:[%s528 + $0x8] sm:$0xff] %v2146
        %2211 = vst [vmem:[%s528 + $0x10] sm:$0xff] %v2147
        %2212 = vst [vmem:[%s528 + $0x18] sm:$0xff] %v2148
        %2213 = vst [vmem:[%s528 + $0x20] sm:$0xff] %v2149
        %2214 = vst [vmem:[%s528 + $0x28] sm:$0xff] %v2150
        %2215 = vst [vmem:[%s528 + $0x30] sm:$0xff] %v2151
        %2216 = vst [vmem:[%s528 + $0x38] sm:$0xff] %v2152
        %2217 = vst [vmem:[%s528 + $0x40] sm:$0xff] %v2153
        %2218 = vst [vmem:[%s528 + $0x48] sm:$0xff] %v2154
        %2219 = vst [vmem:[%s528 + $0x50] sm:$0xff] %v2155
        %2220 = vst [vmem:[%s528 + $0x58] sm:$0xff] %v2156
        %2221 = vst [vmem:[%s528 + $0x60] sm:$0xff] %v2157
        %2222 = vst [vmem:[%s528 + $0x68] sm:$0xff] %v2158
        %2223 = vst [vmem:[%s528 + $0x70] sm:$0xff] %v2159
        %2224 = vst [vmem:[%s528 + $0x78] sm:$0xff] %v2160
        %2225 = vst [vmem:[%s528 + $0x80] sm:$0xff] %v2161
        %2226 = vst [vmem:[%s528 + $0x88] sm:$0xff] %v2162
        %2227 = vst [vmem:[%s528 + $0x90] sm:$0xff] %v2163
        %2228 = vst [vmem:[%s528 + $0x98] sm:$0xff] %v2164
        %2229 = vst [vmem:[%s528 + $0xa0] sm:$0xff] %v2165
        %2230 = vst [vmem:[%s528 + $0xa8] sm:$0xff] %v2166
        %2231 = vst [vmem:[%s528 + $0xb0] sm:$0xff] %v2167
        %2232 = vst [vmem:[%s528 + $0xb8] sm:$0xff] %v2168
        %2233 = vst [vmem:[%s528 + $0xc0] sm:$0xff] %v2169
        %2234 = vst [vmem:[%s528 + $0xc8] sm:$0xff] %v2170
        %2235 = vst [vmem:[%s528 + $0xd0] sm:$0xff] %v2171
        %2236 = vst [vmem:[%s528 + $0xd8] sm:$0xff] %v2172
        %2237 = vst [vmem:[%s528 + $0xe0] sm:$0xff] %v2173
        %2238 = vst [vmem:[%s528 + $0xe8] sm:$0xff] %v2174
        %2239 = vst [vmem:[%s528 + $0xf0] sm:$0xff] %v2175
        %2240 = vst [vmem:[%s528 + $0xf8] sm:$0xff] %v2176
        %2241 = vst [vmem:[%s528 + $0x100] sm:$0xff] %v2177
        %2242 = vst [vmem:[%s528 + $0x108] sm:$0xff] %v2178
        %2243 = vst [vmem:[%s528 + $0x110] sm:$0xff] %v2179
        %2244 = vst [vmem:[%s528 + $0x118] sm:$0xff] %v2180
        %2245 = vst [vmem:[%s528 + $0x120] sm:$0xff] %v2181
        %2246 = vst [vmem:[%s528 + $0x128] sm:$0xff] %v2182
        %2247 = vst [vmem:[%s528 + $0x130] sm:$0xff] %v2183
        %2248 = vst [vmem:[%s528 + $0x138] sm:$0xff] %v2184
        %2249 = vst [vmem:[%s528 + $0x140] sm:$0xff] %v2185
        %2250 = vst [vmem:[%s528 + $0x148] sm:$0xff] %v2186
        %2251 = vst [vmem:[%s528 + $0x150] sm:$0xff] %v2187
        %2252 = vst [vmem:[%s528 + $0x158] sm:$0xff] %v2188
        %2253 = vst [vmem:[%s528 + $0x160] sm:$0xff] %v2189
        %2254 = vst [vmem:[%s528 + $0x168] sm:$0xff] %v2190
        %2255 = vst [vmem:[%s528 + $0x170] sm:$0xff] %v2191
        %2256 = vst [vmem:[%s528 + $0x178] sm:$0xff] %v2192
        %2257 = vst [vmem:[%s528 + $0x180] sm:$0xff] %v2193
        %2258 = vst [vmem:[%s528 + $0x188] sm:$0xff] %v2194
        %2259 = vst [vmem:[%s528 + $0x190] sm:$0xff] %v2195
        %2260 = vst [vmem:[%s528 + $0x198] sm:$0xff] %v2196
        %2261 = vst [vmem:[%s528 + $0x1a0] sm:$0xff] %v2197
        %2262 = vst [vmem:[%s528 + $0x1a8] sm:$0xff] %v2198
        %2263 = vst [vmem:[%s528 + $0x1b0] sm:$0xff] %v2199
        %2264 = vst [vmem:[%s528 + $0x1b8] sm:$0xff] %v2200
        %2265 = vst [vmem:[%s528 + $0x1c0] sm:$0xff] %v2201
        %2266 = vst [vmem:[%s528 + $0x1c8] sm:$0xff] %v2202
        %2267 = vst [vmem:[%s528 + $0x1d0] sm:$0xff] %v2203
        %2268 = vst [vmem:[%s528 + $0x1d8] sm:$0xff] %v2204
        %2269 = vst [vmem:[%s528 + $0x1e0] sm:$0xff] %v2205
        %2270 = vst [vmem:[%s528 + $0x1e8] sm:$0xff] %v2206
        %2271 = vst [vmem:[%s528 + $0x1f0] sm:$0xff] %v2207
        %2272 = vst [vmem:[%s528 + $0x1f8] sm:$0xff] %v2208
        %2273 = vst [vmem:[%s514] sm:$0xff] %v1873
        %2274 = vst [vmem:[%s514 + $0x8] sm:$0xff] %v1874
        %vm2275 = vcmask 7168
        %2276 = vst.msk [vmem:[%s536] sm:$0xff] %vm2275, %v1889
        %2277 = vst.msk [vmem:[%s536 + $0x8] sm:$0xff] %vm2275, %v1890
        %s2278 = sand.u32 %s266, 1
        %s2279 = scalar_lea.sflag [#allocation5], %s2278
        %s2280 = sand.u32 %s266, 1
        %s2281 = smul.addr %s2280, 16
        %s2282 = scalar_lea.vmem [#allocation11], %s2281
        %s2283 = smul.u32 2, %s38
        %p2284 = scmp.lt.s32.totalorder %s2283, 3
        %s2285 = scalar_select %p2284, %s2283, 3
        %s2286 = smul.addr %s2285, 8
        %s2287 = scalar_lea.vmem %s11, %s2286
        %s2288 = sand.u32 %s318, 1
        %s2289 = scalar_lea.sflag [#allocation13], %s2288
        %s2290 = sand.u32 %s318, 1
        %s2291 = smul.addr %s2290, 512
        %s2292 = scalar_lea.vmem [#allocation12], %s2291
        // Predicated region
        $region77: #{call_fn.1} parent=59 // pred_check
          %p2293 = pneg %p276
        $region78: #{call_fn.1} parent=59 // pred_check_branch
          %2295 = sbr.rel (%p2293) target = $region80
        $region79: #{call_fn.1} parent=59 // pred_region
          %s2296 = smul.u32 2, %s38
          %2298 = vsyncadd %s2279, 0
          %s2299 = smul.addr %s2296, 8
          %s2300 = scalar_lea.hbm %s10, %s2299
          %s2301 = sshll.u32 %s2282, 4
          %s2302 = int_to_ptr.vmem [resolvable:$true] %s2301
          %s2303 = sshll.u32 %s2300, 4
          %s2304 = int_to_ptr.hbm [resolvable:$true] %s2303
          %2309 = dma.vmem_to_hbm [thread:$0]  %s2302, 256, %s2304, %s2279, 128, 128, 8
        $region80: #{call_fn.1} parent=59 // pred_fallthru
          _
        // Predicated region
        $region81: #{call_fn.1} parent=59 // pred_check
          %p2310 = pneg %p302
        $region82: #{call_fn.1} parent=59 // pred_check_branch
          %2312 = sbr.rel (%p2310) target = $region84
        $region83: #{call_fn.1} parent=59 // pred_region
          %s2313 = smul.u32 2, %s38
        $region84: #{call_fn.1} parent=59 // pred_fallthru
          _
        // Predicated region
        $region85: #{call_fn.1} parent=59 // pred_check
          %p2314 = pneg %p328
        $region86: #{call_fn.1} parent=59 // pred_check_branch
          %2316 = sbr.rel (%p2314) target = $region88
        $region87: #{call_fn.1} parent=59 // pred_region
          %s2317 = smul.u32 16, %s38
          %2319 = vsyncadd %s2289, 0
          %s2320 = smul.addr %s2317, 4
          %s2321 = smul.addr %s2320, 8
          %s2322 = scalar_lea.hbm %s12, %s2321
          %s2323 = sshll.u32 %s2292, 4
          %s2324 = int_to_ptr.vmem [resolvable:$true] %s2323
          %s2325 = sshll.u32 %s2322, 4
          %s2326 = int_to_ptr.hbm [resolvable:$true] %s2325
          %2331 = dma.vmem_to_hbm [thread:$0]  %s2324, 8192, %s2326, %s2289, 128, 128, 8
        $region88: #{call_fn.1} parent=59 // pred_fallthru
          _
      $region60: #{call_fn.1} parent=5 // pred_fallthru
        _
      %p2332 = scmp.le.s32.totalorder 2, %s33
      // Predicated region
      $region89: #{call_fn.1} parent=5 // pred_check
        %p2333 = pneg %p2332
      $region90: #{call_fn.1} parent=5 // pred_check_branch
        %2335 = sbr.rel (%p2333) target = $region92
      $region91: #{call_fn.1} parent=5 // pred_region
        %s2336 = ssub.s32 %s33, 2
        // Predicated region
        $region93: #{call_fn.1} parent=91 // pred_check
          %p2337 = pneg %p282
        $region94: #{call_fn.1} parent=91 // pred_check_branch
          %2339 = sbr.rel (%p2337) target = $region96
        $region95: #{call_fn.1} parent=91 // pred_region
          %s2340 = sand.u32 %s267, 1
          %s2341 = scalar_lea.sflag [#allocation5], %s2340
          %s2342 = sand.u32 %s267, 1
          %s2343 = smul.addr %s2342, 16
          %s2344 = scalar_lea.vmem [#allocation11], %s2343
          %2346 = dma.done %s2341, 256
        $region96: #{call_fn.1} parent=91 // pred_fallthru
          _
        // Predicated region
        $region97: #{call_fn.1} parent=91 // pred_check
          %p2347 = pneg %p308
        $region98: #{call_fn.1} parent=91 // pred_check_branch
          %2349 = sbr.rel (%p2347) target = $region100
        $region99: #{call_fn.1} parent=91 // pred_region
          %s2350 = smul.u32 2, %s39
          %p2351 = scmp.lt.s32.totalorder %s2350, 3
          %s2352 = scalar_select %p2351, %s2350, 3
          %s2353 = smul.addr %s2352, 8
          %s2354 = scalar_lea.vmem %s11, %s2353
        $region100: #{call_fn.1} parent=91 // pred_fallthru
          _
        // Predicated region
        $region101: #{call_fn.1} parent=91 // pred_check
          %p2355 = pneg %p334
        $region102: #{call_fn.1} parent=91 // pred_check_branch
          %2357 = sbr.rel (%p2355) target = $region104
        $region103: #{call_fn.1} parent=91 // pred_region
          %s2358 = sand.u32 %s319, 1
          %s2359 = scalar_lea.sflag [#allocation13], %s2358
          %s2360 = sand.u32 %s319, 1
          %s2361 = smul.addr %s2360, 512
          %s2362 = scalar_lea.vmem [#allocation12], %s2361
          %2364 = dma.done %s2359, 8192
        $region104: #{call_fn.1} parent=91 // pred_fallthru
          _
      $region92: #{call_fn.1} parent=5 // pred_fallthru
        _
    $region6: #{call_fn.1} parent=1 // loop_footer
      %s37 = sadd.s32 1, %s33
    $region7: #{call_fn.1} parent=1 // loop_footer_branch
      %32 = sbr.rel target = $region3
    $region8: #{call_fn.1} parent=1 // loop_exit
      _
    %2365 = vsyncpa [#allocation4], 1
    %s2366 = scalar_lea.sflag [#allocation4], 1
    %2367 = vsyncpa %s2366, 1
    %2368 = vsyncpa [#allocation7], 1
    %2369 = vsyncpa [#allocation10], 1
    %s2370 = scalar_lea.sflag [#allocation10], 1
    %2371 = vsyncpa %s2370, 1
    %2372 = vsyncpa [#allocation5], 1
    %s2373 = scalar_lea.sflag [#allocation5], 1
    %2374 = vsyncpa %s2373, 1
    %2375 = vsyncpa [#allocation13], 1
    %s2376 = scalar_lea.sflag [#allocation13], 1
    %2377 = vsyncpa %s2376, 1

// kernel: call_fn.1
$region0: #{call_fn.1}
  #allocation0 [shape = 'u32[]', space=smem, size = 0x4, offset = 0x4, fixed_abs, tag = 'smem constant byte address 0x4 - core index']
  #allocation1 [shape = 'u32[72,128]{1,0:T(1,128)}', space=vmem, size = 0x9000, scoped, tag = 'internal scratch']
  #allocation2 [shape = 'f32[1,1]{1,0:T(1,128)S(6)}', space=smem, size = 0x200, scoped, tag = 'scoped memory for call_fn.1']
  %s0 = inlined_call_operand.vmem [shape: f32[32,32], index: 0, kind: input, shape index: {}]
  %s1 = inlined_call_operand.vmem [shape: f32[32,32,1], index: 1, kind: input, shape index: {}]
  %s2 = inlined_call_operand.hbm [shape: f32[32,128], index: 2, kind: input, shape index: {}]
  %s3 = inlined_call_operand.hbm [shape: f32[32,128], index: 3, kind: input, shape index: {}]
  %s4 = inlined_call_operand.vmem [shape: f32[32,32,128], index: 4, kind: input, shape index: {}, may-alias: {4,13}]
  %s5 = inlined_call_operand.vmem [shape: f32[1,128], index: 5, kind: input, shape index: {}]
  %s6 = inlined_call_operand.vmem [shape: f32[1,128], index: 6, kind: input, shape index: {}]
  %s7 = inlined_call_operand.vmem [shape: f32[1,128], index: 7, kind: input, shape index: {}]
  %s8 = inlined_call_operand.<no memory space> [shape: f32[1,1], index: 8, kind: input, shape index: {}]
  %s9 = inlined_call_operand.vmem [shape: f32[1,128], index: 9, kind: input, shape index: {}]
  %s10 = inlined_call_operand.vmem [shape: f32[1,128], index: 10, kind: input, shape index: {}]
  %s11 = inlined_call_operand.hbm [shape: f32[32,128], index: 11, kind: output, shape index: {0}]
  %s12 = inlined_call_operand.vmem [shape: f32[32,1], index: 12, kind: output, shape index: {1}]
  %s13 = inlined_call_operand.vmem [shape: f32[32,32,128], index: 13, kind: output, shape index: {2}, may-alias: {4,13}]
  %14 = xla_tuple %s11, %s12, %s13
  %s15 = sld [smem:[#allocation0]]
  $region101: #{call_fn.1} parent=0
    _
  %s17 = ssub.s32 1, %s15
  %s18 = scalar_select 0, %s17, %s15
  %19 = sst [smem:[#allocation2]] %s8
  $region1: #{call_fn.1} parent=0
    #allocation3 [shape = 'u8[16384]{0}', space=vmem, size = 0x4000, scoped, tag = 'input window, operand 2, single buffered']
    #allocation4 [shape = 's32[2]{0}', space=sflag, size = 0x8, scoped, tag = 'scoped memory for call_fn.1']
    #allocation5 [shape = 's32[2]{0}', space=sflag, size = 0x8, scoped, tag = 'scoped memory for call_fn.1']
    #allocation6 [shape = 'u8[16384]{0}', space=vmem, size = 0x4000, scoped, tag = 'input window, operand 3, single buffered']
    #allocation7 [shape = 's32[1]{0}', space=sflag, size = 0x4, scoped, tag = 'scoped memory for call_fn.1']
    #allocation8 [shape = 'u8[16384]{0}', space=vmem, size = 0x4000, scoped, tag = 'output window, operand 0']
    %20 = vsyncpa [#allocation4], 0
    %21 = vsyncpa [#allocation7], 0
    %22 = vsyncpa [#allocation5], 0
    %s23 = scalar_lea.sflag [#allocation5], 1
    %24 = vsyncpa %s23, 0
    loop: start=0, step=1, limit=4
    $region2: #{call_fn.1} parent=1 // loop_pre_header
      _
    $region3: #{call_fn.1} parent=1 // loop_header
      %s26 = sphi 0, %s30
      %p27 = scmp.ge.s32.totalorder %s26, 4
      %s36 = sphi 0, %s38
      %s39 = sphi 0, %s36
      %s40 = sphi 0, %s39
      %s56 = sphi 0, %s40
      %s62 = sphi 0, %s64
      %s65 = sphi 0, %s62
      %s66 = sphi 0, %s65
      %s82 = sphi 0, %s66
      %s86 = sphi 0, %s86
      %s88 = sphi 0, %s86
      %s89 = sphi 0, %s88
      %s103 = sphi 0, %s89
      %s107 = sphi 0, %s107
      %s109 = sphi 0, %s107
      %s110 = sphi 0, %s109
      %s124 = sphi 0, %s110
      %s130 = sphi 0, %s132
      %s133 = sphi 0, %s130
      %s134 = sphi 0, %s133
      %s150 = sphi 0, %s134
      %s154 = sphi 0, %s154
      %s156 = sphi 0, %s154
      %s157 = sphi 0, %s156
      %s171 = sphi 0, %s157
      %s175 = sphi 0, %s175
      %s177 = sphi 0, %s175
      %s178 = sphi 0, %s177
      %s192 = sphi 0, %s178
      %s196 = sphi 0, %s196
      %s198 = sphi 0, %s196
      %s199 = sphi 0, %s198
      %s213 = sphi 0, %s199
      %s217 = sphi 0, %s217
      %s219 = sphi 0, %s217
      %s220 = sphi 0, %s219
      %s234 = sphi 0, %s220
      %s238 = sphi 0, %s238
      %s240 = sphi 0, %s238
      %s241 = sphi 0, %s240
      %s255 = sphi 0, %s241
      %s259 = sphi 0, %s259
      %s261 = sphi 0, %s259
      %s262 = sphi 0, %s261
      %s276 = sphi 0, %s262
      %s282 = sphi 0, %s284
      %s285 = sphi 0, %s282
      %s286 = sphi 0, %s285
      %s302 = sphi 0, %s286
      %s308 = sphi 0, %s310
      %s311 = sphi 0, %s308
      %s312 = sphi 0, %s311
      %s328 = sphi 0, %s312
      %s334 = sphi 0, %s336
      %s337 = sphi 0, %s334
      %s338 = sphi 0, %s337
      %s354 = sphi 0, %s338
    $region4: #{call_fn.1} parent=1 // loop_header_branch
      %29 = sbr.rel (%p27) target = $region8
    $region5: #{call_fn.1} parent=1 // loop_body
      %s31 = ssub.s32 %s26, 1
      %s32 = ssub.s32 %s26, 2
      %s33 = sadd.s32 %s26, 1
      %s34 = ssub.s32 %s26, %s33
      %p35 = scmp.eq.s32.totalorder %s34, 0
      %s37 = sadd.s32 %s36, 1
      %s38 = scalar_select %p35, %s36, %s37
      %p41 = pneg %p35
      %p42 = scmp.eq.s32.totalorder %s26, 1
      %p43 = por %p41, %p42
      %p44 = scmp.ne.s32.totalorder %s36, %s39
      %p45 = scmp.eq.s32.totalorder %s26, 0
      %p46 = por %p44, %p45
      %p47 = scmp.ne.s32.totalorder %s36, %s39
      %p48 = scmp.eq.s32.totalorder %s31, 1
      %p49 = por %p47, %p48
      %p50 = scmp.ne.s32.totalorder %s39, %s40
      %p51 = scmp.eq.s32.totalorder %s31, 0
      %p52 = por %p50, %p51
      %p53 = scmp.ne.s32.totalorder %s39, %s40
      %p54 = scmp.eq.s32.totalorder %s32, 1
      %p55 = por %p53, %p54
      %p57 = scmp.ne.s32.totalorder %s40, %s56
      %p58 = scmp.eq.s32.totalorder %s32, 0
      %p59 = por %p57, %p58
      %s60 = ssub.s32 %s26, %s33
      %p61 = scmp.eq.s32.totalorder %s60, 0
      %s63 = sadd.s32 %s62, 1
      %s64 = scalar_select %p61, %s62, %s63
      %p67 = pneg %p61
      %p68 = scmp.eq.s32.totalorder %s26, 1
      %p69 = por %p67, %p68
      %p70 = scmp.ne.s32.totalorder %s62, %s65
      %p71 = scmp.eq.s32.totalorder %s26, 0
      %p72 = por %p70, %p71
      %p73 = scmp.ne.s32.totalorder %s62, %s65
      %p74 = scmp.eq.s32.totalorder %s31, 1
      %p75 = por %p73, %p74
      %p76 = scmp.ne.s32.totalorder %s65, %s66
      %p77 = scmp.eq.s32.totalorder %s31, 0
      %p78 = por %p76, %p77
      %p79 = scmp.ne.s32.totalorder %s65, %s66
      %p80 = scmp.eq.s32.totalorder %s32, 1
      %p81 = por %p79, %p80
      %p83 = scmp.ne.s32.totalorder %s66, %s82
      %p84 = scmp.eq.s32.totalorder %s32, 0
      %p85 = por %p83, %p84
      %s87 = sadd.s32 %s86, 1
      %p90 = scmp.eq.s32.totalorder %s26, 1
      %p91 = scmp.ne.s32.totalorder %s86, %s88
      %p92 = scmp.eq.s32.totalorder %s26, 0
      %p93 = por %p91, %p92
      %p94 = scmp.ne.s32.totalorder %s86, %s88
      %p95 = scmp.eq.s32.totalorder %s31, 1
      %p96 = por %p94, %p95
      %p97 = scmp.ne.s32.totalorder %s88, %s89
      %p98 = scmp.eq.s32.totalorder %s31, 0
      %p99 = por %p97, %p98
      %p100 = scmp.ne.s32.totalorder %s88, %s89
      %p101 = scmp.eq.s32.totalorder %s32, 1
      %p102 = por %p100, %p101
      %p104 = scmp.ne.s32.totalorder %s89, %s103
      %p105 = scmp.eq.s32.totalorder %s32, 0
      %p106 = por %p104, %p105
      %s108 = sadd.s32 %s107, 1
      %p111 = scmp.eq.s32.totalorder %s26, 1
      %p112 = scmp.ne.s32.totalorder %s107, %s109
      %p113 = scmp.eq.s32.totalorder %s26, 0
      %p114 = por %p112, %p113
      %p115 = scmp.ne.s32.totalorder %s107, %s109
      %p116 = scmp.eq.s32.totalorder %s31, 1
      %p117 = por %p115, %p116
      %p118 = scmp.ne.s32.totalorder %s109, %s110
      %p119 = scmp.eq.s32.totalorder %s31, 0
      %p120 = por %p118, %p119
      %p121 = scmp.ne.s32.totalorder %s109, %s110
      %p122 = scmp.eq.s32.totalorder %s32, 1
      %p123 = por %p121, %p122
      %p125 = scmp.ne.s32.totalorder %s110, %s124
      %p126 = scmp.eq.s32.totalorder %s32, 0
      %p127 = por %p125, %p126
      %s128 = ssub.s32 %s26, %s33
      %p129 = scmp.eq.s32.totalorder %s128, 0
      %s131 = sadd.s32 %s130, 1
      %s132 = scalar_select %p129, %s130, %s131
      %p135 = pneg %p129
      %p136 = scmp.eq.s32.totalorder %s26, 1
      %p137 = por %p135, %p136
      %p138 = scmp.ne.s32.totalorder %s130, %s133
      %p139 = scmp.eq.s32.totalorder %s26, 0
      %p140 = por %p138, %p139
      %p141 = scmp.ne.s32.totalorder %s130, %s133
      %p142 = scmp.eq.s32.totalorder %s31, 1
      %p143 = por %p141, %p142
      %p144 = scmp.ne.s32.totalorder %s133, %s134
      %p145 = scmp.eq.s32.totalorder %s31, 0
      %p146 = por %p144, %p145
      %p147 = scmp.ne.s32.totalorder %s133, %s134
      %p148 = scmp.eq.s32.totalorder %s32, 1
      %p149 = por %p147, %p148
      %p151 = scmp.ne.s32.totalorder %s134, %s150
      %p152 = scmp.eq.s32.totalorder %s32, 0
      %p153 = por %p151, %p152
      %s155 = sadd.s32 %s154, 1
      %p158 = scmp.eq.s32.totalorder %s26, 1
      %p159 = scmp.ne.s32.totalorder %s154, %s156
      %p160 = scmp.eq.s32.totalorder %s26, 0
      %p161 = por %p159, %p160
      %p162 = scmp.ne.s32.totalorder %s154, %s156
      %p163 = scmp.eq.s32.totalorder %s31, 1
      %p164 = por %p162, %p163
      %p165 = scmp.ne.s32.totalorder %s156, %s157
      %p166 = scmp.eq.s32.totalorder %s31, 0
      %p167 = por %p165, %p166
      %p168 = scmp.ne.s32.totalorder %s156, %s157
      %p169 = scmp.eq.s32.totalorder %s32, 1
      %p170 = por %p168, %p169
      %p172 = scmp.ne.s32.totalorder %s157, %s171
      %p173 = scmp.eq.s32.totalorder %s32, 0
      %p174 = por %p172, %p173
      %s176 = sadd.s32 %s175, 1
      %p179 = scmp.eq.s32.totalorder %s26, 1
      %p180 = scmp.ne.s32.totalorder %s175, %s177
      %p181 = scmp.eq.s32.totalorder %s26, 0
      %p182 = por %p180, %p181
      %p183 = scmp.ne.s32.totalorder %s175, %s177
      %p184 = scmp.eq.s32.totalorder %s31, 1
      %p185 = por %p183, %p184
      %p186 = scmp.ne.s32.totalorder %s177, %s178
      %p187 = scmp.eq.s32.totalorder %s31, 0
      %p188 = por %p186, %p187
      %p189 = scmp.ne.s32.totalorder %s177, %s178
      %p190 = scmp.eq.s32.totalorder %s32, 1
      %p191 = por %p189, %p190
      %p193 = scmp.ne.s32.totalorder %s178, %s192
      %p194 = scmp.eq.s32.totalorder %s32, 0
      %p195 = por %p193, %p194
      %s197 = sadd.s32 %s196, 1
      %p200 = scmp.eq.s32.totalorder %s26, 1
      %p201 = scmp.ne.s32.totalorder %s196, %s198
      %p202 = scmp.eq.s32.totalorder %s26, 0
      %p203 = por %p201, %p202
      %p204 = scmp.ne.s32.totalorder %s196, %s198
      %p205 = scmp.eq.s32.totalorder %s31, 1
      %p206 = por %p204, %p205
      %p207 = scmp.ne.s32.totalorder %s198, %s199
      %p208 = scmp.eq.s32.totalorder %s31, 0
      %p209 = por %p207, %p208
      %p210 = scmp.ne.s32.totalorder %s198, %s199
      %p211 = scmp.eq.s32.totalorder %s32, 1
      %p212 = por %p210, %p211
      %p214 = scmp.ne.s32.totalorder %s199, %s213
      %p215 = scmp.eq.s32.totalorder %s32, 0
      %p216 = por %p214, %p215
      %s218 = sadd.s32 %s217, 1
      %p221 = scmp.eq.s32.totalorder %s26, 1
      %p222 = scmp.ne.s32.totalorder %s217, %s219
      %p223 = scmp.eq.s32.totalorder %s26, 0
      %p224 = por %p222, %p223
      %p225 = scmp.ne.s32.totalorder %s217, %s219
      %p226 = scmp.eq.s32.totalorder %s31, 1
      %p227 = por %p225, %p226
      %p228 = scmp.ne.s32.totalorder %s219, %s220
      %p229 = scmp.eq.s32.totalorder %s31, 0
      %p230 = por %p228, %p229
      %p231 = scmp.ne.s32.totalorder %s219, %s220
      %p232 = scmp.eq.s32.totalorder %s32, 1
      %p233 = por %p231, %p232
      %p235 = scmp.ne.s32.totalorder %s220, %s234
      %p236 = scmp.eq.s32.totalorder %s32, 0
      %p237 = por %p235, %p236
      %s239 = sadd.s32 %s238, 1
      %p242 = scmp.eq.s32.totalorder %s26, 1
      %p243 = scmp.ne.s32.totalorder %s238, %s240
      %p244 = scmp.eq.s32.totalorder %s26, 0
      %p245 = por %p243, %p244
      %p246 = scmp.ne.s32.totalorder %s238, %s240
      %p247 = scmp.eq.s32.totalorder %s31, 1
      %p248 = por %p246, %p247
      %p249 = scmp.ne.s32.totalorder %s240, %s241
      %p250 = scmp.eq.s32.totalorder %s31, 0
      %p251 = por %p249, %p250
      %p252 = scmp.ne.s32.totalorder %s240, %s241
      %p253 = scmp.eq.s32.totalorder %s32, 1
      %p254 = por %p252, %p253
      %p256 = scmp.ne.s32.totalorder %s241, %s255
      %p257 = scmp.eq.s32.totalorder %s32, 0
      %p258 = por %p256, %p257
      %s260 = sadd.s32 %s259, 1
      %p263 = scmp.eq.s32.totalorder %s26, 1
      %p264 = scmp.ne.s32.totalorder %s259, %s261
      %p265 = scmp.eq.s32.totalorder %s26, 0
      %p266 = por %p264, %p265
      %p267 = scmp.ne.s32.totalorder %s259, %s261
      %p268 = scmp.eq.s32.totalorder %s31, 1
      %p269 = por %p267, %p268
      %p270 = scmp.ne.s32.totalorder %s261, %s262
      %p271 = scmp.eq.s32.totalorder %s31, 0
      %p272 = por %p270, %p271
      %p273 = scmp.ne.s32.totalorder %s261, %s262
      %p274 = scmp.eq.s32.totalorder %s32, 1
      %p275 = por %p273, %p274
      %p277 = scmp.ne.s32.totalorder %s262, %s276
      %p278 = scmp.eq.s32.totalorder %s32, 0
      %p279 = por %p277, %p278
      %s280 = ssub.s32 %s26, %s33
      %p281 = scmp.eq.s32.totalorder %s280, 0
      %s283 = sadd.s32 %s282, 1
      %s284 = scalar_select %p281, %s282, %s283
      %p287 = pneg %p281
      %p288 = scmp.eq.s32.totalorder %s26, 1
      %p289 = por %p287, %p288
      %p290 = scmp.ne.s32.totalorder %s282, %s285
      %p291 = scmp.eq.s32.totalorder %s26, 0
      %p292 = por %p290, %p291
      %p293 = scmp.ne.s32.totalorder %s282, %s285
      %p294 = scmp.eq.s32.totalorder %s31, 1
      %p295 = por %p293, %p294
      %p296 = scmp.ne.s32.totalorder %s285, %s286
      %p297 = scmp.eq.s32.totalorder %s31, 0
      %p298 = por %p296, %p297
      %p299 = scmp.ne.s32.totalorder %s285, %s286
      %p300 = scmp.eq.s32.totalorder %s32, 1
      %p301 = por %p299, %p300
      %p303 = scmp.ne.s32.totalorder %s286, %s302
      %p304 = scmp.eq.s32.totalorder %s32, 0
      %p305 = por %p303, %p304
      %s306 = ssub.s32 %s26, %s33
      %p307 = scmp.eq.s32.totalorder %s306, 0
      %s309 = sadd.s32 %s308, 1
      %s310 = scalar_select %p307, %s308, %s309
      %p313 = pneg %p307
      %p314 = scmp.eq.s32.totalorder %s26, 1
      %p315 = por %p313, %p314
      %p316 = scmp.ne.s32.totalorder %s308, %s311
      %p317 = scmp.eq.s32.totalorder %s26, 0
      %p318 = por %p316, %p317
      %p319 = scmp.ne.s32.totalorder %s308, %s311
      %p320 = scmp.eq.s32.totalorder %s31, 1
      %p321 = por %p319, %p320
      %p322 = scmp.ne.s32.totalorder %s311, %s312
      %p323 = scmp.eq.s32.totalorder %s31, 0
      %p324 = por %p322, %p323
      %p325 = scmp.ne.s32.totalorder %s311, %s312
      %p326 = scmp.eq.s32.totalorder %s32, 1
      %p327 = por %p325, %p326
      %p329 = scmp.ne.s32.totalorder %s312, %s328
      %p330 = scmp.eq.s32.totalorder %s32, 0
      %p331 = por %p329, %p330
      %s332 = ssub.s32 %s26, %s33
      %p333 = scmp.eq.s32.totalorder %s332, 0
      %s335 = sadd.s32 %s334, 1
      %s336 = scalar_select %p333, %s334, %s335
      %p339 = pneg %p333
      %p340 = scmp.eq.s32.totalorder %s26, 1
      %p341 = por %p339, %p340
      %p342 = scmp.ne.s32.totalorder %s334, %s337
      %p343 = scmp.eq.s32.totalorder %s26, 0
      %p344 = por %p342, %p343
      %p345 = scmp.ne.s32.totalorder %s334, %s337
      %p346 = scmp.eq.s32.totalorder %s31, 1
      %p347 = por %p345, %p346
      %p348 = scmp.ne.s32.totalorder %s337, %s338
      %p349 = scmp.eq.s32.totalorder %s31, 0
      %p350 = por %p348, %p349
      %p351 = scmp.ne.s32.totalorder %s337, %s338
      %p352 = scmp.eq.s32.totalorder %s32, 1
      %p353 = por %p351, %p352
      %p355 = scmp.ne.s32.totalorder %s338, %s354
      %p356 = scmp.eq.s32.totalorder %s32, 0
      %p357 = por %p355, %p356
      %p358 = scmp.le.s32.totalorder 1, %s26
      %p359 = scmp.lt.s32.totalorder %s26, 3
      %p360 = pnand %p358, %p359
      %p361 = pneg %p360
      // Predicated region
      $region9: #{call_fn.1} parent=5 // pred_check
        _
      $region10: #{call_fn.1} parent=5 // pred_check_branch
        %363 = sbr.rel (%p360) target = $region12
      $region11: #{call_fn.1} parent=5 // pred_region
        %s364 = ssub.s32 %s26, 1
        // Predicated region
        $region13: #{call_fn.1} parent=11 // pred_check
          %p365 = pneg %p99
        $region14: #{call_fn.1} parent=11 // pred_check_branch
          %367 = sbr.rel (%p365) target = $region16
        $region15: #{call_fn.1} parent=11 // pred_region
          %369 = vsyncadd [#allocation4], 0
          %s370 = sshll.u32 %s2, 4
          %s371 = int_to_ptr.hbm [resolvable:$true] %s370
          %s372 = sshll.u32 [#allocation3], 4
          %s373 = int_to_ptr.vmem [resolvable:$true] %s372
          %378 = dma.hbm_to_vmem [thread:$0]  %s371, 512, %s373, [#allocation4], 128, 128, 8
        $region16: #{call_fn.1} parent=11 // pred_fallthru
          _
        // Predicated region
        $region17: #{call_fn.1} parent=11 // pred_check
          %p379 = pneg %p120
        $region18: #{call_fn.1} parent=11 // pred_check_branch
          %381 = sbr.rel (%p379) target = $region20
        $region19: #{call_fn.1} parent=11 // pred_region
          %383 = vsyncadd [#allocation7], 0
          %s384 = sshll.u32 %s3, 4
          %s385 = int_to_ptr.hbm [resolvable:$true] %s384
          %s386 = sshll.u32 [#allocation6], 4
          %s387 = int_to_ptr.vmem [resolvable:$true] %s386
          %392 = dma.hbm_to_vmem [thread:$0]  %s385, 512, %s387, [#allocation7], 128, 128, 8
        $region20: #{call_fn.1} parent=11 // pred_fallthru
          _
        // Predicated region
        $region21: #{call_fn.1} parent=11 // pred_check
          %p393 = pneg %p167
        $region22: #{call_fn.1} parent=11 // pred_check_branch
          %395 = sbr.rel (%p393) target = $region24
        $region23: #{call_fn.1} parent=11 // pred_region
          _
        $region24: #{call_fn.1} parent=11 // pred_fallthru
          _
        // Predicated region
        $region25: #{call_fn.1} parent=11 // pred_check
          %p396 = pneg %p188
        $region26: #{call_fn.1} parent=11 // pred_check_branch
          %398 = sbr.rel (%p396) target = $region28
        $region27: #{call_fn.1} parent=11 // pred_region
          _
        $region28: #{call_fn.1} parent=11 // pred_fallthru
          _
        // Predicated region
        $region29: #{call_fn.1} parent=11 // pred_check
          %p399 = pneg %p209
        $region30: #{call_fn.1} parent=11 // pred_check_branch
          %401 = sbr.rel (%p399) target = $region32
        $region31: #{call_fn.1} parent=11 // pred_region
          _
        $region32: #{call_fn.1} parent=11 // pred_fallthru
          _
        // Predicated region
        $region33: #{call_fn.1} parent=11 // pred_check
          %p402 = pneg %p230
        $region34: #{call_fn.1} parent=11 // pred_check_branch
          %404 = sbr.rel (%p402) target = $region36
        $region35: #{call_fn.1} parent=11 // pred_region
          _
        $region36: #{call_fn.1} parent=11 // pred_fallthru
          _
        // Predicated region
        $region37: #{call_fn.1} parent=11 // pred_check
          %p405 = pneg %p251
        $region38: #{call_fn.1} parent=11 // pred_check_branch
          %407 = sbr.rel (%p405) target = $region40
        $region39: #{call_fn.1} parent=11 // pred_region
          _
        $region40: #{call_fn.1} parent=11 // pred_fallthru
          _
        // Predicated region
        $region41: #{call_fn.1} parent=11 // pred_check
          %p408 = pneg %p272
        $region42: #{call_fn.1} parent=11 // pred_check_branch
          %410 = sbr.rel (%p408) target = $region44
        $region43: #{call_fn.1} parent=11 // pred_region
          _
        $region44: #{call_fn.1} parent=11 // pred_fallthru
          _
      $region12: #{call_fn.1} parent=5 // pred_fallthru
        _
      %p411 = scmp.lt.s32.totalorder %s26, 2
      // Predicated region
      $region45: #{call_fn.1} parent=5 // pred_check
        %p412 = pneg %p411
      $region46: #{call_fn.1} parent=5 // pred_check_branch
        %414 = sbr.rel (%p412) target = $region48
      $region47: #{call_fn.1} parent=5 // pred_region
        // Predicated region
        $region49: #{call_fn.1} parent=47 // pred_check
          %p415 = pneg %p46
        $region50: #{call_fn.1} parent=47 // pred_check_branch
          %417 = sbr.rel (%p415) target = $region52
        $region51: #{call_fn.1} parent=47 // pred_region
          %s418 = smul.u32 2, %s26
          %p419 = scmp.lt.s32.totalorder %s418, 3
          %s420 = scalar_select %p419, %s418, 3
          %s421 = smul.addr %s420, 8
          %s422 = scalar_lea.vmem %s0, %s421
          %s423 = smul.u32 2, %s26
        $region52: #{call_fn.1} parent=47 // pred_fallthru
          _
        // Predicated region
        $region53: #{call_fn.1} parent=47 // pred_check
          %p424 = pneg %p72
        $region54: #{call_fn.1} parent=47 // pred_check_branch
          %426 = sbr.rel (%p424) target = $region56
        $region55: #{call_fn.1} parent=47 // pred_region
          %s427 = smul.u32 16, %s26
          %p428 = scmp.lt.s32.totalorder %s427, 31
          %s429 = scalar_select %p428, %s427, 31
          %s430 = smul.addr %s429, 4
          %s431 = smul.addr %s430, 8
          %s432 = scalar_lea.vmem %s1, %s431
          %s433 = smul.u32 16, %s26
        $region56: #{call_fn.1} parent=47 // pred_fallthru
          _
        // Predicated region
        $region57: #{call_fn.1} parent=47 // pred_check
          %p434 = pneg %p140
        $region58: #{call_fn.1} parent=47 // pred_check_branch
          %436 = sbr.rel (%p434) target = $region60
        $region59: #{call_fn.1} parent=47 // pred_region
          %s437 = smul.u32 16, %s26
          %p438 = scmp.lt.s32.totalorder %s437, 31
          %s439 = scalar_select %p438, %s437, 31
          %s440 = smul.addr %s439, 4
          %s441 = smul.addr %s440, 8
          %s442 = scalar_lea.vmem %s4, %s441
          %s443 = smul.u32 16, %s26
        $region60: #{call_fn.1} parent=47 // pred_fallthru
          _
      $region48: #{call_fn.1} parent=5 // pred_fallthru
        _
      %p444 = scmp.le.s32.totalorder 1, %s26
      %p445 = scmp.lt.s32.totalorder %s26, 3
      %p446 = pnand %p444, %p445
      %p447 = pneg %p446
      // Predicated region
      $region61: #{call_fn.1} parent=5 // pred_check
        _
      $region62: #{call_fn.1} parent=5 // pred_check_branch
        %449 = sbr.rel (%p446) target = $region64
      $region63: #{call_fn.1} parent=5 // pred_region
        %s450 = ssub.s32 %s26, 1
        // Predicated region
        $region65: #{call_fn.1} parent=63 // pred_check
          %p451 = pneg %p99
        $region66: #{call_fn.1} parent=63 // pred_check_branch
          %453 = sbr.rel (%p451) target = $region68
        $region67: #{call_fn.1} parent=63 // pred_region
          %455 = dma.done [#allocation4], 512
        $region68: #{call_fn.1} parent=63 // pred_fallthru
          _
        // Predicated region
        $region69: #{call_fn.1} parent=63 // pred_check
          %p456 = pneg %p120
        $region70: #{call_fn.1} parent=63 // pred_check_branch
          %458 = sbr.rel (%p456) target = $region72
        $region71: #{call_fn.1} parent=63 // pred_region
          %460 = dma.done [#allocation7], 512
        $region72: #{call_fn.1} parent=63 // pred_fallthru
          _
        %s461 = smul.u32 2, %s31
        %p462 = scmp.lt.s32.totalorder %s461, 3
        %s463 = scalar_select %p462, %s461, 3
        %s464 = smul.addr %s463, 8
        %s465 = scalar_lea.vmem %s0, %s464
        %p466 = pneg %p52
        %p467 = pneg %p49
        %s468 = smul.u32 16, %s31
        %p469 = scmp.lt.s32.totalorder %s468, 31
        %s470 = scalar_select %p469, %s468, 31
        %s471 = smul.addr %s470, 4
        %s472 = smul.addr %s471, 8
        %s473 = scalar_lea.vmem %s1, %s472
        %p474 = pneg %p78
        %p475 = pneg %p75
        %p476 = pneg %p99
        %p477 = pneg %p96
        %p478 = pneg %p120
        %p479 = pneg %p117
        %s480 = smul.u32 16, %s31
        %p481 = scmp.lt.s32.totalorder %s480, 31
        %s482 = scalar_select %p481, %s480, 31
        %s483 = smul.addr %s482, 4
        %s484 = smul.addr %s483, 8
        %s485 = scalar_lea.vmem %s4, %s484
        %p486 = pneg %p146
        %p487 = pneg %p143
        %p488 = pneg %p167
        %p489 = pneg %p164
        %p490 = pneg %p188
        %p491 = pneg %p185
        %p492 = pneg %p209
        %p493 = pneg %p206
        %p494 = pneg %p230
        %p495 = pneg %p227
        %p496 = pneg %p251
        %p497 = pneg %p248
        %p498 = pneg %p272
        %p499 = pneg %p269
        %p500 = pneg %p298
        %p501 = pneg %p295
        %s502 = sand.u32 %s285, 1
        %s503 = scalar_lea.sflag [#allocation5], %s502
        %s504 = sand.u32 %s285, 1
        %s505 = smul.addr %s504, 16
        %s506 = scalar_lea.vmem [#allocation8], %s505
        %p507 = pneg %p324
        %p508 = pneg %p321
        %s509 = smul.u32 2, %s31
        %p510 = scmp.lt.s32.totalorder %s509, 3
        %s511 = scalar_select %p510, %s509, 3
        %s512 = smul.addr %s511, 8
        %s513 = scalar_lea.vmem %s12, %s512
        %p514 = pneg %p350
        %p515 = pneg %p347
        %s516 = smul.u32 16, %s31
        %p517 = scmp.lt.s32.totalorder %s516, 31
        %s518 = scalar_select %p517, %s516, 31
        %s519 = smul.addr %s518, 4
        %s520 = smul.addr %s519, 8
        %s521 = scalar_lea.vmem %s13, %s520
        %s522 = smul.u32 2, %s31
        %p523 = scmp.lt.s32.totalorder %s522, 3
        %s524 = scalar_select %p523, %s522, 3
        %s525 = smul.addr %s524, 8
        %s526 = scalar_lea.vmem %s0, %s525
        %s527 = smul.u32 2, %s31
        %s528 = smul.u32 16, %s31
        %p529 = scmp.lt.s32.totalorder %s528, 31
        %s530 = scalar_select %p529, %s528, 31
        %s531 = smul.addr %s530, 4
        %s532 = smul.addr %s531, 8
        %s533 = scalar_lea.vmem %s1, %s532
        %s534 = smul.u32 16, %s31
        %s535 = smul.u32 16, %s31
        %p536 = scmp.lt.s32.totalorder %s535, 31
        %s537 = scalar_select %p536, %s535, 31
        %s538 = smul.addr %s537, 4
        %s539 = smul.addr %s538, 8
        %s540 = scalar_lea.vmem %s4, %s539
        %s541 = smul.u32 16, %s31
        %s542 = smul.u32 2, %s31
        %s543 = smul.u32 2, %s31
        %p544 = scmp.lt.s32.totalorder %s543, 3
        %s545 = scalar_select %p544, %s543, 3
        %s546 = smul.addr %s545, 8
        %s547 = scalar_lea.vmem %s12, %s546
        %s548 = smul.u32 2, %s31
        %s549 = smul.u32 16, %s31
        %p550 = scmp.lt.s32.totalorder %s549, 31
        %s551 = scalar_select %p550, %s549, 31
        %s552 = smul.addr %s551, 4
        %s553 = smul.addr %s552, 8
        %s554 = scalar_lea.vmem %s13, %s553
        %s555 = smul.u32 16, %s31
        %v556 = vld [vmem:[%s526] sm:$0xff]
        %v557 = vld [vmem:[%s526 + $0x8] sm:$0xff]
        %v558 = vld [vmem:[%s533] sm:$0xff]
        %v559 = vld [vmem:[%s533 + $0x8] sm:$0xff]
        %v560 = vld [vmem:[%s533 + $0x10] sm:$0xff]
        %v561 = vld [vmem:[%s533 + $0x18] sm:$0xff]
        %v562 = vld [vmem:[%s533 + $0x20] sm:$0xff]
        %v563 = vld [vmem:[%s533 + $0x28] sm:$0xff]
        %v564 = vld [vmem:[%s533 + $0x30] sm:$0xff]
        %v565 = vld [vmem:[%s533 + $0x38] sm:$0xff]
        %v566 = vld [vmem:[%s533 + $0x40] sm:$0xff]
        %v567 = vld [vmem:[%s533 + $0x48] sm:$0xff]
        %v568 = vld [vmem:[%s533 + $0x50] sm:$0xff]
        %v569 = vld [vmem:[%s533 + $0x58] sm:$0xff]
        %v570 = vld [vmem:[%s533 + $0x60] sm:$0xff]
        %v571 = vld [vmem:[%s533 + $0x68] sm:$0xff]
        %v572 = vld [vmem:[%s533 + $0x70] sm:$0xff]
        %v573 = vld [vmem:[%s533 + $0x78] sm:$0xff]
        %v574 = vld [vmem:[%s533 + $0x80] sm:$0xff]
        %v575 = vld [vmem:[%s533 + $0x88] sm:$0xff]
        %v576 = vld [vmem:[%s533 + $0x90] sm:$0xff]
        %v577 = vld [vmem:[%s533 + $0x98] sm:$0xff]
        %v578 = vld [vmem:[%s533 + $0xa0] sm:$0xff]
        %v579 = vld [vmem:[%s533 + $0xa8] sm:$0xff]
        %v580 = vld [vmem:[%s533 + $0xb0] sm:$0xff]
        %v581 = vld [vmem:[%s533 + $0xb8] sm:$0xff]
        %v582 = vld [vmem:[%s533 + $0xc0] sm:$0xff]
        %v583 = vld [vmem:[%s533 + $0xc8] sm:$0xff]
        %v584 = vld [vmem:[%s533 + $0xd0] sm:$0xff]
        %v585 = vld [vmem:[%s533 + $0xd8] sm:$0xff]
        %v586 = vld [vmem:[%s533 + $0xe0] sm:$0xff]
        %v587 = vld [vmem:[%s533 + $0xe8] sm:$0xff]
        %v588 = vld [vmem:[%s533 + $0xf0] sm:$0xff]
        %v589 = vld [vmem:[%s533 + $0xf8] sm:$0xff]
        %v590 = vld [vmem:[%s533 + $0x100] sm:$0xff]
        %v591 = vld [vmem:[%s533 + $0x108] sm:$0xff]
        %v592 = vld [vmem:[%s533 + $0x110] sm:$0xff]
        %v593 = vld [vmem:[%s533 + $0x118] sm:$0xff]
        %v594 = vld [vmem:[%s533 + $0x120] sm:$0xff]
        %v595 = vld [vmem:[%s533 + $0x128] sm:$0xff]
        %v596 = vld [vmem:[%s533 + $0x130] sm:$0xff]
        %v597 = vld [vmem:[%s533 + $0x138] sm:$0xff]
        %v598 = vld [vmem:[%s533 + $0x140] sm:$0xff]
        %v599 = vld [vmem:[%s533 + $0x148] sm:$0xff]
        %v600 = vld [vmem:[%s533 + $0x150] sm:$0xff]
        %v601 = vld [vmem:[%s533 + $0x158] sm:$0xff]
        %v602 = vld [vmem:[%s533 + $0x160] sm:$0xff]
        %v603 = vld [vmem:[%s533 + $0x168] sm:$0xff]
        %v604 = vld [vmem:[%s533 + $0x170] sm:$0xff]
        %v605 = vld [vmem:[%s533 + $0x178] sm:$0xff]
        %v606 = vld [vmem:[%s533 + $0x180] sm:$0xff]
        %v607 = vld [vmem:[%s533 + $0x188] sm:$0xff]
        %v608 = vld [vmem:[%s533 + $0x190] sm:$0xff]
        %v609 = vld [vmem:[%s533 + $0x198] sm:$0xff]
        %v610 = vld [vmem:[%s533 + $0x1a0] sm:$0xff]
        %v611 = vld [vmem:[%s533 + $0x1a8] sm:$0xff]
        %v612 = vld [vmem:[%s533 + $0x1b0] sm:$0xff]
        %v613 = vld [vmem:[%s533 + $0x1b8] sm:$0xff]
        %v614 = vld [vmem:[%s533 + $0x1c0] sm:$0xff]
        %v615 = vld [vmem:[%s533 + $0x1c8] sm:$0xff]
        %v616 = vld [vmem:[%s533 + $0x1d0] sm:$0xff]
        %v617 = vld [vmem:[%s533 + $0x1d8] sm:$0xff]
        %v618 = vld [vmem:[%s533 + $0x1e0] sm:$0xff]
        %v619 = vld [vmem:[%s533 + $0x1e8] sm:$0xff]
        %v620 = vld [vmem:[%s533 + $0x1f0] sm:$0xff]
        %v621 = vld [vmem:[%s533 + $0x1f8] sm:$0xff]
        %v622 = vld [vmem:[#allocation3] sm:$0xff]
        %v623 = vld [vmem:[#allocation3 + $0x8] sm:$0xff]
        %v624 = vld [vmem:[#allocation3 + $0x10] sm:$0xff]
        %v625 = vld [vmem:[#allocation3 + $0x18] sm:$0xff]
        %v626 = vld [vmem:[%s540] sm:$0xff]
        %v627 = vld [vmem:[%s540 + $0x8] sm:$0xff]
        %v628 = vld [vmem:[%s540 + $0x10] sm:$0xff]
        %v629 = vld [vmem:[%s540 + $0x18] sm:$0xff]
        %v630 = vld [vmem:[%s540 + $0x20] sm:$0xff]
        %v631 = vld [vmem:[%s540 + $0x28] sm:$0xff]
        %v632 = vld [vmem:[%s540 + $0x30] sm:$0xff]
        %v633 = vld [vmem:[%s540 + $0x38] sm:$0xff]
        %v634 = vld [vmem:[%s540 + $0x40] sm:$0xff]
        %v635 = vld [vmem:[%s540 + $0x48] sm:$0xff]
        %v636 = vld [vmem:[%s540 + $0x50] sm:$0xff]
        %v637 = vld [vmem:[%s540 + $0x58] sm:$0xff]
        %v638 = vld [vmem:[%s540 + $0x60] sm:$0xff]
        %v639 = vld [vmem:[%s540 + $0x68] sm:$0xff]
        %v640 = vld [vmem:[%s540 + $0x70] sm:$0xff]
        %v641 = vld [vmem:[%s540 + $0x78] sm:$0xff]
        %v642 = vld [vmem:[%s540 + $0x80] sm:$0xff]
        %v643 = vld [vmem:[%s540 + $0x88] sm:$0xff]
        %v644 = vld [vmem:[%s540 + $0x90] sm:$0xff]
        %v645 = vld [vmem:[%s540 + $0x98] sm:$0xff]
        %v646 = vld [vmem:[%s540 + $0xa0] sm:$0xff]
        %v647 = vld [vmem:[%s540 + $0xa8] sm:$0xff]
        %v648 = vld [vmem:[%s540 + $0xb0] sm:$0xff]
        %v649 = vld [vmem:[%s540 + $0xb8] sm:$0xff]
        %v650 = vld [vmem:[%s540 + $0xc0] sm:$0xff]
        %v651 = vld [vmem:[%s540 + $0xc8] sm:$0xff]
        %v652 = vld [vmem:[%s540 + $0xd0] sm:$0xff]
        %v653 = vld [vmem:[%s540 + $0xd8] sm:$0xff]
        %v654 = vld [vmem:[%s540 + $0xe0] sm:$0xff]
        %v655 = vld [vmem:[%s540 + $0xe8] sm:$0xff]
        %v656 = vld [vmem:[%s540 + $0xf0] sm:$0xff]
        %v657 = vld [vmem:[%s540 + $0xf8] sm:$0xff]
        %v658 = vld [vmem:[%s540 + $0x100] sm:$0xff]
        %v659 = vld [vmem:[%s540 + $0x108] sm:$0xff]
        %v660 = vld [vmem:[%s540 + $0x110] sm:$0xff]
        %v661 = vld [vmem:[%s540 + $0x118] sm:$0xff]
        %v662 = vld [vmem:[%s540 + $0x120] sm:$0xff]
        %v663 = vld [vmem:[%s540 + $0x128] sm:$0xff]
        %v664 = vld [vmem:[%s540 + $0x130] sm:$0xff]
        %v665 = vld [vmem:[%s540 + $0x138] sm:$0xff]
        %v666 = vld [vmem:[%s540 + $0x140] sm:$0xff]
        %v667 = vld [vmem:[%s540 + $0x148] sm:$0xff]
        %v668 = vld [vmem:[%s540 + $0x150] sm:$0xff]
        %v669 = vld [vmem:[%s540 + $0x158] sm:$0xff]
        %v670 = vld [vmem:[%s540 + $0x160] sm:$0xff]
        %v671 = vld [vmem:[%s540 + $0x168] sm:$0xff]
        %v672 = vld [vmem:[%s540 + $0x170] sm:$0xff]
        %v673 = vld [vmem:[%s540 + $0x178] sm:$0xff]
        %v674 = vld [vmem:[%s540 + $0x180] sm:$0xff]
        %v675 = vld [vmem:[%s540 + $0x188] sm:$0xff]
        %v676 = vld [vmem:[%s540 + $0x190] sm:$0xff]
        %v677 = vld [vmem:[%s540 + $0x198] sm:$0xff]
        %v678 = vld [vmem:[%s540 + $0x1a0] sm:$0xff]
        %v679 = vld [vmem:[%s540 + $0x1a8] sm:$0xff]
        %v680 = vld [vmem:[%s540 + $0x1b0] sm:$0xff]
        %v681 = vld [vmem:[%s540 + $0x1b8] sm:$0xff]
        %v682 = vld [vmem:[%s540 + $0x1c0] sm:$0xff]
        %v683 = vld [vmem:[%s540 + $0x1c8] sm:$0xff]
        %v684 = vld [vmem:[%s540 + $0x1d0] sm:$0xff]
        %v685 = vld [vmem:[%s540 + $0x1d8] sm:$0xff]
        %v686 = vld [vmem:[%s540 + $0x1e0] sm:$0xff]
        %v687 = vld [vmem:[%s540 + $0x1e8] sm:$0xff]
        %v688 = vld [vmem:[%s540 + $0x1f0] sm:$0xff]
        %v689 = vld [vmem:[%s540 + $0x1f8] sm:$0xff]
        %v690 = vld [vmem:[#allocation6] sm:$0xff]
        %v691 = vld [vmem:[#allocation6 + $0x8] sm:$0xff]
        %v692 = vld [vmem:[#allocation6 + $0x10] sm:$0xff]
        %v693 = vld [vmem:[#allocation6 + $0x18] sm:$0xff]
        %v694 = vmul.f32 %v626, %v690
        %v695 = vmul.f32 %v627, %v691
        %v696 = vmul.f32 %v628, %v692
        %v697 = vmul.f32 %v629, %v693
        %v698 = vmul.f32 %v630, %v690
        %v699 = vmul.f32 %v631, %v691
        %v700 = vmul.f32 %v632, %v692
        %v701 = vmul.f32 %v633, %v693
        %v702 = vmul.f32 %v634, %v690
        %v703 = vmul.f32 %v635, %v691
        %v704 = vmul.f32 %v636, %v692
        %v705 = vmul.f32 %v637, %v693
        %v706 = vmul.f32 %v638, %v690
        %v707 = vmul.f32 %v639, %v691
        %v708 = vmul.f32 %v640, %v692
        %v709 = vmul.f32 %v641, %v693
        %v710 = vmul.f32 %v642, %v690
        %v711 = vmul.f32 %v643, %v691
        %v712 = vmul.f32 %v644, %v692
        %v713 = vmul.f32 %v645, %v693
        %v714 = vmul.f32 %v646, %v690
        %v715 = vmul.f32 %v647, %v691
        %v716 = vmul.f32 %v648, %v692
        %v717 = vmul.f32 %v649, %v693
        %v718 = vmul.f32 %v650, %v690
        %v719 = vmul.f32 %v651, %v691
        %v720 = vmul.f32 %v652, %v692
        %v721 = vmul.f32 %v653, %v693
        %v722 = vmul.f32 %v654, %v690
        %v723 = vmul.f32 %v655, %v691
        %v724 = vmul.f32 %v656, %v692
        %v725 = vmul.f32 %v657, %v693
        %v726 = vmul.f32 %v658, %v690
        %v727 = vmul.f32 %v659, %v691
        %v728 = vmul.f32 %v660, %v692
        %v729 = vmul.f32 %v661, %v693
        %v730 = vmul.f32 %v662, %v690
        %v731 = vmul.f32 %v663, %v691
        %v732 = vmul.f32 %v664, %v692
        %v733 = vmul.f32 %v665, %v693
        %v734 = vmul.f32 %v666, %v690
        %v735 = vmul.f32 %v667, %v691
        %v736 = vmul.f32 %v668, %v692
        %v737 = vmul.f32 %v669, %v693
        %v738 = vmul.f32 %v670, %v690
        %v739 = vmul.f32 %v671, %v691
        %v740 = vmul.f32 %v672, %v692
        %v741 = vmul.f32 %v673, %v693
        %v742 = vmul.f32 %v674, %v690
        %v743 = vmul.f32 %v675, %v691
        %v744 = vmul.f32 %v676, %v692
        %v745 = vmul.f32 %v677, %v693
        %v746 = vmul.f32 %v678, %v690
        %v747 = vmul.f32 %v679, %v691
        %v748 = vmul.f32 %v680, %v692
        %v749 = vmul.f32 %v681, %v693
        %v750 = vmul.f32 %v682, %v690
        %v751 = vmul.f32 %v683, %v691
        %v752 = vmul.f32 %v684, %v692
        %v753 = vmul.f32 %v685, %v693
        %v754 = vmul.f32 %v686, %v690
        %v755 = vmul.f32 %v687, %v691
        %v756 = vmul.f32 %v688, %v692
        %v757 = vmul.f32 %v689, %v693
        %759 = vset.pattern.permute.xlu0 0
        %760 = vperm.xlu0 %759, %v558
        %v761 = vpop.permute.xlu0 %760
        %764 = vset.pattern.permute.xlu0 0
        %765 = vperm.xlu0 %764, %v559
        %v766 = vpop.permute.xlu0 %765
        %769 = vset.pattern.permute.xlu0 0
        %770 = vperm.xlu0 %769, %v560
        %v771 = vpop.permute.xlu0 %770
        %774 = vset.pattern.permute.xlu0 0
        %775 = vperm.xlu0 %774, %v561
        %v776 = vpop.permute.xlu0 %775
        %779 = vset.pattern.permute.xlu0 0
        %780 = vperm.xlu0 %779, %v562
        %v781 = vpop.permute.xlu0 %780
        %784 = vset.pattern.permute.xlu0 0
        %785 = vperm.xlu0 %784, %v563
        %v786 = vpop.permute.xlu0 %785
        %789 = vset.pattern.permute.xlu0 0
        %790 = vperm.xlu0 %789, %v564
        %v791 = vpop.permute.xlu0 %790
        %794 = vset.pattern.permute.xlu0 0
        %795 = vperm.xlu0 %794, %v565
        %v796 = vpop.permute.xlu0 %795
        %799 = vset.pattern.permute.xlu0 0
        %800 = vperm.xlu0 %799, %v566
        %v801 = vpop.permute.xlu0 %800
        %804 = vset.pattern.permute.xlu0 0
        %805 = vperm.xlu0 %804, %v567
        %v806 = vpop.permute.xlu0 %805
        %809 = vset.pattern.permute.xlu0 0
        %810 = vperm.xlu0 %809, %v568
        %v811 = vpop.permute.xlu0 %810
        %814 = vset.pattern.permute.xlu0 0
        %815 = vperm.xlu0 %814, %v569
        %v816 = vpop.permute.xlu0 %815
        %819 = vset.pattern.permute.xlu0 0
        %820 = vperm.xlu0 %819, %v570
        %v821 = vpop.permute.xlu0 %820
        %824 = vset.pattern.permute.xlu0 0
        %825 = vperm.xlu0 %824, %v571
        %v826 = vpop.permute.xlu0 %825
        %829 = vset.pattern.permute.xlu0 0
        %830 = vperm.xlu0 %829, %v572
        %v831 = vpop.permute.xlu0 %830
        %834 = vset.pattern.permute.xlu0 0
        %835 = vperm.xlu0 %834, %v573
        %v836 = vpop.permute.xlu0 %835
        %839 = vset.pattern.permute.xlu0 0
        %840 = vperm.xlu0 %839, %v574
        %v841 = vpop.permute.xlu0 %840
        %844 = vset.pattern.permute.xlu0 0
        %845 = vperm.xlu0 %844, %v575
        %v846 = vpop.permute.xlu0 %845
        %849 = vset.pattern.permute.xlu0 0
        %850 = vperm.xlu0 %849, %v576
        %v851 = vpop.permute.xlu0 %850
        %854 = vset.pattern.permute.xlu0 0
        %855 = vperm.xlu0 %854, %v577
        %v856 = vpop.permute.xlu0 %855
        %859 = vset.pattern.permute.xlu0 0
        %860 = vperm.xlu0 %859, %v578
        %v861 = vpop.permute.xlu0 %860
        %864 = vset.pattern.permute.xlu0 0
        %865 = vperm.xlu0 %864, %v579
        %v866 = vpop.permute.xlu0 %865
        %869 = vset.pattern.permute.xlu0 0
        %870 = vperm.xlu0 %869, %v580
        %v871 = vpop.permute.xlu0 %870
        %874 = vset.pattern.permute.xlu0 0
        %875 = vperm.xlu0 %874, %v581
        %v876 = vpop.permute.xlu0 %875
        %879 = vset.pattern.permute.xlu0 0
        %880 = vperm.xlu0 %879, %v582
        %v881 = vpop.permute.xlu0 %880
        %884 = vset.pattern.permute.xlu0 0
        %885 = vperm.xlu0 %884, %v583
        %v886 = vpop.permute.xlu0 %885
        %889 = vset.pattern.permute.xlu0 0
        %890 = vperm.xlu0 %889, %v584
        %v891 = vpop.permute.xlu0 %890
        %894 = vset.pattern.permute.xlu0 0
        %895 = vperm.xlu0 %894, %v585
        %v896 = vpop.permute.xlu0 %895
        %899 = vset.pattern.permute.xlu0 0
        %900 = vperm.xlu0 %899, %v586
        %v901 = vpop.permute.xlu0 %900
        %904 = vset.pattern.permute.xlu0 0
        %905 = vperm.xlu0 %904, %v587
        %v906 = vpop.permute.xlu0 %905
        %909 = vset.pattern.permute.xlu0 0
        %910 = vperm.xlu0 %909, %v588
        %v911 = vpop.permute.xlu0 %910
        %914 = vset.pattern.permute.xlu0 0
        %915 = vperm.xlu0 %914, %v589
        %v916 = vpop.permute.xlu0 %915
        %919 = vset.pattern.permute.xlu0 0
        %920 = vperm.xlu0 %919, %v590
        %v921 = vpop.permute.xlu0 %920
        %924 = vset.pattern.permute.xlu0 0
        %925 = vperm.xlu0 %924, %v591
        %v926 = vpop.permute.xlu0 %925
        %929 = vset.pattern.permute.xlu0 0
        %930 = vperm.xlu0 %929, %v592
        %v931 = vpop.permute.xlu0 %930
        %934 = vset.pattern.permute.xlu0 0
        %935 = vperm.xlu0 %934, %v593
        %v936 = vpop.permute.xlu0 %935
        %939 = vset.pattern.permute.xlu0 0
        %940 = vperm.xlu0 %939, %v594
        %v941 = vpop.permute.xlu0 %940
        %944 = vset.pattern.permute.xlu0 0
        %945 = vperm.xlu0 %944, %v595
        %v946 = vpop.permute.xlu0 %945
        %949 = vset.pattern.permute.xlu0 0
        %950 = vperm.xlu0 %949, %v596
        %v951 = vpop.permute.xlu0 %950
        %954 = vset.pattern.permute.xlu0 0
        %955 = vperm.xlu0 %954, %v597
        %v956 = vpop.permute.xlu0 %955
        %959 = vset.pattern.permute.xlu0 0
        %960 = vperm.xlu0 %959, %v598
        %v961 = vpop.permute.xlu0 %960
        %964 = vset.pattern.permute.xlu0 0
        %965 = vperm.xlu0 %964, %v599
        %v966 = vpop.permute.xlu0 %965
        %969 = vset.pattern.permute.xlu0 0
        %970 = vperm.xlu0 %969, %v600
        %v971 = vpop.permute.xlu0 %970
        %974 = vset.pattern.permute.xlu0 0
        %975 = vperm.xlu0 %974, %v601
        %v976 = vpop.permute.xlu0 %975
        %979 = vset.pattern.permute.xlu0 0
        %980 = vperm.xlu0 %979, %v602
        %v981 = vpop.permute.xlu0 %980
        %984 = vset.pattern.permute.xlu0 0
        %985 = vperm.xlu0 %984, %v603
        %v986 = vpop.permute.xlu0 %985
        %989 = vset.pattern.permute.xlu0 0
        %990 = vperm.xlu0 %989, %v604
        %v991 = vpop.permute.xlu0 %990
        %994 = vset.pattern.permute.xlu0 0
        %995 = vperm.xlu0 %994, %v605
        %v996 = vpop.permute.xlu0 %995
        %999 = vset.pattern.permute.xlu0 0
        %1000 = vperm.xlu0 %999, %v606
        %v1001 = vpop.permute.xlu0 %1000
        %1004 = vset.pattern.permute.xlu0 0
        %1005 = vperm.xlu0 %1004, %v607
        %v1006 = vpop.permute.xlu0 %1005
        %1009 = vset.pattern.permute.xlu0 0
        %1010 = vperm.xlu0 %1009, %v608
        %v1011 = vpop.permute.xlu0 %1010
        %1014 = vset.pattern.permute.xlu0 0
        %1015 = vperm.xlu0 %1014, %v609
        %v1016 = vpop.permute.xlu0 %1015
        %1019 = vset.pattern.permute.xlu0 0
        %1020 = vperm.xlu0 %1019, %v610
        %v1021 = vpop.permute.xlu0 %1020
        %1024 = vset.pattern.permute.xlu0 0
        %1025 = vperm.xlu0 %1024, %v611
        %v1026 = vpop.permute.xlu0 %1025
        %1029 = vset.pattern.permute.xlu0 0
        %1030 = vperm.xlu0 %1029, %v612
        %v1031 = vpop.permute.xlu0 %1030
        %1034 = vset.pattern.permute.xlu0 0
        %1035 = vperm.xlu0 %1034, %v613
        %v1036 = vpop.permute.xlu0 %1035
        %1039 = vset.pattern.permute.xlu0 0
        %1040 = vperm.xlu0 %1039, %v614
        %v1041 = vpop.permute.xlu0 %1040
        %1044 = vset.pattern.permute.xlu0 0
        %1045 = vperm.xlu0 %1044, %v615
        %v1046 = vpop.permute.xlu0 %1045
        %1049 = vset.pattern.permute.xlu0 0
        %1050 = vperm.xlu0 %1049, %v616
        %v1051 = vpop.permute.xlu0 %1050
        %1054 = vset.pattern.permute.xlu0 0
        %1055 = vperm.xlu0 %1054, %v617
        %v1056 = vpop.permute.xlu0 %1055
        %1059 = vset.pattern.permute.xlu0 0
        %1060 = vperm.xlu0 %1059, %v618
        %v1061 = vpop.permute.xlu0 %1060
        %1064 = vset.pattern.permute.xlu0 0
        %1065 = vperm.xlu0 %1064, %v619
        %v1066 = vpop.permute.xlu0 %1065
        %1069 = vset.pattern.permute.xlu0 0
        %1070 = vperm.xlu0 %1069, %v620
        %v1071 = vpop.permute.xlu0 %1070
        %1074 = vset.pattern.permute.xlu0 0
        %1075 = vperm.xlu0 %1074, %v621
        %v1076 = vpop.permute.xlu0 %1075
        %v1078 = vmul.f32 %v694, %v761
        %v1079 = vmul.f32 %v695, %v766
        %v1080 = vmul.f32 %v696, %v771
        %v1081 = vmul.f32 %v697, %v776
        %v1082 = vmul.f32 %v698, %v781
        %v1083 = vmul.f32 %v699, %v786
        %v1084 = vmul.f32 %v700, %v791
        %v1085 = vmul.f32 %v701, %v796
        %v1086 = vmul.f32 %v702, %v801
        %v1087 = vmul.f32 %v703, %v806
        %v1088 = vmul.f32 %v704, %v811
        %v1089 = vmul.f32 %v705, %v816
        %v1090 = vmul.f32 %v706, %v821
        %v1091 = vmul.f32 %v707, %v826
        %v1092 = vmul.f32 %v708, %v831
        %v1093 = vmul.f32 %v709, %v836
        %v1094 = vmul.f32 %v710, %v841
        %v1095 = vmul.f32 %v711, %v846
        %v1096 = vmul.f32 %v712, %v851
        %v1097 = vmul.f32 %v713, %v856
        %v1098 = vmul.f32 %v714, %v861
        %v1099 = vmul.f32 %v715, %v866
        %v1100 = vmul.f32 %v716, %v871
        %v1101 = vmul.f32 %v717, %v876
        %v1102 = vmul.f32 %v718, %v881
        %v1103 = vmul.f32 %v719, %v886
        %v1104 = vmul.f32 %v720, %v891
        %v1105 = vmul.f32 %v721, %v896
        %v1106 = vmul.f32 %v722, %v901
        %v1107 = vmul.f32 %v723, %v906
        %v1108 = vmul.f32 %v724, %v911
        %v1109 = vmul.f32 %v725, %v916
        %v1110 = vmul.f32 %v726, %v921
        %v1111 = vmul.f32 %v727, %v926
        %v1112 = vmul.f32 %v728, %v931
        %v1113 = vmul.f32 %v729, %v936
        %v1114 = vmul.f32 %v730, %v941
        %v1115 = vmul.f32 %v731, %v946
        %v1116 = vmul.f32 %v732, %v951
        %v1117 = vmul.f32 %v733, %v956
        %v1118 = vmul.f32 %v734, %v961
        %v1119 = vmul.f32 %v735, %v966
        %v1120 = vmul.f32 %v736, %v971
        %v1121 = vmul.f32 %v737, %v976
        %v1122 = vmul.f32 %v738, %v981
        %v1123 = vmul.f32 %v739, %v986
        %v1124 = vmul.f32 %v740, %v991
        %v1125 = vmul.f32 %v741, %v996
        %v1126 = vmul.f32 %v742, %v1001
        %v1127 = vmul.f32 %v743, %v1006
        %v1128 = vmul.f32 %v744, %v1011
        %v1129 = vmul.f32 %v745, %v1016
        %v1130 = vmul.f32 %v746, %v1021
        %v1131 = vmul.f32 %v747, %v1026
        %v1132 = vmul.f32 %v748, %v1031
        %v1133 = vmul.f32 %v749, %v1036
        %v1134 = vmul.f32 %v750, %v1041
        %v1135 = vmul.f32 %v751, %v1046
        %v1136 = vmul.f32 %v752, %v1051
        %v1137 = vmul.f32 %v753, %v1056
        %v1138 = vmul.f32 %v754, %v1061
        %v1139 = vmul.f32 %v755, %v1066
        %v1140 = vmul.f32 %v756, %v1071
        %v1141 = vmul.f32 %v757, %v1076
        %v1142 = vadd.f32 %v1078, %v1079
        %v1143 = vadd.f32 %v1142, %v1080
        %v1144 = vadd.f32 %v1143, %v1081
        %v1145 = vrot.slane %v1144, 4
        %v1146 = vadd.f32 %v1144, %v1145
        %v1147 = vrot.slane %v1146, 2
        %v1148 = vadd.f32 %v1146, %v1147
        %v1149 = vrot.slane %v1148, 1
        %v1150 = vadd.f32 %v1148, %v1149
        %v1151 = vadd.f32 %v1082, %v1083
        %v1152 = vadd.f32 %v1151, %v1084
        %v1153 = vadd.f32 %v1152, %v1085
        %v1154 = vrot.slane %v1153, 4
        %v1155 = vadd.f32 %v1153, %v1154
        %v1156 = vrot.slane %v1155, 2
        %v1157 = vadd.f32 %v1155, %v1156
        %v1158 = vrot.slane %v1157, 1
        %v1159 = vadd.f32 %v1157, %v1158
        %v1160 = vadd.f32 %v1086, %v1087
        %v1161 = vadd.f32 %v1160, %v1088
        %v1162 = vadd.f32 %v1161, %v1089
        %v1163 = vrot.slane %v1162, 4
        %v1164 = vadd.f32 %v1162, %v1163
        %v1165 = vrot.slane %v1164, 2
        %v1166 = vadd.f32 %v1164, %v1165
        %v1167 = vrot.slane %v1166, 1
        %v1168 = vadd.f32 %v1166, %v1167
        %v1169 = vadd.f32 %v1090, %v1091
        %v1170 = vadd.f32 %v1169, %v1092
        %v1171 = vadd.f32 %v1170, %v1093
        %v1172 = vrot.slane %v1171, 4
        %v1173 = vadd.f32 %v1171, %v1172
        %v1174 = vrot.slane %v1173, 2
        %v1175 = vadd.f32 %v1173, %v1174
        %v1176 = vrot.slane %v1175, 1
        %v1177 = vadd.f32 %v1175, %v1176
        %v1178 = vadd.f32 %v1094, %v1095
        %v1179 = vadd.f32 %v1178, %v1096
        %v1180 = vadd.f32 %v1179, %v1097
        %v1181 = vrot.slane %v1180, 4
        %v1182 = vadd.f32 %v1180, %v1181
        %v1183 = vrot.slane %v1182, 2
        %v1184 = vadd.f32 %v1182, %v1183
        %v1185 = vrot.slane %v1184, 1
        %v1186 = vadd.f32 %v1184, %v1185
        %v1187 = vadd.f32 %v1098, %v1099
        %v1188 = vadd.f32 %v1187, %v1100
        %v1189 = vadd.f32 %v1188, %v1101
        %v1190 = vrot.slane %v1189, 4
        %v1191 = vadd.f32 %v1189, %v1190
        %v1192 = vrot.slane %v1191, 2
        %v1193 = vadd.f32 %v1191, %v1192
        %v1194 = vrot.slane %v1193, 1
        %v1195 = vadd.f32 %v1193, %v1194
        %v1196 = vadd.f32 %v1102, %v1103
        %v1197 = vadd.f32 %v1196, %v1104
        %v1198 = vadd.f32 %v1197, %v1105
        %v1199 = vrot.slane %v1198, 4
        %v1200 = vadd.f32 %v1198, %v1199
        %v1201 = vrot.slane %v1200, 2
        %v1202 = vadd.f32 %v1200, %v1201
        %v1203 = vrot.slane %v1202, 1
        %v1204 = vadd.f32 %v1202, %v1203
        %v1205 = vadd.f32 %v1106, %v1107
        %v1206 = vadd.f32 %v1205, %v1108
        %v1207 = vadd.f32 %v1206, %v1109
        %v1208 = vrot.slane %v1207, 4
        %v1209 = vadd.f32 %v1207, %v1208
        %v1210 = vrot.slane %v1209, 2
        %v1211 = vadd.f32 %v1209, %v1210
        %v1212 = vrot.slane %v1211, 1
        %v1213 = vadd.f32 %v1211, %v1212
        %v1214 = vadd.f32 %v1110, %v1111
        %v1215 = vadd.f32 %v1214, %v1112
        %v1216 = vadd.f32 %v1215, %v1113
        %v1217 = vrot.slane %v1216, 4
        %v1218 = vadd.f32 %v1216, %v1217
        %v1219 = vrot.slane %v1218, 2
        %v1220 = vadd.f32 %v1218, %v1219
        %v1221 = vrot.slane %v1220, 1
        %v1222 = vadd.f32 %v1220, %v1221
        %v1223 = vadd.f32 %v1114, %v1115
        %v1224 = vadd.f32 %v1223, %v1116
        %v1225 = vadd.f32 %v1224, %v1117
        %v1226 = vrot.slane %v1225, 4
        %v1227 = vadd.f32 %v1225, %v1226
        %v1228 = vrot.slane %v1227, 2
        %v1229 = vadd.f32 %v1227, %v1228
        %v1230 = vrot.slane %v1229, 1
        %v1231 = vadd.f32 %v1229, %v1230
        %v1232 = vadd.f32 %v1118, %v1119
        %v1233 = vadd.f32 %v1232, %v1120
        %v1234 = vadd.f32 %v1233, %v1121
        %v1235 = vrot.slane %v1234, 4
        %v1236 = vadd.f32 %v1234, %v1235
        %v1237 = vrot.slane %v1236, 2
        %v1238 = vadd.f32 %v1236, %v1237
        %v1239 = vrot.slane %v1238, 1
        %v1240 = vadd.f32 %v1238, %v1239
        %v1241 = vadd.f32 %v1122, %v1123
        %v1242 = vadd.f32 %v1241, %v1124
        %v1243 = vadd.f32 %v1242, %v1125
        %v1244 = vrot.slane %v1243, 4
        %v1245 = vadd.f32 %v1243, %v1244
        %v1246 = vrot.slane %v1245, 2
        %v1247 = vadd.f32 %v1245, %v1246
        %v1248 = vrot.slane %v1247, 1
        %v1249 = vadd.f32 %v1247, %v1248
        %v1250 = vadd.f32 %v1126, %v1127
        %v1251 = vadd.f32 %v1250, %v1128
        %v1252 = vadd.f32 %v1251, %v1129
        %v1253 = vrot.slane %v1252, 4
        %v1254 = vadd.f32 %v1252, %v1253
        %v1255 = vrot.slane %v1254, 2
        %v1256 = vadd.f32 %v1254, %v1255
        %v1257 = vrot.slane %v1256, 1
        %v1258 = vadd.f32 %v1256, %v1257
        %v1259 = vadd.f32 %v1130, %v1131
        %v1260 = vadd.f32 %v1259, %v1132
        %v1261 = vadd.f32 %v1260, %v1133
        %v1262 = vrot.slane %v1261, 4
        %v1263 = vadd.f32 %v1261, %v1262
        %v1264 = vrot.slane %v1263, 2
        %v1265 = vadd.f32 %v1263, %v1264
        %v1266 = vrot.slane %v1265, 1
        %v1267 = vadd.f32 %v1265, %v1266
        %v1268 = vadd.f32 %v1134, %v1135
        %v1269 = vadd.f32 %v1268, %v1136
        %v1270 = vadd.f32 %v1269, %v1137
        %v1271 = vrot.slane %v1270, 4
        %v1272 = vadd.f32 %v1270, %v1271
        %v1273 = vrot.slane %v1272, 2
        %v1274 = vadd.f32 %v1272, %v1273
        %v1275 = vrot.slane %v1274, 1
        %v1276 = vadd.f32 %v1274, %v1275
        %v1277 = vadd.f32 %v1138, %v1139
        %v1278 = vadd.f32 %v1277, %v1140
        %v1279 = vadd.f32 %v1278, %v1141
        %v1280 = vrot.slane %v1279, 4
        %v1281 = vadd.f32 %v1279, %v1280
        %v1282 = vrot.slane %v1281, 2
        %v1283 = vadd.f32 %v1281, %v1282
        %v1284 = vrot.slane %v1283, 1
        %v1285 = vadd.f32 %v1283, %v1284
        %vm1302 = vcmask 1041409
        %v1303 = vsel %vm1302, %v1159, %v1150
        %vm1304 = vcmask 1042434
        %v1305 = vsel %vm1304, %v1168, %v1303
        %vm1306 = vcmask 1043459
        %v1307 = vsel %vm1306, %v1177, %v1305
        %vm1308 = vcmask 1044484
        %v1309 = vsel %vm1308, %v1186, %v1307
        %vm1310 = vcmask 1045509
        %v1311 = vsel %vm1310, %v1195, %v1309
        %vm1312 = vcmask 1046534
        %v1313 = vsel %vm1312, %v1204, %v1311
        %vm1314 = vcmask 1047559
        %v1315 = vsel %vm1314, %v1213, %v1313
        %v1316 = vsel %vm1302, %v1231, %v1222
        %v1317 = vsel %vm1304, %v1240, %v1316
        %v1318 = vsel %vm1306, %v1249, %v1317
        %v1319 = vsel %vm1308, %v1258, %v1318
        %v1320 = vsel %vm1310, %v1267, %v1319
        %v1321 = vsel %vm1312, %v1276, %v1320
        %v1322 = vsel %vm1314, %v1285, %v1321
        %vm1325 = vcmask 261120
        %v1327 = vsel %vm1325, %v556, 0
        %v1330 = vsel %vm1325, %v557, 0
        %1332 = vmatpush.msra.mxu0 0.0
        %1333 = vmatpush.msra.mxu0 0.0
        %1334 = vmatpush.msra.mxu0 0.0
        %1335 = vmatpush.msra.mxu0 0.0
        %1336 = vmatpush.msra.mxu0 0.0
        %1337 = vmatpush.msra.mxu0 0.0
        %1338 = vmatpush.msra.mxu0 0.0
        %1339 = vmatpush.msra.mxu0 0.0
        %1340 = vmatpush.msra.mxu0 0.0
        %1341 = vmatpush.msra.mxu0 0.0
        %1342 = vmatpush.msra.mxu0 0.0
        %1343 = vmatpush.msra.mxu0 0.0
        %1344 = vmatpush.msra.mxu0 %v625
        %1345 = vmatpush.msra.mxu0 %v624
        %1346 = vmatpush.msra.mxu0 %v623
        %1347 = vmatpush.msra.mxu0 %v622
        %1348 = vmatmul.f32.gmra.mxu0 %v1327
        %v1349 = vpop.f32.mrf.mxu0
        %v1350 = vadd.f32 %v1315, %v1349
        %1351 = vmatmul.f32.gmra.mxu0 %v1330
        %v1352 = vpop.f32.mrf.mxu0
        %v1353 = vadd.f32 %v1322, %v1352
        %1354 = vdwg.mxu0
        %1355 = vadd.xlane.f32.xlu0 %v1350
        %v1356 = vpop.xlane.xlu0 %1355
        %1357 = vadd.xlane.f32.xlu0 %v1353
        %v1358 = vpop.xlane.xlu0 %1357
        %v1359 = vrcp.pop 128.0
        %v1360 = vmul.f32 128.0, %v1359
        %v1361 = vsub.f32 1.0, %v1360
        %v1362 = vmul.f32 %v1359, %v1361
        %v1363 = vadd.f32 %v1359, %v1362
        %vm1364 = vweird.f32 %v1359
        %v1365 = vsel %vm1364, %v1359, %v1363
        %v1366 = vmul.f32 %v1356, %v1365
        %v1367 = vmul.f32 %v1358, %v1365
        %v1368 = vsub.f32 %v1350, %v1366
        %v1369 = vsub.f32 %v1353, %v1367
        %v1370 = vmul.f32 %v1368, %v1368
        %v1371 = vmul.f32 %v1369, %v1369
        %1372 = vadd.xlane.f32.xlu0 %v1370
        %v1373 = vpop.xlane.xlu0 %1372
        %1374 = vadd.xlane.f32.xlu0 %v1371
        %v1375 = vpop.xlane.xlu0 %1374
        %v1376 = vmul.f32 %v1373, %v1365
        %v1377 = vmul.f32 %v1375, %v1365
        %v1378 = vadd.f32 %v1376, 1e-05
        %v1379 = vadd.f32 %v1377, 1e-05
        %v1380 = vrsqrt.pop %v1378
        %v1381 = vmul.f32 %v1380, %v1378
        %v1382 = vmul.f32 %v1381, %v1380
        %v1383 = vmul.f32 0.5, %v1382
        %v1384 = vsub.f32 1.5, %v1383
        %v1385 = vmul.f32 %v1380, %v1384
        %vm1386 = vweird.f32 %v1378
        %vm1387 = vweird.f32 %v1380
        %vm1388 = vmor %vm1386, %vm1387
        %v1389 = vsel %vm1388, %v1380, %v1385
        %v1390 = vrsqrt.pop %v1379
        %v1391 = vmul.f32 %v1390, %v1379
        %v1392 = vmul.f32 %v1391, %v1390
        %v1393 = vmul.f32 0.5, %v1392
        %v1394 = vsub.f32 1.5, %v1393
        %v1395 = vmul.f32 %v1390, %v1394
        %vm1396 = vweird.f32 %v1379
        %vm1397 = vweird.f32 %v1390
        %vm1398 = vmor %vm1396, %vm1397
        %v1399 = vsel %vm1398, %v1390, %v1395
        %v1400 = vmul.f32 %v1368, %v1389
        %v1401 = vmul.f32 %v1369, %v1399
        %v1402 = vld [vmem:[%s5] sm:$0x1]
        %v1404 = vperm.slane %v1402, 0
        %v1406 = vmul.f32 %v1400, %v1404
        %v1407 = vmul.f32 %v1401, %v1404
        %v1408 = vld [vmem:[%s6] sm:$0x1]
        %v1410 = vperm.slane %v1408, 0
        %v1412 = vadd.f32 %v1406, %v1410
        %v1413 = vadd.f32 %v1407, %v1410
        %v1414 = vtanh.pop %v1412
        %v1415 = vtanh.pop %v1413
        %v1416 = vld [vmem:[%s7] sm:$0x1]
        %v1418 = vperm.slane %v1416, 0
        %v1420 = vmul.f32 %v1414, %v1418
        %v1421 = vmul.f32 %v1415, %v1418
        %1422 = vadd.xlane.f32.xlu0 %v1420
        %v1423 = vpop.xlane.xlu0 %1422
        %1424 = vadd.xlane.f32.xlu0 %v1421
        %v1425 = vpop.xlane.xlu0 %1424
        %s1426 = sld [smem:[#allocation2]]
        %v1427 = vstv %s1426
        %v1428 = vadd.f32 %v1423, %v1427
        %v1429 = vadd.f32 %v1425, %v1427
        %v1430 = vtanh.pop %v1428
        %v1431 = vtanh.pop %v1429
        %v1432 = vld [vmem:[%s9] sm:$0x1]
        %v1434 = vperm.slane %v1432, 0
        %v1436 = vmul.f32 %v1430, %v1434
        %v1437 = vmul.f32 %v1431, %v1434
        %v1438 = vld [vmem:[%s10] sm:$0x1]
        %v1440 = vperm.slane %v1438, 0
        %v1442 = vadd.f32 %v1436, %v1440
        %v1443 = vadd.f32 %v1437, %v1440
        %v1444 = vmul.f32 %v1442, %v1414
        %v1445 = vmul.f32 %v1443, %v1415
        %v1448 = vrot.slane %v1444, 1
        %v1449 = vrot.slane %v1444, 2
        %v1450 = vrot.slane %v1444, 3
        %v1451 = vrot.slane %v1444, 4
        %v1452 = vrot.slane %v1444, 5
        %v1453 = vrot.slane %v1444, 6
        %v1454 = vrot.slane %v1444, 7
        %v1455 = vrot.slane %v1445, 1
        %v1456 = vrot.slane %v1445, 2
        %v1457 = vrot.slane %v1445, 3
        %v1458 = vrot.slane %v1445, 4
        %v1459 = vrot.slane %v1445, 5
        %v1460 = vrot.slane %v1445, 6
        %v1461 = vrot.slane %v1445, 7
        %v1462 = vperm.slane %v1444, 0
        %v1463 = vperm.slane %v1448, 0
        %v1464 = vperm.slane %v1449, 0
        %v1465 = vperm.slane %v1450, 0
        %v1466 = vperm.slane %v1451, 0
        %v1467 = vperm.slane %v1452, 0
        %v1468 = vperm.slane %v1453, 0
        %v1469 = vperm.slane %v1454, 0
        %v1470 = vperm.slane %v1445, 0
        %v1471 = vperm.slane %v1455, 0
        %v1472 = vperm.slane %v1456, 0
        %v1473 = vperm.slane %v1457, 0
        %v1474 = vperm.slane %v1458, 0
        %v1475 = vperm.slane %v1459, 0
        %v1476 = vperm.slane %v1460, 0
        %v1477 = vperm.slane %v1461, 0
        %v1494 = vmul.f32 %v1462, %v761
        %v1495 = vmul.f32 %v1462, %v766
        %v1496 = vmul.f32 %v1462, %v771
        %v1497 = vmul.f32 %v1462, %v776
        %v1498 = vmul.f32 %v1463, %v781
        %v1499 = vmul.f32 %v1463, %v786
        %v1500 = vmul.f32 %v1463, %v791
        %v1501 = vmul.f32 %v1463, %v796
        %v1502 = vmul.f32 %v1464, %v801
        %v1503 = vmul.f32 %v1464, %v806
        %v1504 = vmul.f32 %v1464, %v811
        %v1505 = vmul.f32 %v1464, %v816
        %v1506 = vmul.f32 %v1465, %v821
        %v1507 = vmul.f32 %v1465, %v826
        %v1508 = vmul.f32 %v1465, %v831
        %v1509 = vmul.f32 %v1465, %v836
        %v1510 = vmul.f32 %v1466, %v841
        %v1511 = vmul.f32 %v1466, %v846
        %v1512 = vmul.f32 %v1466, %v851
        %v1513 = vmul.f32 %v1466, %v856
        %v1514 = vmul.f32 %v1467, %v861
        %v1515 = vmul.f32 %v1467, %v866
        %v1516 = vmul.f32 %v1467, %v871
        %v1517 = vmul.f32 %v1467, %v876
        %v1518 = vmul.f32 %v1468, %v881
        %v1519 = vmul.f32 %v1468, %v886
        %v1520 = vmul.f32 %v1468, %v891
        %v1521 = vmul.f32 %v1468, %v896
        %v1522 = vmul.f32 %v1469, %v901
        %v1523 = vmul.f32 %v1469, %v906
        %v1524 = vmul.f32 %v1469, %v911
        %v1525 = vmul.f32 %v1469, %v916
        %v1526 = vmul.f32 %v1470, %v921
        %v1527 = vmul.f32 %v1470, %v926
        %v1528 = vmul.f32 %v1470, %v931
        %v1529 = vmul.f32 %v1470, %v936
        %v1530 = vmul.f32 %v1471, %v941
        %v1531 = vmul.f32 %v1471, %v946
        %v1532 = vmul.f32 %v1471, %v951
        %v1533 = vmul.f32 %v1471, %v956
        %v1534 = vmul.f32 %v1472, %v961
        %v1535 = vmul.f32 %v1472, %v966
        %v1536 = vmul.f32 %v1472, %v971
        %v1537 = vmul.f32 %v1472, %v976
        %v1538 = vmul.f32 %v1473, %v981
        %v1539 = vmul.f32 %v1473, %v986
        %v1540 = vmul.f32 %v1473, %v991
        %v1541 = vmul.f32 %v1473, %v996
        %v1542 = vmul.f32 %v1474, %v1001
        %v1543 = vmul.f32 %v1474, %v1006
        %v1544 = vmul.f32 %v1474, %v1011
        %v1545 = vmul.f32 %v1474, %v1016
        %v1546 = vmul.f32 %v1475, %v1021
        %v1547 = vmul.f32 %v1475, %v1026
        %v1548 = vmul.f32 %v1475, %v1031
        %v1549 = vmul.f32 %v1475, %v1036
        %v1550 = vmul.f32 %v1476, %v1041
        %v1551 = vmul.f32 %v1476, %v1046
        %v1552 = vmul.f32 %v1476, %v1051
        %v1553 = vmul.f32 %v1476, %v1056
        %v1554 = vmul.f32 %v1477, %v1061
        %v1555 = vmul.f32 %v1477, %v1066
        %v1556 = vmul.f32 %v1477, %v1071
        %v1557 = vmul.f32 %v1477, %v1076
        %v1558 = vadd.f32 %v626, %v1494
        %v1559 = vadd.f32 %v627, %v1495
        %v1560 = vadd.f32 %v628, %v1496
        %v1561 = vadd.f32 %v629, %v1497
        %v1562 = vadd.f32 %v630, %v1498
        %v1563 = vadd.f32 %v631, %v1499
        %v1564 = vadd.f32 %v632, %v1500
        %v1565 = vadd.f32 %v633, %v1501
        %v1566 = vadd.f32 %v634, %v1502
        %v1567 = vadd.f32 %v635, %v1503
        %v1568 = vadd.f32 %v636, %v1504
        %v1569 = vadd.f32 %v637, %v1505
        %v1570 = vadd.f32 %v638, %v1506
        %v1571 = vadd.f32 %v639, %v1507
        %v1572 = vadd.f32 %v640, %v1508
        %v1573 = vadd.f32 %v641, %v1509
        %v1574 = vadd.f32 %v642, %v1510
        %v1575 = vadd.f32 %v643, %v1511
        %v1576 = vadd.f32 %v644, %v1512
        %v1577 = vadd.f32 %v645, %v1513
        %v1578 = vadd.f32 %v646, %v1514
        %v1579 = vadd.f32 %v647, %v1515
        %v1580 = vadd.f32 %v648, %v1516
        %v1581 = vadd.f32 %v649, %v1517
        %v1582 = vadd.f32 %v650, %v1518
        %v1583 = vadd.f32 %v651, %v1519
        %v1584 = vadd.f32 %v652, %v1520
        %v1585 = vadd.f32 %v653, %v1521
        %v1586 = vadd.f32 %v654, %v1522
        %v1587 = vadd.f32 %v655, %v1523
        %v1588 = vadd.f32 %v656, %v1524
        %v1589 = vadd.f32 %v657, %v1525
        %v1590 = vadd.f32 %v658, %v1526
        %v1591 = vadd.f32 %v659, %v1527
        %v1592 = vadd.f32 %v660, %v1528
        %v1593 = vadd.f32 %v661, %v1529
        %v1594 = vadd.f32 %v662, %v1530
        %v1595 = vadd.f32 %v663, %v1531
        %v1596 = vadd.f32 %v664, %v1532
        %v1597 = vadd.f32 %v665, %v1533
        %v1598 = vadd.f32 %v666, %v1534
        %v1599 = vadd.f32 %v667, %v1535
        %v1600 = vadd.f32 %v668, %v1536
        %v1601 = vadd.f32 %v669, %v1537
        %v1602 = vadd.f32 %v670, %v1538
        %v1603 = vadd.f32 %v671, %v1539
        %v1604 = vadd.f32 %v672, %v1540
        %v1605 = vadd.f32 %v673, %v1541
        %v1606 = vadd.f32 %v674, %v1542
        %v1607 = vadd.f32 %v675, %v1543
        %v1608 = vadd.f32 %v676, %v1544
        %v1609 = vadd.f32 %v677, %v1545
        %v1610 = vadd.f32 %v678, %v1546
        %v1611 = vadd.f32 %v679, %v1547
        %v1612 = vadd.f32 %v680, %v1548
        %v1613 = vadd.f32 %v681, %v1549
        %v1614 = vadd.f32 %v682, %v1550
        %v1615 = vadd.f32 %v683, %v1551
        %v1616 = vadd.f32 %v684, %v1552
        %v1617 = vadd.f32 %v685, %v1553
        %v1618 = vadd.f32 %v686, %v1554
        %v1619 = vadd.f32 %v687, %v1555
        %v1620 = vadd.f32 %v688, %v1556
        %v1621 = vadd.f32 %v689, %v1557
        %v1622 = vmax.f32 %v1558, -2.0
        %v1623 = vmax.f32 %v1559, -2.0
        %v1624 = vmax.f32 %v1560, -2.0
        %v1625 = vmax.f32 %v1561, -2.0
        %v1626 = vmax.f32 %v1562, -2.0
        %v1627 = vmax.f32 %v1563, -2.0
        %v1628 = vmax.f32 %v1564, -2.0
        %v1629 = vmax.f32 %v1565, -2.0
        %v1630 = vmax.f32 %v1566, -2.0
        %v1631 = vmax.f32 %v1567, -2.0
        %v1632 = vmax.f32 %v1568, -2.0
        %v1633 = vmax.f32 %v1569, -2.0
        %v1634 = vmax.f32 %v1570, -2.0
        %v1635 = vmax.f32 %v1571, -2.0
        %v1636 = vmax.f32 %v1572, -2.0
        %v1637 = vmax.f32 %v1573, -2.0
        %v1638 = vmax.f32 %v1574, -2.0
        %v1639 = vmax.f32 %v1575, -2.0
        %v1640 = vmax.f32 %v1576, -2.0
        %v1641 = vmax.f32 %v1577, -2.0
        %v1642 = vmax.f32 %v1578, -2.0
        %v1643 = vmax.f32 %v1579, -2.0
        %v1644 = vmax.f32 %v1580, -2.0
        %v1645 = vmax.f32 %v1581, -2.0
        %v1646 = vmax.f32 %v1582, -2.0
        %v1647 = vmax.f32 %v1583, -2.0
        %v1648 = vmax.f32 %v1584, -2.0
        %v1649 = vmax.f32 %v1585, -2.0
        %v1650 = vmax.f32 %v1586, -2.0
        %v1651 = vmax.f32 %v1587, -2.0
        %v1652 = vmax.f32 %v1588, -2.0
        %v1653 = vmax.f32 %v1589, -2.0
        %v1654 = vmax.f32 %v1590, -2.0
        %v1655 = vmax.f32 %v1591, -2.0
        %v1656 = vmax.f32 %v1592, -2.0
        %v1657 = vmax.f32 %v1593, -2.0
        %v1658 = vmax.f32 %v1594, -2.0
        %v1659 = vmax.f32 %v1595, -2.0
        %v1660 = vmax.f32 %v1596, -2.0
        %v1661 = vmax.f32 %v1597, -2.0
        %v1662 = vmax.f32 %v1598, -2.0
        %v1663 = vmax.f32 %v1599, -2.0
        %v1664 = vmax.f32 %v1600, -2.0
        %v1665 = vmax.f32 %v1601, -2.0
        %v1666 = vmax.f32 %v1602, -2.0
        %v1667 = vmax.f32 %v1603, -2.0
        %v1668 = vmax.f32 %v1604, -2.0
        %v1669 = vmax.f32 %v1605, -2.0
        %v1670 = vmax.f32 %v1606, -2.0
        %v1671 = vmax.f32 %v1607, -2.0
        %v1672 = vmax.f32 %v1608, -2.0
        %v1673 = vmax.f32 %v1609, -2.0
        %v1674 = vmax.f32 %v1610, -2.0
        %v1675 = vmax.f32 %v1611, -2.0
        %v1676 = vmax.f32 %v1612, -2.0
        %v1677 = vmax.f32 %v1613, -2.0
        %v1678 = vmax.f32 %v1614, -2.0
        %v1679 = vmax.f32 %v1615, -2.0
        %v1680 = vmax.f32 %v1616, -2.0
        %v1681 = vmax.f32 %v1617, -2.0
        %v1682 = vmax.f32 %v1618, -2.0
        %v1683 = vmax.f32 %v1619, -2.0
        %v1684 = vmax.f32 %v1620, -2.0
        %v1685 = vmax.f32 %v1621, -2.0
        %v1686 = vmin.f32 %v1622, 2.0
        %v1687 = vmin.f32 %v1623, 2.0
        %v1688 = vmin.f32 %v1624, 2.0
        %v1689 = vmin.f32 %v1625, 2.0
        %v1690 = vmin.f32 %v1626, 2.0
        %v1691 = vmin.f32 %v1627, 2.0
        %v1692 = vmin.f32 %v1628, 2.0
        %v1693 = vmin.f32 %v1629, 2.0
        %v1694 = vmin.f32 %v1630, 2.0
        %v1695 = vmin.f32 %v1631, 2.0
        %v1696 = vmin.f32 %v1632, 2.0
        %v1697 = vmin.f32 %v1633, 2.0
        %v1698 = vmin.f32 %v1634, 2.0
        %v1699 = vmin.f32 %v1635, 2.0
        %v1700 = vmin.f32 %v1636, 2.0
        %v1701 = vmin.f32 %v1637, 2.0
        %v1702 = vmin.f32 %v1638, 2.0
        %v1703 = vmin.f32 %v1639, 2.0
        %v1704 = vmin.f32 %v1640, 2.0
        %v1705 = vmin.f32 %v1641, 2.0
        %v1706 = vmin.f32 %v1642, 2.0
        %v1707 = vmin.f32 %v1643, 2.0
        %v1708 = vmin.f32 %v1644, 2.0
        %v1709 = vmin.f32 %v1645, 2.0
        %v1710 = vmin.f32 %v1646, 2.0
        %v1711 = vmin.f32 %v1647, 2.0
        %v1712 = vmin.f32 %v1648, 2.0
        %v1713 = vmin.f32 %v1649, 2.0
        %v1714 = vmin.f32 %v1650, 2.0
        %v1715 = vmin.f32 %v1651, 2.0
        %v1716 = vmin.f32 %v1652, 2.0
        %v1717 = vmin.f32 %v1653, 2.0
        %v1718 = vmin.f32 %v1654, 2.0
        %v1719 = vmin.f32 %v1655, 2.0
        %v1720 = vmin.f32 %v1656, 2.0
        %v1721 = vmin.f32 %v1657, 2.0
        %v1722 = vmin.f32 %v1658, 2.0
        %v1723 = vmin.f32 %v1659, 2.0
        %v1724 = vmin.f32 %v1660, 2.0
        %v1725 = vmin.f32 %v1661, 2.0
        %v1726 = vmin.f32 %v1662, 2.0
        %v1727 = vmin.f32 %v1663, 2.0
        %v1728 = vmin.f32 %v1664, 2.0
        %v1729 = vmin.f32 %v1665, 2.0
        %v1730 = vmin.f32 %v1666, 2.0
        %v1731 = vmin.f32 %v1667, 2.0
        %v1732 = vmin.f32 %v1668, 2.0
        %v1733 = vmin.f32 %v1669, 2.0
        %v1734 = vmin.f32 %v1670, 2.0
        %v1735 = vmin.f32 %v1671, 2.0
        %v1736 = vmin.f32 %v1672, 2.0
        %v1737 = vmin.f32 %v1673, 2.0
        %v1738 = vmin.f32 %v1674, 2.0
        %v1739 = vmin.f32 %v1675, 2.0
        %v1740 = vmin.f32 %v1676, 2.0
        %v1741 = vmin.f32 %v1677, 2.0
        %v1742 = vmin.f32 %v1678, 2.0
        %v1743 = vmin.f32 %v1679, 2.0
        %v1744 = vmin.f32 %v1680, 2.0
        %v1745 = vmin.f32 %v1681, 2.0
        %v1746 = vmin.f32 %v1682, 2.0
        %v1747 = vmin.f32 %v1683, 2.0
        %v1748 = vmin.f32 %v1684, 2.0
        %v1749 = vmin.f32 %v1685, 2.0
        %1750 = vst [vmem:[%s554] sm:$0xff] %v1686
        %1751 = vst [vmem:[%s554 + $0x8] sm:$0xff] %v1687
        %1752 = vst [vmem:[%s554 + $0x10] sm:$0xff] %v1688
        %1753 = vst [vmem:[%s554 + $0x18] sm:$0xff] %v1689
        %1754 = vst [vmem:[%s554 + $0x20] sm:$0xff] %v1690
        %1755 = vst [vmem:[%s554 + $0x28] sm:$0xff] %v1691
        %1756 = vst [vmem:[%s554 + $0x30] sm:$0xff] %v1692
        %1757 = vst [vmem:[%s554 + $0x38] sm:$0xff] %v1693
        %1758 = vst [vmem:[%s554 + $0x40] sm:$0xff] %v1694
        %1759 = vst [vmem:[%s554 + $0x48] sm:$0xff] %v1695
        %1760 = vst [vmem:[%s554 + $0x50] sm:$0xff] %v1696
        %1761 = vst [vmem:[%s554 + $0x58] sm:$0xff] %v1697
        %1762 = vst [vmem:[%s554 + $0x60] sm:$0xff] %v1698
        %1763 = vst [vmem:[%s554 + $0x68] sm:$0xff] %v1699
        %1764 = vst [vmem:[%s554 + $0x70] sm:$0xff] %v1700
        %1765 = vst [vmem:[%s554 + $0x78] sm:$0xff] %v1701
        %1766 = vst [vmem:[%s554 + $0x80] sm:$0xff] %v1702
        %1767 = vst [vmem:[%s554 + $0x88] sm:$0xff] %v1703
        %1768 = vst [vmem:[%s554 + $0x90] sm:$0xff] %v1704
        %1769 = vst [vmem:[%s554 + $0x98] sm:$0xff] %v1705
        %1770 = vst [vmem:[%s554 + $0xa0] sm:$0xff] %v1706
        %1771 = vst [vmem:[%s554 + $0xa8] sm:$0xff] %v1707
        %1772 = vst [vmem:[%s554 + $0xb0] sm:$0xff] %v1708
        %1773 = vst [vmem:[%s554 + $0xb8] sm:$0xff] %v1709
        %1774 = vst [vmem:[%s554 + $0xc0] sm:$0xff] %v1710
        %1775 = vst [vmem:[%s554 + $0xc8] sm:$0xff] %v1711
        %1776 = vst [vmem:[%s554 + $0xd0] sm:$0xff] %v1712
        %1777 = vst [vmem:[%s554 + $0xd8] sm:$0xff] %v1713
        %1778 = vst [vmem:[%s554 + $0xe0] sm:$0xff] %v1714
        %1779 = vst [vmem:[%s554 + $0xe8] sm:$0xff] %v1715
        %1780 = vst [vmem:[%s554 + $0xf0] sm:$0xff] %v1716
        %1781 = vst [vmem:[%s554 + $0xf8] sm:$0xff] %v1717
        %1782 = vst [vmem:[%s554 + $0x100] sm:$0xff] %v1718
        %1783 = vst [vmem:[%s554 + $0x108] sm:$0xff] %v1719
        %1784 = vst [vmem:[%s554 + $0x110] sm:$0xff] %v1720
        %1785 = vst [vmem:[%s554 + $0x118] sm:$0xff] %v1721
        %1786 = vst [vmem:[%s554 + $0x120] sm:$0xff] %v1722
        %1787 = vst [vmem:[%s554 + $0x128] sm:$0xff] %v1723
        %1788 = vst [vmem:[%s554 + $0x130] sm:$0xff] %v1724
        %1789 = vst [vmem:[%s554 + $0x138] sm:$0xff] %v1725
        %1790 = vst [vmem:[%s554 + $0x140] sm:$0xff] %v1726
        %1791 = vst [vmem:[%s554 + $0x148] sm:$0xff] %v1727
        %1792 = vst [vmem:[%s554 + $0x150] sm:$0xff] %v1728
        %1793 = vst [vmem:[%s554 + $0x158] sm:$0xff] %v1729
        %1794 = vst [vmem:[%s554 + $0x160] sm:$0xff] %v1730
        %1795 = vst [vmem:[%s554 + $0x168] sm:$0xff] %v1731
        %1796 = vst [vmem:[%s554 + $0x170] sm:$0xff] %v1732
        %1797 = vst [vmem:[%s554 + $0x178] sm:$0xff] %v1733
        %1798 = vst [vmem:[%s554 + $0x180] sm:$0xff] %v1734
        %1799 = vst [vmem:[%s554 + $0x188] sm:$0xff] %v1735
        %1800 = vst [vmem:[%s554 + $0x190] sm:$0xff] %v1736
        %1801 = vst [vmem:[%s554 + $0x198] sm:$0xff] %v1737
        %1802 = vst [vmem:[%s554 + $0x1a0] sm:$0xff] %v1738
        %1803 = vst [vmem:[%s554 + $0x1a8] sm:$0xff] %v1739
        %1804 = vst [vmem:[%s554 + $0x1b0] sm:$0xff] %v1740
        %1805 = vst [vmem:[%s554 + $0x1b8] sm:$0xff] %v1741
        %1806 = vst [vmem:[%s554 + $0x1c0] sm:$0xff] %v1742
        %1807 = vst [vmem:[%s554 + $0x1c8] sm:$0xff] %v1743
        %1808 = vst [vmem:[%s554 + $0x1d0] sm:$0xff] %v1744
        %1809 = vst [vmem:[%s554 + $0x1d8] sm:$0xff] %v1745
        %1810 = vst [vmem:[%s554 + $0x1e0] sm:$0xff] %v1746
        %1811 = vst [vmem:[%s554 + $0x1e8] sm:$0xff] %v1747
        %1812 = vst [vmem:[%s554 + $0x1f0] sm:$0xff] %v1748
        %1813 = vst [vmem:[%s554 + $0x1f8] sm:$0xff] %v1749
        %1814 = vst [vmem:[%s506] sm:$0xff] %v1414
        %1815 = vst [vmem:[%s506 + $0x8] sm:$0xff] %v1415
        %vm1816 = vcmask 7168
        %1817 = vst.msk [vmem:[%s547] sm:$0xff] %vm1816, %v1430
        %1818 = vst.msk [vmem:[%s547 + $0x8] sm:$0xff] %vm1816, %v1431
        %s1819 = sand.u32 %s285, 1
        %s1820 = scalar_lea.sflag [#allocation5], %s1819
        %s1821 = sand.u32 %s285, 1
        %s1822 = smul.addr %s1821, 16
        %s1823 = scalar_lea.vmem [#allocation8], %s1822
        %s1824 = smul.u32 2, %s31
        %p1825 = scmp.lt.s32.totalorder %s1824, 3
        %s1826 = scalar_select %p1825, %s1824, 3
        %s1827 = smul.addr %s1826, 8
        %s1828 = scalar_lea.vmem %s12, %s1827
        %s1829 = smul.u32 16, %s31
        %p1830 = scmp.lt.s32.totalorder %s1829, 31
        %s1831 = scalar_select %p1830, %s1829, 31
        %s1832 = smul.addr %s1831, 4
        %s1833 = smul.addr %s1832, 8
        %s1834 = scalar_lea.vmem %s13, %s1833
        // Predicated region
        $region73: #{call_fn.1} parent=63 // pred_check
          %p1835 = pneg %p295
        $region74: #{call_fn.1} parent=63 // pred_check_branch
          %1837 = sbr.rel (%p1835) target = $region76
        $region75: #{call_fn.1} parent=63 // pred_region
          %s1838 = smul.u32 2, %s31
          %1840 = vsyncadd %s1820, 0
          %s1841 = smul.addr %s1838, 8
          %s1842 = scalar_lea.hbm %s11, %s1841
          %s1843 = sshll.u32 %s1823, 4
          %s1844 = int_to_ptr.vmem [resolvable:$true] %s1843
          %s1845 = sshll.u32 %s1842, 4
          %s1846 = int_to_ptr.hbm [resolvable:$true] %s1845
          %1851 = dma.vmem_to_hbm [thread:$0]  %s1844, 256, %s1846, %s1820, 128, 128, 8
        $region76: #{call_fn.1} parent=63 // pred_fallthru
          _
        // Predicated region
        $region77: #{call_fn.1} parent=63 // pred_check
          %p1852 = pneg %p321
        $region78: #{call_fn.1} parent=63 // pred_check_branch
          %1854 = sbr.rel (%p1852) target = $region80
        $region79: #{call_fn.1} parent=63 // pred_region
          %s1855 = smul.u32 2, %s31
        $region80: #{call_fn.1} parent=63 // pred_fallthru
          _
        // Predicated region
        $region81: #{call_fn.1} parent=63 // pred_check
          %p1856 = pneg %p347
        $region82: #{call_fn.1} parent=63 // pred_check_branch
          %1858 = sbr.rel (%p1856) target = $region84
        $region83: #{call_fn.1} parent=63 // pred_region
          %s1859 = smul.u32 16, %s31
        $region84: #{call_fn.1} parent=63 // pred_fallthru
          _
      $region64: #{call_fn.1} parent=5 // pred_fallthru
        _
      %p1860 = scmp.le.s32.totalorder 2, %s26
      // Predicated region
      $region85: #{call_fn.1} parent=5 // pred_check
        %p1861 = pneg %p1860
      $region86: #{call_fn.1} parent=5 // pred_check_branch
        %1863 = sbr.rel (%p1861) target = $region88
      $region87: #{call_fn.1} parent=5 // pred_region
        %s1864 = ssub.s32 %s26, 2
        // Predicated region
        $region89: #{call_fn.1} parent=87 // pred_check
          %p1865 = pneg %p301
        $region90: #{call_fn.1} parent=87 // pred_check_branch
          %1867 = sbr.rel (%p1865) target = $region92
        $region91: #{call_fn.1} parent=87 // pred_region
          %s1868 = sand.u32 %s286, 1
          %s1869 = scalar_lea.sflag [#allocation5], %s1868
          %s1870 = sand.u32 %s286, 1
          %s1871 = smul.addr %s1870, 16
          %s1872 = scalar_lea.vmem [#allocation8], %s1871
          %1874 = dma.done %s1869, 256
        $region92: #{call_fn.1} parent=87 // pred_fallthru
          _
        // Predicated region
        $region93: #{call_fn.1} parent=87 // pred_check
          %p1875 = pneg %p327
        $region94: #{call_fn.1} parent=87 // pred_check_branch
          %1877 = sbr.rel (%p1875) target = $region96
        $region95: #{call_fn.1} parent=87 // pred_region
          %s1878 = smul.u32 2, %s32
          %p1879 = scmp.lt.s32.totalorder %s1878, 3
          %s1880 = scalar_select %p1879, %s1878, 3
          %s1881 = smul.addr %s1880, 8
          %s1882 = scalar_lea.vmem %s12, %s1881
        $region96: #{call_fn.1} parent=87 // pred_fallthru
          _
        // Predicated region
        $region97: #{call_fn.1} parent=87 // pred_check
          %p1883 = pneg %p353
        $region98: #{call_fn.1} parent=87 // pred_check_branch
          %1885 = sbr.rel (%p1883) target = $region100
        $region99: #{call_fn.1} parent=87 // pred_region
          %s1886 = smul.u32 16, %s32
          %p1887 = scmp.lt.s32.totalorder %s1886, 31
          %s1888 = scalar_select %p1887, %s1886, 31
          %s1889 = smul.addr %s1888, 4
          %s1890 = smul.addr %s1889, 8
          %s1891 = scalar_lea.vmem %s13, %s1890
        $region100: #{call_fn.1} parent=87 // pred_fallthru
          _
      $region88: #{call_fn.1} parent=5 // pred_fallthru
        _
    $region6: #{call_fn.1} parent=1 // loop_footer
      %s30 = sadd.s32 1, %s26
    $region7: #{call_fn.1} parent=1 // loop_footer_branch
      %25 = sbr.rel target = $region3
    $region8: #{call_fn.1} parent=1 // loop_exit
      _
    %1892 = vsyncpa [#allocation4], 1
    %s1893 = scalar_lea.sflag [#allocation4], 1
    %1894 = vsyncpa %s1893, 1
    %1895 = vsyncpa [#allocation7], 1
    %1896 = vsyncpa [#allocation5], 1
    %s1897 = scalar_lea.sflag [#allocation5], 1
    %1898 = vsyncpa %s1897, 1

</llo_original>
